<compile_context>
chip_gen: v5e
topology: v5e:2x2
jax: 0.10.0
libtpu: 0.0.40
codegen_flags: <defaults>
</compile_context>

<pallas_src>
import jax
import jax.numpy as jnp
from jax.experimental import pallas as pl
from jax.experimental.pallas import tpu as pltpu


# ----------------------------------------------------------------------------
# Fused FK + motion-loss kernel
#   inputs  (per grid step b): xm,ym -> [D, T]; xt,yt -> [1, 3J]; jw -> [1, J]
#   output  (per grid step b): [4, T] rows = (pos, quat, gtr, grot) partials
# ----------------------------------------------------------------------------
def make_fk_loss_kernel(topology):
    J = len(topology)
    root_off = 4 * J

    def kernel(xm_ref, ym_ref, xt_ref, yt_ref, jw_ref, out_ref):
        T = xm_ref.shape[-1]

        def row(ref, r):
            return ref[r:r + 1, :]                    # [1, T] lane-dense row

        def scalar(ref, c):
            return ref[0:1, c:c + 1]                  # [1, 1] -> lane broadcast

        def quat(ref, j):
            return [row(ref, 4 * j + c) for c in range(4)]

        def quat_to_matrix(q):                        # pytorch3d convention
            r_, i_, j_, k_ = q
            qq = r_ * r_ + i_ * i_ + j_ * j_ + k_ * k_
            two_s = 2.0 / jnp.maximum(qq, 1e-12)      # eps-clamped
            return [
                1.0 - two_s * (j_ * j_ + k_ * k_), two_s * (i_ * j_ - k_ * r_), two_s * (i_ * k_ + j_ * r_),
                two_s * (i_ * j_ + k_ * r_), 1.0 - two_s * (i_ * i_ + k_ * k_), two_s * (j_ * k_ - i_ * r_),
                two_s * (i_ * k_ - j_ * r_), two_s * (j_ * k_ + i_ * r_), 1.0 - two_s * (i_ * i_ + j_ * j_),
            ]

        def normalize(q):                             # F.normalize(dim=-1, eps=1e-12)
            n = jnp.sqrt(q[0] * q[0] + q[1] * q[1] + q[2] * q[2] + q[3] * q[3])
            inv = 1.0 / jnp.maximum(n, 1e-12)
            return [c * inv for c in q]

        def abs_diff_sum(xs, ys):
            acc = jnp.abs(xs[0] - ys[0])
            for a, b in zip(xs[1:], ys[1:]):
                acc = acc + jnp.abs(a - b)
            return acc

        def mat3_mul(A, B):                           # (3x3)@(3x3), entries [1,T]
            return [A[3 * r + 0] * B[0 + c] + A[3 * r + 1] * B[3 + c] + A[3 * r + 2] * B[6 + c]
                    for r in range(3) for c in range(3)]

        def mat3_vec(A, v):                           # (3x3)@(3,), v entries [1,1]
            return [A[3 * r + 0] * v[0] + A[3 * r + 1] * v[1] + A[3 * r + 2] * v[2]
                    for r in range(3)]

        zero = jnp.zeros((1, T), jnp.float32)
        quat_acc, gtr_acc, grot_acc = zero, zero, zero

        Gx = [None] * J
        Gy = [None] * J
        Px = [None] * J
        Py = [None] * J

        for j, par in enumerate(topology):
            wj = scalar(jw_ref, j)

            qx, qy = quat(xm_ref, j), quat(ym_ref, j)
            quat_acc = quat_acc + wj * abs_diff_sum(normalize(qx), normalize(qy))

            Rx, Ry = quat_to_matrix(qx), quat_to_matrix(qy)
            if par == -1:
                Gx[j], Gy[j] = Rx, Ry
                Px[j] = [row(xm_ref, root_off + c) for c in range(3)]
                Py[j] = [row(ym_ref, root_off + c) for c in range(3)]
            else:
                Gx[j] = mat3_mul(Gx[par], Rx)
                Gy[j] = mat3_mul(Gy[par], Ry)
                tx = [scalar(xt_ref, 3 * j + c) for c in range(3)]
                ty = [scalar(yt_ref, 3 * j + c) for c in range(3)]
                Px[j] = [m + p for m, p in zip(mat3_vec(Gx[par], tx), Px[par])]
                Py[j] = [m + p for m, p in zip(mat3_vec(Gy[par], ty), Py[par])]

            # accumulate joint-loss contributions immediately (keeps liveness low)
            grot_acc = grot_acc + abs_diff_sum(Gx[j], Gy[j])
            gtr_acc = gtr_acc + wj * abs_diff_sum(Px[j], Py[j])

        pos_acc = abs_diff_sum([row(xm_ref, root_off + c) for c in range(3)],
                               [row(ym_ref, root_off + c) for c in range(3)])

        out_ref[0:1, :] = pos_acc
        out_ref[1:2, :] = quat_acc
        out_ref[2:3, :] = gtr_acc
        out_ref[3:4, :] = grot_acc

    return kernel


def fk_motion_losses(topology, X_m, Y_m, X_t, Y_t, joint_weights):
    """Fused FK(X_m,X_t), FK(Y_m,Y_t) and the four motion-loss means.

    Returns (loss_quat_rot, loss_root_pos, loss_global_tr, loss_global_rot)."""
    bs, T, D = X_m.shape
    J = len(topology)
    assert D == 4 * J + 3 and X_t.shape == (bs, J, 3)

    xm = jnp.transpose(X_m, (0, 2, 1)).astype(jnp.float32)       # [bs, D, T]
    ym = jnp.transpose(Y_m, (0, 2, 1)).astype(jnp.float32)
    xt = X_t.reshape(bs, 1, 3 * J).astype(jnp.float32)           # [bs, 1, 3J]
    yt = Y_t.reshape(bs, 1, 3 * J).astype(jnp.float32)
    jw = jnp.broadcast_to(
        jnp.asarray(joint_weights, jnp.float32).reshape(-1)[:, None], (J, 1)
    ).reshape(1, J)

    partial = pl.pallas_call(
        make_fk_loss_kernel(tuple(topology)),
        grid=(bs,),
        in_specs=[
            pl.BlockSpec((None, D, T), lambda b: (b, 0, 0)),
            pl.BlockSpec((None, D, T), lambda b: (b, 0, 0)),
            pl.BlockSpec((None, 1, 3 * J), lambda b: (b, 0, 0)),
            pl.BlockSpec((None, 1, 3 * J), lambda b: (b, 0, 0)),
            pl.BlockSpec((1, J), lambda b: (0, 0)),
        ],
        out_specs=pl.BlockSpec((None, 4, T), lambda b: (b, 0, 0)),
        out_shape=jax.ShapeDtypeStruct((bs, 4, T), jnp.float32),
        compiler_params=pltpu.CompilerParams(
            dimension_semantics=("parallel",)),
    )(xm, ym, xt, yt, jw)

    sums = jnp.sum(partial, axis=(0, 2))             # [pos, quat, gtr, grot]
    loss_pos = sums[0] / (bs * T * 3)
    loss_quat = sums[1] / (bs * T * J * 4)
    loss_gtr = sums[2] / (bs * T * J * 3)
    loss_grot = sums[3] / (bs * T * J * 9)
    return loss_quat, loss_pos, loss_gtr, loss_grot


# ----------------------------------------------------------------------------
# Generic tiled weighted-L1 'mean' reduction (markers / offsets / template)
# ----------------------------------------------------------------------------
def _wl1_kernel(a_ref, b_ref, w_ref, out_ref):
    @pl.when(pl.program_id(0) == 0)
    def _():
        out_ref[...] = jnp.zeros_like(out_ref)

    out_ref[...] += jnp.sum(w_ref[...] * jnp.abs(a_ref[...] - b_ref[...]))


def weighted_l1_mean(a, b, weights, *, max_block_bytes=2 * 1024 * 1024):
    """mean(weights * |a - b|); weights right-align-broadcast against `a`."""
    a = jnp.asarray(a, jnp.float32)
    b = jnp.asarray(b, jnp.float32)
    w = jnp.asarray(weights, jnp.float32)
    n_elem = a.size

    nd_w = w.ndim if w.ndim > 0 else 1
    nd_w = min(nd_w, a.ndim - 1)
    trail = a.shape[a.ndim - nd_w:]
    C = 1
    for d in trail:
        C *= d
    R = n_elem // C

    a2 = a.reshape(R, C)
    b2 = b.reshape(R, C)
    w2 = jnp.broadcast_to(w, trail).reshape(1, C)    # tiny weight pattern only

    max_rows = max(8, (max_block_bytes // (4 * C)) // 8 * 8)
    if R <= max_rows:
        tR, nR = R, 1
    else:
        tR = max_rows
        nR = -(-R // tR)
        pad = nR * tR - R
        a2 = jnp.pad(a2, ((0, pad), (0, 0)))         # zero rows -> zero contribution
        b2 = jnp.pad(b2, ((0, pad), (0, 0)))

    s = pl.pallas_call(
        _wl1_kernel,
        grid=(nR,),
        in_specs=[
            pl.BlockSpec((tR, C), lambda i: (i, 0)),
            pl.BlockSpec((tR, C), lambda i: (i, 0)),
            pl.BlockSpec((1, C), lambda i: (0, 0)),
        ],
        out_specs=pl.BlockSpec((1, 1), lambda i: (0, 0)),
        out_shape=jax.ShapeDtypeStruct((1, 1), jnp.float32),
        compiler_params=pltpu.CompilerParams(
            dimension_semantics=("arbitrary",)),     # scalar accumulator
    )(a2, b2, w2)
    return s[0, 0] / n_elem


# ----------------------------------------------------------------------------
# MS_loss
# ----------------------------------------------------------------------------
class MSLossPallas:
    def __init__(self, joint_topology, joint_weights, marker_weights,
                 offset_weights, alphas):
        self.a1, self.a2, self.a3, self.a4 = alphas
        self.topology = tuple(int(p) for p in joint_topology)
        self.joint_weights = jnp.asarray(joint_weights, jnp.float32)
        self.marker_weights = jnp.asarray(marker_weights, jnp.float32)
        self.offset_weights = jnp.asarray(offset_weights, jnp.float32)

    def __call__(self, Y, X):
        Y_c, Y_t, Y_m, Y_ = Y
        X_c, X_t, X_m, X_ = X

        # fused: FK(X), FK(Y), split_raw_motion quat/pos losses, joint losses
        loss_quat, loss_pos, loss_gtr, loss_grot = fk_motion_losses(
            self.topology, X_m, Y_m, X_t, Y_t, self.joint_weights)

        loss_marker = weighted_l1_mean(Y_, X_, self.marker_weights)
        loss_c = weighted_l1_mean(Y_c, X_c, self.offset_weights)
        loss_t = weighted_l1_mean(Y_t, X_t, self.joint_weights)

        loss_m = self.a4 * loss_quat + 5000.0 * loss_pos
        loss_joint = 5000.0 * loss_gtr + loss_grot
        loss = (self.a1 * loss_marker + self.a2 * loss_c + self.a3 * loss_t
                + self.a4 * loss_m + loss_joint)
        return loss, loss_c, loss_t, loss_m, loss_marker


if __name__ == "__main__":
    key = jax.random.PRNGKey(0)
    bs, T, J, M = 2, 8, 8, 6
    topology = [-1, 0, 1, 2, 0, 4, 0, 6]  # parents precede children

    keys = jax.random.split(key, 11)

    def rnd(k, shape):
        return jax.random.normal(k, shape, dtype=jnp.float32)

    # inputs: (X_c marker offsets, X_t skeleton template, X_m raw motion, X_ markers)
    X_c = rnd(keys[0], (bs, M, J, 3))
    Y_c = rnd(keys[1], (bs, M, J, 3))
    X_t = rnd(keys[2], (bs, J, 3))
    Y_t = rnd(keys[3], (bs, J, 3))
    X_m = rnd(keys[4], (bs, T, 4 * J + 3))
    Y_m = rnd(keys[5], (bs, T, 4 * J + 3))
    X_ = rnd(keys[6], (bs, T, M, 3))
    Y_ = rnd(keys[7], (bs, T, M, 3))

    joint_weights = jax.random.uniform(keys[8], (J, 1), dtype=jnp.float32) + 0.5
    marker_weights = jax.random.uniform(keys[9], (M, 1), dtype=jnp.float32) + 0.5
    offset_weights = jax.random.uniform(keys[10], (M, J, 1), dtype=jnp.float32) + 0.5
    alphas = (1.0, 10.0, 5.0, 2.0)

    ms_loss = MSLossPallas(topology, joint_weights, marker_weights,
                           offset_weights, alphas)
    out = ms_loss((Y_c, Y_t, Y_m, Y_), (X_c, X_t, X_m, X_))
    out = jax.block_until_ready(out)

    loss, loss_c, loss_t, loss_m, loss_marker = out
    assert all(bool(jnp.isfinite(v)) for v in out), "non-finite loss"
    print("KERNEL_OK")
</pallas_src>

<mosaic_0001>
module attributes {stable_mosaic.version = 11 : i64} {
  func.func @kernel(%arg0: i32, %arg1: memref<1x35x8xf32, #tpu.memory_space<vmem>>, %arg2: memref<1x35x8xf32, #tpu.memory_space<vmem>>, %arg3: memref<1x1x24xf32, #tpu.memory_space<vmem>>, %arg4: memref<1x1x24xf32, #tpu.memory_space<vmem>>, %arg5: memref<1x8xf32, #tpu.memory_space<vmem>>, %arg6: memref<1x4x8xf32, #tpu.memory_space<vmem>>) attributes {dimension_semantics = [#tpu.dimension_semantics<parallel>], iteration_bounds = array<i64: 2>, scalar_prefetch = 0 : i64, scratch_operands = 0 : i64, tpu.core_type = #tpu.core_type<tc>, window_params = [{transform_indices = @transform_0, window_bounds = array<i64: 1, 35, 8>}, {transform_indices = @transform_1, window_bounds = array<i64: 1, 35, 8>}, {transform_indices = @transform_2, window_bounds = array<i64: 1, 1, 24>}, {transform_indices = @transform_3, window_bounds = array<i64: 1, 1, 24>}, {pipeline_mode = #tpu.pipeline_mode<synchronous>, transform_indices = @transform_4, window_bounds = array<i64: 1, 8>}, {transform_indices = @transform_5, window_bounds = array<i64: 1, 4, 8>}]} {
    %cst = arith.constant 0.000000e+00 : f32
    %0 = vector.broadcast %cst : f32 to vector<1x8xf32>
    %c0 = arith.constant 0 : index
    %c0_0 = arith.constant 0 : index
    %1 = vector.load %arg5[%c0, %c0_0] : memref<1x8xf32, #tpu.memory_space<vmem>>, vector<1x1xf32>
    %c0_1 = arith.constant 0 : index
    %c0_2 = arith.constant 0 : index
    %c0_3 = arith.constant 0 : index
    %2 = vector.load %arg1[%c0_1, %c0_2, %c0_3] : memref<1x35x8xf32, #tpu.memory_space<vmem>>, vector<1x1x8xf32>
    %3 = vector.shape_cast %2 : vector<1x1x8xf32> to vector<1x8xf32>
    %c0_4 = arith.constant 0 : index
    %c1 = arith.constant 1 : index
    %c0_5 = arith.constant 0 : index
    %4 = vector.load %arg1[%c0_4, %c1, %c0_5] : memref<1x35x8xf32, #tpu.memory_space<vmem>>, vector<1x1x8xf32>
    %5 = vector.shape_cast %4 : vector<1x1x8xf32> to vector<1x8xf32>
    %c0_6 = arith.constant 0 : index
    %c2 = arith.constant 2 : index
    %c0_7 = arith.constant 0 : index
    %6 = vector.load %arg1[%c0_6, %c2, %c0_7] : memref<1x35x8xf32, #tpu.memory_space<vmem>>, vector<1x1x8xf32>
    %7 = vector.shape_cast %6 : vector<1x1x8xf32> to vector<1x8xf32>
    %c0_8 = arith.constant 0 : index
    %c3 = arith.constant 3 : index
    %c0_9 = arith.constant 0 : index
    %8 = vector.load %arg1[%c0_8, %c3, %c0_9] : memref<1x35x8xf32, #tpu.memory_space<vmem>>, vector<1x1x8xf32>
    %9 = vector.shape_cast %8 : vector<1x1x8xf32> to vector<1x8xf32>
    %c0_10 = arith.constant 0 : index
    %c0_11 = arith.constant 0 : index
    %c0_12 = arith.constant 0 : index
    %10 = vector.load %arg2[%c0_10, %c0_11, %c0_12] : memref<1x35x8xf32, #tpu.memory_space<vmem>>, vector<1x1x8xf32>
    %11 = vector.shape_cast %10 : vector<1x1x8xf32> to vector<1x8xf32>
    %c0_13 = arith.constant 0 : index
    %c1_14 = arith.constant 1 : index
    %c0_15 = arith.constant 0 : index
    %12 = vector.load %arg2[%c0_13, %c1_14, %c0_15] : memref<1x35x8xf32, #tpu.memory_space<vmem>>, vector<1x1x8xf32>
    %13 = vector.shape_cast %12 : vector<1x1x8xf32> to vector<1x8xf32>
    %c0_16 = arith.constant 0 : index
    %c2_17 = arith.constant 2 : index
    %c0_18 = arith.constant 0 : index
    %14 = vector.load %arg2[%c0_16, %c2_17, %c0_18] : memref<1x35x8xf32, #tpu.memory_space<vmem>>, vector<1x1x8xf32>
    %15 = vector.shape_cast %14 : vector<1x1x8xf32> to vector<1x8xf32>
    %c0_19 = arith.constant 0 : index
    %c3_20 = arith.constant 3 : index
    %c0_21 = arith.constant 0 : index
    %16 = vector.load %arg2[%c0_19, %c3_20, %c0_21] : memref<1x35x8xf32, #tpu.memory_space<vmem>>, vector<1x1x8xf32>
    %17 = vector.shape_cast %16 : vector<1x1x8xf32> to vector<1x8xf32>
    %18 = arith.mulf %3, %3 : vector<1x8xf32>
    %19 = arith.mulf %5, %5 : vector<1x8xf32>
    %20 = arith.addf %18, %19 : vector<1x8xf32>
    %21 = arith.mulf %7, %7 : vector<1x8xf32>
    %22 = arith.addf %20, %21 : vector<1x8xf32>
    %23 = arith.mulf %9, %9 : vector<1x8xf32>
    %24 = arith.addf %22, %23 : vector<1x8xf32>
    %25 = math.sqrt %24 : vector<1x8xf32>
    %cst_22 = arith.constant 9.99999996E-13 : f32
    %26 = vector.broadcast %cst_22 : f32 to vector<1x8xf32>
    %27 = arith.maximumf %25, %26 : vector<1x8xf32>
    %cst_23 = arith.constant 1.000000e+00 : f32
    %28 = vector.broadcast %cst_23 : f32 to vector<1x8xf32>
    %29 = arith.divf %28, %27 : vector<1x8xf32>
    %30 = arith.mulf %3, %29 : vector<1x8xf32>
    %31 = arith.mulf %5, %29 : vector<1x8xf32>
    %32 = arith.mulf %7, %29 : vector<1x8xf32>
    %33 = arith.mulf %9, %29 : vector<1x8xf32>
    %34 = arith.mulf %11, %11 : vector<1x8xf32>
    %35 = arith.mulf %13, %13 : vector<1x8xf32>
    %36 = arith.addf %34, %35 : vector<1x8xf32>
    %37 = arith.mulf %15, %15 : vector<1x8xf32>
    %38 = arith.addf %36, %37 : vector<1x8xf32>
    %39 = arith.mulf %17, %17 : vector<1x8xf32>
    %40 = arith.addf %38, %39 : vector<1x8xf32>
    %41 = math.sqrt %40 : vector<1x8xf32>
    %cst_24 = arith.constant 9.99999996E-13 : f32
    %42 = vector.broadcast %cst_24 : f32 to vector<1x8xf32>
    %43 = arith.maximumf %41, %42 : vector<1x8xf32>
    %cst_25 = arith.constant 1.000000e+00 : f32
    %44 = vector.broadcast %cst_25 : f32 to vector<1x8xf32>
    %45 = arith.divf %44, %43 : vector<1x8xf32>
    %46 = arith.mulf %11, %45 : vector<1x8xf32>
    %47 = arith.mulf %13, %45 : vector<1x8xf32>
    %48 = arith.mulf %15, %45 : vector<1x8xf32>
    %49 = arith.mulf %17, %45 : vector<1x8xf32>
    %50 = arith.subf %30, %46 : vector<1x8xf32>
    %51 = math.absf %50 : vector<1x8xf32>
    %52 = arith.subf %31, %47 : vector<1x8xf32>
    %53 = math.absf %52 : vector<1x8xf32>
    %54 = arith.addf %51, %53 : vector<1x8xf32>
    %55 = arith.subf %32, %48 : vector<1x8xf32>
    %56 = math.absf %55 : vector<1x8xf32>
    %57 = arith.addf %54, %56 : vector<1x8xf32>
    %58 = arith.subf %33, %49 : vector<1x8xf32>
    %59 = math.absf %58 : vector<1x8xf32>
    %60 = arith.addf %57, %59 : vector<1x8xf32>
    %61 = vector.broadcast %1 : vector<1x1xf32> to vector<1x8xf32>
    %62 = arith.mulf %61, %60 : vector<1x8xf32>
    %63 = arith.addf %0, %62 : vector<1x8xf32>
    %64 = arith.mulf %3, %3 : vector<1x8xf32>
    %65 = arith.mulf %5, %5 : vector<1x8xf32>
    %66 = arith.addf %64, %65 : vector<1x8xf32>
    %67 = arith.mulf %7, %7 : vector<1x8xf32>
    %68 = arith.addf %66, %67 : vector<1x8xf32>
    %69 = arith.mulf %9, %9 : vector<1x8xf32>
    %70 = arith.addf %68, %69 : vector<1x8xf32>
    %cst_26 = arith.constant 9.99999996E-13 : f32
    %71 = vector.broadcast %cst_26 : f32 to vector<1x8xf32>
    %72 = arith.maximumf %70, %71 : vector<1x8xf32>
    %cst_27 = arith.constant 2.000000e+00 : f32
    %73 = vector.broadcast %cst_27 : f32 to vector<1x8xf32>
    %74 = arith.divf %73, %72 : vector<1x8xf32>
    %75 = arith.mulf %7, %7 : vector<1x8xf32>
    %76 = arith.mulf %9, %9 : vector<1x8xf32>
    %77 = arith.addf %75, %76 : vector<1x8xf32>
    %78 = arith.mulf %74, %77 : vector<1x8xf32>
    %cst_28 = arith.constant 1.000000e+00 : f32
    %79 = vector.broadcast %cst_28 : f32 to vector<1x8xf32>
    %80 = arith.subf %79, %78 : vector<1x8xf32>
    %81 = arith.mulf %5, %7 : vector<1x8xf32>
    %82 = arith.mulf %9, %3 : vector<1x8xf32>
    %83 = arith.subf %81, %82 : vector<1x8xf32>
    %84 = arith.mulf %74, %83 : vector<1x8xf32>
    %85 = arith.mulf %5, %9 : vector<1x8xf32>
    %86 = arith.mulf %7, %3 : vector<1x8xf32>
    %87 = arith.addf %85, %86 : vector<1x8xf32>
    %88 = arith.mulf %74, %87 : vector<1x8xf32>
    %89 = arith.mulf %5, %7 : vector<1x8xf32>
    %90 = arith.mulf %9, %3 : vector<1x8xf32>
    %91 = arith.addf %89, %90 : vector<1x8xf32>
    %92 = arith.mulf %74, %91 : vector<1x8xf32>
    %93 = arith.mulf %5, %5 : vector<1x8xf32>
    %94 = arith.mulf %9, %9 : vector<1x8xf32>
    %95 = arith.addf %93, %94 : vector<1x8xf32>
    %96 = arith.mulf %74, %95 : vector<1x8xf32>
    %cst_29 = arith.constant 1.000000e+00 : f32
    %97 = vector.broadcast %cst_29 : f32 to vector<1x8xf32>
    %98 = arith.subf %97, %96 : vector<1x8xf32>
    %99 = arith.mulf %7, %9 : vector<1x8xf32>
    %100 = arith.mulf %5, %3 : vector<1x8xf32>
    %101 = arith.subf %99, %100 : vector<1x8xf32>
    %102 = arith.mulf %74, %101 : vector<1x8xf32>
    %103 = arith.mulf %5, %9 : vector<1x8xf32>
    %104 = arith.mulf %7, %3 : vector<1x8xf32>
    %105 = arith.subf %103, %104 : vector<1x8xf32>
    %106 = arith.mulf %74, %105 : vector<1x8xf32>
    %107 = arith.mulf %7, %9 : vector<1x8xf32>
    %108 = arith.mulf %5, %3 : vector<1x8xf32>
    %109 = arith.addf %107, %108 : vector<1x8xf32>
    %110 = arith.mulf %74, %109 : vector<1x8xf32>
    %111 = arith.mulf %5, %5 : vector<1x8xf32>
    %112 = arith.mulf %7, %7 : vector<1x8xf32>
    %113 = arith.addf %111, %112 : vector<1x8xf32>
    %114 = arith.mulf %74, %113 : vector<1x8xf32>
    %cst_30 = arith.constant 1.000000e+00 : f32
    %115 = vector.broadcast %cst_30 : f32 to vector<1x8xf32>
    %116 = arith.subf %115, %114 : vector<1x8xf32>
    %117 = arith.mulf %11, %11 : vector<1x8xf32>
    %118 = arith.mulf %13, %13 : vector<1x8xf32>
    %119 = arith.addf %117, %118 : vector<1x8xf32>
    %120 = arith.mulf %15, %15 : vector<1x8xf32>
    %121 = arith.addf %119, %120 : vector<1x8xf32>
    %122 = arith.mulf %17, %17 : vector<1x8xf32>
    %123 = arith.addf %121, %122 : vector<1x8xf32>
    %cst_31 = arith.constant 9.99999996E-13 : f32
    %124 = vector.broadcast %cst_31 : f32 to vector<1x8xf32>
    %125 = arith.maximumf %123, %124 : vector<1x8xf32>
    %cst_32 = arith.constant 2.000000e+00 : f32
    %126 = vector.broadcast %cst_32 : f32 to vector<1x8xf32>
    %127 = arith.divf %126, %125 : vector<1x8xf32>
    %128 = arith.mulf %15, %15 : vector<1x8xf32>
    %129 = arith.mulf %17, %17 : vector<1x8xf32>
    %130 = arith.addf %128, %129 : vector<1x8xf32>
    %131 = arith.mulf %127, %130 : vector<1x8xf32>
    %cst_33 = arith.constant 1.000000e+00 : f32
    %132 = vector.broadcast %cst_33 : f32 to vector<1x8xf32>
    %133 = arith.subf %132, %131 : vector<1x8xf32>
    %134 = arith.mulf %13, %15 : vector<1x8xf32>
    %135 = arith.mulf %17, %11 : vector<1x8xf32>
    %136 = arith.subf %134, %135 : vector<1x8xf32>
    %137 = arith.mulf %127, %136 : vector<1x8xf32>
    %138 = arith.mulf %13, %17 : vector<1x8xf32>
    %139 = arith.mulf %15, %11 : vector<1x8xf32>
    %140 = arith.addf %138, %139 : vector<1x8xf32>
    %141 = arith.mulf %127, %140 : vector<1x8xf32>
    %142 = arith.mulf %13, %15 : vector<1x8xf32>
    %143 = arith.mulf %17, %11 : vector<1x8xf32>
    %144 = arith.addf %142, %143 : vector<1x8xf32>
    %145 = arith.mulf %127, %144 : vector<1x8xf32>
    %146 = arith.mulf %13, %13 : vector<1x8xf32>
    %147 = arith.mulf %17, %17 : vector<1x8xf32>
    %148 = arith.addf %146, %147 : vector<1x8xf32>
    %149 = arith.mulf %127, %148 : vector<1x8xf32>
    %cst_34 = arith.constant 1.000000e+00 : f32
    %150 = vector.broadcast %cst_34 : f32 to vector<1x8xf32>
    %151 = arith.subf %150, %149 : vector<1x8xf32>
    %152 = arith.mulf %15, %17 : vector<1x8xf32>
    %153 = arith.mulf %13, %11 : vector<1x8xf32>
    %154 = arith.subf %152, %153 : vector<1x8xf32>
    %155 = arith.mulf %127, %154 : vector<1x8xf32>
    %156 = arith.mulf %13, %17 : vector<1x8xf32>
    %157 = arith.mulf %15, %11 : vector<1x8xf32>
    %158 = arith.subf %156, %157 : vector<1x8xf32>
    %159 = arith.mulf %127, %158 : vector<1x8xf32>
    %160 = arith.mulf %15, %17 : vector<1x8xf32>
    %161 = arith.mulf %13, %11 : vector<1x8xf32>
    %162 = arith.addf %160, %161 : vector<1x8xf32>
    %163 = arith.mulf %127, %162 : vector<1x8xf32>
    %164 = arith.mulf %13, %13 : vector<1x8xf32>
    %165 = arith.mulf %15, %15 : vector<1x8xf32>
    %166 = arith.addf %164, %165 : vector<1x8xf32>
    %167 = arith.mulf %127, %166 : vector<1x8xf32>
    %cst_35 = arith.constant 1.000000e+00 : f32
    %168 = vector.broadcast %cst_35 : f32 to vector<1x8xf32>
    %169 = arith.subf %168, %167 : vector<1x8xf32>
    %c0_36 = arith.constant 0 : index
    %c32 = arith.constant 32 : index
    %c0_37 = arith.constant 0 : index
    %170 = vector.load %arg1[%c0_36, %c32, %c0_37] : memref<1x35x8xf32, #tpu.memory_space<vmem>>, vector<1x1x8xf32>
    %171 = vector.shape_cast %170 : vector<1x1x8xf32> to vector<1x8xf32>
    %c0_38 = arith.constant 0 : index
    %c33 = arith.constant 33 : index
    %c0_39 = arith.constant 0 : index
    %172 = vector.load %arg1[%c0_38, %c33, %c0_39] : memref<1x35x8xf32, #tpu.memory_space<vmem>>, vector<1x1x8xf32>
    %173 = vector.shape_cast %172 : vector<1x1x8xf32> to vector<1x8xf32>
    %c0_40 = arith.constant 0 : index
    %c34 = arith.constant 34 : index
    %c0_41 = arith.constant 0 : index
    %174 = vector.load %arg1[%c0_40, %c34, %c0_41] : memref<1x35x8xf32, #tpu.memory_space<vmem>>, vector<1x1x8xf32>
    %175 = vector.shape_cast %174 : vector<1x1x8xf32> to vector<1x8xf32>
    %c0_42 = arith.constant 0 : index
    %c32_43 = arith.constant 32 : index
    %c0_44 = arith.constant 0 : index
    %176 = vector.load %arg2[%c0_42, %c32_43, %c0_44] : memref<1x35x8xf32, #tpu.memory_space<vmem>>, vector<1x1x8xf32>
    %177 = vector.shape_cast %176 : vector<1x1x8xf32> to vector<1x8xf32>
    %c0_45 = arith.constant 0 : index
    %c33_46 = arith.constant 33 : index
    %c0_47 = arith.constant 0 : index
    %178 = vector.load %arg2[%c0_45, %c33_46, %c0_47] : memref<1x35x8xf32, #tpu.memory_space<vmem>>, vector<1x1x8xf32>
    %179 = vector.shape_cast %178 : vector<1x1x8xf32> to vector<1x8xf32>
    %c0_48 = arith.constant 0 : index
    %c34_49 = arith.constant 34 : index
    %c0_50 = arith.constant 0 : index
    %180 = vector.load %arg2[%c0_48, %c34_49, %c0_50] : memref<1x35x8xf32, #tpu.memory_space<vmem>>, vector<1x1x8xf32>
    %181 = vector.shape_cast %180 : vector<1x1x8xf32> to vector<1x8xf32>
    %182 = arith.subf %80, %133 : vector<1x8xf32>
    %183 = math.absf %182 : vector<1x8xf32>
    %184 = arith.subf %84, %137 : vector<1x8xf32>
    %185 = math.absf %184 : vector<1x8xf32>
    %186 = arith.addf %183, %185 : vector<1x8xf32>
    %187 = arith.subf %88, %141 : vector<1x8xf32>
    %188 = math.absf %187 : vector<1x8xf32>
    %189 = arith.addf %186, %188 : vector<1x8xf32>
    %190 = arith.subf %92, %145 : vector<1x8xf32>
    %191 = math.absf %190 : vector<1x8xf32>
    %192 = arith.addf %189, %191 : vector<1x8xf32>
    %193 = arith.subf %98, %151 : vector<1x8xf32>
    %194 = math.absf %193 : vector<1x8xf32>
    %195 = arith.addf %192, %194 : vector<1x8xf32>
    %196 = arith.subf %102, %155 : vector<1x8xf32>
    %197 = math.absf %196 : vector<1x8xf32>
    %198 = arith.addf %195, %197 : vector<1x8xf32>
    %199 = arith.subf %106, %159 : vector<1x8xf32>
    %200 = math.absf %199 : vector<1x8xf32>
    %201 = arith.addf %198, %200 : vector<1x8xf32>
    %202 = arith.subf %110, %163 : vector<1x8xf32>
    %203 = math.absf %202 : vector<1x8xf32>
    %204 = arith.addf %201, %203 : vector<1x8xf32>
    %205 = arith.subf %116, %169 : vector<1x8xf32>
    %206 = math.absf %205 : vector<1x8xf32>
    %207 = arith.addf %204, %206 : vector<1x8xf32>
    %208 = arith.addf %0, %207 : vector<1x8xf32>
    %209 = arith.subf %171, %177 : vector<1x8xf32>
    %210 = math.absf %209 : vector<1x8xf32>
    %211 = arith.subf %173, %179 : vector<1x8xf32>
    %212 = math.absf %211 : vector<1x8xf32>
    %213 = arith.addf %210, %212 : vector<1x8xf32>
    %214 = arith.subf %175, %181 : vector<1x8xf32>
    %215 = math.absf %214 : vector<1x8xf32>
    %216 = arith.addf %213, %215 : vector<1x8xf32>
    %217 = vector.broadcast %1 : vector<1x1xf32> to vector<1x8xf32>
    %218 = arith.mulf %217, %216 : vector<1x8xf32>
    %219 = arith.addf %0, %218 : vector<1x8xf32>
    %c0_51 = arith.constant 0 : index
    %c1_52 = arith.constant 1 : index
    %220 = vector.load %arg5[%c0_51, %c1_52] : memref<1x8xf32, #tpu.memory_space<vmem>>, vector<1x1xf32>
    %c0_53 = arith.constant 0 : index
    %c4 = arith.constant 4 : index
    %c0_54 = arith.constant 0 : index
    %221 = vector.load %arg1[%c0_53, %c4, %c0_54] : memref<1x35x8xf32, #tpu.memory_space<vmem>>, vector<1x1x8xf32>
    %222 = vector.shape_cast %221 : vector<1x1x8xf32> to vector<1x8xf32>
    %c0_55 = arith.constant 0 : index
    %c5 = arith.constant 5 : index
    %c0_56 = arith.constant 0 : index
    %223 = vector.load %arg1[%c0_55, %c5, %c0_56] : memref<1x35x8xf32, #tpu.memory_space<vmem>>, vector<1x1x8xf32>
    %224 = vector.shape_cast %223 : vector<1x1x8xf32> to vector<1x8xf32>
    %c0_57 = arith.constant 0 : index
    %c6 = arith.constant 6 : index
    %c0_58 = arith.constant 0 : index
    %225 = vector.load %arg1[%c0_57, %c6, %c0_58] : memref<1x35x8xf32, #tpu.memory_space<vmem>>, vector<1x1x8xf32>
    %226 = vector.shape_cast %225 : vector<1x1x8xf32> to vector<1x8xf32>
    %c0_59 = arith.constant 0 : index
    %c7 = arith.constant 7 : index
    %c0_60 = arith.constant 0 : index
    %227 = vector.load %arg1[%c0_59, %c7, %c0_60] : memref<1x35x8xf32, #tpu.memory_space<vmem>>, vector<1x1x8xf32>
    %228 = vector.shape_cast %227 : vector<1x1x8xf32> to vector<1x8xf32>
    %c0_61 = arith.constant 0 : index
    %c4_62 = arith.constant 4 : index
    %c0_63 = arith.constant 0 : index
    %229 = vector.load %arg2[%c0_61, %c4_62, %c0_63] : memref<1x35x8xf32, #tpu.memory_space<vmem>>, vector<1x1x8xf32>
    %230 = vector.shape_cast %229 : vector<1x1x8xf32> to vector<1x8xf32>
    %c0_64 = arith.constant 0 : index
    %c5_65 = arith.constant 5 : index
    %c0_66 = arith.constant 0 : index
    %231 = vector.load %arg2[%c0_64, %c5_65, %c0_66] : memref<1x35x8xf32, #tpu.memory_space<vmem>>, vector<1x1x8xf32>
    %232 = vector.shape_cast %231 : vector<1x1x8xf32> to vector<1x8xf32>
    %c0_67 = arith.constant 0 : index
    %c6_68 = arith.constant 6 : index
    %c0_69 = arith.constant 0 : index
    %233 = vector.load %arg2[%c0_67, %c6_68, %c0_69] : memref<1x35x8xf32, #tpu.memory_space<vmem>>, vector<1x1x8xf32>
    %234 = vector.shape_cast %233 : vector<1x1x8xf32> to vector<1x8xf32>
    %c0_70 = arith.constant 0 : index
    %c7_71 = arith.constant 7 : index
    %c0_72 = arith.constant 0 : index
    %235 = vector.load %arg2[%c0_70, %c7_71, %c0_72] : memref<1x35x8xf32, #tpu.memory_space<vmem>>, vector<1x1x8xf32>
    %236 = vector.shape_cast %235 : vector<1x1x8xf32> to vector<1x8xf32>
    %237 = arith.mulf %222, %222 : vector<1x8xf32>
    %238 = arith.mulf %224, %224 : vector<1x8xf32>
    %239 = arith.addf %237, %238 : vector<1x8xf32>
    %240 = arith.mulf %226, %226 : vector<1x8xf32>
    %241 = arith.addf %239, %240 : vector<1x8xf32>
    %242 = arith.mulf %228, %228 : vector<1x8xf32>
    %243 = arith.addf %241, %242 : vector<1x8xf32>
    %244 = math.sqrt %243 : vector<1x8xf32>
    %cst_73 = arith.constant 9.99999996E-13 : f32
    %245 = vector.broadcast %cst_73 : f32 to vector<1x8xf32>
    %246 = arith.maximumf %244, %245 : vector<1x8xf32>
    %cst_74 = arith.constant 1.000000e+00 : f32
    %247 = vector.broadcast %cst_74 : f32 to vector<1x8xf32>
    %248 = arith.divf %247, %246 : vector<1x8xf32>
    %249 = arith.mulf %222, %248 : vector<1x8xf32>
    %250 = arith.mulf %224, %248 : vector<1x8xf32>
    %251 = arith.mulf %226, %248 : vector<1x8xf32>
    %252 = arith.mulf %228, %248 : vector<1x8xf32>
    %253 = arith.mulf %230, %230 : vector<1x8xf32>
    %254 = arith.mulf %232, %232 : vector<1x8xf32>
    %255 = arith.addf %253, %254 : vector<1x8xf32>
    %256 = arith.mulf %234, %234 : vector<1x8xf32>
    %257 = arith.addf %255, %256 : vector<1x8xf32>
    %258 = arith.mulf %236, %236 : vector<1x8xf32>
    %259 = arith.addf %257, %258 : vector<1x8xf32>
    %260 = math.sqrt %259 : vector<1x8xf32>
    %cst_75 = arith.constant 9.99999996E-13 : f32
    %261 = vector.broadcast %cst_75 : f32 to vector<1x8xf32>
    %262 = arith.maximumf %260, %261 : vector<1x8xf32>
    %cst_76 = arith.constant 1.000000e+00 : f32
    %263 = vector.broadcast %cst_76 : f32 to vector<1x8xf32>
    %264 = arith.divf %263, %262 : vector<1x8xf32>
    %265 = arith.mulf %230, %264 : vector<1x8xf32>
    %266 = arith.mulf %232, %264 : vector<1x8xf32>
    %267 = arith.mulf %234, %264 : vector<1x8xf32>
    %268 = arith.mulf %236, %264 : vector<1x8xf32>
    %269 = arith.subf %249, %265 : vector<1x8xf32>
    %270 = math.absf %269 : vector<1x8xf32>
    %271 = arith.subf %250, %266 : vector<1x8xf32>
    %272 = math.absf %271 : vector<1x8xf32>
    %273 = arith.addf %270, %272 : vector<1x8xf32>
    %274 = arith.subf %251, %267 : vector<1x8xf32>
    %275 = math.absf %274 : vector<1x8xf32>
    %276 = arith.addf %273, %275 : vector<1x8xf32>
    %277 = arith.subf %252, %268 : vector<1x8xf32>
    %278 = math.absf %277 : vector<1x8xf32>
    %279 = arith.addf %276, %278 : vector<1x8xf32>
    %280 = vector.broadcast %220 : vector<1x1xf32> to vector<1x8xf32>
    %281 = arith.mulf %280, %279 : vector<1x8xf32>
    %282 = arith.addf %63, %281 : vector<1x8xf32>
    %283 = arith.mulf %222, %222 : vector<1x8xf32>
    %284 = arith.mulf %224, %224 : vector<1x8xf32>
    %285 = arith.addf %283, %284 : vector<1x8xf32>
    %286 = arith.mulf %226, %226 : vector<1x8xf32>
    %287 = arith.addf %285, %286 : vector<1x8xf32>
    %288 = arith.mulf %228, %228 : vector<1x8xf32>
    %289 = arith.addf %287, %288 : vector<1x8xf32>
    %cst_77 = arith.constant 9.99999996E-13 : f32
    %290 = vector.broadcast %cst_77 : f32 to vector<1x8xf32>
    %291 = arith.maximumf %289, %290 : vector<1x8xf32>
    %cst_78 = arith.constant 2.000000e+00 : f32
    %292 = vector.broadcast %cst_78 : f32 to vector<1x8xf32>
    %293 = arith.divf %292, %291 : vector<1x8xf32>
    %294 = arith.mulf %226, %226 : vector<1x8xf32>
    %295 = arith.mulf %228, %228 : vector<1x8xf32>
    %296 = arith.addf %294, %295 : vector<1x8xf32>
    %297 = arith.mulf %293, %296 : vector<1x8xf32>
    %cst_79 = arith.constant 1.000000e+00 : f32
    %298 = vector.broadcast %cst_79 : f32 to vector<1x8xf32>
    %299 = arith.subf %298, %297 : vector<1x8xf32>
    %300 = arith.mulf %224, %226 : vector<1x8xf32>
    %301 = arith.mulf %228, %222 : vector<1x8xf32>
    %302 = arith.subf %300, %301 : vector<1x8xf32>
    %303 = arith.mulf %293, %302 : vector<1x8xf32>
    %304 = arith.mulf %224, %228 : vector<1x8xf32>
    %305 = arith.mulf %226, %222 : vector<1x8xf32>
    %306 = arith.addf %304, %305 : vector<1x8xf32>
    %307 = arith.mulf %293, %306 : vector<1x8xf32>
    %308 = arith.mulf %224, %226 : vector<1x8xf32>
    %309 = arith.mulf %228, %222 : vector<1x8xf32>
    %310 = arith.addf %308, %309 : vector<1x8xf32>
    %311 = arith.mulf %293, %310 : vector<1x8xf32>
    %312 = arith.mulf %224, %224 : vector<1x8xf32>
    %313 = arith.mulf %228, %228 : vector<1x8xf32>
    %314 = arith.addf %312, %313 : vector<1x8xf32>
    %315 = arith.mulf %293, %314 : vector<1x8xf32>
    %cst_80 = arith.constant 1.000000e+00 : f32
    %316 = vector.broadcast %cst_80 : f32 to vector<1x8xf32>
    %317 = arith.subf %316, %315 : vector<1x8xf32>
    %318 = arith.mulf %226, %228 : vector<1x8xf32>
    %319 = arith.mulf %224, %222 : vector<1x8xf32>
    %320 = arith.subf %318, %319 : vector<1x8xf32>
    %321 = arith.mulf %293, %320 : vector<1x8xf32>
    %322 = arith.mulf %224, %228 : vector<1x8xf32>
    %323 = arith.mulf %226, %222 : vector<1x8xf32>
    %324 = arith.subf %322, %323 : vector<1x8xf32>
    %325 = arith.mulf %293, %324 : vector<1x8xf32>
    %326 = arith.mulf %226, %228 : vector<1x8xf32>
    %327 = arith.mulf %224, %222 : vector<1x8xf32>
    %328 = arith.addf %326, %327 : vector<1x8xf32>
    %329 = arith.mulf %293, %328 : vector<1x8xf32>
    %330 = arith.mulf %224, %224 : vector<1x8xf32>
    %331 = arith.mulf %226, %226 : vector<1x8xf32>
    %332 = arith.addf %330, %331 : vector<1x8xf32>
    %333 = arith.mulf %293, %332 : vector<1x8xf32>
    %cst_81 = arith.constant 1.000000e+00 : f32
    %334 = vector.broadcast %cst_81 : f32 to vector<1x8xf32>
    %335 = arith.subf %334, %333 : vector<1x8xf32>
    %336 = arith.mulf %230, %230 : vector<1x8xf32>
    %337 = arith.mulf %232, %232 : vector<1x8xf32>
    %338 = arith.addf %336, %337 : vector<1x8xf32>
    %339 = arith.mulf %234, %234 : vector<1x8xf32>
    %340 = arith.addf %338, %339 : vector<1x8xf32>
    %341 = arith.mulf %236, %236 : vector<1x8xf32>
    %342 = arith.addf %340, %341 : vector<1x8xf32>
    %cst_82 = arith.constant 9.99999996E-13 : f32
    %343 = vector.broadcast %cst_82 : f32 to vector<1x8xf32>
    %344 = arith.maximumf %342, %343 : vector<1x8xf32>
    %cst_83 = arith.constant 2.000000e+00 : f32
    %345 = vector.broadcast %cst_83 : f32 to vector<1x8xf32>
    %346 = arith.divf %345, %344 : vector<1x8xf32>
    %347 = arith.mulf %234, %234 : vector<1x8xf32>
    %348 = arith.mulf %236, %236 : vector<1x8xf32>
    %349 = arith.addf %347, %348 : vector<1x8xf32>
    %350 = arith.mulf %346, %349 : vector<1x8xf32>
    %cst_84 = arith.constant 1.000000e+00 : f32
    %351 = vector.broadcast %cst_84 : f32 to vector<1x8xf32>
    %352 = arith.subf %351, %350 : vector<1x8xf32>
    %353 = arith.mulf %232, %234 : vector<1x8xf32>
    %354 = arith.mulf %236, %230 : vector<1x8xf32>
    %355 = arith.subf %353, %354 : vector<1x8xf32>
    %356 = arith.mulf %346, %355 : vector<1x8xf32>
    %357 = arith.mulf %232, %236 : vector<1x8xf32>
    %358 = arith.mulf %234, %230 : vector<1x8xf32>
    %359 = arith.addf %357, %358 : vector<1x8xf32>
    %360 = arith.mulf %346, %359 : vector<1x8xf32>
    %361 = arith.mulf %232, %234 : vector<1x8xf32>
    %362 = arith.mulf %236, %230 : vector<1x8xf32>
    %363 = arith.addf %361, %362 : vector<1x8xf32>
    %364 = arith.mulf %346, %363 : vector<1x8xf32>
    %365 = arith.mulf %232, %232 : vector<1x8xf32>
    %366 = arith.mulf %236, %236 : vector<1x8xf32>
    %367 = arith.addf %365, %366 : vector<1x8xf32>
    %368 = arith.mulf %346, %367 : vector<1x8xf32>
    %cst_85 = arith.constant 1.000000e+00 : f32
    %369 = vector.broadcast %cst_85 : f32 to vector<1x8xf32>
    %370 = arith.subf %369, %368 : vector<1x8xf32>
    %371 = arith.mulf %234, %236 : vector<1x8xf32>
    %372 = arith.mulf %232, %230 : vector<1x8xf32>
    %373 = arith.subf %371, %372 : vector<1x8xf32>
    %374 = arith.mulf %346, %373 : vector<1x8xf32>
    %375 = arith.mulf %232, %236 : vector<1x8xf32>
    %376 = arith.mulf %234, %230 : vector<1x8xf32>
    %377 = arith.subf %375, %376 : vector<1x8xf32>
    %378 = arith.mulf %346, %377 : vector<1x8xf32>
    %379 = arith.mulf %234, %236 : vector<1x8xf32>
    %380 = arith.mulf %232, %230 : vector<1x8xf32>
    %381 = arith.addf %379, %380 : vector<1x8xf32>
    %382 = arith.mulf %346, %381 : vector<1x8xf32>
    %383 = arith.mulf %232, %232 : vector<1x8xf32>
    %384 = arith.mulf %234, %234 : vector<1x8xf32>
    %385 = arith.addf %383, %384 : vector<1x8xf32>
    %386 = arith.mulf %346, %385 : vector<1x8xf32>
    %cst_86 = arith.constant 1.000000e+00 : f32
    %387 = vector.broadcast %cst_86 : f32 to vector<1x8xf32>
    %388 = arith.subf %387, %386 : vector<1x8xf32>
    %389 = arith.mulf %80, %299 : vector<1x8xf32>
    %390 = arith.mulf %84, %311 : vector<1x8xf32>
    %391 = arith.addf %389, %390 : vector<1x8xf32>
    %392 = arith.mulf %88, %325 : vector<1x8xf32>
    %393 = arith.addf %391, %392 : vector<1x8xf32>
    %394 = arith.mulf %80, %303 : vector<1x8xf32>
    %395 = arith.mulf %84, %317 : vector<1x8xf32>
    %396 = arith.addf %394, %395 : vector<1x8xf32>
    %397 = arith.mulf %88, %329 : vector<1x8xf32>
    %398 = arith.addf %396, %397 : vector<1x8xf32>
    %399 = arith.mulf %80, %307 : vector<1x8xf32>
    %400 = arith.mulf %84, %321 : vector<1x8xf32>
    %401 = arith.addf %399, %400 : vector<1x8xf32>
    %402 = arith.mulf %88, %335 : vector<1x8xf32>
    %403 = arith.addf %401, %402 : vector<1x8xf32>
    %404 = arith.mulf %92, %299 : vector<1x8xf32>
    %405 = arith.mulf %98, %311 : vector<1x8xf32>
    %406 = arith.addf %404, %405 : vector<1x8xf32>
    %407 = arith.mulf %102, %325 : vector<1x8xf32>
    %408 = arith.addf %406, %407 : vector<1x8xf32>
    %409 = arith.mulf %92, %303 : vector<1x8xf32>
    %410 = arith.mulf %98, %317 : vector<1x8xf32>
    %411 = arith.addf %409, %410 : vector<1x8xf32>
    %412 = arith.mulf %102, %329 : vector<1x8xf32>
    %413 = arith.addf %411, %412 : vector<1x8xf32>
    %414 = arith.mulf %92, %307 : vector<1x8xf32>
    %415 = arith.mulf %98, %321 : vector<1x8xf32>
    %416 = arith.addf %414, %415 : vector<1x8xf32>
    %417 = arith.mulf %102, %335 : vector<1x8xf32>
    %418 = arith.addf %416, %417 : vector<1x8xf32>
    %419 = arith.mulf %106, %299 : vector<1x8xf32>
    %420 = arith.mulf %110, %311 : vector<1x8xf32>
    %421 = arith.addf %419, %420 : vector<1x8xf32>
    %422 = arith.mulf %116, %325 : vector<1x8xf32>
    %423 = arith.addf %421, %422 : vector<1x8xf32>
    %424 = arith.mulf %106, %303 : vector<1x8xf32>
    %425 = arith.mulf %110, %317 : vector<1x8xf32>
    %426 = arith.addf %424, %425 : vector<1x8xf32>
    %427 = arith.mulf %116, %329 : vector<1x8xf32>
    %428 = arith.addf %426, %427 : vector<1x8xf32>
    %429 = arith.mulf %106, %307 : vector<1x8xf32>
    %430 = arith.mulf %110, %321 : vector<1x8xf32>
    %431 = arith.addf %429, %430 : vector<1x8xf32>
    %432 = arith.mulf %116, %335 : vector<1x8xf32>
    %433 = arith.addf %431, %432 : vector<1x8xf32>
    %434 = arith.mulf %133, %352 : vector<1x8xf32>
    %435 = arith.mulf %137, %364 : vector<1x8xf32>
    %436 = arith.addf %434, %435 : vector<1x8xf32>
    %437 = arith.mulf %141, %378 : vector<1x8xf32>
    %438 = arith.addf %436, %437 : vector<1x8xf32>
    %439 = arith.mulf %133, %356 : vector<1x8xf32>
    %440 = arith.mulf %137, %370 : vector<1x8xf32>
    %441 = arith.addf %439, %440 : vector<1x8xf32>
    %442 = arith.mulf %141, %382 : vector<1x8xf32>
    %443 = arith.addf %441, %442 : vector<1x8xf32>
    %444 = arith.mulf %133, %360 : vector<1x8xf32>
    %445 = arith.mulf %137, %374 : vector<1x8xf32>
    %446 = arith.addf %444, %445 : vector<1x8xf32>
    %447 = arith.mulf %141, %388 : vector<1x8xf32>
    %448 = arith.addf %446, %447 : vector<1x8xf32>
    %449 = arith.mulf %145, %352 : vector<1x8xf32>
    %450 = arith.mulf %151, %364 : vector<1x8xf32>
    %451 = arith.addf %449, %450 : vector<1x8xf32>
    %452 = arith.mulf %155, %378 : vector<1x8xf32>
    %453 = arith.addf %451, %452 : vector<1x8xf32>
    %454 = arith.mulf %145, %356 : vector<1x8xf32>
    %455 = arith.mulf %151, %370 : vector<1x8xf32>
    %456 = arith.addf %454, %455 : vector<1x8xf32>
    %457 = arith.mulf %155, %382 : vector<1x8xf32>
    %458 = arith.addf %456, %457 : vector<1x8xf32>
    %459 = arith.mulf %145, %360 : vector<1x8xf32>
    %460 = arith.mulf %151, %374 : vector<1x8xf32>
    %461 = arith.addf %459, %460 : vector<1x8xf32>
    %462 = arith.mulf %155, %388 : vector<1x8xf32>
    %463 = arith.addf %461, %462 : vector<1x8xf32>
    %464 = arith.mulf %159, %352 : vector<1x8xf32>
    %465 = arith.mulf %163, %364 : vector<1x8xf32>
    %466 = arith.addf %464, %465 : vector<1x8xf32>
    %467 = arith.mulf %169, %378 : vector<1x8xf32>
    %468 = arith.addf %466, %467 : vector<1x8xf32>
    %469 = arith.mulf %159, %356 : vector<1x8xf32>
    %470 = arith.mulf %163, %370 : vector<1x8xf32>
    %471 = arith.addf %469, %470 : vector<1x8xf32>
    %472 = arith.mulf %169, %382 : vector<1x8xf32>
    %473 = arith.addf %471, %472 : vector<1x8xf32>
    %474 = arith.mulf %159, %360 : vector<1x8xf32>
    %475 = arith.mulf %163, %374 : vector<1x8xf32>
    %476 = arith.addf %474, %475 : vector<1x8xf32>
    %477 = arith.mulf %169, %388 : vector<1x8xf32>
    %478 = arith.addf %476, %477 : vector<1x8xf32>
    %c0_87 = arith.constant 0 : index
    %c0_88 = arith.constant 0 : index
    %c3_89 = arith.constant 3 : index
    %479 = vector.load %arg3[%c0_87, %c0_88, %c3_89] : memref<1x1x24xf32, #tpu.memory_space<vmem>>, vector<1x1x1xf32>
    %480 = vector.shape_cast %479 : vector<1x1x1xf32> to vector<1x1xf32>
    %c0_90 = arith.constant 0 : index
    %c0_91 = arith.constant 0 : index
    %c4_92 = arith.constant 4 : index
    %481 = vector.load %arg3[%c0_90, %c0_91, %c4_92] : memref<1x1x24xf32, #tpu.memory_space<vmem>>, vector<1x1x1xf32>
    %482 = vector.shape_cast %481 : vector<1x1x1xf32> to vector<1x1xf32>
    %c0_93 = arith.constant 0 : index
    %c0_94 = arith.constant 0 : index
    %c5_95 = arith.constant 5 : index
    %483 = vector.load %arg3[%c0_93, %c0_94, %c5_95] : memref<1x1x24xf32, #tpu.memory_space<vmem>>, vector<1x1x1xf32>
    %484 = vector.shape_cast %483 : vector<1x1x1xf32> to vector<1x1xf32>
    %c0_96 = arith.constant 0 : index
    %c0_97 = arith.constant 0 : index
    %c3_98 = arith.constant 3 : index
    %485 = vector.load %arg4[%c0_96, %c0_97, %c3_98] : memref<1x1x24xf32, #tpu.memory_space<vmem>>, vector<1x1x1xf32>
    %486 = vector.shape_cast %485 : vector<1x1x1xf32> to vector<1x1xf32>
    %c0_99 = arith.constant 0 : index
    %c0_100 = arith.constant 0 : index
    %c4_101 = arith.constant 4 : index
    %487 = vector.load %arg4[%c0_99, %c0_100, %c4_101] : memref<1x1x24xf32, #tpu.memory_space<vmem>>, vector<1x1x1xf32>
    %488 = vector.shape_cast %487 : vector<1x1x1xf32> to vector<1x1xf32>
    %c0_102 = arith.constant 0 : index
    %c0_103 = arith.constant 0 : index
    %c5_104 = arith.constant 5 : index
    %489 = vector.load %arg4[%c0_102, %c0_103, %c5_104] : memref<1x1x24xf32, #tpu.memory_space<vmem>>, vector<1x1x1xf32>
    %490 = vector.shape_cast %489 : vector<1x1x1xf32> to vector<1x1xf32>
    %491 = vector.broadcast %480 : vector<1x1xf32> to vector<1x8xf32>
    %492 = arith.mulf %80, %491 : vector<1x8xf32>
    %493 = vector.broadcast %482 : vector<1x1xf32> to vector<1x8xf32>
    %494 = arith.mulf %84, %493 : vector<1x8xf32>
    %495 = arith.addf %492, %494 : vector<1x8xf32>
    %496 = vector.broadcast %484 : vector<1x1xf32> to vector<1x8xf32>
    %497 = arith.mulf %88, %496 : vector<1x8xf32>
    %498 = arith.addf %495, %497 : vector<1x8xf32>
    %499 = vector.broadcast %480 : vector<1x1xf32> to vector<1x8xf32>
    %500 = arith.mulf %92, %499 : vector<1x8xf32>
    %501 = vector.broadcast %482 : vector<1x1xf32> to vector<1x8xf32>
    %502 = arith.mulf %98, %501 : vector<1x8xf32>
    %503 = arith.addf %500, %502 : vector<1x8xf32>
    %504 = vector.broadcast %484 : vector<1x1xf32> to vector<1x8xf32>
    %505 = arith.mulf %102, %504 : vector<1x8xf32>
    %506 = arith.addf %503, %505 : vector<1x8xf32>
    %507 = vector.broadcast %480 : vector<1x1xf32> to vector<1x8xf32>
    %508 = arith.mulf %106, %507 : vector<1x8xf32>
    %509 = vector.broadcast %482 : vector<1x1xf32> to vector<1x8xf32>
    %510 = arith.mulf %110, %509 : vector<1x8xf32>
    %511 = arith.addf %508, %510 : vector<1x8xf32>
    %512 = vector.broadcast %484 : vector<1x1xf32> to vector<1x8xf32>
    %513 = arith.mulf %116, %512 : vector<1x8xf32>
    %514 = arith.addf %511, %513 : vector<1x8xf32>
    %515 = arith.addf %498, %171 : vector<1x8xf32>
    %516 = arith.addf %506, %173 : vector<1x8xf32>
    %517 = arith.addf %514, %175 : vector<1x8xf32>
    %518 = vector.broadcast %486 : vector<1x1xf32> to vector<1x8xf32>
    %519 = arith.mulf %133, %518 : vector<1x8xf32>
    %520 = vector.broadcast %488 : vector<1x1xf32> to vector<1x8xf32>
    %521 = arith.mulf %137, %520 : vector<1x8xf32>
    %522 = arith.addf %519, %521 : vector<1x8xf32>
    %523 = vector.broadcast %490 : vector<1x1xf32> to vector<1x8xf32>
    %524 = arith.mulf %141, %523 : vector<1x8xf32>
    %525 = arith.addf %522, %524 : vector<1x8xf32>
    %526 = vector.broadcast %486 : vector<1x1xf32> to vector<1x8xf32>
    %527 = arith.mulf %145, %526 : vector<1x8xf32>
    %528 = vector.broadcast %488 : vector<1x1xf32> to vector<1x8xf32>
    %529 = arith.mulf %151, %528 : vector<1x8xf32>
    %530 = arith.addf %527, %529 : vector<1x8xf32>
    %531 = vector.broadcast %490 : vector<1x1xf32> to vector<1x8xf32>
    %532 = arith.mulf %155, %531 : vector<1x8xf32>
    %533 = arith.addf %530, %532 : vector<1x8xf32>
    %534 = vector.broadcast %486 : vector<1x1xf32> to vector<1x8xf32>
    %535 = arith.mulf %159, %534 : vector<1x8xf32>
    %536 = vector.broadcast %488 : vector<1x1xf32> to vector<1x8xf32>
    %537 = arith.mulf %163, %536 : vector<1x8xf32>
    %538 = arith.addf %535, %537 : vector<1x8xf32>
    %539 = vector.broadcast %490 : vector<1x1xf32> to vector<1x8xf32>
    %540 = arith.mulf %169, %539 : vector<1x8xf32>
    %541 = arith.addf %538, %540 : vector<1x8xf32>
    %542 = arith.addf %525, %177 : vector<1x8xf32>
    %543 = arith.addf %533, %179 : vector<1x8xf32>
    %544 = arith.addf %541, %181 : vector<1x8xf32>
    %545 = arith.subf %393, %438 : vector<1x8xf32>
    %546 = math.absf %545 : vector<1x8xf32>
    %547 = arith.subf %398, %443 : vector<1x8xf32>
    %548 = math.absf %547 : vector<1x8xf32>
    %549 = arith.addf %546, %548 : vector<1x8xf32>
    %550 = arith.subf %403, %448 : vector<1x8xf32>
    %551 = math.absf %550 : vector<1x8xf32>
    %552 = arith.addf %549, %551 : vector<1x8xf32>
    %553 = arith.subf %408, %453 : vector<1x8xf32>
    %554 = math.absf %553 : vector<1x8xf32>
    %555 = arith.addf %552, %554 : vector<1x8xf32>
    %556 = arith.subf %413, %458 : vector<1x8xf32>
    %557 = math.absf %556 : vector<1x8xf32>
    %558 = arith.addf %555, %557 : vector<1x8xf32>
    %559 = arith.subf %418, %463 : vector<1x8xf32>
    %560 = math.absf %559 : vector<1x8xf32>
    %561 = arith.addf %558, %560 : vector<1x8xf32>
    %562 = arith.subf %423, %468 : vector<1x8xf32>
    %563 = math.absf %562 : vector<1x8xf32>
    %564 = arith.addf %561, %563 : vector<1x8xf32>
    %565 = arith.subf %428, %473 : vector<1x8xf32>
    %566 = math.absf %565 : vector<1x8xf32>
    %567 = arith.addf %564, %566 : vector<1x8xf32>
    %568 = arith.subf %433, %478 : vector<1x8xf32>
    %569 = math.absf %568 : vector<1x8xf32>
    %570 = arith.addf %567, %569 : vector<1x8xf32>
    %571 = arith.addf %208, %570 : vector<1x8xf32>
    %572 = arith.subf %515, %542 : vector<1x8xf32>
    %573 = math.absf %572 : vector<1x8xf32>
    %574 = arith.subf %516, %543 : vector<1x8xf32>
    %575 = math.absf %574 : vector<1x8xf32>
    %576 = arith.addf %573, %575 : vector<1x8xf32>
    %577 = arith.subf %517, %544 : vector<1x8xf32>
    %578 = math.absf %577 : vector<1x8xf32>
    %579 = arith.addf %576, %578 : vector<1x8xf32>
    %580 = vector.broadcast %220 : vector<1x1xf32> to vector<1x8xf32>
    %581 = arith.mulf %580, %579 : vector<1x8xf32>
    %582 = arith.addf %219, %581 : vector<1x8xf32>
    %c0_105 = arith.constant 0 : index
    %c2_106 = arith.constant 2 : index
    %583 = vector.load %arg5[%c0_105, %c2_106] : memref<1x8xf32, #tpu.memory_space<vmem>>, vector<1x1xf32>
    %c0_107 = arith.constant 0 : index
    %c8 = arith.constant 8 : index
    %c0_108 = arith.constant 0 : index
    %584 = vector.load %arg1[%c0_107, %c8, %c0_108] : memref<1x35x8xf32, #tpu.memory_space<vmem>>, vector<1x1x8xf32>
    %585 = vector.shape_cast %584 : vector<1x1x8xf32> to vector<1x8xf32>
    %c0_109 = arith.constant 0 : index
    %c9 = arith.constant 9 : index
    %c0_110 = arith.constant 0 : index
    %586 = vector.load %arg1[%c0_109, %c9, %c0_110] : memref<1x35x8xf32, #tpu.memory_space<vmem>>, vector<1x1x8xf32>
    %587 = vector.shape_cast %586 : vector<1x1x8xf32> to vector<1x8xf32>
    %c0_111 = arith.constant 0 : index
    %c10 = arith.constant 10 : index
    %c0_112 = arith.constant 0 : index
    %588 = vector.load %arg1[%c0_111, %c10, %c0_112] : memref<1x35x8xf32, #tpu.memory_space<vmem>>, vector<1x1x8xf32>
    %589 = vector.shape_cast %588 : vector<1x1x8xf32> to vector<1x8xf32>
    %c0_113 = arith.constant 0 : index
    %c11 = arith.constant 11 : index
    %c0_114 = arith.constant 0 : index
    %590 = vector.load %arg1[%c0_113, %c11, %c0_114] : memref<1x35x8xf32, #tpu.memory_space<vmem>>, vector<1x1x8xf32>
    %591 = vector.shape_cast %590 : vector<1x1x8xf32> to vector<1x8xf32>
    %c0_115 = arith.constant 0 : index
    %c8_116 = arith.constant 8 : index
    %c0_117 = arith.constant 0 : index
    %592 = vector.load %arg2[%c0_115, %c8_116, %c0_117] : memref<1x35x8xf32, #tpu.memory_space<vmem>>, vector<1x1x8xf32>
    %593 = vector.shape_cast %592 : vector<1x1x8xf32> to vector<1x8xf32>
    %c0_118 = arith.constant 0 : index
    %c9_119 = arith.constant 9 : index
    %c0_120 = arith.constant 0 : index
    %594 = vector.load %arg2[%c0_118, %c9_119, %c0_120] : memref<1x35x8xf32, #tpu.memory_space<vmem>>, vector<1x1x8xf32>
    %595 = vector.shape_cast %594 : vector<1x1x8xf32> to vector<1x8xf32>
    %c0_121 = arith.constant 0 : index
    %c10_122 = arith.constant 10 : index
    %c0_123 = arith.constant 0 : index
    %596 = vector.load %arg2[%c0_121, %c10_122, %c0_123] : memref<1x35x8xf32, #tpu.memory_space<vmem>>, vector<1x1x8xf32>
    %597 = vector.shape_cast %596 : vector<1x1x8xf32> to vector<1x8xf32>
    %c0_124 = arith.constant 0 : index
    %c11_125 = arith.constant 11 : index
    %c0_126 = arith.constant 0 : index
    %598 = vector.load %arg2[%c0_124, %c11_125, %c0_126] : memref<1x35x8xf32, #tpu.memory_space<vmem>>, vector<1x1x8xf32>
    %599 = vector.shape_cast %598 : vector<1x1x8xf32> to vector<1x8xf32>
    %600 = arith.mulf %585, %585 : vector<1x8xf32>
    %601 = arith.mulf %587, %587 : vector<1x8xf32>
    %602 = arith.addf %600, %601 : vector<1x8xf32>
    %603 = arith.mulf %589, %589 : vector<1x8xf32>
    %604 = arith.addf %602, %603 : vector<1x8xf32>
    %605 = arith.mulf %591, %591 : vector<1x8xf32>
    %606 = arith.addf %604, %605 : vector<1x8xf32>
    %607 = math.sqrt %606 : vector<1x8xf32>
    %cst_127 = arith.constant 9.99999996E-13 : f32
    %608 = vector.broadcast %cst_127 : f32 to vector<1x8xf32>
    %609 = arith.maximumf %607, %608 : vector<1x8xf32>
    %cst_128 = arith.constant 1.000000e+00 : f32
    %610 = vector.broadcast %cst_128 : f32 to vector<1x8xf32>
    %611 = arith.divf %610, %609 : vector<1x8xf32>
    %612 = arith.mulf %585, %611 : vector<1x8xf32>
    %613 = arith.mulf %587, %611 : vector<1x8xf32>
    %614 = arith.mulf %589, %611 : vector<1x8xf32>
    %615 = arith.mulf %591, %611 : vector<1x8xf32>
    %616 = arith.mulf %593, %593 : vector<1x8xf32>
    %617 = arith.mulf %595, %595 : vector<1x8xf32>
    %618 = arith.addf %616, %617 : vector<1x8xf32>
    %619 = arith.mulf %597, %597 : vector<1x8xf32>
    %620 = arith.addf %618, %619 : vector<1x8xf32>
    %621 = arith.mulf %599, %599 : vector<1x8xf32>
    %622 = arith.addf %620, %621 : vector<1x8xf32>
    %623 = math.sqrt %622 : vector<1x8xf32>
    %cst_129 = arith.constant 9.99999996E-13 : f32
    %624 = vector.broadcast %cst_129 : f32 to vector<1x8xf32>
    %625 = arith.maximumf %623, %624 : vector<1x8xf32>
    %cst_130 = arith.constant 1.000000e+00 : f32
    %626 = vector.broadcast %cst_130 : f32 to vector<1x8xf32>
    %627 = arith.divf %626, %625 : vector<1x8xf32>
    %628 = arith.mulf %593, %627 : vector<1x8xf32>
    %629 = arith.mulf %595, %627 : vector<1x8xf32>
    %630 = arith.mulf %597, %627 : vector<1x8xf32>
    %631 = arith.mulf %599, %627 : vector<1x8xf32>
    %632 = arith.subf %612, %628 : vector<1x8xf32>
    %633 = math.absf %632 : vector<1x8xf32>
    %634 = arith.subf %613, %629 : vector<1x8xf32>
    %635 = math.absf %634 : vector<1x8xf32>
    %636 = arith.addf %633, %635 : vector<1x8xf32>
    %637 = arith.subf %614, %630 : vector<1x8xf32>
    %638 = math.absf %637 : vector<1x8xf32>
    %639 = arith.addf %636, %638 : vector<1x8xf32>
    %640 = arith.subf %615, %631 : vector<1x8xf32>
    %641 = math.absf %640 : vector<1x8xf32>
    %642 = arith.addf %639, %641 : vector<1x8xf32>
    %643 = vector.broadcast %583 : vector<1x1xf32> to vector<1x8xf32>
    %644 = arith.mulf %643, %642 : vector<1x8xf32>
    %645 = arith.addf %282, %644 : vector<1x8xf32>
    %646 = arith.mulf %585, %585 : vector<1x8xf32>
    %647 = arith.mulf %587, %587 : vector<1x8xf32>
    %648 = arith.addf %646, %647 : vector<1x8xf32>
    %649 = arith.mulf %589, %589 : vector<1x8xf32>
    %650 = arith.addf %648, %649 : vector<1x8xf32>
    %651 = arith.mulf %591, %591 : vector<1x8xf32>
    %652 = arith.addf %650, %651 : vector<1x8xf32>
    %cst_131 = arith.constant 9.99999996E-13 : f32
    %653 = vector.broadcast %cst_131 : f32 to vector<1x8xf32>
    %654 = arith.maximumf %652, %653 : vector<1x8xf32>
    %cst_132 = arith.constant 2.000000e+00 : f32
    %655 = vector.broadcast %cst_132 : f32 to vector<1x8xf32>
    %656 = arith.divf %655, %654 : vector<1x8xf32>
    %657 = arith.mulf %589, %589 : vector<1x8xf32>
    %658 = arith.mulf %591, %591 : vector<1x8xf32>
    %659 = arith.addf %657, %658 : vector<1x8xf32>
    %660 = arith.mulf %656, %659 : vector<1x8xf32>
    %cst_133 = arith.constant 1.000000e+00 : f32
    %661 = vector.broadcast %cst_133 : f32 to vector<1x8xf32>
    %662 = arith.subf %661, %660 : vector<1x8xf32>
    %663 = arith.mulf %587, %589 : vector<1x8xf32>
    %664 = arith.mulf %591, %585 : vector<1x8xf32>
    %665 = arith.subf %663, %664 : vector<1x8xf32>
    %666 = arith.mulf %656, %665 : vector<1x8xf32>
    %667 = arith.mulf %587, %591 : vector<1x8xf32>
    %668 = arith.mulf %589, %585 : vector<1x8xf32>
    %669 = arith.addf %667, %668 : vector<1x8xf32>
    %670 = arith.mulf %656, %669 : vector<1x8xf32>
    %671 = arith.mulf %587, %589 : vector<1x8xf32>
    %672 = arith.mulf %591, %585 : vector<1x8xf32>
    %673 = arith.addf %671, %672 : vector<1x8xf32>
    %674 = arith.mulf %656, %673 : vector<1x8xf32>
    %675 = arith.mulf %587, %587 : vector<1x8xf32>
    %676 = arith.mulf %591, %591 : vector<1x8xf32>
    %677 = arith.addf %675, %676 : vector<1x8xf32>
    %678 = arith.mulf %656, %677 : vector<1x8xf32>
    %cst_134 = arith.constant 1.000000e+00 : f32
    %679 = vector.broadcast %cst_134 : f32 to vector<1x8xf32>
    %680 = arith.subf %679, %678 : vector<1x8xf32>
    %681 = arith.mulf %589, %591 : vector<1x8xf32>
    %682 = arith.mulf %587, %585 : vector<1x8xf32>
    %683 = arith.subf %681, %682 : vector<1x8xf32>
    %684 = arith.mulf %656, %683 : vector<1x8xf32>
    %685 = arith.mulf %587, %591 : vector<1x8xf32>
    %686 = arith.mulf %589, %585 : vector<1x8xf32>
    %687 = arith.subf %685, %686 : vector<1x8xf32>
    %688 = arith.mulf %656, %687 : vector<1x8xf32>
    %689 = arith.mulf %589, %591 : vector<1x8xf32>
    %690 = arith.mulf %587, %585 : vector<1x8xf32>
    %691 = arith.addf %689, %690 : vector<1x8xf32>
    %692 = arith.mulf %656, %691 : vector<1x8xf32>
    %693 = arith.mulf %587, %587 : vector<1x8xf32>
    %694 = arith.mulf %589, %589 : vector<1x8xf32>
    %695 = arith.addf %693, %694 : vector<1x8xf32>
    %696 = arith.mulf %656, %695 : vector<1x8xf32>
    %cst_135 = arith.constant 1.000000e+00 : f32
    %697 = vector.broadcast %cst_135 : f32 to vector<1x8xf32>
    %698 = arith.subf %697, %696 : vector<1x8xf32>
    %699 = arith.mulf %593, %593 : vector<1x8xf32>
    %700 = arith.mulf %595, %595 : vector<1x8xf32>
    %701 = arith.addf %699, %700 : vector<1x8xf32>
    %702 = arith.mulf %597, %597 : vector<1x8xf32>
    %703 = arith.addf %701, %702 : vector<1x8xf32>
    %704 = arith.mulf %599, %599 : vector<1x8xf32>
    %705 = arith.addf %703, %704 : vector<1x8xf32>
    %cst_136 = arith.constant 9.99999996E-13 : f32
    %706 = vector.broadcast %cst_136 : f32 to vector<1x8xf32>
    %707 = arith.maximumf %705, %706 : vector<1x8xf32>
    %cst_137 = arith.constant 2.000000e+00 : f32
    %708 = vector.broadcast %cst_137 : f32 to vector<1x8xf32>
    %709 = arith.divf %708, %707 : vector<1x8xf32>
    %710 = arith.mulf %597, %597 : vector<1x8xf32>
    %711 = arith.mulf %599, %599 : vector<1x8xf32>
    %712 = arith.addf %710, %711 : vector<1x8xf32>
    %713 = arith.mulf %709, %712 : vector<1x8xf32>
    %cst_138 = arith.constant 1.000000e+00 : f32
    %714 = vector.broadcast %cst_138 : f32 to vector<1x8xf32>
    %715 = arith.subf %714, %713 : vector<1x8xf32>
    %716 = arith.mulf %595, %597 : vector<1x8xf32>
    %717 = arith.mulf %599, %593 : vector<1x8xf32>
    %718 = arith.subf %716, %717 : vector<1x8xf32>
    %719 = arith.mulf %709, %718 : vector<1x8xf32>
    %720 = arith.mulf %595, %599 : vector<1x8xf32>
    %721 = arith.mulf %597, %593 : vector<1x8xf32>
    %722 = arith.addf %720, %721 : vector<1x8xf32>
    %723 = arith.mulf %709, %722 : vector<1x8xf32>
    %724 = arith.mulf %595, %597 : vector<1x8xf32>
    %725 = arith.mulf %599, %593 : vector<1x8xf32>
    %726 = arith.addf %724, %725 : vector<1x8xf32>
    %727 = arith.mulf %709, %726 : vector<1x8xf32>
    %728 = arith.mulf %595, %595 : vector<1x8xf32>
    %729 = arith.mulf %599, %599 : vector<1x8xf32>
    %730 = arith.addf %728, %729 : vector<1x8xf32>
    %731 = arith.mulf %709, %730 : vector<1x8xf32>
    %cst_139 = arith.constant 1.000000e+00 : f32
    %732 = vector.broadcast %cst_139 : f32 to vector<1x8xf32>
    %733 = arith.subf %732, %731 : vector<1x8xf32>
    %734 = arith.mulf %597, %599 : vector<1x8xf32>
    %735 = arith.mulf %595, %593 : vector<1x8xf32>
    %736 = arith.subf %734, %735 : vector<1x8xf32>
    %737 = arith.mulf %709, %736 : vector<1x8xf32>
    %738 = arith.mulf %595, %599 : vector<1x8xf32>
    %739 = arith.mulf %597, %593 : vector<1x8xf32>
    %740 = arith.subf %738, %739 : vector<1x8xf32>
    %741 = arith.mulf %709, %740 : vector<1x8xf32>
    %742 = arith.mulf %597, %599 : vector<1x8xf32>
    %743 = arith.mulf %595, %593 : vector<1x8xf32>
    %744 = arith.addf %742, %743 : vector<1x8xf32>
    %745 = arith.mulf %709, %744 : vector<1x8xf32>
    %746 = arith.mulf %595, %595 : vector<1x8xf32>
    %747 = arith.mulf %597, %597 : vector<1x8xf32>
    %748 = arith.addf %746, %747 : vector<1x8xf32>
    %749 = arith.mulf %709, %748 : vector<1x8xf32>
    %cst_140 = arith.constant 1.000000e+00 : f32
    %750 = vector.broadcast %cst_140 : f32 to vector<1x8xf32>
    %751 = arith.subf %750, %749 : vector<1x8xf32>
    %752 = arith.mulf %393, %662 : vector<1x8xf32>
    %753 = arith.mulf %398, %674 : vector<1x8xf32>
    %754 = arith.addf %752, %753 : vector<1x8xf32>
    %755 = arith.mulf %403, %688 : vector<1x8xf32>
    %756 = arith.addf %754, %755 : vector<1x8xf32>
    %757 = arith.mulf %393, %666 : vector<1x8xf32>
    %758 = arith.mulf %398, %680 : vector<1x8xf32>
    %759 = arith.addf %757, %758 : vector<1x8xf32>
    %760 = arith.mulf %403, %692 : vector<1x8xf32>
    %761 = arith.addf %759, %760 : vector<1x8xf32>
    %762 = arith.mulf %393, %670 : vector<1x8xf32>
    %763 = arith.mulf %398, %684 : vector<1x8xf32>
    %764 = arith.addf %762, %763 : vector<1x8xf32>
    %765 = arith.mulf %403, %698 : vector<1x8xf32>
    %766 = arith.addf %764, %765 : vector<1x8xf32>
    %767 = arith.mulf %408, %662 : vector<1x8xf32>
    %768 = arith.mulf %413, %674 : vector<1x8xf32>
    %769 = arith.addf %767, %768 : vector<1x8xf32>
    %770 = arith.mulf %418, %688 : vector<1x8xf32>
    %771 = arith.addf %769, %770 : vector<1x8xf32>
    %772 = arith.mulf %408, %666 : vector<1x8xf32>
    %773 = arith.mulf %413, %680 : vector<1x8xf32>
    %774 = arith.addf %772, %773 : vector<1x8xf32>
    %775 = arith.mulf %418, %692 : vector<1x8xf32>
    %776 = arith.addf %774, %775 : vector<1x8xf32>
    %777 = arith.mulf %408, %670 : vector<1x8xf32>
    %778 = arith.mulf %413, %684 : vector<1x8xf32>
    %779 = arith.addf %777, %778 : vector<1x8xf32>
    %780 = arith.mulf %418, %698 : vector<1x8xf32>
    %781 = arith.addf %779, %780 : vector<1x8xf32>
    %782 = arith.mulf %423, %662 : vector<1x8xf32>
    %783 = arith.mulf %428, %674 : vector<1x8xf32>
    %784 = arith.addf %782, %783 : vector<1x8xf32>
    %785 = arith.mulf %433, %688 : vector<1x8xf32>
    %786 = arith.addf %784, %785 : vector<1x8xf32>
    %787 = arith.mulf %423, %666 : vector<1x8xf32>
    %788 = arith.mulf %428, %680 : vector<1x8xf32>
    %789 = arith.addf %787, %788 : vector<1x8xf32>
    %790 = arith.mulf %433, %692 : vector<1x8xf32>
    %791 = arith.addf %789, %790 : vector<1x8xf32>
    %792 = arith.mulf %423, %670 : vector<1x8xf32>
    %793 = arith.mulf %428, %684 : vector<1x8xf32>
    %794 = arith.addf %792, %793 : vector<1x8xf32>
    %795 = arith.mulf %433, %698 : vector<1x8xf32>
    %796 = arith.addf %794, %795 : vector<1x8xf32>
    %797 = arith.mulf %438, %715 : vector<1x8xf32>
    %798 = arith.mulf %443, %727 : vector<1x8xf32>
    %799 = arith.addf %797, %798 : vector<1x8xf32>
    %800 = arith.mulf %448, %741 : vector<1x8xf32>
    %801 = arith.addf %799, %800 : vector<1x8xf32>
    %802 = arith.mulf %438, %719 : vector<1x8xf32>
    %803 = arith.mulf %443, %733 : vector<1x8xf32>
    %804 = arith.addf %802, %803 : vector<1x8xf32>
    %805 = arith.mulf %448, %745 : vector<1x8xf32>
    %806 = arith.addf %804, %805 : vector<1x8xf32>
    %807 = arith.mulf %438, %723 : vector<1x8xf32>
    %808 = arith.mulf %443, %737 : vector<1x8xf32>
    %809 = arith.addf %807, %808 : vector<1x8xf32>
    %810 = arith.mulf %448, %751 : vector<1x8xf32>
    %811 = arith.addf %809, %810 : vector<1x8xf32>
    %812 = arith.mulf %453, %715 : vector<1x8xf32>
    %813 = arith.mulf %458, %727 : vector<1x8xf32>
    %814 = arith.addf %812, %813 : vector<1x8xf32>
    %815 = arith.mulf %463, %741 : vector<1x8xf32>
    %816 = arith.addf %814, %815 : vector<1x8xf32>
    %817 = arith.mulf %453, %719 : vector<1x8xf32>
    %818 = arith.mulf %458, %733 : vector<1x8xf32>
    %819 = arith.addf %817, %818 : vector<1x8xf32>
    %820 = arith.mulf %463, %745 : vector<1x8xf32>
    %821 = arith.addf %819, %820 : vector<1x8xf32>
    %822 = arith.mulf %453, %723 : vector<1x8xf32>
    %823 = arith.mulf %458, %737 : vector<1x8xf32>
    %824 = arith.addf %822, %823 : vector<1x8xf32>
    %825 = arith.mulf %463, %751 : vector<1x8xf32>
    %826 = arith.addf %824, %825 : vector<1x8xf32>
    %827 = arith.mulf %468, %715 : vector<1x8xf32>
    %828 = arith.mulf %473, %727 : vector<1x8xf32>
    %829 = arith.addf %827, %828 : vector<1x8xf32>
    %830 = arith.mulf %478, %741 : vector<1x8xf32>
    %831 = arith.addf %829, %830 : vector<1x8xf32>
    %832 = arith.mulf %468, %719 : vector<1x8xf32>
    %833 = arith.mulf %473, %733 : vector<1x8xf32>
    %834 = arith.addf %832, %833 : vector<1x8xf32>
    %835 = arith.mulf %478, %745 : vector<1x8xf32>
    %836 = arith.addf %834, %835 : vector<1x8xf32>
    %837 = arith.mulf %468, %723 : vector<1x8xf32>
    %838 = arith.mulf %473, %737 : vector<1x8xf32>
    %839 = arith.addf %837, %838 : vector<1x8xf32>
    %840 = arith.mulf %478, %751 : vector<1x8xf32>
    %841 = arith.addf %839, %840 : vector<1x8xf32>
    %c0_141 = arith.constant 0 : index
    %c0_142 = arith.constant 0 : index
    %c6_143 = arith.constant 6 : index
    %842 = vector.load %arg3[%c0_141, %c0_142, %c6_143] : memref<1x1x24xf32, #tpu.memory_space<vmem>>, vector<1x1x1xf32>
    %843 = vector.shape_cast %842 : vector<1x1x1xf32> to vector<1x1xf32>
    %c0_144 = arith.constant 0 : index
    %c0_145 = arith.constant 0 : index
    %c7_146 = arith.constant 7 : index
    %844 = vector.load %arg3[%c0_144, %c0_145, %c7_146] : memref<1x1x24xf32, #tpu.memory_space<vmem>>, vector<1x1x1xf32>
    %845 = vector.shape_cast %844 : vector<1x1x1xf32> to vector<1x1xf32>
    %c0_147 = arith.constant 0 : index
    %c0_148 = arith.constant 0 : index
    %c8_149 = arith.constant 8 : index
    %846 = vector.load %arg3[%c0_147, %c0_148, %c8_149] : memref<1x1x24xf32, #tpu.memory_space<vmem>>, vector<1x1x1xf32>
    %847 = vector.shape_cast %846 : vector<1x1x1xf32> to vector<1x1xf32>
    %c0_150 = arith.constant 0 : index
    %c0_151 = arith.constant 0 : index
    %c6_152 = arith.constant 6 : index
    %848 = vector.load %arg4[%c0_150, %c0_151, %c6_152] : memref<1x1x24xf32, #tpu.memory_space<vmem>>, vector<1x1x1xf32>
    %849 = vector.shape_cast %848 : vector<1x1x1xf32> to vector<1x1xf32>
    %c0_153 = arith.constant 0 : index
    %c0_154 = arith.constant 0 : index
    %c7_155 = arith.constant 7 : index
    %850 = vector.load %arg4[%c0_153, %c0_154, %c7_155] : memref<1x1x24xf32, #tpu.memory_space<vmem>>, vector<1x1x1xf32>
    %851 = vector.shape_cast %850 : vector<1x1x1xf32> to vector<1x1xf32>
    %c0_156 = arith.constant 0 : index
    %c0_157 = arith.constant 0 : index
    %c8_158 = arith.constant 8 : index
    %852 = vector.load %arg4[%c0_156, %c0_157, %c8_158] : memref<1x1x24xf32, #tpu.memory_space<vmem>>, vector<1x1x1xf32>
    %853 = vector.shape_cast %852 : vector<1x1x1xf32> to vector<1x1xf32>
    %854 = vector.broadcast %843 : vector<1x1xf32> to vector<1x8xf32>
    %855 = arith.mulf %393, %854 : vector<1x8xf32>
    %856 = vector.broadcast %845 : vector<1x1xf32> to vector<1x8xf32>
    %857 = arith.mulf %398, %856 : vector<1x8xf32>
    %858 = arith.addf %855, %857 : vector<1x8xf32>
    %859 = vector.broadcast %847 : vector<1x1xf32> to vector<1x8xf32>
    %860 = arith.mulf %403, %859 : vector<1x8xf32>
    %861 = arith.addf %858, %860 : vector<1x8xf32>
    %862 = vector.broadcast %843 : vector<1x1xf32> to vector<1x8xf32>
    %863 = arith.mulf %408, %862 : vector<1x8xf32>
    %864 = vector.broadcast %845 : vector<1x1xf32> to vector<1x8xf32>
    %865 = arith.mulf %413, %864 : vector<1x8xf32>
    %866 = arith.addf %863, %865 : vector<1x8xf32>
    %867 = vector.broadcast %847 : vector<1x1xf32> to vector<1x8xf32>
    %868 = arith.mulf %418, %867 : vector<1x8xf32>
    %869 = arith.addf %866, %868 : vector<1x8xf32>
    %870 = vector.broadcast %843 : vector<1x1xf32> to vector<1x8xf32>
    %871 = arith.mulf %423, %870 : vector<1x8xf32>
    %872 = vector.broadcast %845 : vector<1x1xf32> to vector<1x8xf32>
    %873 = arith.mulf %428, %872 : vector<1x8xf32>
    %874 = arith.addf %871, %873 : vector<1x8xf32>
    %875 = vector.broadcast %847 : vector<1x1xf32> to vector<1x8xf32>
    %876 = arith.mulf %433, %875 : vector<1x8xf32>
    %877 = arith.addf %874, %876 : vector<1x8xf32>
    %878 = arith.addf %861, %515 : vector<1x8xf32>
    %879 = arith.addf %869, %516 : vector<1x8xf32>
    %880 = arith.addf %877, %517 : vector<1x8xf32>
    %881 = vector.broadcast %849 : vector<1x1xf32> to vector<1x8xf32>
    %882 = arith.mulf %438, %881 : vector<1x8xf32>
    %883 = vector.broadcast %851 : vector<1x1xf32> to vector<1x8xf32>
    %884 = arith.mulf %443, %883 : vector<1x8xf32>
    %885 = arith.addf %882, %884 : vector<1x8xf32>
    %886 = vector.broadcast %853 : vector<1x1xf32> to vector<1x8xf32>
    %887 = arith.mulf %448, %886 : vector<1x8xf32>
    %888 = arith.addf %885, %887 : vector<1x8xf32>
    %889 = vector.broadcast %849 : vector<1x1xf32> to vector<1x8xf32>
    %890 = arith.mulf %453, %889 : vector<1x8xf32>
    %891 = vector.broadcast %851 : vector<1x1xf32> to vector<1x8xf32>
    %892 = arith.mulf %458, %891 : vector<1x8xf32>
    %893 = arith.addf %890, %892 : vector<1x8xf32>
    %894 = vector.broadcast %853 : vector<1x1xf32> to vector<1x8xf32>
    %895 = arith.mulf %463, %894 : vector<1x8xf32>
    %896 = arith.addf %893, %895 : vector<1x8xf32>
    %897 = vector.broadcast %849 : vector<1x1xf32> to vector<1x8xf32>
    %898 = arith.mulf %468, %897 : vector<1x8xf32>
    %899 = vector.broadcast %851 : vector<1x1xf32> to vector<1x8xf32>
    %900 = arith.mulf %473, %899 : vector<1x8xf32>
    %901 = arith.addf %898, %900 : vector<1x8xf32>
    %902 = vector.broadcast %853 : vector<1x1xf32> to vector<1x8xf32>
    %903 = arith.mulf %478, %902 : vector<1x8xf32>
    %904 = arith.addf %901, %903 : vector<1x8xf32>
    %905 = arith.addf %888, %542 : vector<1x8xf32>
    %906 = arith.addf %896, %543 : vector<1x8xf32>
    %907 = arith.addf %904, %544 : vector<1x8xf32>
    %908 = arith.subf %756, %801 : vector<1x8xf32>
    %909 = math.absf %908 : vector<1x8xf32>
    %910 = arith.subf %761, %806 : vector<1x8xf32>
    %911 = math.absf %910 : vector<1x8xf32>
    %912 = arith.addf %909, %911 : vector<1x8xf32>
    %913 = arith.subf %766, %811 : vector<1x8xf32>
    %914 = math.absf %913 : vector<1x8xf32>
    %915 = arith.addf %912, %914 : vector<1x8xf32>
    %916 = arith.subf %771, %816 : vector<1x8xf32>
    %917 = math.absf %916 : vector<1x8xf32>
    %918 = arith.addf %915, %917 : vector<1x8xf32>
    %919 = arith.subf %776, %821 : vector<1x8xf32>
    %920 = math.absf %919 : vector<1x8xf32>
    %921 = arith.addf %918, %920 : vector<1x8xf32>
    %922 = arith.subf %781, %826 : vector<1x8xf32>
    %923 = math.absf %922 : vector<1x8xf32>
    %924 = arith.addf %921, %923 : vector<1x8xf32>
    %925 = arith.subf %786, %831 : vector<1x8xf32>
    %926 = math.absf %925 : vector<1x8xf32>
    %927 = arith.addf %924, %926 : vector<1x8xf32>
    %928 = arith.subf %791, %836 : vector<1x8xf32>
    %929 = math.absf %928 : vector<1x8xf32>
    %930 = arith.addf %927, %929 : vector<1x8xf32>
    %931 = arith.subf %796, %841 : vector<1x8xf32>
    %932 = math.absf %931 : vector<1x8xf32>
    %933 = arith.addf %930, %932 : vector<1x8xf32>
    %934 = arith.addf %571, %933 : vector<1x8xf32>
    %935 = arith.subf %878, %905 : vector<1x8xf32>
    %936 = math.absf %935 : vector<1x8xf32>
    %937 = arith.subf %879, %906 : vector<1x8xf32>
    %938 = math.absf %937 : vector<1x8xf32>
    %939 = arith.addf %936, %938 : vector<1x8xf32>
    %940 = arith.subf %880, %907 : vector<1x8xf32>
    %941 = math.absf %940 : vector<1x8xf32>
    %942 = arith.addf %939, %941 : vector<1x8xf32>
    %943 = vector.broadcast %583 : vector<1x1xf32> to vector<1x8xf32>
    %944 = arith.mulf %943, %942 : vector<1x8xf32>
    %945 = arith.addf %582, %944 : vector<1x8xf32>
    %c0_159 = arith.constant 0 : index
    %c3_160 = arith.constant 3 : index
    %946 = vector.load %arg5[%c0_159, %c3_160] : memref<1x8xf32, #tpu.memory_space<vmem>>, vector<1x1xf32>
    %c0_161 = arith.constant 0 : index
    %c12 = arith.constant 12 : index
    %c0_162 = arith.constant 0 : index
    %947 = vector.load %arg1[%c0_161, %c12, %c0_162] : memref<1x35x8xf32, #tpu.memory_space<vmem>>, vector<1x1x8xf32>
    %948 = vector.shape_cast %947 : vector<1x1x8xf32> to vector<1x8xf32>
    %c0_163 = arith.constant 0 : index
    %c13 = arith.constant 13 : index
    %c0_164 = arith.constant 0 : index
    %949 = vector.load %arg1[%c0_163, %c13, %c0_164] : memref<1x35x8xf32, #tpu.memory_space<vmem>>, vector<1x1x8xf32>
    %950 = vector.shape_cast %949 : vector<1x1x8xf32> to vector<1x8xf32>
    %c0_165 = arith.constant 0 : index
    %c14 = arith.constant 14 : index
    %c0_166 = arith.constant 0 : index
    %951 = vector.load %arg1[%c0_165, %c14, %c0_166] : memref<1x35x8xf32, #tpu.memory_space<vmem>>, vector<1x1x8xf32>
    %952 = vector.shape_cast %951 : vector<1x1x8xf32> to vector<1x8xf32>
    %c0_167 = arith.constant 0 : index
    %c15 = arith.constant 15 : index
    %c0_168 = arith.constant 0 : index
    %953 = vector.load %arg1[%c0_167, %c15, %c0_168] : memref<1x35x8xf32, #tpu.memory_space<vmem>>, vector<1x1x8xf32>
    %954 = vector.shape_cast %953 : vector<1x1x8xf32> to vector<1x8xf32>
    %c0_169 = arith.constant 0 : index
    %c12_170 = arith.constant 12 : index
    %c0_171 = arith.constant 0 : index
    %955 = vector.load %arg2[%c0_169, %c12_170, %c0_171] : memref<1x35x8xf32, #tpu.memory_space<vmem>>, vector<1x1x8xf32>
    %956 = vector.shape_cast %955 : vector<1x1x8xf32> to vector<1x8xf32>
    %c0_172 = arith.constant 0 : index
    %c13_173 = arith.constant 13 : index
    %c0_174 = arith.constant 0 : index
    %957 = vector.load %arg2[%c0_172, %c13_173, %c0_174] : memref<1x35x8xf32, #tpu.memory_space<vmem>>, vector<1x1x8xf32>
    %958 = vector.shape_cast %957 : vector<1x1x8xf32> to vector<1x8xf32>
    %c0_175 = arith.constant 0 : index
    %c14_176 = arith.constant 14 : index
    %c0_177 = arith.constant 0 : index
    %959 = vector.load %arg2[%c0_175, %c14_176, %c0_177] : memref<1x35x8xf32, #tpu.memory_space<vmem>>, vector<1x1x8xf32>
    %960 = vector.shape_cast %959 : vector<1x1x8xf32> to vector<1x8xf32>
    %c0_178 = arith.constant 0 : index
    %c15_179 = arith.constant 15 : index
    %c0_180 = arith.constant 0 : index
    %961 = vector.load %arg2[%c0_178, %c15_179, %c0_180] : memref<1x35x8xf32, #tpu.memory_space<vmem>>, vector<1x1x8xf32>
    %962 = vector.shape_cast %961 : vector<1x1x8xf32> to vector<1x8xf32>
    %963 = arith.mulf %948, %948 : vector<1x8xf32>
    %964 = arith.mulf %950, %950 : vector<1x8xf32>
    %965 = arith.addf %963, %964 : vector<1x8xf32>
    %966 = arith.mulf %952, %952 : vector<1x8xf32>
    %967 = arith.addf %965, %966 : vector<1x8xf32>
    %968 = arith.mulf %954, %954 : vector<1x8xf32>
    %969 = arith.addf %967, %968 : vector<1x8xf32>
    %970 = math.sqrt %969 : vector<1x8xf32>
    %cst_181 = arith.constant 9.99999996E-13 : f32
    %971 = vector.broadcast %cst_181 : f32 to vector<1x8xf32>
    %972 = arith.maximumf %970, %971 : vector<1x8xf32>
    %cst_182 = arith.constant 1.000000e+00 : f32
    %973 = vector.broadcast %cst_182 : f32 to vector<1x8xf32>
    %974 = arith.divf %973, %972 : vector<1x8xf32>
    %975 = arith.mulf %948, %974 : vector<1x8xf32>
    %976 = arith.mulf %950, %974 : vector<1x8xf32>
    %977 = arith.mulf %952, %974 : vector<1x8xf32>
    %978 = arith.mulf %954, %974 : vector<1x8xf32>
    %979 = arith.mulf %956, %956 : vector<1x8xf32>
    %980 = arith.mulf %958, %958 : vector<1x8xf32>
    %981 = arith.addf %979, %980 : vector<1x8xf32>
    %982 = arith.mulf %960, %960 : vector<1x8xf32>
    %983 = arith.addf %981, %982 : vector<1x8xf32>
    %984 = arith.mulf %962, %962 : vector<1x8xf32>
    %985 = arith.addf %983, %984 : vector<1x8xf32>
    %986 = math.sqrt %985 : vector<1x8xf32>
    %cst_183 = arith.constant 9.99999996E-13 : f32
    %987 = vector.broadcast %cst_183 : f32 to vector<1x8xf32>
    %988 = arith.maximumf %986, %987 : vector<1x8xf32>
    %cst_184 = arith.constant 1.000000e+00 : f32
    %989 = vector.broadcast %cst_184 : f32 to vector<1x8xf32>
    %990 = arith.divf %989, %988 : vector<1x8xf32>
    %991 = arith.mulf %956, %990 : vector<1x8xf32>
    %992 = arith.mulf %958, %990 : vector<1x8xf32>
    %993 = arith.mulf %960, %990 : vector<1x8xf32>
    %994 = arith.mulf %962, %990 : vector<1x8xf32>
    %995 = arith.subf %975, %991 : vector<1x8xf32>
    %996 = math.absf %995 : vector<1x8xf32>
    %997 = arith.subf %976, %992 : vector<1x8xf32>
    %998 = math.absf %997 : vector<1x8xf32>
    %999 = arith.addf %996, %998 : vector<1x8xf32>
    %1000 = arith.subf %977, %993 : vector<1x8xf32>
    %1001 = math.absf %1000 : vector<1x8xf32>
    %1002 = arith.addf %999, %1001 : vector<1x8xf32>
    %1003 = arith.subf %978, %994 : vector<1x8xf32>
    %1004 = math.absf %1003 : vector<1x8xf32>
    %1005 = arith.addf %1002, %1004 : vector<1x8xf32>
    %1006 = vector.broadcast %946 : vector<1x1xf32> to vector<1x8xf32>
    %1007 = arith.mulf %1006, %1005 : vector<1x8xf32>
    %1008 = arith.addf %645, %1007 : vector<1x8xf32>
    %1009 = arith.mulf %948, %948 : vector<1x8xf32>
    %1010 = arith.mulf %950, %950 : vector<1x8xf32>
    %1011 = arith.addf %1009, %1010 : vector<1x8xf32>
    %1012 = arith.mulf %952, %952 : vector<1x8xf32>
    %1013 = arith.addf %1011, %1012 : vector<1x8xf32>
    %1014 = arith.mulf %954, %954 : vector<1x8xf32>
    %1015 = arith.addf %1013, %1014 : vector<1x8xf32>
    %cst_185 = arith.constant 9.99999996E-13 : f32
    %1016 = vector.broadcast %cst_185 : f32 to vector<1x8xf32>
    %1017 = arith.maximumf %1015, %1016 : vector<1x8xf32>
    %cst_186 = arith.constant 2.000000e+00 : f32
    %1018 = vector.broadcast %cst_186 : f32 to vector<1x8xf32>
    %1019 = arith.divf %1018, %1017 : vector<1x8xf32>
    %1020 = arith.mulf %952, %952 : vector<1x8xf32>
    %1021 = arith.mulf %954, %954 : vector<1x8xf32>
    %1022 = arith.addf %1020, %1021 : vector<1x8xf32>
    %1023 = arith.mulf %1019, %1022 : vector<1x8xf32>
    %cst_187 = arith.constant 1.000000e+00 : f32
    %1024 = vector.broadcast %cst_187 : f32 to vector<1x8xf32>
    %1025 = arith.subf %1024, %1023 : vector<1x8xf32>
    %1026 = arith.mulf %950, %952 : vector<1x8xf32>
    %1027 = arith.mulf %954, %948 : vector<1x8xf32>
    %1028 = arith.subf %1026, %1027 : vector<1x8xf32>
    %1029 = arith.mulf %1019, %1028 : vector<1x8xf32>
    %1030 = arith.mulf %950, %954 : vector<1x8xf32>
    %1031 = arith.mulf %952, %948 : vector<1x8xf32>
    %1032 = arith.addf %1030, %1031 : vector<1x8xf32>
    %1033 = arith.mulf %1019, %1032 : vector<1x8xf32>
    %1034 = arith.mulf %950, %952 : vector<1x8xf32>
    %1035 = arith.mulf %954, %948 : vector<1x8xf32>
    %1036 = arith.addf %1034, %1035 : vector<1x8xf32>
    %1037 = arith.mulf %1019, %1036 : vector<1x8xf32>
    %1038 = arith.mulf %950, %950 : vector<1x8xf32>
    %1039 = arith.mulf %954, %954 : vector<1x8xf32>
    %1040 = arith.addf %1038, %1039 : vector<1x8xf32>
    %1041 = arith.mulf %1019, %1040 : vector<1x8xf32>
    %cst_188 = arith.constant 1.000000e+00 : f32
    %1042 = vector.broadcast %cst_188 : f32 to vector<1x8xf32>
    %1043 = arith.subf %1042, %1041 : vector<1x8xf32>
    %1044 = arith.mulf %952, %954 : vector<1x8xf32>
    %1045 = arith.mulf %950, %948 : vector<1x8xf32>
    %1046 = arith.subf %1044, %1045 : vector<1x8xf32>
    %1047 = arith.mulf %1019, %1046 : vector<1x8xf32>
    %1048 = arith.mulf %950, %954 : vector<1x8xf32>
    %1049 = arith.mulf %952, %948 : vector<1x8xf32>
    %1050 = arith.subf %1048, %1049 : vector<1x8xf32>
    %1051 = arith.mulf %1019, %1050 : vector<1x8xf32>
    %1052 = arith.mulf %952, %954 : vector<1x8xf32>
    %1053 = arith.mulf %950, %948 : vector<1x8xf32>
    %1054 = arith.addf %1052, %1053 : vector<1x8xf32>
    %1055 = arith.mulf %1019, %1054 : vector<1x8xf32>
    %1056 = arith.mulf %950, %950 : vector<1x8xf32>
    %1057 = arith.mulf %952, %952 : vector<1x8xf32>
    %1058 = arith.addf %1056, %1057 : vector<1x8xf32>
    %1059 = arith.mulf %1019, %1058 : vector<1x8xf32>
    %cst_189 = arith.constant 1.000000e+00 : f32
    %1060 = vector.broadcast %cst_189 : f32 to vector<1x8xf32>
    %1061 = arith.subf %1060, %1059 : vector<1x8xf32>
    %1062 = arith.mulf %956, %956 : vector<1x8xf32>
    %1063 = arith.mulf %958, %958 : vector<1x8xf32>
    %1064 = arith.addf %1062, %1063 : vector<1x8xf32>
    %1065 = arith.mulf %960, %960 : vector<1x8xf32>
    %1066 = arith.addf %1064, %1065 : vector<1x8xf32>
    %1067 = arith.mulf %962, %962 : vector<1x8xf32>
    %1068 = arith.addf %1066, %1067 : vector<1x8xf32>
    %cst_190 = arith.constant 9.99999996E-13 : f32
    %1069 = vector.broadcast %cst_190 : f32 to vector<1x8xf32>
    %1070 = arith.maximumf %1068, %1069 : vector<1x8xf32>
    %cst_191 = arith.constant 2.000000e+00 : f32
    %1071 = vector.broadcast %cst_191 : f32 to vector<1x8xf32>
    %1072 = arith.divf %1071, %1070 : vector<1x8xf32>
    %1073 = arith.mulf %960, %960 : vector<1x8xf32>
    %1074 = arith.mulf %962, %962 : vector<1x8xf32>
    %1075 = arith.addf %1073, %1074 : vector<1x8xf32>
    %1076 = arith.mulf %1072, %1075 : vector<1x8xf32>
    %cst_192 = arith.constant 1.000000e+00 : f32
    %1077 = vector.broadcast %cst_192 : f32 to vector<1x8xf32>
    %1078 = arith.subf %1077, %1076 : vector<1x8xf32>
    %1079 = arith.mulf %958, %960 : vector<1x8xf32>
    %1080 = arith.mulf %962, %956 : vector<1x8xf32>
    %1081 = arith.subf %1079, %1080 : vector<1x8xf32>
    %1082 = arith.mulf %1072, %1081 : vector<1x8xf32>
    %1083 = arith.mulf %958, %962 : vector<1x8xf32>
    %1084 = arith.mulf %960, %956 : vector<1x8xf32>
    %1085 = arith.addf %1083, %1084 : vector<1x8xf32>
    %1086 = arith.mulf %1072, %1085 : vector<1x8xf32>
    %1087 = arith.mulf %958, %960 : vector<1x8xf32>
    %1088 = arith.mulf %962, %956 : vector<1x8xf32>
    %1089 = arith.addf %1087, %1088 : vector<1x8xf32>
    %1090 = arith.mulf %1072, %1089 : vector<1x8xf32>
    %1091 = arith.mulf %958, %958 : vector<1x8xf32>
    %1092 = arith.mulf %962, %962 : vector<1x8xf32>
    %1093 = arith.addf %1091, %1092 : vector<1x8xf32>
    %1094 = arith.mulf %1072, %1093 : vector<1x8xf32>
    %cst_193 = arith.constant 1.000000e+00 : f32
    %1095 = vector.broadcast %cst_193 : f32 to vector<1x8xf32>
    %1096 = arith.subf %1095, %1094 : vector<1x8xf32>
    %1097 = arith.mulf %960, %962 : vector<1x8xf32>
    %1098 = arith.mulf %958, %956 : vector<1x8xf32>
    %1099 = arith.subf %1097, %1098 : vector<1x8xf32>
    %1100 = arith.mulf %1072, %1099 : vector<1x8xf32>
    %1101 = arith.mulf %958, %962 : vector<1x8xf32>
    %1102 = arith.mulf %960, %956 : vector<1x8xf32>
    %1103 = arith.subf %1101, %1102 : vector<1x8xf32>
    %1104 = arith.mulf %1072, %1103 : vector<1x8xf32>
    %1105 = arith.mulf %960, %962 : vector<1x8xf32>
    %1106 = arith.mulf %958, %956 : vector<1x8xf32>
    %1107 = arith.addf %1105, %1106 : vector<1x8xf32>
    %1108 = arith.mulf %1072, %1107 : vector<1x8xf32>
    %1109 = arith.mulf %958, %958 : vector<1x8xf32>
    %1110 = arith.mulf %960, %960 : vector<1x8xf32>
    %1111 = arith.addf %1109, %1110 : vector<1x8xf32>
    %1112 = arith.mulf %1072, %1111 : vector<1x8xf32>
    %cst_194 = arith.constant 1.000000e+00 : f32
    %1113 = vector.broadcast %cst_194 : f32 to vector<1x8xf32>
    %1114 = arith.subf %1113, %1112 : vector<1x8xf32>
    %1115 = arith.mulf %756, %1025 : vector<1x8xf32>
    %1116 = arith.mulf %761, %1037 : vector<1x8xf32>
    %1117 = arith.addf %1115, %1116 : vector<1x8xf32>
    %1118 = arith.mulf %766, %1051 : vector<1x8xf32>
    %1119 = arith.addf %1117, %1118 : vector<1x8xf32>
    %1120 = arith.mulf %756, %1029 : vector<1x8xf32>
    %1121 = arith.mulf %761, %1043 : vector<1x8xf32>
    %1122 = arith.addf %1120, %1121 : vector<1x8xf32>
    %1123 = arith.mulf %766, %1055 : vector<1x8xf32>
    %1124 = arith.addf %1122, %1123 : vector<1x8xf32>
    %1125 = arith.mulf %756, %1033 : vector<1x8xf32>
    %1126 = arith.mulf %761, %1047 : vector<1x8xf32>
    %1127 = arith.addf %1125, %1126 : vector<1x8xf32>
    %1128 = arith.mulf %766, %1061 : vector<1x8xf32>
    %1129 = arith.addf %1127, %1128 : vector<1x8xf32>
    %1130 = arith.mulf %771, %1025 : vector<1x8xf32>
    %1131 = arith.mulf %776, %1037 : vector<1x8xf32>
    %1132 = arith.addf %1130, %1131 : vector<1x8xf32>
    %1133 = arith.mulf %781, %1051 : vector<1x8xf32>
    %1134 = arith.addf %1132, %1133 : vector<1x8xf32>
    %1135 = arith.mulf %771, %1029 : vector<1x8xf32>
    %1136 = arith.mulf %776, %1043 : vector<1x8xf32>
    %1137 = arith.addf %1135, %1136 : vector<1x8xf32>
    %1138 = arith.mulf %781, %1055 : vector<1x8xf32>
    %1139 = arith.addf %1137, %1138 : vector<1x8xf32>
    %1140 = arith.mulf %771, %1033 : vector<1x8xf32>
    %1141 = arith.mulf %776, %1047 : vector<1x8xf32>
    %1142 = arith.addf %1140, %1141 : vector<1x8xf32>
    %1143 = arith.mulf %781, %1061 : vector<1x8xf32>
    %1144 = arith.addf %1142, %1143 : vector<1x8xf32>
    %1145 = arith.mulf %786, %1025 : vector<1x8xf32>
    %1146 = arith.mulf %791, %1037 : vector<1x8xf32>
    %1147 = arith.addf %1145, %1146 : vector<1x8xf32>
    %1148 = arith.mulf %796, %1051 : vector<1x8xf32>
    %1149 = arith.addf %1147, %1148 : vector<1x8xf32>
    %1150 = arith.mulf %786, %1029 : vector<1x8xf32>
    %1151 = arith.mulf %791, %1043 : vector<1x8xf32>
    %1152 = arith.addf %1150, %1151 : vector<1x8xf32>
    %1153 = arith.mulf %796, %1055 : vector<1x8xf32>
    %1154 = arith.addf %1152, %1153 : vector<1x8xf32>
    %1155 = arith.mulf %786, %1033 : vector<1x8xf32>
    %1156 = arith.mulf %791, %1047 : vector<1x8xf32>
    %1157 = arith.addf %1155, %1156 : vector<1x8xf32>
    %1158 = arith.mulf %796, %1061 : vector<1x8xf32>
    %1159 = arith.addf %1157, %1158 : vector<1x8xf32>
    %1160 = arith.mulf %801, %1078 : vector<1x8xf32>
    %1161 = arith.mulf %806, %1090 : vector<1x8xf32>
    %1162 = arith.addf %1160, %1161 : vector<1x8xf32>
    %1163 = arith.mulf %811, %1104 : vector<1x8xf32>
    %1164 = arith.addf %1162, %1163 : vector<1x8xf32>
    %1165 = arith.mulf %801, %1082 : vector<1x8xf32>
    %1166 = arith.mulf %806, %1096 : vector<1x8xf32>
    %1167 = arith.addf %1165, %1166 : vector<1x8xf32>
    %1168 = arith.mulf %811, %1108 : vector<1x8xf32>
    %1169 = arith.addf %1167, %1168 : vector<1x8xf32>
    %1170 = arith.mulf %801, %1086 : vector<1x8xf32>
    %1171 = arith.mulf %806, %1100 : vector<1x8xf32>
    %1172 = arith.addf %1170, %1171 : vector<1x8xf32>
    %1173 = arith.mulf %811, %1114 : vector<1x8xf32>
    %1174 = arith.addf %1172, %1173 : vector<1x8xf32>
    %1175 = arith.mulf %816, %1078 : vector<1x8xf32>
    %1176 = arith.mulf %821, %1090 : vector<1x8xf32>
    %1177 = arith.addf %1175, %1176 : vector<1x8xf32>
    %1178 = arith.mulf %826, %1104 : vector<1x8xf32>
    %1179 = arith.addf %1177, %1178 : vector<1x8xf32>
    %1180 = arith.mulf %816, %1082 : vector<1x8xf32>
    %1181 = arith.mulf %821, %1096 : vector<1x8xf32>
    %1182 = arith.addf %1180, %1181 : vector<1x8xf32>
    %1183 = arith.mulf %826, %1108 : vector<1x8xf32>
    %1184 = arith.addf %1182, %1183 : vector<1x8xf32>
    %1185 = arith.mulf %816, %1086 : vector<1x8xf32>
    %1186 = arith.mulf %821, %1100 : vector<1x8xf32>
    %1187 = arith.addf %1185, %1186 : vector<1x8xf32>
    %1188 = arith.mulf %826, %1114 : vector<1x8xf32>
    %1189 = arith.addf %1187, %1188 : vector<1x8xf32>
    %1190 = arith.mulf %831, %1078 : vector<1x8xf32>
    %1191 = arith.mulf %836, %1090 : vector<1x8xf32>
    %1192 = arith.addf %1190, %1191 : vector<1x8xf32>
    %1193 = arith.mulf %841, %1104 : vector<1x8xf32>
    %1194 = arith.addf %1192, %1193 : vector<1x8xf32>
    %1195 = arith.mulf %831, %1082 : vector<1x8xf32>
    %1196 = arith.mulf %836, %1096 : vector<1x8xf32>
    %1197 = arith.addf %1195, %1196 : vector<1x8xf32>
    %1198 = arith.mulf %841, %1108 : vector<1x8xf32>
    %1199 = arith.addf %1197, %1198 : vector<1x8xf32>
    %1200 = arith.mulf %831, %1086 : vector<1x8xf32>
    %1201 = arith.mulf %836, %1100 : vector<1x8xf32>
    %1202 = arith.addf %1200, %1201 : vector<1x8xf32>
    %1203 = arith.mulf %841, %1114 : vector<1x8xf32>
    %1204 = arith.addf %1202, %1203 : vector<1x8xf32>
    %c0_195 = arith.constant 0 : index
    %c0_196 = arith.constant 0 : index
    %c9_197 = arith.constant 9 : index
    %1205 = vector.load %arg3[%c0_195, %c0_196, %c9_197] : memref<1x1x24xf32, #tpu.memory_space<vmem>>, vector<1x1x1xf32>
    %1206 = vector.shape_cast %1205 : vector<1x1x1xf32> to vector<1x1xf32>
    %c0_198 = arith.constant 0 : index
    %c0_199 = arith.constant 0 : index
    %c10_200 = arith.constant 10 : index
    %1207 = vector.load %arg3[%c0_198, %c0_199, %c10_200] : memref<1x1x24xf32, #tpu.memory_space<vmem>>, vector<1x1x1xf32>
    %1208 = vector.shape_cast %1207 : vector<1x1x1xf32> to vector<1x1xf32>
    %c0_201 = arith.constant 0 : index
    %c0_202 = arith.constant 0 : index
    %c11_203 = arith.constant 11 : index
    %1209 = vector.load %arg3[%c0_201, %c0_202, %c11_203] : memref<1x1x24xf32, #tpu.memory_space<vmem>>, vector<1x1x1xf32>
    %1210 = vector.shape_cast %1209 : vector<1x1x1xf32> to vector<1x1xf32>
    %c0_204 = arith.constant 0 : index
    %c0_205 = arith.constant 0 : index
    %c9_206 = arith.constant 9 : index
    %1211 = vector.load %arg4[%c0_204, %c0_205, %c9_206] : memref<1x1x24xf32, #tpu.memory_space<vmem>>, vector<1x1x1xf32>
    %1212 = vector.shape_cast %1211 : vector<1x1x1xf32> to vector<1x1xf32>
    %c0_207 = arith.constant 0 : index
    %c0_208 = arith.constant 0 : index
    %c10_209 = arith.constant 10 : index
    %1213 = vector.load %arg4[%c0_207, %c0_208, %c10_209] : memref<1x1x24xf32, #tpu.memory_space<vmem>>, vector<1x1x1xf32>
    %1214 = vector.shape_cast %1213 : vector<1x1x1xf32> to vector<1x1xf32>
    %c0_210 = arith.constant 0 : index
    %c0_211 = arith.constant 0 : index
    %c11_212 = arith.constant 11 : index
    %1215 = vector.load %arg4[%c0_210, %c0_211, %c11_212] : memref<1x1x24xf32, #tpu.memory_space<vmem>>, vector<1x1x1xf32>
    %1216 = vector.shape_cast %1215 : vector<1x1x1xf32> to vector<1x1xf32>
    %1217 = vector.broadcast %1206 : vector<1x1xf32> to vector<1x8xf32>
    %1218 = arith.mulf %756, %1217 : vector<1x8xf32>
    %1219 = vector.broadcast %1208 : vector<1x1xf32> to vector<1x8xf32>
    %1220 = arith.mulf %761, %1219 : vector<1x8xf32>
    %1221 = arith.addf %1218, %1220 : vector<1x8xf32>
    %1222 = vector.broadcast %1210 : vector<1x1xf32> to vector<1x8xf32>
    %1223 = arith.mulf %766, %1222 : vector<1x8xf32>
    %1224 = arith.addf %1221, %1223 : vector<1x8xf32>
    %1225 = vector.broadcast %1206 : vector<1x1xf32> to vector<1x8xf32>
    %1226 = arith.mulf %771, %1225 : vector<1x8xf32>
    %1227 = vector.broadcast %1208 : vector<1x1xf32> to vector<1x8xf32>
    %1228 = arith.mulf %776, %1227 : vector<1x8xf32>
    %1229 = arith.addf %1226, %1228 : vector<1x8xf32>
    %1230 = vector.broadcast %1210 : vector<1x1xf32> to vector<1x8xf32>
    %1231 = arith.mulf %781, %1230 : vector<1x8xf32>
    %1232 = arith.addf %1229, %1231 : vector<1x8xf32>
    %1233 = vector.broadcast %1206 : vector<1x1xf32> to vector<1x8xf32>
    %1234 = arith.mulf %786, %1233 : vector<1x8xf32>
    %1235 = vector.broadcast %1208 : vector<1x1xf32> to vector<1x8xf32>
    %1236 = arith.mulf %791, %1235 : vector<1x8xf32>
    %1237 = arith.addf %1234, %1236 : vector<1x8xf32>
    %1238 = vector.broadcast %1210 : vector<1x1xf32> to vector<1x8xf32>
    %1239 = arith.mulf %796, %1238 : vector<1x8xf32>
    %1240 = arith.addf %1237, %1239 : vector<1x8xf32>
    %1241 = arith.addf %1224, %878 : vector<1x8xf32>
    %1242 = arith.addf %1232, %879 : vector<1x8xf32>
    %1243 = arith.addf %1240, %880 : vector<1x8xf32>
    %1244 = vector.broadcast %1212 : vector<1x1xf32> to vector<1x8xf32>
    %1245 = arith.mulf %801, %1244 : vector<1x8xf32>
    %1246 = vector.broadcast %1214 : vector<1x1xf32> to vector<1x8xf32>
    %1247 = arith.mulf %806, %1246 : vector<1x8xf32>
    %1248 = arith.addf %1245, %1247 : vector<1x8xf32>
    %1249 = vector.broadcast %1216 : vector<1x1xf32> to vector<1x8xf32>
    %1250 = arith.mulf %811, %1249 : vector<1x8xf32>
    %1251 = arith.addf %1248, %1250 : vector<1x8xf32>
    %1252 = vector.broadcast %1212 : vector<1x1xf32> to vector<1x8xf32>
    %1253 = arith.mulf %816, %1252 : vector<1x8xf32>
    %1254 = vector.broadcast %1214 : vector<1x1xf32> to vector<1x8xf32>
    %1255 = arith.mulf %821, %1254 : vector<1x8xf32>
    %1256 = arith.addf %1253, %1255 : vector<1x8xf32>
    %1257 = vector.broadcast %1216 : vector<1x1xf32> to vector<1x8xf32>
    %1258 = arith.mulf %826, %1257 : vector<1x8xf32>
    %1259 = arith.addf %1256, %1258 : vector<1x8xf32>
    %1260 = vector.broadcast %1212 : vector<1x1xf32> to vector<1x8xf32>
    %1261 = arith.mulf %831, %1260 : vector<1x8xf32>
    %1262 = vector.broadcast %1214 : vector<1x1xf32> to vector<1x8xf32>
    %1263 = arith.mulf %836, %1262 : vector<1x8xf32>
    %1264 = arith.addf %1261, %1263 : vector<1x8xf32>
    %1265 = vector.broadcast %1216 : vector<1x1xf32> to vector<1x8xf32>
    %1266 = arith.mulf %841, %1265 : vector<1x8xf32>
    %1267 = arith.addf %1264, %1266 : vector<1x8xf32>
    %1268 = arith.addf %1251, %905 : vector<1x8xf32>
    %1269 = arith.addf %1259, %906 : vector<1x8xf32>
    %1270 = arith.addf %1267, %907 : vector<1x8xf32>
    %1271 = arith.subf %1119, %1164 : vector<1x8xf32>
    %1272 = math.absf %1271 : vector<1x8xf32>
    %1273 = arith.subf %1124, %1169 : vector<1x8xf32>
    %1274 = math.absf %1273 : vector<1x8xf32>
    %1275 = arith.addf %1272, %1274 : vector<1x8xf32>
    %1276 = arith.subf %1129, %1174 : vector<1x8xf32>
    %1277 = math.absf %1276 : vector<1x8xf32>
    %1278 = arith.addf %1275, %1277 : vector<1x8xf32>
    %1279 = arith.subf %1134, %1179 : vector<1x8xf32>
    %1280 = math.absf %1279 : vector<1x8xf32>
    %1281 = arith.addf %1278, %1280 : vector<1x8xf32>
    %1282 = arith.subf %1139, %1184 : vector<1x8xf32>
    %1283 = math.absf %1282 : vector<1x8xf32>
    %1284 = arith.addf %1281, %1283 : vector<1x8xf32>
    %1285 = arith.subf %1144, %1189 : vector<1x8xf32>
    %1286 = math.absf %1285 : vector<1x8xf32>
    %1287 = arith.addf %1284, %1286 : vector<1x8xf32>
    %1288 = arith.subf %1149, %1194 : vector<1x8xf32>
    %1289 = math.absf %1288 : vector<1x8xf32>
    %1290 = arith.addf %1287, %1289 : vector<1x8xf32>
    %1291 = arith.subf %1154, %1199 : vector<1x8xf32>
    %1292 = math.absf %1291 : vector<1x8xf32>
    %1293 = arith.addf %1290, %1292 : vector<1x8xf32>
    %1294 = arith.subf %1159, %1204 : vector<1x8xf32>
    %1295 = math.absf %1294 : vector<1x8xf32>
    %1296 = arith.addf %1293, %1295 : vector<1x8xf32>
    %1297 = arith.addf %934, %1296 : vector<1x8xf32>
    %1298 = arith.subf %1241, %1268 : vector<1x8xf32>
    %1299 = math.absf %1298 : vector<1x8xf32>
    %1300 = arith.subf %1242, %1269 : vector<1x8xf32>
    %1301 = math.absf %1300 : vector<1x8xf32>
    %1302 = arith.addf %1299, %1301 : vector<1x8xf32>
    %1303 = arith.subf %1243, %1270 : vector<1x8xf32>
    %1304 = math.absf %1303 : vector<1x8xf32>
    %1305 = arith.addf %1302, %1304 : vector<1x8xf32>
    %1306 = vector.broadcast %946 : vector<1x1xf32> to vector<1x8xf32>
    %1307 = arith.mulf %1306, %1305 : vector<1x8xf32>
    %1308 = arith.addf %945, %1307 : vector<1x8xf32>
    %c0_213 = arith.constant 0 : index
    %c4_214 = arith.constant 4 : index
    %1309 = vector.load %arg5[%c0_213, %c4_214] : memref<1x8xf32, #tpu.memory_space<vmem>>, vector<1x1xf32>
    %c0_215 = arith.constant 0 : index
    %c16 = arith.constant 16 : index
    %c0_216 = arith.constant 0 : index
    %1310 = vector.load %arg1[%c0_215, %c16, %c0_216] : memref<1x35x8xf32, #tpu.memory_space<vmem>>, vector<1x1x8xf32>
    %1311 = vector.shape_cast %1310 : vector<1x1x8xf32> to vector<1x8xf32>
    %c0_217 = arith.constant 0 : index
    %c17 = arith.constant 17 : index
    %c0_218 = arith.constant 0 : index
    %1312 = vector.load %arg1[%c0_217, %c17, %c0_218] : memref<1x35x8xf32, #tpu.memory_space<vmem>>, vector<1x1x8xf32>
    %1313 = vector.shape_cast %1312 : vector<1x1x8xf32> to vector<1x8xf32>
    %c0_219 = arith.constant 0 : index
    %c18 = arith.constant 18 : index
    %c0_220 = arith.constant 0 : index
    %1314 = vector.load %arg1[%c0_219, %c18, %c0_220] : memref<1x35x8xf32, #tpu.memory_space<vmem>>, vector<1x1x8xf32>
    %1315 = vector.shape_cast %1314 : vector<1x1x8xf32> to vector<1x8xf32>
    %c0_221 = arith.constant 0 : index
    %c19 = arith.constant 19 : index
    %c0_222 = arith.constant 0 : index
    %1316 = vector.load %arg1[%c0_221, %c19, %c0_222] : memref<1x35x8xf32, #tpu.memory_space<vmem>>, vector<1x1x8xf32>
    %1317 = vector.shape_cast %1316 : vector<1x1x8xf32> to vector<1x8xf32>
    %c0_223 = arith.constant 0 : index
    %c16_224 = arith.constant 16 : index
    %c0_225 = arith.constant 0 : index
    %1318 = vector.load %arg2[%c0_223, %c16_224, %c0_225] : memref<1x35x8xf32, #tpu.memory_space<vmem>>, vector<1x1x8xf32>
    %1319 = vector.shape_cast %1318 : vector<1x1x8xf32> to vector<1x8xf32>
    %c0_226 = arith.constant 0 : index
    %c17_227 = arith.constant 17 : index
    %c0_228 = arith.constant 0 : index
    %1320 = vector.load %arg2[%c0_226, %c17_227, %c0_228] : memref<1x35x8xf32, #tpu.memory_space<vmem>>, vector<1x1x8xf32>
    %1321 = vector.shape_cast %1320 : vector<1x1x8xf32> to vector<1x8xf32>
    %c0_229 = arith.constant 0 : index
    %c18_230 = arith.constant 18 : index
    %c0_231 = arith.constant 0 : index
    %1322 = vector.load %arg2[%c0_229, %c18_230, %c0_231] : memref<1x35x8xf32, #tpu.memory_space<vmem>>, vector<1x1x8xf32>
    %1323 = vector.shape_cast %1322 : vector<1x1x8xf32> to vector<1x8xf32>
    %c0_232 = arith.constant 0 : index
    %c19_233 = arith.constant 19 : index
    %c0_234 = arith.constant 0 : index
    %1324 = vector.load %arg2[%c0_232, %c19_233, %c0_234] : memref<1x35x8xf32, #tpu.memory_space<vmem>>, vector<1x1x8xf32>
    %1325 = vector.shape_cast %1324 : vector<1x1x8xf32> to vector<1x8xf32>
    %1326 = arith.mulf %1311, %1311 : vector<1x8xf32>
    %1327 = arith.mulf %1313, %1313 : vector<1x8xf32>
    %1328 = arith.addf %1326, %1327 : vector<1x8xf32>
    %1329 = arith.mulf %1315, %1315 : vector<1x8xf32>
    %1330 = arith.addf %1328, %1329 : vector<1x8xf32>
    %1331 = arith.mulf %1317, %1317 : vector<1x8xf32>
    %1332 = arith.addf %1330, %1331 : vector<1x8xf32>
    %1333 = math.sqrt %1332 : vector<1x8xf32>
    %cst_235 = arith.constant 9.99999996E-13 : f32
    %1334 = vector.broadcast %cst_235 : f32 to vector<1x8xf32>
    %1335 = arith.maximumf %1333, %1334 : vector<1x8xf32>
    %cst_236 = arith.constant 1.000000e+00 : f32
    %1336 = vector.broadcast %cst_236 : f32 to vector<1x8xf32>
    %1337 = arith.divf %1336, %1335 : vector<1x8xf32>
    %1338 = arith.mulf %1311, %1337 : vector<1x8xf32>
    %1339 = arith.mulf %1313, %1337 : vector<1x8xf32>
    %1340 = arith.mulf %1315, %1337 : vector<1x8xf32>
    %1341 = arith.mulf %1317, %1337 : vector<1x8xf32>
    %1342 = arith.mulf %1319, %1319 : vector<1x8xf32>
    %1343 = arith.mulf %1321, %1321 : vector<1x8xf32>
    %1344 = arith.addf %1342, %1343 : vector<1x8xf32>
    %1345 = arith.mulf %1323, %1323 : vector<1x8xf32>
    %1346 = arith.addf %1344, %1345 : vector<1x8xf32>
    %1347 = arith.mulf %1325, %1325 : vector<1x8xf32>
    %1348 = arith.addf %1346, %1347 : vector<1x8xf32>
    %1349 = math.sqrt %1348 : vector<1x8xf32>
    %cst_237 = arith.constant 9.99999996E-13 : f32
    %1350 = vector.broadcast %cst_237 : f32 to vector<1x8xf32>
    %1351 = arith.maximumf %1349, %1350 : vector<1x8xf32>
    %cst_238 = arith.constant 1.000000e+00 : f32
    %1352 = vector.broadcast %cst_238 : f32 to vector<1x8xf32>
    %1353 = arith.divf %1352, %1351 : vector<1x8xf32>
    %1354 = arith.mulf %1319, %1353 : vector<1x8xf32>
    %1355 = arith.mulf %1321, %1353 : vector<1x8xf32>
    %1356 = arith.mulf %1323, %1353 : vector<1x8xf32>
    %1357 = arith.mulf %1325, %1353 : vector<1x8xf32>
    %1358 = arith.subf %1338, %1354 : vector<1x8xf32>
    %1359 = math.absf %1358 : vector<1x8xf32>
    %1360 = arith.subf %1339, %1355 : vector<1x8xf32>
    %1361 = math.absf %1360 : vector<1x8xf32>
    %1362 = arith.addf %1359, %1361 : vector<1x8xf32>
    %1363 = arith.subf %1340, %1356 : vector<1x8xf32>
    %1364 = math.absf %1363 : vector<1x8xf32>
    %1365 = arith.addf %1362, %1364 : vector<1x8xf32>
    %1366 = arith.subf %1341, %1357 : vector<1x8xf32>
    %1367 = math.absf %1366 : vector<1x8xf32>
    %1368 = arith.addf %1365, %1367 : vector<1x8xf32>
    %1369 = vector.broadcast %1309 : vector<1x1xf32> to vector<1x8xf32>
    %1370 = arith.mulf %1369, %1368 : vector<1x8xf32>
    %1371 = arith.addf %1008, %1370 : vector<1x8xf32>
    %1372 = arith.mulf %1311, %1311 : vector<1x8xf32>
    %1373 = arith.mulf %1313, %1313 : vector<1x8xf32>
    %1374 = arith.addf %1372, %1373 : vector<1x8xf32>
    %1375 = arith.mulf %1315, %1315 : vector<1x8xf32>
    %1376 = arith.addf %1374, %1375 : vector<1x8xf32>
    %1377 = arith.mulf %1317, %1317 : vector<1x8xf32>
    %1378 = arith.addf %1376, %1377 : vector<1x8xf32>
    %cst_239 = arith.constant 9.99999996E-13 : f32
    %1379 = vector.broadcast %cst_239 : f32 to vector<1x8xf32>
    %1380 = arith.maximumf %1378, %1379 : vector<1x8xf32>
    %cst_240 = arith.constant 2.000000e+00 : f32
    %1381 = vector.broadcast %cst_240 : f32 to vector<1x8xf32>
    %1382 = arith.divf %1381, %1380 : vector<1x8xf32>
    %1383 = arith.mulf %1315, %1315 : vector<1x8xf32>
    %1384 = arith.mulf %1317, %1317 : vector<1x8xf32>
    %1385 = arith.addf %1383, %1384 : vector<1x8xf32>
    %1386 = arith.mulf %1382, %1385 : vector<1x8xf32>
    %cst_241 = arith.constant 1.000000e+00 : f32
    %1387 = vector.broadcast %cst_241 : f32 to vector<1x8xf32>
    %1388 = arith.subf %1387, %1386 : vector<1x8xf32>
    %1389 = arith.mulf %1313, %1315 : vector<1x8xf32>
    %1390 = arith.mulf %1317, %1311 : vector<1x8xf32>
    %1391 = arith.subf %1389, %1390 : vector<1x8xf32>
    %1392 = arith.mulf %1382, %1391 : vector<1x8xf32>
    %1393 = arith.mulf %1313, %1317 : vector<1x8xf32>
    %1394 = arith.mulf %1315, %1311 : vector<1x8xf32>
    %1395 = arith.addf %1393, %1394 : vector<1x8xf32>
    %1396 = arith.mulf %1382, %1395 : vector<1x8xf32>
    %1397 = arith.mulf %1313, %1315 : vector<1x8xf32>
    %1398 = arith.mulf %1317, %1311 : vector<1x8xf32>
    %1399 = arith.addf %1397, %1398 : vector<1x8xf32>
    %1400 = arith.mulf %1382, %1399 : vector<1x8xf32>
    %1401 = arith.mulf %1313, %1313 : vector<1x8xf32>
    %1402 = arith.mulf %1317, %1317 : vector<1x8xf32>
    %1403 = arith.addf %1401, %1402 : vector<1x8xf32>
    %1404 = arith.mulf %1382, %1403 : vector<1x8xf32>
    %cst_242 = arith.constant 1.000000e+00 : f32
    %1405 = vector.broadcast %cst_242 : f32 to vector<1x8xf32>
    %1406 = arith.subf %1405, %1404 : vector<1x8xf32>
    %1407 = arith.mulf %1315, %1317 : vector<1x8xf32>
    %1408 = arith.mulf %1313, %1311 : vector<1x8xf32>
    %1409 = arith.subf %1407, %1408 : vector<1x8xf32>
    %1410 = arith.mulf %1382, %1409 : vector<1x8xf32>
    %1411 = arith.mulf %1313, %1317 : vector<1x8xf32>
    %1412 = arith.mulf %1315, %1311 : vector<1x8xf32>
    %1413 = arith.subf %1411, %1412 : vector<1x8xf32>
    %1414 = arith.mulf %1382, %1413 : vector<1x8xf32>
    %1415 = arith.mulf %1315, %1317 : vector<1x8xf32>
    %1416 = arith.mulf %1313, %1311 : vector<1x8xf32>
    %1417 = arith.addf %1415, %1416 : vector<1x8xf32>
    %1418 = arith.mulf %1382, %1417 : vector<1x8xf32>
    %1419 = arith.mulf %1313, %1313 : vector<1x8xf32>
    %1420 = arith.mulf %1315, %1315 : vector<1x8xf32>
    %1421 = arith.addf %1419, %1420 : vector<1x8xf32>
    %1422 = arith.mulf %1382, %1421 : vector<1x8xf32>
    %cst_243 = arith.constant 1.000000e+00 : f32
    %1423 = vector.broadcast %cst_243 : f32 to vector<1x8xf32>
    %1424 = arith.subf %1423, %1422 : vector<1x8xf32>
    %1425 = arith.mulf %1319, %1319 : vector<1x8xf32>
    %1426 = arith.mulf %1321, %1321 : vector<1x8xf32>
    %1427 = arith.addf %1425, %1426 : vector<1x8xf32>
    %1428 = arith.mulf %1323, %1323 : vector<1x8xf32>
    %1429 = arith.addf %1427, %1428 : vector<1x8xf32>
    %1430 = arith.mulf %1325, %1325 : vector<1x8xf32>
    %1431 = arith.addf %1429, %1430 : vector<1x8xf32>
    %cst_244 = arith.constant 9.99999996E-13 : f32
    %1432 = vector.broadcast %cst_244 : f32 to vector<1x8xf32>
    %1433 = arith.maximumf %1431, %1432 : vector<1x8xf32>
    %cst_245 = arith.constant 2.000000e+00 : f32
    %1434 = vector.broadcast %cst_245 : f32 to vector<1x8xf32>
    %1435 = arith.divf %1434, %1433 : vector<1x8xf32>
    %1436 = arith.mulf %1323, %1323 : vector<1x8xf32>
    %1437 = arith.mulf %1325, %1325 : vector<1x8xf32>
    %1438 = arith.addf %1436, %1437 : vector<1x8xf32>
    %1439 = arith.mulf %1435, %1438 : vector<1x8xf32>
    %cst_246 = arith.constant 1.000000e+00 : f32
    %1440 = vector.broadcast %cst_246 : f32 to vector<1x8xf32>
    %1441 = arith.subf %1440, %1439 : vector<1x8xf32>
    %1442 = arith.mulf %1321, %1323 : vector<1x8xf32>
    %1443 = arith.mulf %1325, %1319 : vector<1x8xf32>
    %1444 = arith.subf %1442, %1443 : vector<1x8xf32>
    %1445 = arith.mulf %1435, %1444 : vector<1x8xf32>
    %1446 = arith.mulf %1321, %1325 : vector<1x8xf32>
    %1447 = arith.mulf %1323, %1319 : vector<1x8xf32>
    %1448 = arith.addf %1446, %1447 : vector<1x8xf32>
    %1449 = arith.mulf %1435, %1448 : vector<1x8xf32>
    %1450 = arith.mulf %1321, %1323 : vector<1x8xf32>
    %1451 = arith.mulf %1325, %1319 : vector<1x8xf32>
    %1452 = arith.addf %1450, %1451 : vector<1x8xf32>
    %1453 = arith.mulf %1435, %1452 : vector<1x8xf32>
    %1454 = arith.mulf %1321, %1321 : vector<1x8xf32>
    %1455 = arith.mulf %1325, %1325 : vector<1x8xf32>
    %1456 = arith.addf %1454, %1455 : vector<1x8xf32>
    %1457 = arith.mulf %1435, %1456 : vector<1x8xf32>
    %cst_247 = arith.constant 1.000000e+00 : f32
    %1458 = vector.broadcast %cst_247 : f32 to vector<1x8xf32>
    %1459 = arith.subf %1458, %1457 : vector<1x8xf32>
    %1460 = arith.mulf %1323, %1325 : vector<1x8xf32>
    %1461 = arith.mulf %1321, %1319 : vector<1x8xf32>
    %1462 = arith.subf %1460, %1461 : vector<1x8xf32>
    %1463 = arith.mulf %1435, %1462 : vector<1x8xf32>
    %1464 = arith.mulf %1321, %1325 : vector<1x8xf32>
    %1465 = arith.mulf %1323, %1319 : vector<1x8xf32>
    %1466 = arith.subf %1464, %1465 : vector<1x8xf32>
    %1467 = arith.mulf %1435, %1466 : vector<1x8xf32>
    %1468 = arith.mulf %1323, %1325 : vector<1x8xf32>
    %1469 = arith.mulf %1321, %1319 : vector<1x8xf32>
    %1470 = arith.addf %1468, %1469 : vector<1x8xf32>
    %1471 = arith.mulf %1435, %1470 : vector<1x8xf32>
    %1472 = arith.mulf %1321, %1321 : vector<1x8xf32>
    %1473 = arith.mulf %1323, %1323 : vector<1x8xf32>
    %1474 = arith.addf %1472, %1473 : vector<1x8xf32>
    %1475 = arith.mulf %1435, %1474 : vector<1x8xf32>
    %cst_248 = arith.constant 1.000000e+00 : f32
    %1476 = vector.broadcast %cst_248 : f32 to vector<1x8xf32>
    %1477 = arith.subf %1476, %1475 : vector<1x8xf32>
    %1478 = arith.mulf %80, %1388 : vector<1x8xf32>
    %1479 = arith.mulf %84, %1400 : vector<1x8xf32>
    %1480 = arith.addf %1478, %1479 : vector<1x8xf32>
    %1481 = arith.mulf %88, %1414 : vector<1x8xf32>
    %1482 = arith.addf %1480, %1481 : vector<1x8xf32>
    %1483 = arith.mulf %80, %1392 : vector<1x8xf32>
    %1484 = arith.mulf %84, %1406 : vector<1x8xf32>
    %1485 = arith.addf %1483, %1484 : vector<1x8xf32>
    %1486 = arith.mulf %88, %1418 : vector<1x8xf32>
    %1487 = arith.addf %1485, %1486 : vector<1x8xf32>
    %1488 = arith.mulf %80, %1396 : vector<1x8xf32>
    %1489 = arith.mulf %84, %1410 : vector<1x8xf32>
    %1490 = arith.addf %1488, %1489 : vector<1x8xf32>
    %1491 = arith.mulf %88, %1424 : vector<1x8xf32>
    %1492 = arith.addf %1490, %1491 : vector<1x8xf32>
    %1493 = arith.mulf %92, %1388 : vector<1x8xf32>
    %1494 = arith.mulf %98, %1400 : vector<1x8xf32>
    %1495 = arith.addf %1493, %1494 : vector<1x8xf32>
    %1496 = arith.mulf %102, %1414 : vector<1x8xf32>
    %1497 = arith.addf %1495, %1496 : vector<1x8xf32>
    %1498 = arith.mulf %92, %1392 : vector<1x8xf32>
    %1499 = arith.mulf %98, %1406 : vector<1x8xf32>
    %1500 = arith.addf %1498, %1499 : vector<1x8xf32>
    %1501 = arith.mulf %102, %1418 : vector<1x8xf32>
    %1502 = arith.addf %1500, %1501 : vector<1x8xf32>
    %1503 = arith.mulf %92, %1396 : vector<1x8xf32>
    %1504 = arith.mulf %98, %1410 : vector<1x8xf32>
    %1505 = arith.addf %1503, %1504 : vector<1x8xf32>
    %1506 = arith.mulf %102, %1424 : vector<1x8xf32>
    %1507 = arith.addf %1505, %1506 : vector<1x8xf32>
    %1508 = arith.mulf %106, %1388 : vector<1x8xf32>
    %1509 = arith.mulf %110, %1400 : vector<1x8xf32>
    %1510 = arith.addf %1508, %1509 : vector<1x8xf32>
    %1511 = arith.mulf %116, %1414 : vector<1x8xf32>
    %1512 = arith.addf %1510, %1511 : vector<1x8xf32>
    %1513 = arith.mulf %106, %1392 : vector<1x8xf32>
    %1514 = arith.mulf %110, %1406 : vector<1x8xf32>
    %1515 = arith.addf %1513, %1514 : vector<1x8xf32>
    %1516 = arith.mulf %116, %1418 : vector<1x8xf32>
    %1517 = arith.addf %1515, %1516 : vector<1x8xf32>
    %1518 = arith.mulf %106, %1396 : vector<1x8xf32>
    %1519 = arith.mulf %110, %1410 : vector<1x8xf32>
    %1520 = arith.addf %1518, %1519 : vector<1x8xf32>
    %1521 = arith.mulf %116, %1424 : vector<1x8xf32>
    %1522 = arith.addf %1520, %1521 : vector<1x8xf32>
    %1523 = arith.mulf %133, %1441 : vector<1x8xf32>
    %1524 = arith.mulf %137, %1453 : vector<1x8xf32>
    %1525 = arith.addf %1523, %1524 : vector<1x8xf32>
    %1526 = arith.mulf %141, %1467 : vector<1x8xf32>
    %1527 = arith.addf %1525, %1526 : vector<1x8xf32>
    %1528 = arith.mulf %133, %1445 : vector<1x8xf32>
    %1529 = arith.mulf %137, %1459 : vector<1x8xf32>
    %1530 = arith.addf %1528, %1529 : vector<1x8xf32>
    %1531 = arith.mulf %141, %1471 : vector<1x8xf32>
    %1532 = arith.addf %1530, %1531 : vector<1x8xf32>
    %1533 = arith.mulf %133, %1449 : vector<1x8xf32>
    %1534 = arith.mulf %137, %1463 : vector<1x8xf32>
    %1535 = arith.addf %1533, %1534 : vector<1x8xf32>
    %1536 = arith.mulf %141, %1477 : vector<1x8xf32>
    %1537 = arith.addf %1535, %1536 : vector<1x8xf32>
    %1538 = arith.mulf %145, %1441 : vector<1x8xf32>
    %1539 = arith.mulf %151, %1453 : vector<1x8xf32>
    %1540 = arith.addf %1538, %1539 : vector<1x8xf32>
    %1541 = arith.mulf %155, %1467 : vector<1x8xf32>
    %1542 = arith.addf %1540, %1541 : vector<1x8xf32>
    %1543 = arith.mulf %145, %1445 : vector<1x8xf32>
    %1544 = arith.mulf %151, %1459 : vector<1x8xf32>
    %1545 = arith.addf %1543, %1544 : vector<1x8xf32>
    %1546 = arith.mulf %155, %1471 : vector<1x8xf32>
    %1547 = arith.addf %1545, %1546 : vector<1x8xf32>
    %1548 = arith.mulf %145, %1449 : vector<1x8xf32>
    %1549 = arith.mulf %151, %1463 : vector<1x8xf32>
    %1550 = arith.addf %1548, %1549 : vector<1x8xf32>
    %1551 = arith.mulf %155, %1477 : vector<1x8xf32>
    %1552 = arith.addf %1550, %1551 : vector<1x8xf32>
    %1553 = arith.mulf %159, %1441 : vector<1x8xf32>
    %1554 = arith.mulf %163, %1453 : vector<1x8xf32>
    %1555 = arith.addf %1553, %1554 : vector<1x8xf32>
    %1556 = arith.mulf %169, %1467 : vector<1x8xf32>
    %1557 = arith.addf %1555, %1556 : vector<1x8xf32>
    %1558 = arith.mulf %159, %1445 : vector<1x8xf32>
    %1559 = arith.mulf %163, %1459 : vector<1x8xf32>
    %1560 = arith.addf %1558, %1559 : vector<1x8xf32>
    %1561 = arith.mulf %169, %1471 : vector<1x8xf32>
    %1562 = arith.addf %1560, %1561 : vector<1x8xf32>
    %1563 = arith.mulf %159, %1449 : vector<1x8xf32>
    %1564 = arith.mulf %163, %1463 : vector<1x8xf32>
    %1565 = arith.addf %1563, %1564 : vector<1x8xf32>
    %1566 = arith.mulf %169, %1477 : vector<1x8xf32>
    %1567 = arith.addf %1565, %1566 : vector<1x8xf32>
    %c0_249 = arith.constant 0 : index
    %c0_250 = arith.constant 0 : index
    %c12_251 = arith.constant 12 : index
    %1568 = vector.load %arg3[%c0_249, %c0_250, %c12_251] : memref<1x1x24xf32, #tpu.memory_space<vmem>>, vector<1x1x1xf32>
    %1569 = vector.shape_cast %1568 : vector<1x1x1xf32> to vector<1x1xf32>
    %c0_252 = arith.constant 0 : index
    %c0_253 = arith.constant 0 : index
    %c13_254 = arith.constant 13 : index
    %1570 = vector.load %arg3[%c0_252, %c0_253, %c13_254] : memref<1x1x24xf32, #tpu.memory_space<vmem>>, vector<1x1x1xf32>
    %1571 = vector.shape_cast %1570 : vector<1x1x1xf32> to vector<1x1xf32>
    %c0_255 = arith.constant 0 : index
    %c0_256 = arith.constant 0 : index
    %c14_257 = arith.constant 14 : index
    %1572 = vector.load %arg3[%c0_255, %c0_256, %c14_257] : memref<1x1x24xf32, #tpu.memory_space<vmem>>, vector<1x1x1xf32>
    %1573 = vector.shape_cast %1572 : vector<1x1x1xf32> to vector<1x1xf32>
    %c0_258 = arith.constant 0 : index
    %c0_259 = arith.constant 0 : index
    %c12_260 = arith.constant 12 : index
    %1574 = vector.load %arg4[%c0_258, %c0_259, %c12_260] : memref<1x1x24xf32, #tpu.memory_space<vmem>>, vector<1x1x1xf32>
    %1575 = vector.shape_cast %1574 : vector<1x1x1xf32> to vector<1x1xf32>
    %c0_261 = arith.constant 0 : index
    %c0_262 = arith.constant 0 : index
    %c13_263 = arith.constant 13 : index
    %1576 = vector.load %arg4[%c0_261, %c0_262, %c13_263] : memref<1x1x24xf32, #tpu.memory_space<vmem>>, vector<1x1x1xf32>
    %1577 = vector.shape_cast %1576 : vector<1x1x1xf32> to vector<1x1xf32>
    %c0_264 = arith.constant 0 : index
    %c0_265 = arith.constant 0 : index
    %c14_266 = arith.constant 14 : index
    %1578 = vector.load %arg4[%c0_264, %c0_265, %c14_266] : memref<1x1x24xf32, #tpu.memory_space<vmem>>, vector<1x1x1xf32>
    %1579 = vector.shape_cast %1578 : vector<1x1x1xf32> to vector<1x1xf32>
    %1580 = vector.broadcast %1569 : vector<1x1xf32> to vector<1x8xf32>
    %1581 = arith.mulf %80, %1580 : vector<1x8xf32>
    %1582 = vector.broadcast %1571 : vector<1x1xf32> to vector<1x8xf32>
    %1583 = arith.mulf %84, %1582 : vector<1x8xf32>
    %1584 = arith.addf %1581, %1583 : vector<1x8xf32>
    %1585 = vector.broadcast %1573 : vector<1x1xf32> to vector<1x8xf32>
    %1586 = arith.mulf %88, %1585 : vector<1x8xf32>
    %1587 = arith.addf %1584, %1586 : vector<1x8xf32>
    %1588 = vector.broadcast %1569 : vector<1x1xf32> to vector<1x8xf32>
    %1589 = arith.mulf %92, %1588 : vector<1x8xf32>
    %1590 = vector.broadcast %1571 : vector<1x1xf32> to vector<1x8xf32>
    %1591 = arith.mulf %98, %1590 : vector<1x8xf32>
    %1592 = arith.addf %1589, %1591 : vector<1x8xf32>
    %1593 = vector.broadcast %1573 : vector<1x1xf32> to vector<1x8xf32>
    %1594 = arith.mulf %102, %1593 : vector<1x8xf32>
    %1595 = arith.addf %1592, %1594 : vector<1x8xf32>
    %1596 = vector.broadcast %1569 : vector<1x1xf32> to vector<1x8xf32>
    %1597 = arith.mulf %106, %1596 : vector<1x8xf32>
    %1598 = vector.broadcast %1571 : vector<1x1xf32> to vector<1x8xf32>
    %1599 = arith.mulf %110, %1598 : vector<1x8xf32>
    %1600 = arith.addf %1597, %1599 : vector<1x8xf32>
    %1601 = vector.broadcast %1573 : vector<1x1xf32> to vector<1x8xf32>
    %1602 = arith.mulf %116, %1601 : vector<1x8xf32>
    %1603 = arith.addf %1600, %1602 : vector<1x8xf32>
    %1604 = arith.addf %1587, %171 : vector<1x8xf32>
    %1605 = arith.addf %1595, %173 : vector<1x8xf32>
    %1606 = arith.addf %1603, %175 : vector<1x8xf32>
    %1607 = vector.broadcast %1575 : vector<1x1xf32> to vector<1x8xf32>
    %1608 = arith.mulf %133, %1607 : vector<1x8xf32>
    %1609 = vector.broadcast %1577 : vector<1x1xf32> to vector<1x8xf32>
    %1610 = arith.mulf %137, %1609 : vector<1x8xf32>
    %1611 = arith.addf %1608, %1610 : vector<1x8xf32>
    %1612 = vector.broadcast %1579 : vector<1x1xf32> to vector<1x8xf32>
    %1613 = arith.mulf %141, %1612 : vector<1x8xf32>
    %1614 = arith.addf %1611, %1613 : vector<1x8xf32>
    %1615 = vector.broadcast %1575 : vector<1x1xf32> to vector<1x8xf32>
    %1616 = arith.mulf %145, %1615 : vector<1x8xf32>
    %1617 = vector.broadcast %1577 : vector<1x1xf32> to vector<1x8xf32>
    %1618 = arith.mulf %151, %1617 : vector<1x8xf32>
    %1619 = arith.addf %1616, %1618 : vector<1x8xf32>
    %1620 = vector.broadcast %1579 : vector<1x1xf32> to vector<1x8xf32>
    %1621 = arith.mulf %155, %1620 : vector<1x8xf32>
    %1622 = arith.addf %1619, %1621 : vector<1x8xf32>
    %1623 = vector.broadcast %1575 : vector<1x1xf32> to vector<1x8xf32>
    %1624 = arith.mulf %159, %1623 : vector<1x8xf32>
    %1625 = vector.broadcast %1577 : vector<1x1xf32> to vector<1x8xf32>
    %1626 = arith.mulf %163, %1625 : vector<1x8xf32>
    %1627 = arith.addf %1624, %1626 : vector<1x8xf32>
    %1628 = vector.broadcast %1579 : vector<1x1xf32> to vector<1x8xf32>
    %1629 = arith.mulf %169, %1628 : vector<1x8xf32>
    %1630 = arith.addf %1627, %1629 : vector<1x8xf32>
    %1631 = arith.addf %1614, %177 : vector<1x8xf32>
    %1632 = arith.addf %1622, %179 : vector<1x8xf32>
    %1633 = arith.addf %1630, %181 : vector<1x8xf32>
    %1634 = arith.subf %1482, %1527 : vector<1x8xf32>
    %1635 = math.absf %1634 : vector<1x8xf32>
    %1636 = arith.subf %1487, %1532 : vector<1x8xf32>
    %1637 = math.absf %1636 : vector<1x8xf32>
    %1638 = arith.addf %1635, %1637 : vector<1x8xf32>
    %1639 = arith.subf %1492, %1537 : vector<1x8xf32>
    %1640 = math.absf %1639 : vector<1x8xf32>
    %1641 = arith.addf %1638, %1640 : vector<1x8xf32>
    %1642 = arith.subf %1497, %1542 : vector<1x8xf32>
    %1643 = math.absf %1642 : vector<1x8xf32>
    %1644 = arith.addf %1641, %1643 : vector<1x8xf32>
    %1645 = arith.subf %1502, %1547 : vector<1x8xf32>
    %1646 = math.absf %1645 : vector<1x8xf32>
    %1647 = arith.addf %1644, %1646 : vector<1x8xf32>
    %1648 = arith.subf %1507, %1552 : vector<1x8xf32>
    %1649 = math.absf %1648 : vector<1x8xf32>
    %1650 = arith.addf %1647, %1649 : vector<1x8xf32>
    %1651 = arith.subf %1512, %1557 : vector<1x8xf32>
    %1652 = math.absf %1651 : vector<1x8xf32>
    %1653 = arith.addf %1650, %1652 : vector<1x8xf32>
    %1654 = arith.subf %1517, %1562 : vector<1x8xf32>
    %1655 = math.absf %1654 : vector<1x8xf32>
    %1656 = arith.addf %1653, %1655 : vector<1x8xf32>
    %1657 = arith.subf %1522, %1567 : vector<1x8xf32>
    %1658 = math.absf %1657 : vector<1x8xf32>
    %1659 = arith.addf %1656, %1658 : vector<1x8xf32>
    %1660 = arith.addf %1297, %1659 : vector<1x8xf32>
    %1661 = arith.subf %1604, %1631 : vector<1x8xf32>
    %1662 = math.absf %1661 : vector<1x8xf32>
    %1663 = arith.subf %1605, %1632 : vector<1x8xf32>
    %1664 = math.absf %1663 : vector<1x8xf32>
    %1665 = arith.addf %1662, %1664 : vector<1x8xf32>
    %1666 = arith.subf %1606, %1633 : vector<1x8xf32>
    %1667 = math.absf %1666 : vector<1x8xf32>
    %1668 = arith.addf %1665, %1667 : vector<1x8xf32>
    %1669 = vector.broadcast %1309 : vector<1x1xf32> to vector<1x8xf32>
    %1670 = arith.mulf %1669, %1668 : vector<1x8xf32>
    %1671 = arith.addf %1308, %1670 : vector<1x8xf32>
    %c0_267 = arith.constant 0 : index
    %c5_268 = arith.constant 5 : index
    %1672 = vector.load %arg5[%c0_267, %c5_268] : memref<1x8xf32, #tpu.memory_space<vmem>>, vector<1x1xf32>
    %c0_269 = arith.constant 0 : index
    %c20 = arith.constant 20 : index
    %c0_270 = arith.constant 0 : index
    %1673 = vector.load %arg1[%c0_269, %c20, %c0_270] : memref<1x35x8xf32, #tpu.memory_space<vmem>>, vector<1x1x8xf32>
    %1674 = vector.shape_cast %1673 : vector<1x1x8xf32> to vector<1x8xf32>
    %c0_271 = arith.constant 0 : index
    %c21 = arith.constant 21 : index
    %c0_272 = arith.constant 0 : index
    %1675 = vector.load %arg1[%c0_271, %c21, %c0_272] : memref<1x35x8xf32, #tpu.memory_space<vmem>>, vector<1x1x8xf32>
    %1676 = vector.shape_cast %1675 : vector<1x1x8xf32> to vector<1x8xf32>
    %c0_273 = arith.constant 0 : index
    %c22 = arith.constant 22 : index
    %c0_274 = arith.constant 0 : index
    %1677 = vector.load %arg1[%c0_273, %c22, %c0_274] : memref<1x35x8xf32, #tpu.memory_space<vmem>>, vector<1x1x8xf32>
    %1678 = vector.shape_cast %1677 : vector<1x1x8xf32> to vector<1x8xf32>
    %c0_275 = arith.constant 0 : index
    %c23 = arith.constant 23 : index
    %c0_276 = arith.constant 0 : index
    %1679 = vector.load %arg1[%c0_275, %c23, %c0_276] : memref<1x35x8xf32, #tpu.memory_space<vmem>>, vector<1x1x8xf32>
    %1680 = vector.shape_cast %1679 : vector<1x1x8xf32> to vector<1x8xf32>
    %c0_277 = arith.constant 0 : index
    %c20_278 = arith.constant 20 : index
    %c0_279 = arith.constant 0 : index
    %1681 = vector.load %arg2[%c0_277, %c20_278, %c0_279] : memref<1x35x8xf32, #tpu.memory_space<vmem>>, vector<1x1x8xf32>
    %1682 = vector.shape_cast %1681 : vector<1x1x8xf32> to vector<1x8xf32>
    %c0_280 = arith.constant 0 : index
    %c21_281 = arith.constant 21 : index
    %c0_282 = arith.constant 0 : index
    %1683 = vector.load %arg2[%c0_280, %c21_281, %c0_282] : memref<1x35x8xf32, #tpu.memory_space<vmem>>, vector<1x1x8xf32>
    %1684 = vector.shape_cast %1683 : vector<1x1x8xf32> to vector<1x8xf32>
    %c0_283 = arith.constant 0 : index
    %c22_284 = arith.constant 22 : index
    %c0_285 = arith.constant 0 : index
    %1685 = vector.load %arg2[%c0_283, %c22_284, %c0_285] : memref<1x35x8xf32, #tpu.memory_space<vmem>>, vector<1x1x8xf32>
    %1686 = vector.shape_cast %1685 : vector<1x1x8xf32> to vector<1x8xf32>
    %c0_286 = arith.constant 0 : index
    %c23_287 = arith.constant 23 : index
    %c0_288 = arith.constant 0 : index
    %1687 = vector.load %arg2[%c0_286, %c23_287, %c0_288] : memref<1x35x8xf32, #tpu.memory_space<vmem>>, vector<1x1x8xf32>
    %1688 = vector.shape_cast %1687 : vector<1x1x8xf32> to vector<1x8xf32>
    %1689 = arith.mulf %1674, %1674 : vector<1x8xf32>
    %1690 = arith.mulf %1676, %1676 : vector<1x8xf32>
    %1691 = arith.addf %1689, %1690 : vector<1x8xf32>
    %1692 = arith.mulf %1678, %1678 : vector<1x8xf32>
    %1693 = arith.addf %1691, %1692 : vector<1x8xf32>
    %1694 = arith.mulf %1680, %1680 : vector<1x8xf32>
    %1695 = arith.addf %1693, %1694 : vector<1x8xf32>
    %1696 = math.sqrt %1695 : vector<1x8xf32>
    %cst_289 = arith.constant 9.99999996E-13 : f32
    %1697 = vector.broadcast %cst_289 : f32 to vector<1x8xf32>
    %1698 = arith.maximumf %1696, %1697 : vector<1x8xf32>
    %cst_290 = arith.constant 1.000000e+00 : f32
    %1699 = vector.broadcast %cst_290 : f32 to vector<1x8xf32>
    %1700 = arith.divf %1699, %1698 : vector<1x8xf32>
    %1701 = arith.mulf %1674, %1700 : vector<1x8xf32>
    %1702 = arith.mulf %1676, %1700 : vector<1x8xf32>
    %1703 = arith.mulf %1678, %1700 : vector<1x8xf32>
    %1704 = arith.mulf %1680, %1700 : vector<1x8xf32>
    %1705 = arith.mulf %1682, %1682 : vector<1x8xf32>
    %1706 = arith.mulf %1684, %1684 : vector<1x8xf32>
    %1707 = arith.addf %1705, %1706 : vector<1x8xf32>
    %1708 = arith.mulf %1686, %1686 : vector<1x8xf32>
    %1709 = arith.addf %1707, %1708 : vector<1x8xf32>
    %1710 = arith.mulf %1688, %1688 : vector<1x8xf32>
    %1711 = arith.addf %1709, %1710 : vector<1x8xf32>
    %1712 = math.sqrt %1711 : vector<1x8xf32>
    %cst_291 = arith.constant 9.99999996E-13 : f32
    %1713 = vector.broadcast %cst_291 : f32 to vector<1x8xf32>
    %1714 = arith.maximumf %1712, %1713 : vector<1x8xf32>
    %cst_292 = arith.constant 1.000000e+00 : f32
    %1715 = vector.broadcast %cst_292 : f32 to vector<1x8xf32>
    %1716 = arith.divf %1715, %1714 : vector<1x8xf32>
    %1717 = arith.mulf %1682, %1716 : vector<1x8xf32>
    %1718 = arith.mulf %1684, %1716 : vector<1x8xf32>
    %1719 = arith.mulf %1686, %1716 : vector<1x8xf32>
    %1720 = arith.mulf %1688, %1716 : vector<1x8xf32>
    %1721 = arith.subf %1701, %1717 : vector<1x8xf32>
    %1722 = math.absf %1721 : vector<1x8xf32>
    %1723 = arith.subf %1702, %1718 : vector<1x8xf32>
    %1724 = math.absf %1723 : vector<1x8xf32>
    %1725 = arith.addf %1722, %1724 : vector<1x8xf32>
    %1726 = arith.subf %1703, %1719 : vector<1x8xf32>
    %1727 = math.absf %1726 : vector<1x8xf32>
    %1728 = arith.addf %1725, %1727 : vector<1x8xf32>
    %1729 = arith.subf %1704, %1720 : vector<1x8xf32>
    %1730 = math.absf %1729 : vector<1x8xf32>
    %1731 = arith.addf %1728, %1730 : vector<1x8xf32>
    %1732 = vector.broadcast %1672 : vector<1x1xf32> to vector<1x8xf32>
    %1733 = arith.mulf %1732, %1731 : vector<1x8xf32>
    %1734 = arith.addf %1371, %1733 : vector<1x8xf32>
    %1735 = arith.mulf %1674, %1674 : vector<1x8xf32>
    %1736 = arith.mulf %1676, %1676 : vector<1x8xf32>
    %1737 = arith.addf %1735, %1736 : vector<1x8xf32>
    %1738 = arith.mulf %1678, %1678 : vector<1x8xf32>
    %1739 = arith.addf %1737, %1738 : vector<1x8xf32>
    %1740 = arith.mulf %1680, %1680 : vector<1x8xf32>
    %1741 = arith.addf %1739, %1740 : vector<1x8xf32>
    %cst_293 = arith.constant 9.99999996E-13 : f32
    %1742 = vector.broadcast %cst_293 : f32 to vector<1x8xf32>
    %1743 = arith.maximumf %1741, %1742 : vector<1x8xf32>
    %cst_294 = arith.constant 2.000000e+00 : f32
    %1744 = vector.broadcast %cst_294 : f32 to vector<1x8xf32>
    %1745 = arith.divf %1744, %1743 : vector<1x8xf32>
    %1746 = arith.mulf %1678, %1678 : vector<1x8xf32>
    %1747 = arith.mulf %1680, %1680 : vector<1x8xf32>
    %1748 = arith.addf %1746, %1747 : vector<1x8xf32>
    %1749 = arith.mulf %1745, %1748 : vector<1x8xf32>
    %cst_295 = arith.constant 1.000000e+00 : f32
    %1750 = vector.broadcast %cst_295 : f32 to vector<1x8xf32>
    %1751 = arith.subf %1750, %1749 : vector<1x8xf32>
    %1752 = arith.mulf %1676, %1678 : vector<1x8xf32>
    %1753 = arith.mulf %1680, %1674 : vector<1x8xf32>
    %1754 = arith.subf %1752, %1753 : vector<1x8xf32>
    %1755 = arith.mulf %1745, %1754 : vector<1x8xf32>
    %1756 = arith.mulf %1676, %1680 : vector<1x8xf32>
    %1757 = arith.mulf %1678, %1674 : vector<1x8xf32>
    %1758 = arith.addf %1756, %1757 : vector<1x8xf32>
    %1759 = arith.mulf %1745, %1758 : vector<1x8xf32>
    %1760 = arith.mulf %1676, %1678 : vector<1x8xf32>
    %1761 = arith.mulf %1680, %1674 : vector<1x8xf32>
    %1762 = arith.addf %1760, %1761 : vector<1x8xf32>
    %1763 = arith.mulf %1745, %1762 : vector<1x8xf32>
    %1764 = arith.mulf %1676, %1676 : vector<1x8xf32>
    %1765 = arith.mulf %1680, %1680 : vector<1x8xf32>
    %1766 = arith.addf %1764, %1765 : vector<1x8xf32>
    %1767 = arith.mulf %1745, %1766 : vector<1x8xf32>
    %cst_296 = arith.constant 1.000000e+00 : f32
    %1768 = vector.broadcast %cst_296 : f32 to vector<1x8xf32>
    %1769 = arith.subf %1768, %1767 : vector<1x8xf32>
    %1770 = arith.mulf %1678, %1680 : vector<1x8xf32>
    %1771 = arith.mulf %1676, %1674 : vector<1x8xf32>
    %1772 = arith.subf %1770, %1771 : vector<1x8xf32>
    %1773 = arith.mulf %1745, %1772 : vector<1x8xf32>
    %1774 = arith.mulf %1676, %1680 : vector<1x8xf32>
    %1775 = arith.mulf %1678, %1674 : vector<1x8xf32>
    %1776 = arith.subf %1774, %1775 : vector<1x8xf32>
    %1777 = arith.mulf %1745, %1776 : vector<1x8xf32>
    %1778 = arith.mulf %1678, %1680 : vector<1x8xf32>
    %1779 = arith.mulf %1676, %1674 : vector<1x8xf32>
    %1780 = arith.addf %1778, %1779 : vector<1x8xf32>
    %1781 = arith.mulf %1745, %1780 : vector<1x8xf32>
    %1782 = arith.mulf %1676, %1676 : vector<1x8xf32>
    %1783 = arith.mulf %1678, %1678 : vector<1x8xf32>
    %1784 = arith.addf %1782, %1783 : vector<1x8xf32>
    %1785 = arith.mulf %1745, %1784 : vector<1x8xf32>
    %cst_297 = arith.constant 1.000000e+00 : f32
    %1786 = vector.broadcast %cst_297 : f32 to vector<1x8xf32>
    %1787 = arith.subf %1786, %1785 : vector<1x8xf32>
    %1788 = arith.mulf %1682, %1682 : vector<1x8xf32>
    %1789 = arith.mulf %1684, %1684 : vector<1x8xf32>
    %1790 = arith.addf %1788, %1789 : vector<1x8xf32>
    %1791 = arith.mulf %1686, %1686 : vector<1x8xf32>
    %1792 = arith.addf %1790, %1791 : vector<1x8xf32>
    %1793 = arith.mulf %1688, %1688 : vector<1x8xf32>
    %1794 = arith.addf %1792, %1793 : vector<1x8xf32>
    %cst_298 = arith.constant 9.99999996E-13 : f32
    %1795 = vector.broadcast %cst_298 : f32 to vector<1x8xf32>
    %1796 = arith.maximumf %1794, %1795 : vector<1x8xf32>
    %cst_299 = arith.constant 2.000000e+00 : f32
    %1797 = vector.broadcast %cst_299 : f32 to vector<1x8xf32>
    %1798 = arith.divf %1797, %1796 : vector<1x8xf32>
    %1799 = arith.mulf %1686, %1686 : vector<1x8xf32>
    %1800 = arith.mulf %1688, %1688 : vector<1x8xf32>
    %1801 = arith.addf %1799, %1800 : vector<1x8xf32>
    %1802 = arith.mulf %1798, %1801 : vector<1x8xf32>
    %cst_300 = arith.constant 1.000000e+00 : f32
    %1803 = vector.broadcast %cst_300 : f32 to vector<1x8xf32>
    %1804 = arith.subf %1803, %1802 : vector<1x8xf32>
    %1805 = arith.mulf %1684, %1686 : vector<1x8xf32>
    %1806 = arith.mulf %1688, %1682 : vector<1x8xf32>
    %1807 = arith.subf %1805, %1806 : vector<1x8xf32>
    %1808 = arith.mulf %1798, %1807 : vector<1x8xf32>
    %1809 = arith.mulf %1684, %1688 : vector<1x8xf32>
    %1810 = arith.mulf %1686, %1682 : vector<1x8xf32>
    %1811 = arith.addf %1809, %1810 : vector<1x8xf32>
    %1812 = arith.mulf %1798, %1811 : vector<1x8xf32>
    %1813 = arith.mulf %1684, %1686 : vector<1x8xf32>
    %1814 = arith.mulf %1688, %1682 : vector<1x8xf32>
    %1815 = arith.addf %1813, %1814 : vector<1x8xf32>
    %1816 = arith.mulf %1798, %1815 : vector<1x8xf32>
    %1817 = arith.mulf %1684, %1684 : vector<1x8xf32>
    %1818 = arith.mulf %1688, %1688 : vector<1x8xf32>
    %1819 = arith.addf %1817, %1818 : vector<1x8xf32>
    %1820 = arith.mulf %1798, %1819 : vector<1x8xf32>
    %cst_301 = arith.constant 1.000000e+00 : f32
    %1821 = vector.broadcast %cst_301 : f32 to vector<1x8xf32>
    %1822 = arith.subf %1821, %1820 : vector<1x8xf32>
    %1823 = arith.mulf %1686, %1688 : vector<1x8xf32>
    %1824 = arith.mulf %1684, %1682 : vector<1x8xf32>
    %1825 = arith.subf %1823, %1824 : vector<1x8xf32>
    %1826 = arith.mulf %1798, %1825 : vector<1x8xf32>
    %1827 = arith.mulf %1684, %1688 : vector<1x8xf32>
    %1828 = arith.mulf %1686, %1682 : vector<1x8xf32>
    %1829 = arith.subf %1827, %1828 : vector<1x8xf32>
    %1830 = arith.mulf %1798, %1829 : vector<1x8xf32>
    %1831 = arith.mulf %1686, %1688 : vector<1x8xf32>
    %1832 = arith.mulf %1684, %1682 : vector<1x8xf32>
    %1833 = arith.addf %1831, %1832 : vector<1x8xf32>
    %1834 = arith.mulf %1798, %1833 : vector<1x8xf32>
    %1835 = arith.mulf %1684, %1684 : vector<1x8xf32>
    %1836 = arith.mulf %1686, %1686 : vector<1x8xf32>
    %1837 = arith.addf %1835, %1836 : vector<1x8xf32>
    %1838 = arith.mulf %1798, %1837 : vector<1x8xf32>
    %cst_302 = arith.constant 1.000000e+00 : f32
    %1839 = vector.broadcast %cst_302 : f32 to vector<1x8xf32>
    %1840 = arith.subf %1839, %1838 : vector<1x8xf32>
    %1841 = arith.mulf %1482, %1751 : vector<1x8xf32>
    %1842 = arith.mulf %1487, %1763 : vector<1x8xf32>
    %1843 = arith.addf %1841, %1842 : vector<1x8xf32>
    %1844 = arith.mulf %1492, %1777 : vector<1x8xf32>
    %1845 = arith.addf %1843, %1844 : vector<1x8xf32>
    %1846 = arith.mulf %1482, %1755 : vector<1x8xf32>
    %1847 = arith.mulf %1487, %1769 : vector<1x8xf32>
    %1848 = arith.addf %1846, %1847 : vector<1x8xf32>
    %1849 = arith.mulf %1492, %1781 : vector<1x8xf32>
    %1850 = arith.addf %1848, %1849 : vector<1x8xf32>
    %1851 = arith.mulf %1482, %1759 : vector<1x8xf32>
    %1852 = arith.mulf %1487, %1773 : vector<1x8xf32>
    %1853 = arith.addf %1851, %1852 : vector<1x8xf32>
    %1854 = arith.mulf %1492, %1787 : vector<1x8xf32>
    %1855 = arith.addf %1853, %1854 : vector<1x8xf32>
    %1856 = arith.mulf %1497, %1751 : vector<1x8xf32>
    %1857 = arith.mulf %1502, %1763 : vector<1x8xf32>
    %1858 = arith.addf %1856, %1857 : vector<1x8xf32>
    %1859 = arith.mulf %1507, %1777 : vector<1x8xf32>
    %1860 = arith.addf %1858, %1859 : vector<1x8xf32>
    %1861 = arith.mulf %1497, %1755 : vector<1x8xf32>
    %1862 = arith.mulf %1502, %1769 : vector<1x8xf32>
    %1863 = arith.addf %1861, %1862 : vector<1x8xf32>
    %1864 = arith.mulf %1507, %1781 : vector<1x8xf32>
    %1865 = arith.addf %1863, %1864 : vector<1x8xf32>
    %1866 = arith.mulf %1497, %1759 : vector<1x8xf32>
    %1867 = arith.mulf %1502, %1773 : vector<1x8xf32>
    %1868 = arith.addf %1866, %1867 : vector<1x8xf32>
    %1869 = arith.mulf %1507, %1787 : vector<1x8xf32>
    %1870 = arith.addf %1868, %1869 : vector<1x8xf32>
    %1871 = arith.mulf %1512, %1751 : vector<1x8xf32>
    %1872 = arith.mulf %1517, %1763 : vector<1x8xf32>
    %1873 = arith.addf %1871, %1872 : vector<1x8xf32>
    %1874 = arith.mulf %1522, %1777 : vector<1x8xf32>
    %1875 = arith.addf %1873, %1874 : vector<1x8xf32>
    %1876 = arith.mulf %1512, %1755 : vector<1x8xf32>
    %1877 = arith.mulf %1517, %1769 : vector<1x8xf32>
    %1878 = arith.addf %1876, %1877 : vector<1x8xf32>
    %1879 = arith.mulf %1522, %1781 : vector<1x8xf32>
    %1880 = arith.addf %1878, %1879 : vector<1x8xf32>
    %1881 = arith.mulf %1512, %1759 : vector<1x8xf32>
    %1882 = arith.mulf %1517, %1773 : vector<1x8xf32>
    %1883 = arith.addf %1881, %1882 : vector<1x8xf32>
    %1884 = arith.mulf %1522, %1787 : vector<1x8xf32>
    %1885 = arith.addf %1883, %1884 : vector<1x8xf32>
    %1886 = arith.mulf %1527, %1804 : vector<1x8xf32>
    %1887 = arith.mulf %1532, %1816 : vector<1x8xf32>
    %1888 = arith.addf %1886, %1887 : vector<1x8xf32>
    %1889 = arith.mulf %1537, %1830 : vector<1x8xf32>
    %1890 = arith.addf %1888, %1889 : vector<1x8xf32>
    %1891 = arith.mulf %1527, %1808 : vector<1x8xf32>
    %1892 = arith.mulf %1532, %1822 : vector<1x8xf32>
    %1893 = arith.addf %1891, %1892 : vector<1x8xf32>
    %1894 = arith.mulf %1537, %1834 : vector<1x8xf32>
    %1895 = arith.addf %1893, %1894 : vector<1x8xf32>
    %1896 = arith.mulf %1527, %1812 : vector<1x8xf32>
    %1897 = arith.mulf %1532, %1826 : vector<1x8xf32>
    %1898 = arith.addf %1896, %1897 : vector<1x8xf32>
    %1899 = arith.mulf %1537, %1840 : vector<1x8xf32>
    %1900 = arith.addf %1898, %1899 : vector<1x8xf32>
    %1901 = arith.mulf %1542, %1804 : vector<1x8xf32>
    %1902 = arith.mulf %1547, %1816 : vector<1x8xf32>
    %1903 = arith.addf %1901, %1902 : vector<1x8xf32>
    %1904 = arith.mulf %1552, %1830 : vector<1x8xf32>
    %1905 = arith.addf %1903, %1904 : vector<1x8xf32>
    %1906 = arith.mulf %1542, %1808 : vector<1x8xf32>
    %1907 = arith.mulf %1547, %1822 : vector<1x8xf32>
    %1908 = arith.addf %1906, %1907 : vector<1x8xf32>
    %1909 = arith.mulf %1552, %1834 : vector<1x8xf32>
    %1910 = arith.addf %1908, %1909 : vector<1x8xf32>
    %1911 = arith.mulf %1542, %1812 : vector<1x8xf32>
    %1912 = arith.mulf %1547, %1826 : vector<1x8xf32>
    %1913 = arith.addf %1911, %1912 : vector<1x8xf32>
    %1914 = arith.mulf %1552, %1840 : vector<1x8xf32>
    %1915 = arith.addf %1913, %1914 : vector<1x8xf32>
    %1916 = arith.mulf %1557, %1804 : vector<1x8xf32>
    %1917 = arith.mulf %1562, %1816 : vector<1x8xf32>
    %1918 = arith.addf %1916, %1917 : vector<1x8xf32>
    %1919 = arith.mulf %1567, %1830 : vector<1x8xf32>
    %1920 = arith.addf %1918, %1919 : vector<1x8xf32>
    %1921 = arith.mulf %1557, %1808 : vector<1x8xf32>
    %1922 = arith.mulf %1562, %1822 : vector<1x8xf32>
    %1923 = arith.addf %1921, %1922 : vector<1x8xf32>
    %1924 = arith.mulf %1567, %1834 : vector<1x8xf32>
    %1925 = arith.addf %1923, %1924 : vector<1x8xf32>
    %1926 = arith.mulf %1557, %1812 : vector<1x8xf32>
    %1927 = arith.mulf %1562, %1826 : vector<1x8xf32>
    %1928 = arith.addf %1926, %1927 : vector<1x8xf32>
    %1929 = arith.mulf %1567, %1840 : vector<1x8xf32>
    %1930 = arith.addf %1928, %1929 : vector<1x8xf32>
    %c0_303 = arith.constant 0 : index
    %c0_304 = arith.constant 0 : index
    %c15_305 = arith.constant 15 : index
    %1931 = vector.load %arg3[%c0_303, %c0_304, %c15_305] : memref<1x1x24xf32, #tpu.memory_space<vmem>>, vector<1x1x1xf32>
    %1932 = vector.shape_cast %1931 : vector<1x1x1xf32> to vector<1x1xf32>
    %c0_306 = arith.constant 0 : index
    %c0_307 = arith.constant 0 : index
    %c16_308 = arith.constant 16 : index
    %1933 = vector.load %arg3[%c0_306, %c0_307, %c16_308] : memref<1x1x24xf32, #tpu.memory_space<vmem>>, vector<1x1x1xf32>
    %1934 = vector.shape_cast %1933 : vector<1x1x1xf32> to vector<1x1xf32>
    %c0_309 = arith.constant 0 : index
    %c0_310 = arith.constant 0 : index
    %c17_311 = arith.constant 17 : index
    %1935 = vector.load %arg3[%c0_309, %c0_310, %c17_311] : memref<1x1x24xf32, #tpu.memory_space<vmem>>, vector<1x1x1xf32>
    %1936 = vector.shape_cast %1935 : vector<1x1x1xf32> to vector<1x1xf32>
    %c0_312 = arith.constant 0 : index
    %c0_313 = arith.constant 0 : index
    %c15_314 = arith.constant 15 : index
    %1937 = vector.load %arg4[%c0_312, %c0_313, %c15_314] : memref<1x1x24xf32, #tpu.memory_space<vmem>>, vector<1x1x1xf32>
    %1938 = vector.shape_cast %1937 : vector<1x1x1xf32> to vector<1x1xf32>
    %c0_315 = arith.constant 0 : index
    %c0_316 = arith.constant 0 : index
    %c16_317 = arith.constant 16 : index
    %1939 = vector.load %arg4[%c0_315, %c0_316, %c16_317] : memref<1x1x24xf32, #tpu.memory_space<vmem>>, vector<1x1x1xf32>
    %1940 = vector.shape_cast %1939 : vector<1x1x1xf32> to vector<1x1xf32>
    %c0_318 = arith.constant 0 : index
    %c0_319 = arith.constant 0 : index
    %c17_320 = arith.constant 17 : index
    %1941 = vector.load %arg4[%c0_318, %c0_319, %c17_320] : memref<1x1x24xf32, #tpu.memory_space<vmem>>, vector<1x1x1xf32>
    %1942 = vector.shape_cast %1941 : vector<1x1x1xf32> to vector<1x1xf32>
    %1943 = vector.broadcast %1932 : vector<1x1xf32> to vector<1x8xf32>
    %1944 = arith.mulf %1482, %1943 : vector<1x8xf32>
    %1945 = vector.broadcast %1934 : vector<1x1xf32> to vector<1x8xf32>
    %1946 = arith.mulf %1487, %1945 : vector<1x8xf32>
    %1947 = arith.addf %1944, %1946 : vector<1x8xf32>
    %1948 = vector.broadcast %1936 : vector<1x1xf32> to vector<1x8xf32>
    %1949 = arith.mulf %1492, %1948 : vector<1x8xf32>
    %1950 = arith.addf %1947, %1949 : vector<1x8xf32>
    %1951 = vector.broadcast %1932 : vector<1x1xf32> to vector<1x8xf32>
    %1952 = arith.mulf %1497, %1951 : vector<1x8xf32>
    %1953 = vector.broadcast %1934 : vector<1x1xf32> to vector<1x8xf32>
    %1954 = arith.mulf %1502, %1953 : vector<1x8xf32>
    %1955 = arith.addf %1952, %1954 : vector<1x8xf32>
    %1956 = vector.broadcast %1936 : vector<1x1xf32> to vector<1x8xf32>
    %1957 = arith.mulf %1507, %1956 : vector<1x8xf32>
    %1958 = arith.addf %1955, %1957 : vector<1x8xf32>
    %1959 = vector.broadcast %1932 : vector<1x1xf32> to vector<1x8xf32>
    %1960 = arith.mulf %1512, %1959 : vector<1x8xf32>
    %1961 = vector.broadcast %1934 : vector<1x1xf32> to vector<1x8xf32>
    %1962 = arith.mulf %1517, %1961 : vector<1x8xf32>
    %1963 = arith.addf %1960, %1962 : vector<1x8xf32>
    %1964 = vector.broadcast %1936 : vector<1x1xf32> to vector<1x8xf32>
    %1965 = arith.mulf %1522, %1964 : vector<1x8xf32>
    %1966 = arith.addf %1963, %1965 : vector<1x8xf32>
    %1967 = arith.addf %1950, %1604 : vector<1x8xf32>
    %1968 = arith.addf %1958, %1605 : vector<1x8xf32>
    %1969 = arith.addf %1966, %1606 : vector<1x8xf32>
    %1970 = vector.broadcast %1938 : vector<1x1xf32> to vector<1x8xf32>
    %1971 = arith.mulf %1527, %1970 : vector<1x8xf32>
    %1972 = vector.broadcast %1940 : vector<1x1xf32> to vector<1x8xf32>
    %1973 = arith.mulf %1532, %1972 : vector<1x8xf32>
    %1974 = arith.addf %1971, %1973 : vector<1x8xf32>
    %1975 = vector.broadcast %1942 : vector<1x1xf32> to vector<1x8xf32>
    %1976 = arith.mulf %1537, %1975 : vector<1x8xf32>
    %1977 = arith.addf %1974, %1976 : vector<1x8xf32>
    %1978 = vector.broadcast %1938 : vector<1x1xf32> to vector<1x8xf32>
    %1979 = arith.mulf %1542, %1978 : vector<1x8xf32>
    %1980 = vector.broadcast %1940 : vector<1x1xf32> to vector<1x8xf32>
    %1981 = arith.mulf %1547, %1980 : vector<1x8xf32>
    %1982 = arith.addf %1979, %1981 : vector<1x8xf32>
    %1983 = vector.broadcast %1942 : vector<1x1xf32> to vector<1x8xf32>
    %1984 = arith.mulf %1552, %1983 : vector<1x8xf32>
    %1985 = arith.addf %1982, %1984 : vector<1x8xf32>
    %1986 = vector.broadcast %1938 : vector<1x1xf32> to vector<1x8xf32>
    %1987 = arith.mulf %1557, %1986 : vector<1x8xf32>
    %1988 = vector.broadcast %1940 : vector<1x1xf32> to vector<1x8xf32>
    %1989 = arith.mulf %1562, %1988 : vector<1x8xf32>
    %1990 = arith.addf %1987, %1989 : vector<1x8xf32>
    %1991 = vector.broadcast %1942 : vector<1x1xf32> to vector<1x8xf32>
    %1992 = arith.mulf %1567, %1991 : vector<1x8xf32>
    %1993 = arith.addf %1990, %1992 : vector<1x8xf32>
    %1994 = arith.addf %1977, %1631 : vector<1x8xf32>
    %1995 = arith.addf %1985, %1632 : vector<1x8xf32>
    %1996 = arith.addf %1993, %1633 : vector<1x8xf32>
    %1997 = arith.subf %1845, %1890 : vector<1x8xf32>
    %1998 = math.absf %1997 : vector<1x8xf32>
    %1999 = arith.subf %1850, %1895 : vector<1x8xf32>
    %2000 = math.absf %1999 : vector<1x8xf32>
    %2001 = arith.addf %1998, %2000 : vector<1x8xf32>
    %2002 = arith.subf %1855, %1900 : vector<1x8xf32>
    %2003 = math.absf %2002 : vector<1x8xf32>
    %2004 = arith.addf %2001, %2003 : vector<1x8xf32>
    %2005 = arith.subf %1860, %1905 : vector<1x8xf32>
    %2006 = math.absf %2005 : vector<1x8xf32>
    %2007 = arith.addf %2004, %2006 : vector<1x8xf32>
    %2008 = arith.subf %1865, %1910 : vector<1x8xf32>
    %2009 = math.absf %2008 : vector<1x8xf32>
    %2010 = arith.addf %2007, %2009 : vector<1x8xf32>
    %2011 = arith.subf %1870, %1915 : vector<1x8xf32>
    %2012 = math.absf %2011 : vector<1x8xf32>
    %2013 = arith.addf %2010, %2012 : vector<1x8xf32>
    %2014 = arith.subf %1875, %1920 : vector<1x8xf32>
    %2015 = math.absf %2014 : vector<1x8xf32>
    %2016 = arith.addf %2013, %2015 : vector<1x8xf32>
    %2017 = arith.subf %1880, %1925 : vector<1x8xf32>
    %2018 = math.absf %2017 : vector<1x8xf32>
    %2019 = arith.addf %2016, %2018 : vector<1x8xf32>
    %2020 = arith.subf %1885, %1930 : vector<1x8xf32>
    %2021 = math.absf %2020 : vector<1x8xf32>
    %2022 = arith.addf %2019, %2021 : vector<1x8xf32>
    %2023 = arith.addf %1660, %2022 : vector<1x8xf32>
    %2024 = arith.subf %1967, %1994 : vector<1x8xf32>
    %2025 = math.absf %2024 : vector<1x8xf32>
    %2026 = arith.subf %1968, %1995 : vector<1x8xf32>
    %2027 = math.absf %2026 : vector<1x8xf32>
    %2028 = arith.addf %2025, %2027 : vector<1x8xf32>
    %2029 = arith.subf %1969, %1996 : vector<1x8xf32>
    %2030 = math.absf %2029 : vector<1x8xf32>
    %2031 = arith.addf %2028, %2030 : vector<1x8xf32>
    %2032 = vector.broadcast %1672 : vector<1x1xf32> to vector<1x8xf32>
    %2033 = arith.mulf %2032, %2031 : vector<1x8xf32>
    %2034 = arith.addf %1671, %2033 : vector<1x8xf32>
    %c0_321 = arith.constant 0 : index
    %c6_322 = arith.constant 6 : index
    %2035 = vector.load %arg5[%c0_321, %c6_322] : memref<1x8xf32, #tpu.memory_space<vmem>>, vector<1x1xf32>
    %c0_323 = arith.constant 0 : index
    %c24 = arith.constant 24 : index
    %c0_324 = arith.constant 0 : index
    %2036 = vector.load %arg1[%c0_323, %c24, %c0_324] : memref<1x35x8xf32, #tpu.memory_space<vmem>>, vector<1x1x8xf32>
    %2037 = vector.shape_cast %2036 : vector<1x1x8xf32> to vector<1x8xf32>
    %c0_325 = arith.constant 0 : index
    %c25 = arith.constant 25 : index
    %c0_326 = arith.constant 0 : index
    %2038 = vector.load %arg1[%c0_325, %c25, %c0_326] : memref<1x35x8xf32, #tpu.memory_space<vmem>>, vector<1x1x8xf32>
    %2039 = vector.shape_cast %2038 : vector<1x1x8xf32> to vector<1x8xf32>
    %c0_327 = arith.constant 0 : index
    %c26 = arith.constant 26 : index
    %c0_328 = arith.constant 0 : index
    %2040 = vector.load %arg1[%c0_327, %c26, %c0_328] : memref<1x35x8xf32, #tpu.memory_space<vmem>>, vector<1x1x8xf32>
    %2041 = vector.shape_cast %2040 : vector<1x1x8xf32> to vector<1x8xf32>
    %c0_329 = arith.constant 0 : index
    %c27 = arith.constant 27 : index
    %c0_330 = arith.constant 0 : index
    %2042 = vector.load %arg1[%c0_329, %c27, %c0_330] : memref<1x35x8xf32, #tpu.memory_space<vmem>>, vector<1x1x8xf32>
    %2043 = vector.shape_cast %2042 : vector<1x1x8xf32> to vector<1x8xf32>
    %c0_331 = arith.constant 0 : index
    %c24_332 = arith.constant 24 : index
    %c0_333 = arith.constant 0 : index
    %2044 = vector.load %arg2[%c0_331, %c24_332, %c0_333] : memref<1x35x8xf32, #tpu.memory_space<vmem>>, vector<1x1x8xf32>
    %2045 = vector.shape_cast %2044 : vector<1x1x8xf32> to vector<1x8xf32>
    %c0_334 = arith.constant 0 : index
    %c25_335 = arith.constant 25 : index
    %c0_336 = arith.constant 0 : index
    %2046 = vector.load %arg2[%c0_334, %c25_335, %c0_336] : memref<1x35x8xf32, #tpu.memory_space<vmem>>, vector<1x1x8xf32>
    %2047 = vector.shape_cast %2046 : vector<1x1x8xf32> to vector<1x8xf32>
    %c0_337 = arith.constant 0 : index
    %c26_338 = arith.constant 26 : index
    %c0_339 = arith.constant 0 : index
    %2048 = vector.load %arg2[%c0_337, %c26_338, %c0_339] : memref<1x35x8xf32, #tpu.memory_space<vmem>>, vector<1x1x8xf32>
    %2049 = vector.shape_cast %2048 : vector<1x1x8xf32> to vector<1x8xf32>
    %c0_340 = arith.constant 0 : index
    %c27_341 = arith.constant 27 : index
    %c0_342 = arith.constant 0 : index
    %2050 = vector.load %arg2[%c0_340, %c27_341, %c0_342] : memref<1x35x8xf32, #tpu.memory_space<vmem>>, vector<1x1x8xf32>
    %2051 = vector.shape_cast %2050 : vector<1x1x8xf32> to vector<1x8xf32>
    %2052 = arith.mulf %2037, %2037 : vector<1x8xf32>
    %2053 = arith.mulf %2039, %2039 : vector<1x8xf32>
    %2054 = arith.addf %2052, %2053 : vector<1x8xf32>
    %2055 = arith.mulf %2041, %2041 : vector<1x8xf32>
    %2056 = arith.addf %2054, %2055 : vector<1x8xf32>
    %2057 = arith.mulf %2043, %2043 : vector<1x8xf32>
    %2058 = arith.addf %2056, %2057 : vector<1x8xf32>
    %2059 = math.sqrt %2058 : vector<1x8xf32>
    %cst_343 = arith.constant 9.99999996E-13 : f32
    %2060 = vector.broadcast %cst_343 : f32 to vector<1x8xf32>
    %2061 = arith.maximumf %2059, %2060 : vector<1x8xf32>
    %cst_344 = arith.constant 1.000000e+00 : f32
    %2062 = vector.broadcast %cst_344 : f32 to vector<1x8xf32>
    %2063 = arith.divf %2062, %2061 : vector<1x8xf32>
    %2064 = arith.mulf %2037, %2063 : vector<1x8xf32>
    %2065 = arith.mulf %2039, %2063 : vector<1x8xf32>
    %2066 = arith.mulf %2041, %2063 : vector<1x8xf32>
    %2067 = arith.mulf %2043, %2063 : vector<1x8xf32>
    %2068 = arith.mulf %2045, %2045 : vector<1x8xf32>
    %2069 = arith.mulf %2047, %2047 : vector<1x8xf32>
    %2070 = arith.addf %2068, %2069 : vector<1x8xf32>
    %2071 = arith.mulf %2049, %2049 : vector<1x8xf32>
    %2072 = arith.addf %2070, %2071 : vector<1x8xf32>
    %2073 = arith.mulf %2051, %2051 : vector<1x8xf32>
    %2074 = arith.addf %2072, %2073 : vector<1x8xf32>
    %2075 = math.sqrt %2074 : vector<1x8xf32>
    %cst_345 = arith.constant 9.99999996E-13 : f32
    %2076 = vector.broadcast %cst_345 : f32 to vector<1x8xf32>
    %2077 = arith.maximumf %2075, %2076 : vector<1x8xf32>
    %cst_346 = arith.constant 1.000000e+00 : f32
    %2078 = vector.broadcast %cst_346 : f32 to vector<1x8xf32>
    %2079 = arith.divf %2078, %2077 : vector<1x8xf32>
    %2080 = arith.mulf %2045, %2079 : vector<1x8xf32>
    %2081 = arith.mulf %2047, %2079 : vector<1x8xf32>
    %2082 = arith.mulf %2049, %2079 : vector<1x8xf32>
    %2083 = arith.mulf %2051, %2079 : vector<1x8xf32>
    %2084 = arith.subf %2064, %2080 : vector<1x8xf32>
    %2085 = math.absf %2084 : vector<1x8xf32>
    %2086 = arith.subf %2065, %2081 : vector<1x8xf32>
    %2087 = math.absf %2086 : vector<1x8xf32>
    %2088 = arith.addf %2085, %2087 : vector<1x8xf32>
    %2089 = arith.subf %2066, %2082 : vector<1x8xf32>
    %2090 = math.absf %2089 : vector<1x8xf32>
    %2091 = arith.addf %2088, %2090 : vector<1x8xf32>
    %2092 = arith.subf %2067, %2083 : vector<1x8xf32>
    %2093 = math.absf %2092 : vector<1x8xf32>
    %2094 = arith.addf %2091, %2093 : vector<1x8xf32>
    %2095 = vector.broadcast %2035 : vector<1x1xf32> to vector<1x8xf32>
    %2096 = arith.mulf %2095, %2094 : vector<1x8xf32>
    %2097 = arith.addf %1734, %2096 : vector<1x8xf32>
    %2098 = arith.mulf %2037, %2037 : vector<1x8xf32>
    %2099 = arith.mulf %2039, %2039 : vector<1x8xf32>
    %2100 = arith.addf %2098, %2099 : vector<1x8xf32>
    %2101 = arith.mulf %2041, %2041 : vector<1x8xf32>
    %2102 = arith.addf %2100, %2101 : vector<1x8xf32>
    %2103 = arith.mulf %2043, %2043 : vector<1x8xf32>
    %2104 = arith.addf %2102, %2103 : vector<1x8xf32>
    %cst_347 = arith.constant 9.99999996E-13 : f32
    %2105 = vector.broadcast %cst_347 : f32 to vector<1x8xf32>
    %2106 = arith.maximumf %2104, %2105 : vector<1x8xf32>
    %cst_348 = arith.constant 2.000000e+00 : f32
    %2107 = vector.broadcast %cst_348 : f32 to vector<1x8xf32>
    %2108 = arith.divf %2107, %2106 : vector<1x8xf32>
    %2109 = arith.mulf %2041, %2041 : vector<1x8xf32>
    %2110 = arith.mulf %2043, %2043 : vector<1x8xf32>
    %2111 = arith.addf %2109, %2110 : vector<1x8xf32>
    %2112 = arith.mulf %2108, %2111 : vector<1x8xf32>
    %cst_349 = arith.constant 1.000000e+00 : f32
    %2113 = vector.broadcast %cst_349 : f32 to vector<1x8xf32>
    %2114 = arith.subf %2113, %2112 : vector<1x8xf32>
    %2115 = arith.mulf %2039, %2041 : vector<1x8xf32>
    %2116 = arith.mulf %2043, %2037 : vector<1x8xf32>
    %2117 = arith.subf %2115, %2116 : vector<1x8xf32>
    %2118 = arith.mulf %2108, %2117 : vector<1x8xf32>
    %2119 = arith.mulf %2039, %2043 : vector<1x8xf32>
    %2120 = arith.mulf %2041, %2037 : vector<1x8xf32>
    %2121 = arith.addf %2119, %2120 : vector<1x8xf32>
    %2122 = arith.mulf %2108, %2121 : vector<1x8xf32>
    %2123 = arith.mulf %2039, %2041 : vector<1x8xf32>
    %2124 = arith.mulf %2043, %2037 : vector<1x8xf32>
    %2125 = arith.addf %2123, %2124 : vector<1x8xf32>
    %2126 = arith.mulf %2108, %2125 : vector<1x8xf32>
    %2127 = arith.mulf %2039, %2039 : vector<1x8xf32>
    %2128 = arith.mulf %2043, %2043 : vector<1x8xf32>
    %2129 = arith.addf %2127, %2128 : vector<1x8xf32>
    %2130 = arith.mulf %2108, %2129 : vector<1x8xf32>
    %cst_350 = arith.constant 1.000000e+00 : f32
    %2131 = vector.broadcast %cst_350 : f32 to vector<1x8xf32>
    %2132 = arith.subf %2131, %2130 : vector<1x8xf32>
    %2133 = arith.mulf %2041, %2043 : vector<1x8xf32>
    %2134 = arith.mulf %2039, %2037 : vector<1x8xf32>
    %2135 = arith.subf %2133, %2134 : vector<1x8xf32>
    %2136 = arith.mulf %2108, %2135 : vector<1x8xf32>
    %2137 = arith.mulf %2039, %2043 : vector<1x8xf32>
    %2138 = arith.mulf %2041, %2037 : vector<1x8xf32>
    %2139 = arith.subf %2137, %2138 : vector<1x8xf32>
    %2140 = arith.mulf %2108, %2139 : vector<1x8xf32>
    %2141 = arith.mulf %2041, %2043 : vector<1x8xf32>
    %2142 = arith.mulf %2039, %2037 : vector<1x8xf32>
    %2143 = arith.addf %2141, %2142 : vector<1x8xf32>
    %2144 = arith.mulf %2108, %2143 : vector<1x8xf32>
    %2145 = arith.mulf %2039, %2039 : vector<1x8xf32>
    %2146 = arith.mulf %2041, %2041 : vector<1x8xf32>
    %2147 = arith.addf %2145, %2146 : vector<1x8xf32>
    %2148 = arith.mulf %2108, %2147 : vector<1x8xf32>
    %cst_351 = arith.constant 1.000000e+00 : f32
    %2149 = vector.broadcast %cst_351 : f32 to vector<1x8xf32>
    %2150 = arith.subf %2149, %2148 : vector<1x8xf32>
    %2151 = arith.mulf %2045, %2045 : vector<1x8xf32>
    %2152 = arith.mulf %2047, %2047 : vector<1x8xf32>
    %2153 = arith.addf %2151, %2152 : vector<1x8xf32>
    %2154 = arith.mulf %2049, %2049 : vector<1x8xf32>
    %2155 = arith.addf %2153, %2154 : vector<1x8xf32>
    %2156 = arith.mulf %2051, %2051 : vector<1x8xf32>
    %2157 = arith.addf %2155, %2156 : vector<1x8xf32>
    %cst_352 = arith.constant 9.99999996E-13 : f32
    %2158 = vector.broadcast %cst_352 : f32 to vector<1x8xf32>
    %2159 = arith.maximumf %2157, %2158 : vector<1x8xf32>
    %cst_353 = arith.constant 2.000000e+00 : f32
    %2160 = vector.broadcast %cst_353 : f32 to vector<1x8xf32>
    %2161 = arith.divf %2160, %2159 : vector<1x8xf32>
    %2162 = arith.mulf %2049, %2049 : vector<1x8xf32>
    %2163 = arith.mulf %2051, %2051 : vector<1x8xf32>
    %2164 = arith.addf %2162, %2163 : vector<1x8xf32>
    %2165 = arith.mulf %2161, %2164 : vector<1x8xf32>
    %cst_354 = arith.constant 1.000000e+00 : f32
    %2166 = vector.broadcast %cst_354 : f32 to vector<1x8xf32>
    %2167 = arith.subf %2166, %2165 : vector<1x8xf32>
    %2168 = arith.mulf %2047, %2049 : vector<1x8xf32>
    %2169 = arith.mulf %2051, %2045 : vector<1x8xf32>
    %2170 = arith.subf %2168, %2169 : vector<1x8xf32>
    %2171 = arith.mulf %2161, %2170 : vector<1x8xf32>
    %2172 = arith.mulf %2047, %2051 : vector<1x8xf32>
    %2173 = arith.mulf %2049, %2045 : vector<1x8xf32>
    %2174 = arith.addf %2172, %2173 : vector<1x8xf32>
    %2175 = arith.mulf %2161, %2174 : vector<1x8xf32>
    %2176 = arith.mulf %2047, %2049 : vector<1x8xf32>
    %2177 = arith.mulf %2051, %2045 : vector<1x8xf32>
    %2178 = arith.addf %2176, %2177 : vector<1x8xf32>
    %2179 = arith.mulf %2161, %2178 : vector<1x8xf32>
    %2180 = arith.mulf %2047, %2047 : vector<1x8xf32>
    %2181 = arith.mulf %2051, %2051 : vector<1x8xf32>
    %2182 = arith.addf %2180, %2181 : vector<1x8xf32>
    %2183 = arith.mulf %2161, %2182 : vector<1x8xf32>
    %cst_355 = arith.constant 1.000000e+00 : f32
    %2184 = vector.broadcast %cst_355 : f32 to vector<1x8xf32>
    %2185 = arith.subf %2184, %2183 : vector<1x8xf32>
    %2186 = arith.mulf %2049, %2051 : vector<1x8xf32>
    %2187 = arith.mulf %2047, %2045 : vector<1x8xf32>
    %2188 = arith.subf %2186, %2187 : vector<1x8xf32>
    %2189 = arith.mulf %2161, %2188 : vector<1x8xf32>
    %2190 = arith.mulf %2047, %2051 : vector<1x8xf32>
    %2191 = arith.mulf %2049, %2045 : vector<1x8xf32>
    %2192 = arith.subf %2190, %2191 : vector<1x8xf32>
    %2193 = arith.mulf %2161, %2192 : vector<1x8xf32>
    %2194 = arith.mulf %2049, %2051 : vector<1x8xf32>
    %2195 = arith.mulf %2047, %2045 : vector<1x8xf32>
    %2196 = arith.addf %2194, %2195 : vector<1x8xf32>
    %2197 = arith.mulf %2161, %2196 : vector<1x8xf32>
    %2198 = arith.mulf %2047, %2047 : vector<1x8xf32>
    %2199 = arith.mulf %2049, %2049 : vector<1x8xf32>
    %2200 = arith.addf %2198, %2199 : vector<1x8xf32>
    %2201 = arith.mulf %2161, %2200 : vector<1x8xf32>
    %cst_356 = arith.constant 1.000000e+00 : f32
    %2202 = vector.broadcast %cst_356 : f32 to vector<1x8xf32>
    %2203 = arith.subf %2202, %2201 : vector<1x8xf32>
    %2204 = arith.mulf %80, %2114 : vector<1x8xf32>
    %2205 = arith.mulf %84, %2126 : vector<1x8xf32>
    %2206 = arith.addf %2204, %2205 : vector<1x8xf32>
    %2207 = arith.mulf %88, %2140 : vector<1x8xf32>
    %2208 = arith.addf %2206, %2207 : vector<1x8xf32>
    %2209 = arith.mulf %80, %2118 : vector<1x8xf32>
    %2210 = arith.mulf %84, %2132 : vector<1x8xf32>
    %2211 = arith.addf %2209, %2210 : vector<1x8xf32>
    %2212 = arith.mulf %88, %2144 : vector<1x8xf32>
    %2213 = arith.addf %2211, %2212 : vector<1x8xf32>
    %2214 = arith.mulf %80, %2122 : vector<1x8xf32>
    %2215 = arith.mulf %84, %2136 : vector<1x8xf32>
    %2216 = arith.addf %2214, %2215 : vector<1x8xf32>
    %2217 = arith.mulf %88, %2150 : vector<1x8xf32>
    %2218 = arith.addf %2216, %2217 : vector<1x8xf32>
    %2219 = arith.mulf %92, %2114 : vector<1x8xf32>
    %2220 = arith.mulf %98, %2126 : vector<1x8xf32>
    %2221 = arith.addf %2219, %2220 : vector<1x8xf32>
    %2222 = arith.mulf %102, %2140 : vector<1x8xf32>
    %2223 = arith.addf %2221, %2222 : vector<1x8xf32>
    %2224 = arith.mulf %92, %2118 : vector<1x8xf32>
    %2225 = arith.mulf %98, %2132 : vector<1x8xf32>
    %2226 = arith.addf %2224, %2225 : vector<1x8xf32>
    %2227 = arith.mulf %102, %2144 : vector<1x8xf32>
    %2228 = arith.addf %2226, %2227 : vector<1x8xf32>
    %2229 = arith.mulf %92, %2122 : vector<1x8xf32>
    %2230 = arith.mulf %98, %2136 : vector<1x8xf32>
    %2231 = arith.addf %2229, %2230 : vector<1x8xf32>
    %2232 = arith.mulf %102, %2150 : vector<1x8xf32>
    %2233 = arith.addf %2231, %2232 : vector<1x8xf32>
    %2234 = arith.mulf %106, %2114 : vector<1x8xf32>
    %2235 = arith.mulf %110, %2126 : vector<1x8xf32>
    %2236 = arith.addf %2234, %2235 : vector<1x8xf32>
    %2237 = arith.mulf %116, %2140 : vector<1x8xf32>
    %2238 = arith.addf %2236, %2237 : vector<1x8xf32>
    %2239 = arith.mulf %106, %2118 : vector<1x8xf32>
    %2240 = arith.mulf %110, %2132 : vector<1x8xf32>
    %2241 = arith.addf %2239, %2240 : vector<1x8xf32>
    %2242 = arith.mulf %116, %2144 : vector<1x8xf32>
    %2243 = arith.addf %2241, %2242 : vector<1x8xf32>
    %2244 = arith.mulf %106, %2122 : vector<1x8xf32>
    %2245 = arith.mulf %110, %2136 : vector<1x8xf32>
    %2246 = arith.addf %2244, %2245 : vector<1x8xf32>
    %2247 = arith.mulf %116, %2150 : vector<1x8xf32>
    %2248 = arith.addf %2246, %2247 : vector<1x8xf32>
    %2249 = arith.mulf %133, %2167 : vector<1x8xf32>
    %2250 = arith.mulf %137, %2179 : vector<1x8xf32>
    %2251 = arith.addf %2249, %2250 : vector<1x8xf32>
    %2252 = arith.mulf %141, %2193 : vector<1x8xf32>
    %2253 = arith.addf %2251, %2252 : vector<1x8xf32>
    %2254 = arith.mulf %133, %2171 : vector<1x8xf32>
    %2255 = arith.mulf %137, %2185 : vector<1x8xf32>
    %2256 = arith.addf %2254, %2255 : vector<1x8xf32>
    %2257 = arith.mulf %141, %2197 : vector<1x8xf32>
    %2258 = arith.addf %2256, %2257 : vector<1x8xf32>
    %2259 = arith.mulf %133, %2175 : vector<1x8xf32>
    %2260 = arith.mulf %137, %2189 : vector<1x8xf32>
    %2261 = arith.addf %2259, %2260 : vector<1x8xf32>
    %2262 = arith.mulf %141, %2203 : vector<1x8xf32>
    %2263 = arith.addf %2261, %2262 : vector<1x8xf32>
    %2264 = arith.mulf %145, %2167 : vector<1x8xf32>
    %2265 = arith.mulf %151, %2179 : vector<1x8xf32>
    %2266 = arith.addf %2264, %2265 : vector<1x8xf32>
    %2267 = arith.mulf %155, %2193 : vector<1x8xf32>
    %2268 = arith.addf %2266, %2267 : vector<1x8xf32>
    %2269 = arith.mulf %145, %2171 : vector<1x8xf32>
    %2270 = arith.mulf %151, %2185 : vector<1x8xf32>
    %2271 = arith.addf %2269, %2270 : vector<1x8xf32>
    %2272 = arith.mulf %155, %2197 : vector<1x8xf32>
    %2273 = arith.addf %2271, %2272 : vector<1x8xf32>
    %2274 = arith.mulf %145, %2175 : vector<1x8xf32>
    %2275 = arith.mulf %151, %2189 : vector<1x8xf32>
    %2276 = arith.addf %2274, %2275 : vector<1x8xf32>
    %2277 = arith.mulf %155, %2203 : vector<1x8xf32>
    %2278 = arith.addf %2276, %2277 : vector<1x8xf32>
    %2279 = arith.mulf %159, %2167 : vector<1x8xf32>
    %2280 = arith.mulf %163, %2179 : vector<1x8xf32>
    %2281 = arith.addf %2279, %2280 : vector<1x8xf32>
    %2282 = arith.mulf %169, %2193 : vector<1x8xf32>
    %2283 = arith.addf %2281, %2282 : vector<1x8xf32>
    %2284 = arith.mulf %159, %2171 : vector<1x8xf32>
    %2285 = arith.mulf %163, %2185 : vector<1x8xf32>
    %2286 = arith.addf %2284, %2285 : vector<1x8xf32>
    %2287 = arith.mulf %169, %2197 : vector<1x8xf32>
    %2288 = arith.addf %2286, %2287 : vector<1x8xf32>
    %2289 = arith.mulf %159, %2175 : vector<1x8xf32>
    %2290 = arith.mulf %163, %2189 : vector<1x8xf32>
    %2291 = arith.addf %2289, %2290 : vector<1x8xf32>
    %2292 = arith.mulf %169, %2203 : vector<1x8xf32>
    %2293 = arith.addf %2291, %2292 : vector<1x8xf32>
    %c0_357 = arith.constant 0 : index
    %c0_358 = arith.constant 0 : index
    %c18_359 = arith.constant 18 : index
    %2294 = vector.load %arg3[%c0_357, %c0_358, %c18_359] : memref<1x1x24xf32, #tpu.memory_space<vmem>>, vector<1x1x1xf32>
    %2295 = vector.shape_cast %2294 : vector<1x1x1xf32> to vector<1x1xf32>
    %c0_360 = arith.constant 0 : index
    %c0_361 = arith.constant 0 : index
    %c19_362 = arith.constant 19 : index
    %2296 = vector.load %arg3[%c0_360, %c0_361, %c19_362] : memref<1x1x24xf32, #tpu.memory_space<vmem>>, vector<1x1x1xf32>
    %2297 = vector.shape_cast %2296 : vector<1x1x1xf32> to vector<1x1xf32>
    %c0_363 = arith.constant 0 : index
    %c0_364 = arith.constant 0 : index
    %c20_365 = arith.constant 20 : index
    %2298 = vector.load %arg3[%c0_363, %c0_364, %c20_365] : memref<1x1x24xf32, #tpu.memory_space<vmem>>, vector<1x1x1xf32>
    %2299 = vector.shape_cast %2298 : vector<1x1x1xf32> to vector<1x1xf32>
    %c0_366 = arith.constant 0 : index
    %c0_367 = arith.constant 0 : index
    %c18_368 = arith.constant 18 : index
    %2300 = vector.load %arg4[%c0_366, %c0_367, %c18_368] : memref<1x1x24xf32, #tpu.memory_space<vmem>>, vector<1x1x1xf32>
    %2301 = vector.shape_cast %2300 : vector<1x1x1xf32> to vector<1x1xf32>
    %c0_369 = arith.constant 0 : index
    %c0_370 = arith.constant 0 : index
    %c19_371 = arith.constant 19 : index
    %2302 = vector.load %arg4[%c0_369, %c0_370, %c19_371] : memref<1x1x24xf32, #tpu.memory_space<vmem>>, vector<1x1x1xf32>
    %2303 = vector.shape_cast %2302 : vector<1x1x1xf32> to vector<1x1xf32>
    %c0_372 = arith.constant 0 : index
    %c0_373 = arith.constant 0 : index
    %c20_374 = arith.constant 20 : index
    %2304 = vector.load %arg4[%c0_372, %c0_373, %c20_374] : memref<1x1x24xf32, #tpu.memory_space<vmem>>, vector<1x1x1xf32>
    %2305 = vector.shape_cast %2304 : vector<1x1x1xf32> to vector<1x1xf32>
    %2306 = vector.broadcast %2295 : vector<1x1xf32> to vector<1x8xf32>
    %2307 = arith.mulf %80, %2306 : vector<1x8xf32>
    %2308 = vector.broadcast %2297 : vector<1x1xf32> to vector<1x8xf32>
    %2309 = arith.mulf %84, %2308 : vector<1x8xf32>
    %2310 = arith.addf %2307, %2309 : vector<1x8xf32>
    %2311 = vector.broadcast %2299 : vector<1x1xf32> to vector<1x8xf32>
    %2312 = arith.mulf %88, %2311 : vector<1x8xf32>
    %2313 = arith.addf %2310, %2312 : vector<1x8xf32>
    %2314 = vector.broadcast %2295 : vector<1x1xf32> to vector<1x8xf32>
    %2315 = arith.mulf %92, %2314 : vector<1x8xf32>
    %2316 = vector.broadcast %2297 : vector<1x1xf32> to vector<1x8xf32>
    %2317 = arith.mulf %98, %2316 : vector<1x8xf32>
    %2318 = arith.addf %2315, %2317 : vector<1x8xf32>
    %2319 = vector.broadcast %2299 : vector<1x1xf32> to vector<1x8xf32>
    %2320 = arith.mulf %102, %2319 : vector<1x8xf32>
    %2321 = arith.addf %2318, %2320 : vector<1x8xf32>
    %2322 = vector.broadcast %2295 : vector<1x1xf32> to vector<1x8xf32>
    %2323 = arith.mulf %106, %2322 : vector<1x8xf32>
    %2324 = vector.broadcast %2297 : vector<1x1xf32> to vector<1x8xf32>
    %2325 = arith.mulf %110, %2324 : vector<1x8xf32>
    %2326 = arith.addf %2323, %2325 : vector<1x8xf32>
    %2327 = vector.broadcast %2299 : vector<1x1xf32> to vector<1x8xf32>
    %2328 = arith.mulf %116, %2327 : vector<1x8xf32>
    %2329 = arith.addf %2326, %2328 : vector<1x8xf32>
    %2330 = arith.addf %2313, %171 : vector<1x8xf32>
    %2331 = arith.addf %2321, %173 : vector<1x8xf32>
    %2332 = arith.addf %2329, %175 : vector<1x8xf32>
    %2333 = vector.broadcast %2301 : vector<1x1xf32> to vector<1x8xf32>
    %2334 = arith.mulf %133, %2333 : vector<1x8xf32>
    %2335 = vector.broadcast %2303 : vector<1x1xf32> to vector<1x8xf32>
    %2336 = arith.mulf %137, %2335 : vector<1x8xf32>
    %2337 = arith.addf %2334, %2336 : vector<1x8xf32>
    %2338 = vector.broadcast %2305 : vector<1x1xf32> to vector<1x8xf32>
    %2339 = arith.mulf %141, %2338 : vector<1x8xf32>
    %2340 = arith.addf %2337, %2339 : vector<1x8xf32>
    %2341 = vector.broadcast %2301 : vector<1x1xf32> to vector<1x8xf32>
    %2342 = arith.mulf %145, %2341 : vector<1x8xf32>
    %2343 = vector.broadcast %2303 : vector<1x1xf32> to vector<1x8xf32>
    %2344 = arith.mulf %151, %2343 : vector<1x8xf32>
    %2345 = arith.addf %2342, %2344 : vector<1x8xf32>
    %2346 = vector.broadcast %2305 : vector<1x1xf32> to vector<1x8xf32>
    %2347 = arith.mulf %155, %2346 : vector<1x8xf32>
    %2348 = arith.addf %2345, %2347 : vector<1x8xf32>
    %2349 = vector.broadcast %2301 : vector<1x1xf32> to vector<1x8xf32>
    %2350 = arith.mulf %159, %2349 : vector<1x8xf32>
    %2351 = vector.broadcast %2303 : vector<1x1xf32> to vector<1x8xf32>
    %2352 = arith.mulf %163, %2351 : vector<1x8xf32>
    %2353 = arith.addf %2350, %2352 : vector<1x8xf32>
    %2354 = vector.broadcast %2305 : vector<1x1xf32> to vector<1x8xf32>
    %2355 = arith.mulf %169, %2354 : vector<1x8xf32>
    %2356 = arith.addf %2353, %2355 : vector<1x8xf32>
    %2357 = arith.addf %2340, %177 : vector<1x8xf32>
    %2358 = arith.addf %2348, %179 : vector<1x8xf32>
    %2359 = arith.addf %2356, %181 : vector<1x8xf32>
    %2360 = arith.subf %2208, %2253 : vector<1x8xf32>
    %2361 = math.absf %2360 : vector<1x8xf32>
    %2362 = arith.subf %2213, %2258 : vector<1x8xf32>
    %2363 = math.absf %2362 : vector<1x8xf32>
    %2364 = arith.addf %2361, %2363 : vector<1x8xf32>
    %2365 = arith.subf %2218, %2263 : vector<1x8xf32>
    %2366 = math.absf %2365 : vector<1x8xf32>
    %2367 = arith.addf %2364, %2366 : vector<1x8xf32>
    %2368 = arith.subf %2223, %2268 : vector<1x8xf32>
    %2369 = math.absf %2368 : vector<1x8xf32>
    %2370 = arith.addf %2367, %2369 : vector<1x8xf32>
    %2371 = arith.subf %2228, %2273 : vector<1x8xf32>
    %2372 = math.absf %2371 : vector<1x8xf32>
    %2373 = arith.addf %2370, %2372 : vector<1x8xf32>
    %2374 = arith.subf %2233, %2278 : vector<1x8xf32>
    %2375 = math.absf %2374 : vector<1x8xf32>
    %2376 = arith.addf %2373, %2375 : vector<1x8xf32>
    %2377 = arith.subf %2238, %2283 : vector<1x8xf32>
    %2378 = math.absf %2377 : vector<1x8xf32>
    %2379 = arith.addf %2376, %2378 : vector<1x8xf32>
    %2380 = arith.subf %2243, %2288 : vector<1x8xf32>
    %2381 = math.absf %2380 : vector<1x8xf32>
    %2382 = arith.addf %2379, %2381 : vector<1x8xf32>
    %2383 = arith.subf %2248, %2293 : vector<1x8xf32>
    %2384 = math.absf %2383 : vector<1x8xf32>
    %2385 = arith.addf %2382, %2384 : vector<1x8xf32>
    %2386 = arith.addf %2023, %2385 : vector<1x8xf32>
    %2387 = arith.subf %2330, %2357 : vector<1x8xf32>
    %2388 = math.absf %2387 : vector<1x8xf32>
    %2389 = arith.subf %2331, %2358 : vector<1x8xf32>
    %2390 = math.absf %2389 : vector<1x8xf32>
    %2391 = arith.addf %2388, %2390 : vector<1x8xf32>
    %2392 = arith.subf %2332, %2359 : vector<1x8xf32>
    %2393 = math.absf %2392 : vector<1x8xf32>
    %2394 = arith.addf %2391, %2393 : vector<1x8xf32>
    %2395 = vector.broadcast %2035 : vector<1x1xf32> to vector<1x8xf32>
    %2396 = arith.mulf %2395, %2394 : vector<1x8xf32>
    %2397 = arith.addf %2034, %2396 : vector<1x8xf32>
    %c0_375 = arith.constant 0 : index
    %c7_376 = arith.constant 7 : index
    %2398 = vector.load %arg5[%c0_375, %c7_376] : memref<1x8xf32, #tpu.memory_space<vmem>>, vector<1x1xf32>
    %c0_377 = arith.constant 0 : index
    %c28 = arith.constant 28 : index
    %c0_378 = arith.constant 0 : index
    %2399 = vector.load %arg1[%c0_377, %c28, %c0_378] : memref<1x35x8xf32, #tpu.memory_space<vmem>>, vector<1x1x8xf32>
    %2400 = vector.shape_cast %2399 : vector<1x1x8xf32> to vector<1x8xf32>
    %c0_379 = arith.constant 0 : index
    %c29 = arith.constant 29 : index
    %c0_380 = arith.constant 0 : index
    %2401 = vector.load %arg1[%c0_379, %c29, %c0_380] : memref<1x35x8xf32, #tpu.memory_space<vmem>>, vector<1x1x8xf32>
    %2402 = vector.shape_cast %2401 : vector<1x1x8xf32> to vector<1x8xf32>
    %c0_381 = arith.constant 0 : index
    %c30 = arith.constant 30 : index
    %c0_382 = arith.constant 0 : index
    %2403 = vector.load %arg1[%c0_381, %c30, %c0_382] : memref<1x35x8xf32, #tpu.memory_space<vmem>>, vector<1x1x8xf32>
    %2404 = vector.shape_cast %2403 : vector<1x1x8xf32> to vector<1x8xf32>
    %c0_383 = arith.constant 0 : index
    %c31 = arith.constant 31 : index
    %c0_384 = arith.constant 0 : index
    %2405 = vector.load %arg1[%c0_383, %c31, %c0_384] : memref<1x35x8xf32, #tpu.memory_space<vmem>>, vector<1x1x8xf32>
    %2406 = vector.shape_cast %2405 : vector<1x1x8xf32> to vector<1x8xf32>
    %c0_385 = arith.constant 0 : index
    %c28_386 = arith.constant 28 : index
    %c0_387 = arith.constant 0 : index
    %2407 = vector.load %arg2[%c0_385, %c28_386, %c0_387] : memref<1x35x8xf32, #tpu.memory_space<vmem>>, vector<1x1x8xf32>
    %2408 = vector.shape_cast %2407 : vector<1x1x8xf32> to vector<1x8xf32>
    %c0_388 = arith.constant 0 : index
    %c29_389 = arith.constant 29 : index
    %c0_390 = arith.constant 0 : index
    %2409 = vector.load %arg2[%c0_388, %c29_389, %c0_390] : memref<1x35x8xf32, #tpu.memory_space<vmem>>, vector<1x1x8xf32>
    %2410 = vector.shape_cast %2409 : vector<1x1x8xf32> to vector<1x8xf32>
    %c0_391 = arith.constant 0 : index
    %c30_392 = arith.constant 30 : index
    %c0_393 = arith.constant 0 : index
    %2411 = vector.load %arg2[%c0_391, %c30_392, %c0_393] : memref<1x35x8xf32, #tpu.memory_space<vmem>>, vector<1x1x8xf32>
    %2412 = vector.shape_cast %2411 : vector<1x1x8xf32> to vector<1x8xf32>
    %c0_394 = arith.constant 0 : index
    %c31_395 = arith.constant 31 : index
    %c0_396 = arith.constant 0 : index
    %2413 = vector.load %arg2[%c0_394, %c31_395, %c0_396] : memref<1x35x8xf32, #tpu.memory_space<vmem>>, vector<1x1x8xf32>
    %2414 = vector.shape_cast %2413 : vector<1x1x8xf32> to vector<1x8xf32>
    %2415 = arith.mulf %2400, %2400 : vector<1x8xf32>
    %2416 = arith.mulf %2402, %2402 : vector<1x8xf32>
    %2417 = arith.addf %2415, %2416 : vector<1x8xf32>
    %2418 = arith.mulf %2404, %2404 : vector<1x8xf32>
    %2419 = arith.addf %2417, %2418 : vector<1x8xf32>
    %2420 = arith.mulf %2406, %2406 : vector<1x8xf32>
    %2421 = arith.addf %2419, %2420 : vector<1x8xf32>
    %2422 = math.sqrt %2421 : vector<1x8xf32>
    %cst_397 = arith.constant 9.99999996E-13 : f32
    %2423 = vector.broadcast %cst_397 : f32 to vector<1x8xf32>
    %2424 = arith.maximumf %2422, %2423 : vector<1x8xf32>
    %cst_398 = arith.constant 1.000000e+00 : f32
    %2425 = vector.broadcast %cst_398 : f32 to vector<1x8xf32>
    %2426 = arith.divf %2425, %2424 : vector<1x8xf32>
    %2427 = arith.mulf %2400, %2426 : vector<1x8xf32>
    %2428 = arith.mulf %2402, %2426 : vector<1x8xf32>
    %2429 = arith.mulf %2404, %2426 : vector<1x8xf32>
    %2430 = arith.mulf %2406, %2426 : vector<1x8xf32>
    %2431 = arith.mulf %2408, %2408 : vector<1x8xf32>
    %2432 = arith.mulf %2410, %2410 : vector<1x8xf32>
    %2433 = arith.addf %2431, %2432 : vector<1x8xf32>
    %2434 = arith.mulf %2412, %2412 : vector<1x8xf32>
    %2435 = arith.addf %2433, %2434 : vector<1x8xf32>
    %2436 = arith.mulf %2414, %2414 : vector<1x8xf32>
    %2437 = arith.addf %2435, %2436 : vector<1x8xf32>
    %2438 = math.sqrt %2437 : vector<1x8xf32>
    %cst_399 = arith.constant 9.99999996E-13 : f32
    %2439 = vector.broadcast %cst_399 : f32 to vector<1x8xf32>
    %2440 = arith.maximumf %2438, %2439 : vector<1x8xf32>
    %cst_400 = arith.constant 1.000000e+00 : f32
    %2441 = vector.broadcast %cst_400 : f32 to vector<1x8xf32>
    %2442 = arith.divf %2441, %2440 : vector<1x8xf32>
    %2443 = arith.mulf %2408, %2442 : vector<1x8xf32>
    %2444 = arith.mulf %2410, %2442 : vector<1x8xf32>
    %2445 = arith.mulf %2412, %2442 : vector<1x8xf32>
    %2446 = arith.mulf %2414, %2442 : vector<1x8xf32>
    %2447 = arith.subf %2427, %2443 : vector<1x8xf32>
    %2448 = math.absf %2447 : vector<1x8xf32>
    %2449 = arith.subf %2428, %2444 : vector<1x8xf32>
    %2450 = math.absf %2449 : vector<1x8xf32>
    %2451 = arith.addf %2448, %2450 : vector<1x8xf32>
    %2452 = arith.subf %2429, %2445 : vector<1x8xf32>
    %2453 = math.absf %2452 : vector<1x8xf32>
    %2454 = arith.addf %2451, %2453 : vector<1x8xf32>
    %2455 = arith.subf %2430, %2446 : vector<1x8xf32>
    %2456 = math.absf %2455 : vector<1x8xf32>
    %2457 = arith.addf %2454, %2456 : vector<1x8xf32>
    %2458 = vector.broadcast %2398 : vector<1x1xf32> to vector<1x8xf32>
    %2459 = arith.mulf %2458, %2457 : vector<1x8xf32>
    %2460 = arith.addf %2097, %2459 : vector<1x8xf32>
    %2461 = arith.mulf %2400, %2400 : vector<1x8xf32>
    %2462 = arith.mulf %2402, %2402 : vector<1x8xf32>
    %2463 = arith.addf %2461, %2462 : vector<1x8xf32>
    %2464 = arith.mulf %2404, %2404 : vector<1x8xf32>
    %2465 = arith.addf %2463, %2464 : vector<1x8xf32>
    %2466 = arith.mulf %2406, %2406 : vector<1x8xf32>
    %2467 = arith.addf %2465, %2466 : vector<1x8xf32>
    %cst_401 = arith.constant 9.99999996E-13 : f32
    %2468 = vector.broadcast %cst_401 : f32 to vector<1x8xf32>
    %2469 = arith.maximumf %2467, %2468 : vector<1x8xf32>
    %cst_402 = arith.constant 2.000000e+00 : f32
    %2470 = vector.broadcast %cst_402 : f32 to vector<1x8xf32>
    %2471 = arith.divf %2470, %2469 : vector<1x8xf32>
    %2472 = arith.mulf %2404, %2404 : vector<1x8xf32>
    %2473 = arith.mulf %2406, %2406 : vector<1x8xf32>
    %2474 = arith.addf %2472, %2473 : vector<1x8xf32>
    %2475 = arith.mulf %2471, %2474 : vector<1x8xf32>
    %cst_403 = arith.constant 1.000000e+00 : f32
    %2476 = vector.broadcast %cst_403 : f32 to vector<1x8xf32>
    %2477 = arith.subf %2476, %2475 : vector<1x8xf32>
    %2478 = arith.mulf %2402, %2404 : vector<1x8xf32>
    %2479 = arith.mulf %2406, %2400 : vector<1x8xf32>
    %2480 = arith.subf %2478, %2479 : vector<1x8xf32>
    %2481 = arith.mulf %2471, %2480 : vector<1x8xf32>
    %2482 = arith.mulf %2402, %2406 : vector<1x8xf32>
    %2483 = arith.mulf %2404, %2400 : vector<1x8xf32>
    %2484 = arith.addf %2482, %2483 : vector<1x8xf32>
    %2485 = arith.mulf %2471, %2484 : vector<1x8xf32>
    %2486 = arith.mulf %2402, %2404 : vector<1x8xf32>
    %2487 = arith.mulf %2406, %2400 : vector<1x8xf32>
    %2488 = arith.addf %2486, %2487 : vector<1x8xf32>
    %2489 = arith.mulf %2471, %2488 : vector<1x8xf32>
    %2490 = arith.mulf %2402, %2402 : vector<1x8xf32>
    %2491 = arith.mulf %2406, %2406 : vector<1x8xf32>
    %2492 = arith.addf %2490, %2491 : vector<1x8xf32>
    %2493 = arith.mulf %2471, %2492 : vector<1x8xf32>
    %cst_404 = arith.constant 1.000000e+00 : f32
    %2494 = vector.broadcast %cst_404 : f32 to vector<1x8xf32>
    %2495 = arith.subf %2494, %2493 : vector<1x8xf32>
    %2496 = arith.mulf %2404, %2406 : vector<1x8xf32>
    %2497 = arith.mulf %2402, %2400 : vector<1x8xf32>
    %2498 = arith.subf %2496, %2497 : vector<1x8xf32>
    %2499 = arith.mulf %2471, %2498 : vector<1x8xf32>
    %2500 = arith.mulf %2402, %2406 : vector<1x8xf32>
    %2501 = arith.mulf %2404, %2400 : vector<1x8xf32>
    %2502 = arith.subf %2500, %2501 : vector<1x8xf32>
    %2503 = arith.mulf %2471, %2502 : vector<1x8xf32>
    %2504 = arith.mulf %2404, %2406 : vector<1x8xf32>
    %2505 = arith.mulf %2402, %2400 : vector<1x8xf32>
    %2506 = arith.addf %2504, %2505 : vector<1x8xf32>
    %2507 = arith.mulf %2471, %2506 : vector<1x8xf32>
    %2508 = arith.mulf %2402, %2402 : vector<1x8xf32>
    %2509 = arith.mulf %2404, %2404 : vector<1x8xf32>
    %2510 = arith.addf %2508, %2509 : vector<1x8xf32>
    %2511 = arith.mulf %2471, %2510 : vector<1x8xf32>
    %cst_405 = arith.constant 1.000000e+00 : f32
    %2512 = vector.broadcast %cst_405 : f32 to vector<1x8xf32>
    %2513 = arith.subf %2512, %2511 : vector<1x8xf32>
    %2514 = arith.mulf %2408, %2408 : vector<1x8xf32>
    %2515 = arith.mulf %2410, %2410 : vector<1x8xf32>
    %2516 = arith.addf %2514, %2515 : vector<1x8xf32>
    %2517 = arith.mulf %2412, %2412 : vector<1x8xf32>
    %2518 = arith.addf %2516, %2517 : vector<1x8xf32>
    %2519 = arith.mulf %2414, %2414 : vector<1x8xf32>
    %2520 = arith.addf %2518, %2519 : vector<1x8xf32>
    %cst_406 = arith.constant 9.99999996E-13 : f32
    %2521 = vector.broadcast %cst_406 : f32 to vector<1x8xf32>
    %2522 = arith.maximumf %2520, %2521 : vector<1x8xf32>
    %cst_407 = arith.constant 2.000000e+00 : f32
    %2523 = vector.broadcast %cst_407 : f32 to vector<1x8xf32>
    %2524 = arith.divf %2523, %2522 : vector<1x8xf32>
    %2525 = arith.mulf %2412, %2412 : vector<1x8xf32>
    %2526 = arith.mulf %2414, %2414 : vector<1x8xf32>
    %2527 = arith.addf %2525, %2526 : vector<1x8xf32>
    %2528 = arith.mulf %2524, %2527 : vector<1x8xf32>
    %cst_408 = arith.constant 1.000000e+00 : f32
    %2529 = vector.broadcast %cst_408 : f32 to vector<1x8xf32>
    %2530 = arith.subf %2529, %2528 : vector<1x8xf32>
    %2531 = arith.mulf %2410, %2412 : vector<1x8xf32>
    %2532 = arith.mulf %2414, %2408 : vector<1x8xf32>
    %2533 = arith.subf %2531, %2532 : vector<1x8xf32>
    %2534 = arith.mulf %2524, %2533 : vector<1x8xf32>
    %2535 = arith.mulf %2410, %2414 : vector<1x8xf32>
    %2536 = arith.mulf %2412, %2408 : vector<1x8xf32>
    %2537 = arith.addf %2535, %2536 : vector<1x8xf32>
    %2538 = arith.mulf %2524, %2537 : vector<1x8xf32>
    %2539 = arith.mulf %2410, %2412 : vector<1x8xf32>
    %2540 = arith.mulf %2414, %2408 : vector<1x8xf32>
    %2541 = arith.addf %2539, %2540 : vector<1x8xf32>
    %2542 = arith.mulf %2524, %2541 : vector<1x8xf32>
    %2543 = arith.mulf %2410, %2410 : vector<1x8xf32>
    %2544 = arith.mulf %2414, %2414 : vector<1x8xf32>
    %2545 = arith.addf %2543, %2544 : vector<1x8xf32>
    %2546 = arith.mulf %2524, %2545 : vector<1x8xf32>
    %cst_409 = arith.constant 1.000000e+00 : f32
    %2547 = vector.broadcast %cst_409 : f32 to vector<1x8xf32>
    %2548 = arith.subf %2547, %2546 : vector<1x8xf32>
    %2549 = arith.mulf %2412, %2414 : vector<1x8xf32>
    %2550 = arith.mulf %2410, %2408 : vector<1x8xf32>
    %2551 = arith.subf %2549, %2550 : vector<1x8xf32>
    %2552 = arith.mulf %2524, %2551 : vector<1x8xf32>
    %2553 = arith.mulf %2410, %2414 : vector<1x8xf32>
    %2554 = arith.mulf %2412, %2408 : vector<1x8xf32>
    %2555 = arith.subf %2553, %2554 : vector<1x8xf32>
    %2556 = arith.mulf %2524, %2555 : vector<1x8xf32>
    %2557 = arith.mulf %2412, %2414 : vector<1x8xf32>
    %2558 = arith.mulf %2410, %2408 : vector<1x8xf32>
    %2559 = arith.addf %2557, %2558 : vector<1x8xf32>
    %2560 = arith.mulf %2524, %2559 : vector<1x8xf32>
    %2561 = arith.mulf %2410, %2410 : vector<1x8xf32>
    %2562 = arith.mulf %2412, %2412 : vector<1x8xf32>
    %2563 = arith.addf %2561, %2562 : vector<1x8xf32>
    %2564 = arith.mulf %2524, %2563 : vector<1x8xf32>
    %cst_410 = arith.constant 1.000000e+00 : f32
    %2565 = vector.broadcast %cst_410 : f32 to vector<1x8xf32>
    %2566 = arith.subf %2565, %2564 : vector<1x8xf32>
    %2567 = arith.mulf %2208, %2477 : vector<1x8xf32>
    %2568 = arith.mulf %2213, %2489 : vector<1x8xf32>
    %2569 = arith.addf %2567, %2568 : vector<1x8xf32>
    %2570 = arith.mulf %2218, %2503 : vector<1x8xf32>
    %2571 = arith.addf %2569, %2570 : vector<1x8xf32>
    %2572 = arith.mulf %2208, %2481 : vector<1x8xf32>
    %2573 = arith.mulf %2213, %2495 : vector<1x8xf32>
    %2574 = arith.addf %2572, %2573 : vector<1x8xf32>
    %2575 = arith.mulf %2218, %2507 : vector<1x8xf32>
    %2576 = arith.addf %2574, %2575 : vector<1x8xf32>
    %2577 = arith.mulf %2208, %2485 : vector<1x8xf32>
    %2578 = arith.mulf %2213, %2499 : vector<1x8xf32>
    %2579 = arith.addf %2577, %2578 : vector<1x8xf32>
    %2580 = arith.mulf %2218, %2513 : vector<1x8xf32>
    %2581 = arith.addf %2579, %2580 : vector<1x8xf32>
    %2582 = arith.mulf %2223, %2477 : vector<1x8xf32>
    %2583 = arith.mulf %2228, %2489 : vector<1x8xf32>
    %2584 = arith.addf %2582, %2583 : vector<1x8xf32>
    %2585 = arith.mulf %2233, %2503 : vector<1x8xf32>
    %2586 = arith.addf %2584, %2585 : vector<1x8xf32>
    %2587 = arith.mulf %2223, %2481 : vector<1x8xf32>
    %2588 = arith.mulf %2228, %2495 : vector<1x8xf32>
    %2589 = arith.addf %2587, %2588 : vector<1x8xf32>
    %2590 = arith.mulf %2233, %2507 : vector<1x8xf32>
    %2591 = arith.addf %2589, %2590 : vector<1x8xf32>
    %2592 = arith.mulf %2223, %2485 : vector<1x8xf32>
    %2593 = arith.mulf %2228, %2499 : vector<1x8xf32>
    %2594 = arith.addf %2592, %2593 : vector<1x8xf32>
    %2595 = arith.mulf %2233, %2513 : vector<1x8xf32>
    %2596 = arith.addf %2594, %2595 : vector<1x8xf32>
    %2597 = arith.mulf %2238, %2477 : vector<1x8xf32>
    %2598 = arith.mulf %2243, %2489 : vector<1x8xf32>
    %2599 = arith.addf %2597, %2598 : vector<1x8xf32>
    %2600 = arith.mulf %2248, %2503 : vector<1x8xf32>
    %2601 = arith.addf %2599, %2600 : vector<1x8xf32>
    %2602 = arith.mulf %2238, %2481 : vector<1x8xf32>
    %2603 = arith.mulf %2243, %2495 : vector<1x8xf32>
    %2604 = arith.addf %2602, %2603 : vector<1x8xf32>
    %2605 = arith.mulf %2248, %2507 : vector<1x8xf32>
    %2606 = arith.addf %2604, %2605 : vector<1x8xf32>
    %2607 = arith.mulf %2238, %2485 : vector<1x8xf32>
    %2608 = arith.mulf %2243, %2499 : vector<1x8xf32>
    %2609 = arith.addf %2607, %2608 : vector<1x8xf32>
    %2610 = arith.mulf %2248, %2513 : vector<1x8xf32>
    %2611 = arith.addf %2609, %2610 : vector<1x8xf32>
    %2612 = arith.mulf %2253, %2530 : vector<1x8xf32>
    %2613 = arith.mulf %2258, %2542 : vector<1x8xf32>
    %2614 = arith.addf %2612, %2613 : vector<1x8xf32>
    %2615 = arith.mulf %2263, %2556 : vector<1x8xf32>
    %2616 = arith.addf %2614, %2615 : vector<1x8xf32>
    %2617 = arith.mulf %2253, %2534 : vector<1x8xf32>
    %2618 = arith.mulf %2258, %2548 : vector<1x8xf32>
    %2619 = arith.addf %2617, %2618 : vector<1x8xf32>
    %2620 = arith.mulf %2263, %2560 : vector<1x8xf32>
    %2621 = arith.addf %2619, %2620 : vector<1x8xf32>
    %2622 = arith.mulf %2253, %2538 : vector<1x8xf32>
    %2623 = arith.mulf %2258, %2552 : vector<1x8xf32>
    %2624 = arith.addf %2622, %2623 : vector<1x8xf32>
    %2625 = arith.mulf %2263, %2566 : vector<1x8xf32>
    %2626 = arith.addf %2624, %2625 : vector<1x8xf32>
    %2627 = arith.mulf %2268, %2530 : vector<1x8xf32>
    %2628 = arith.mulf %2273, %2542 : vector<1x8xf32>
    %2629 = arith.addf %2627, %2628 : vector<1x8xf32>
    %2630 = arith.mulf %2278, %2556 : vector<1x8xf32>
    %2631 = arith.addf %2629, %2630 : vector<1x8xf32>
    %2632 = arith.mulf %2268, %2534 : vector<1x8xf32>
    %2633 = arith.mulf %2273, %2548 : vector<1x8xf32>
    %2634 = arith.addf %2632, %2633 : vector<1x8xf32>
    %2635 = arith.mulf %2278, %2560 : vector<1x8xf32>
    %2636 = arith.addf %2634, %2635 : vector<1x8xf32>
    %2637 = arith.mulf %2268, %2538 : vector<1x8xf32>
    %2638 = arith.mulf %2273, %2552 : vector<1x8xf32>
    %2639 = arith.addf %2637, %2638 : vector<1x8xf32>
    %2640 = arith.mulf %2278, %2566 : vector<1x8xf32>
    %2641 = arith.addf %2639, %2640 : vector<1x8xf32>
    %2642 = arith.mulf %2283, %2530 : vector<1x8xf32>
    %2643 = arith.mulf %2288, %2542 : vector<1x8xf32>
    %2644 = arith.addf %2642, %2643 : vector<1x8xf32>
    %2645 = arith.mulf %2293, %2556 : vector<1x8xf32>
    %2646 = arith.addf %2644, %2645 : vector<1x8xf32>
    %2647 = arith.mulf %2283, %2534 : vector<1x8xf32>
    %2648 = arith.mulf %2288, %2548 : vector<1x8xf32>
    %2649 = arith.addf %2647, %2648 : vector<1x8xf32>
    %2650 = arith.mulf %2293, %2560 : vector<1x8xf32>
    %2651 = arith.addf %2649, %2650 : vector<1x8xf32>
    %2652 = arith.mulf %2283, %2538 : vector<1x8xf32>
    %2653 = arith.mulf %2288, %2552 : vector<1x8xf32>
    %2654 = arith.addf %2652, %2653 : vector<1x8xf32>
    %2655 = arith.mulf %2293, %2566 : vector<1x8xf32>
    %2656 = arith.addf %2654, %2655 : vector<1x8xf32>
    %c0_411 = arith.constant 0 : index
    %c0_412 = arith.constant 0 : index
    %c21_413 = arith.constant 21 : index
    %2657 = vector.load %arg3[%c0_411, %c0_412, %c21_413] : memref<1x1x24xf32, #tpu.memory_space<vmem>>, vector<1x1x1xf32>
    %2658 = vector.shape_cast %2657 : vector<1x1x1xf32> to vector<1x1xf32>
    %c0_414 = arith.constant 0 : index
    %c0_415 = arith.constant 0 : index
    %c22_416 = arith.constant 22 : index
    %2659 = vector.load %arg3[%c0_414, %c0_415, %c22_416] : memref<1x1x24xf32, #tpu.memory_space<vmem>>, vector<1x1x1xf32>
    %2660 = vector.shape_cast %2659 : vector<1x1x1xf32> to vector<1x1xf32>
    %c0_417 = arith.constant 0 : index
    %c0_418 = arith.constant 0 : index
    %c23_419 = arith.constant 23 : index
    %2661 = vector.load %arg3[%c0_417, %c0_418, %c23_419] : memref<1x1x24xf32, #tpu.memory_space<vmem>>, vector<1x1x1xf32>
    %2662 = vector.shape_cast %2661 : vector<1x1x1xf32> to vector<1x1xf32>
    %c0_420 = arith.constant 0 : index
    %c0_421 = arith.constant 0 : index
    %c21_422 = arith.constant 21 : index
    %2663 = vector.load %arg4[%c0_420, %c0_421, %c21_422] : memref<1x1x24xf32, #tpu.memory_space<vmem>>, vector<1x1x1xf32>
    %2664 = vector.shape_cast %2663 : vector<1x1x1xf32> to vector<1x1xf32>
    %c0_423 = arith.constant 0 : index
    %c0_424 = arith.constant 0 : index
    %c22_425 = arith.constant 22 : index
    %2665 = vector.load %arg4[%c0_423, %c0_424, %c22_425] : memref<1x1x24xf32, #tpu.memory_space<vmem>>, vector<1x1x1xf32>
    %2666 = vector.shape_cast %2665 : vector<1x1x1xf32> to vector<1x1xf32>
    %c0_426 = arith.constant 0 : index
    %c0_427 = arith.constant 0 : index
    %c23_428 = arith.constant 23 : index
    %2667 = vector.load %arg4[%c0_426, %c0_427, %c23_428] : memref<1x1x24xf32, #tpu.memory_space<vmem>>, vector<1x1x1xf32>
    %2668 = vector.shape_cast %2667 : vector<1x1x1xf32> to vector<1x1xf32>
    %2669 = vector.broadcast %2658 : vector<1x1xf32> to vector<1x8xf32>
    %2670 = arith.mulf %2208, %2669 : vector<1x8xf32>
    %2671 = vector.broadcast %2660 : vector<1x1xf32> to vector<1x8xf32>
    %2672 = arith.mulf %2213, %2671 : vector<1x8xf32>
    %2673 = arith.addf %2670, %2672 : vector<1x8xf32>
    %2674 = vector.broadcast %2662 : vector<1x1xf32> to vector<1x8xf32>
    %2675 = arith.mulf %2218, %2674 : vector<1x8xf32>
    %2676 = arith.addf %2673, %2675 : vector<1x8xf32>
    %2677 = vector.broadcast %2658 : vector<1x1xf32> to vector<1x8xf32>
    %2678 = arith.mulf %2223, %2677 : vector<1x8xf32>
    %2679 = vector.broadcast %2660 : vector<1x1xf32> to vector<1x8xf32>
    %2680 = arith.mulf %2228, %2679 : vector<1x8xf32>
    %2681 = arith.addf %2678, %2680 : vector<1x8xf32>
    %2682 = vector.broadcast %2662 : vector<1x1xf32> to vector<1x8xf32>
    %2683 = arith.mulf %2233, %2682 : vector<1x8xf32>
    %2684 = arith.addf %2681, %2683 : vector<1x8xf32>
    %2685 = vector.broadcast %2658 : vector<1x1xf32> to vector<1x8xf32>
    %2686 = arith.mulf %2238, %2685 : vector<1x8xf32>
    %2687 = vector.broadcast %2660 : vector<1x1xf32> to vector<1x8xf32>
    %2688 = arith.mulf %2243, %2687 : vector<1x8xf32>
    %2689 = arith.addf %2686, %2688 : vector<1x8xf32>
    %2690 = vector.broadcast %2662 : vector<1x1xf32> to vector<1x8xf32>
    %2691 = arith.mulf %2248, %2690 : vector<1x8xf32>
    %2692 = arith.addf %2689, %2691 : vector<1x8xf32>
    %2693 = arith.addf %2676, %2330 : vector<1x8xf32>
    %2694 = arith.addf %2684, %2331 : vector<1x8xf32>
    %2695 = arith.addf %2692, %2332 : vector<1x8xf32>
    %2696 = vector.broadcast %2664 : vector<1x1xf32> to vector<1x8xf32>
    %2697 = arith.mulf %2253, %2696 : vector<1x8xf32>
    %2698 = vector.broadcast %2666 : vector<1x1xf32> to vector<1x8xf32>
    %2699 = arith.mulf %2258, %2698 : vector<1x8xf32>
    %2700 = arith.addf %2697, %2699 : vector<1x8xf32>
    %2701 = vector.broadcast %2668 : vector<1x1xf32> to vector<1x8xf32>
    %2702 = arith.mulf %2263, %2701 : vector<1x8xf32>
    %2703 = arith.addf %2700, %2702 : vector<1x8xf32>
    %2704 = vector.broadcast %2664 : vector<1x1xf32> to vector<1x8xf32>
    %2705 = arith.mulf %2268, %2704 : vector<1x8xf32>
    %2706 = vector.broadcast %2666 : vector<1x1xf32> to vector<1x8xf32>
    %2707 = arith.mulf %2273, %2706 : vector<1x8xf32>
    %2708 = arith.addf %2705, %2707 : vector<1x8xf32>
    %2709 = vector.broadcast %2668 : vector<1x1xf32> to vector<1x8xf32>
    %2710 = arith.mulf %2278, %2709 : vector<1x8xf32>
    %2711 = arith.addf %2708, %2710 : vector<1x8xf32>
    %2712 = vector.broadcast %2664 : vector<1x1xf32> to vector<1x8xf32>
    %2713 = arith.mulf %2283, %2712 : vector<1x8xf32>
    %2714 = vector.broadcast %2666 : vector<1x1xf32> to vector<1x8xf32>
    %2715 = arith.mulf %2288, %2714 : vector<1x8xf32>
    %2716 = arith.addf %2713, %2715 : vector<1x8xf32>
    %2717 = vector.broadcast %2668 : vector<1x1xf32> to vector<1x8xf32>
    %2718 = arith.mulf %2293, %2717 : vector<1x8xf32>
    %2719 = arith.addf %2716, %2718 : vector<1x8xf32>
    %2720 = arith.addf %2703, %2357 : vector<1x8xf32>
    %2721 = arith.addf %2711, %2358 : vector<1x8xf32>
    %2722 = arith.addf %2719, %2359 : vector<1x8xf32>
    %2723 = arith.subf %2571, %2616 : vector<1x8xf32>
    %2724 = math.absf %2723 : vector<1x8xf32>
    %2725 = arith.subf %2576, %2621 : vector<1x8xf32>
    %2726 = math.absf %2725 : vector<1x8xf32>
    %2727 = arith.addf %2724, %2726 : vector<1x8xf32>
    %2728 = arith.subf %2581, %2626 : vector<1x8xf32>
    %2729 = math.absf %2728 : vector<1x8xf32>
    %2730 = arith.addf %2727, %2729 : vector<1x8xf32>
    %2731 = arith.subf %2586, %2631 : vector<1x8xf32>
    %2732 = math.absf %2731 : vector<1x8xf32>
    %2733 = arith.addf %2730, %2732 : vector<1x8xf32>
    %2734 = arith.subf %2591, %2636 : vector<1x8xf32>
    %2735 = math.absf %2734 : vector<1x8xf32>
    %2736 = arith.addf %2733, %2735 : vector<1x8xf32>
    %2737 = arith.subf %2596, %2641 : vector<1x8xf32>
    %2738 = math.absf %2737 : vector<1x8xf32>
    %2739 = arith.addf %2736, %2738 : vector<1x8xf32>
    %2740 = arith.subf %2601, %2646 : vector<1x8xf32>
    %2741 = math.absf %2740 : vector<1x8xf32>
    %2742 = arith.addf %2739, %2741 : vector<1x8xf32>
    %2743 = arith.subf %2606, %2651 : vector<1x8xf32>
    %2744 = math.absf %2743 : vector<1x8xf32>
    %2745 = arith.addf %2742, %2744 : vector<1x8xf32>
    %2746 = arith.subf %2611, %2656 : vector<1x8xf32>
    %2747 = math.absf %2746 : vector<1x8xf32>
    %2748 = arith.addf %2745, %2747 : vector<1x8xf32>
    %2749 = arith.addf %2386, %2748 : vector<1x8xf32>
    %2750 = arith.subf %2693, %2720 : vector<1x8xf32>
    %2751 = math.absf %2750 : vector<1x8xf32>
    %2752 = arith.subf %2694, %2721 : vector<1x8xf32>
    %2753 = math.absf %2752 : vector<1x8xf32>
    %2754 = arith.addf %2751, %2753 : vector<1x8xf32>
    %2755 = arith.subf %2695, %2722 : vector<1x8xf32>
    %2756 = math.absf %2755 : vector<1x8xf32>
    %2757 = arith.addf %2754, %2756 : vector<1x8xf32>
    %2758 = vector.broadcast %2398 : vector<1x1xf32> to vector<1x8xf32>
    %2759 = arith.mulf %2758, %2757 : vector<1x8xf32>
    %2760 = arith.addf %2397, %2759 : vector<1x8xf32>
    %c0_429 = arith.constant 0 : index
    %c32_430 = arith.constant 32 : index
    %c0_431 = arith.constant 0 : index
    %2761 = vector.load %arg1[%c0_429, %c32_430, %c0_431] : memref<1x35x8xf32, #tpu.memory_space<vmem>>, vector<1x1x8xf32>
    %2762 = vector.shape_cast %2761 : vector<1x1x8xf32> to vector<1x8xf32>
    %c0_432 = arith.constant 0 : index
    %c33_433 = arith.constant 33 : index
    %c0_434 = arith.constant 0 : index
    %2763 = vector.load %arg1[%c0_432, %c33_433, %c0_434] : memref<1x35x8xf32, #tpu.memory_space<vmem>>, vector<1x1x8xf32>
    %2764 = vector.shape_cast %2763 : vector<1x1x8xf32> to vector<1x8xf32>
    %c0_435 = arith.constant 0 : index
    %c34_436 = arith.constant 34 : index
    %c0_437 = arith.constant 0 : index
    %2765 = vector.load %arg1[%c0_435, %c34_436, %c0_437] : memref<1x35x8xf32, #tpu.memory_space<vmem>>, vector<1x1x8xf32>
    %2766 = vector.shape_cast %2765 : vector<1x1x8xf32> to vector<1x8xf32>
    %c0_438 = arith.constant 0 : index
    %c32_439 = arith.constant 32 : index
    %c0_440 = arith.constant 0 : index
    %2767 = vector.load %arg2[%c0_438, %c32_439, %c0_440] : memref<1x35x8xf32, #tpu.memory_space<vmem>>, vector<1x1x8xf32>
    %2768 = vector.shape_cast %2767 : vector<1x1x8xf32> to vector<1x8xf32>
    %c0_441 = arith.constant 0 : index
    %c33_442 = arith.constant 33 : index
    %c0_443 = arith.constant 0 : index
    %2769 = vector.load %arg2[%c0_441, %c33_442, %c0_443] : memref<1x35x8xf32, #tpu.memory_space<vmem>>, vector<1x1x8xf32>
    %2770 = vector.shape_cast %2769 : vector<1x1x8xf32> to vector<1x8xf32>
    %c0_444 = arith.constant 0 : index
    %c34_445 = arith.constant 34 : index
    %c0_446 = arith.constant 0 : index
    %2771 = vector.load %arg2[%c0_444, %c34_445, %c0_446] : memref<1x35x8xf32, #tpu.memory_space<vmem>>, vector<1x1x8xf32>
    %2772 = vector.shape_cast %2771 : vector<1x1x8xf32> to vector<1x8xf32>
    %2773 = arith.subf %2762, %2768 : vector<1x8xf32>
    %2774 = math.absf %2773 : vector<1x8xf32>
    %2775 = arith.subf %2764, %2770 : vector<1x8xf32>
    %2776 = math.absf %2775 : vector<1x8xf32>
    %2777 = arith.addf %2774, %2776 : vector<1x8xf32>
    %2778 = arith.subf %2766, %2772 : vector<1x8xf32>
    %2779 = math.absf %2778 : vector<1x8xf32>
    %2780 = arith.addf %2777, %2779 : vector<1x8xf32>
    %c0_447 = arith.constant 0 : index
    %c0_448 = arith.constant 0 : index
    %c0_449 = arith.constant 0 : index
    %2781 = vector.load %arg6[%c0_447, %c0_448, %c0_449] : memref<1x4x8xf32, #tpu.memory_space<vmem>>, vector<1x1x8xf32>
    %2782 = vector.shape_cast %2781 : vector<1x1x8xf32> to vector<1x8xf32>
    %2783 = vector.shape_cast %2780 : vector<1x8xf32> to vector<1x1x8xf32>
    tpu.vector_store %arg6[%c0_447, %c0_448, %c0_449], %2783 {strides = array<i32>} : memref<1x4x8xf32, #tpu.memory_space<vmem>>, vector<1x1x8xf32>,
    %c0_450 = arith.constant 0 : index
    %c1_451 = arith.constant 1 : index
    %c0_452 = arith.constant 0 : index
    %2784 = vector.load %arg6[%c0_450, %c1_451, %c0_452] : memref<1x4x8xf32, #tpu.memory_space<vmem>>, vector<1x1x8xf32>
    %2785 = vector.shape_cast %2784 : vector<1x1x8xf32> to vector<1x8xf32>
    %2786 = vector.shape_cast %2460 : vector<1x8xf32> to vector<1x1x8xf32>
    tpu.vector_store %arg6[%c0_450, %c1_451, %c0_452], %2786 {strides = array<i32>} : memref<1x4x8xf32, #tpu.memory_space<vmem>>, vector<1x1x8xf32>,
    %c0_453 = arith.constant 0 : index
    %c2_454 = arith.constant 2 : index
    %c0_455 = arith.constant 0 : index
    %2787 = vector.load %arg6[%c0_453, %c2_454, %c0_455] : memref<1x4x8xf32, #tpu.memory_space<vmem>>, vector<1x1x8xf32>
    %2788 = vector.shape_cast %2787 : vector<1x1x8xf32> to vector<1x8xf32>
    %2789 = vector.shape_cast %2760 : vector<1x8xf32> to vector<1x1x8xf32>
    tpu.vector_store %arg6[%c0_453, %c2_454, %c0_455], %2789 {strides = array<i32>} : memref<1x4x8xf32, #tpu.memory_space<vmem>>, vector<1x1x8xf32>,
    %c0_456 = arith.constant 0 : index
    %c3_457 = arith.constant 3 : index
    %c0_458 = arith.constant 0 : index
    %2790 = vector.load %arg6[%c0_456, %c3_457, %c0_458] : memref<1x4x8xf32, #tpu.memory_space<vmem>>, vector<1x1x8xf32>
    %2791 = vector.shape_cast %2790 : vector<1x1x8xf32> to vector<1x8xf32>
    %2792 = vector.shape_cast %2749 : vector<1x8xf32> to vector<1x1x8xf32>
    tpu.vector_store %arg6[%c0_456, %c3_457, %c0_458], %2792 {strides = array<i32>} : memref<1x4x8xf32, #tpu.memory_space<vmem>>, vector<1x1x8xf32>,
    return
  }
  func.func @transform_0(%arg0: i32) -> (i32, i32, i32) {
    %c0_i32 = arith.constant 0 : i32
    %c0_i32_0 = arith.constant 0 : i32
    %c0_i32_1 = arith.constant 0 : i32
    return %arg0, %c0_i32, %c0_i32_0 : i32, i32, i32
  }
  func.func @transform_1(%arg0: i32) -> (i32, i32, i32) {
    %c0_i32 = arith.constant 0 : i32
    %c0_i32_0 = arith.constant 0 : i32
    %c0_i32_1 = arith.constant 0 : i32
    return %arg0, %c0_i32, %c0_i32_0 : i32, i32, i32
  }
  func.func @transform_2(%arg0: i32) -> (i32, i32, i32) {
    %c0_i32 = arith.constant 0 : i32
    %c0_i32_0 = arith.constant 0 : i32
    %c0_i32_1 = arith.constant 0 : i32
    return %arg0, %c0_i32, %c0_i32_0 : i32, i32, i32
  }
  func.func @transform_3(%arg0: i32) -> (i32, i32, i32) {
    %c0_i32 = arith.constant 0 : i32
    %c0_i32_0 = arith.constant 0 : i32
    %c0_i32_1 = arith.constant 0 : i32
    return %arg0, %c0_i32, %c0_i32_0 : i32, i32, i32
  }
  func.func @transform_4(%arg0: i32) -> (i32, i32) {
    %c0_i32 = arith.constant 0 : i32
    %c0_i32_0 = arith.constant 0 : i32
    %c0_i32_1 = arith.constant 0 : i32
    return %c0_i32, %c0_i32_0 : i32, i32
  }
  func.func @transform_5(%arg0: i32) -> (i32, i32, i32) {
    %c0_i32 = arith.constant 0 : i32
    %c0_i32_0 = arith.constant 0 : i32
    %c0_i32_1 = arith.constant 0 : i32
    return %arg0, %c0_i32, %c0_i32_0 : i32, i32, i32
  }
}

</mosaic_0001>

<llo_original>
// kernel: tpu_custom_call.1
$region0: #{tpu_custom_call.1}
  #allocation0 [shape = 'u32[]', space=smem, size = 0x4, offset = 0x4, fixed_abs, tag = 'smem constant byte address 0x4 - core index']
  #allocation1 [shape = 'u32[72,128]{1,0:T(1,128)}', space=vmem, size = 0x9000, scoped, tag = 'internal scratch']
  %s0 = inlined_call_operand.vmem [shape: f32[2,35,8], index: 0, kind: input, shape index: {}]
  %s1 = inlined_call_operand.vmem [shape: f32[2,35,8], index: 1, kind: input, shape index: {}]
  %s2 = inlined_call_operand.vmem [shape: f32[2,1,24], index: 2, kind: input, shape index: {}]
  %s3 = inlined_call_operand.vmem [shape: f32[2,1,24], index: 3, kind: input, shape index: {}]
  %s4 = inlined_call_operand.vmem [shape: f32[1,8], index: 4, kind: input, shape index: {}]
  %s5 = inlined_call_operand.hbm [shape: f32[2,4,8], index: 5, kind: output, shape index: {}]
  %s6 = sld [smem:[#allocation0]]
  $region53: #{tpu_custom_call.1} parent=0
    _
  %s8 = ssub.s32 1, %s6
  %s9 = scalar_select 0, %s8, %s6
  $region1: #{tpu_custom_call.1} parent=0
    #allocation2 [shape = 'u8[4096]{0}', space=vmem, size = 0x1000, scoped, tag = 'output window, operand 0']
    #allocation3 [shape = 's32[2]{0}', space=sflag, size = 0x8, scoped, tag = 'scoped memory for tpu_custom_call.1']
    %10 = vsyncpa [#allocation3], 0
    %s11 = scalar_lea.sflag [#allocation3], 1
    %12 = vsyncpa %s11, 0
    loop: start=0, step=1, limit=4
    $region2: #{tpu_custom_call.1} parent=1 // loop_pre_header
      _
    $region3: #{tpu_custom_call.1} parent=1 // loop_header
      %s14 = sphi 0, %s18
      %p15 = scmp.ge.s32.totalorder %s14, 4
      %s24 = sphi 0, %s26
      %s27 = sphi 0, %s24
      %s28 = sphi 0, %s27
      %s44 = sphi 0, %s28
      %s50 = sphi 0, %s52
      %s53 = sphi 0, %s50
      %s54 = sphi 0, %s53
      %s70 = sphi 0, %s54
      %s76 = sphi 0, %s78
      %s79 = sphi 0, %s76
      %s80 = sphi 0, %s79
      %s96 = sphi 0, %s80
      %s102 = sphi 0, %s104
      %s105 = sphi 0, %s102
      %s106 = sphi 0, %s105
      %s122 = sphi 0, %s106
      %s126 = sphi 0, %s126
      %s128 = sphi 0, %s126
      %s129 = sphi 0, %s128
      %s143 = sphi 0, %s129
      %s149 = sphi 0, %s151
      %s152 = sphi 0, %s149
      %s153 = sphi 0, %s152
      %s169 = sphi 0, %s153
    $region4: #{tpu_custom_call.1} parent=1 // loop_header_branch
      %17 = sbr.rel (%p15) target = $region8
    $region5: #{tpu_custom_call.1} parent=1 // loop_body
      %s19 = ssub.s32 %s14, 1
      %s20 = ssub.s32 %s14, 2
      %s21 = sadd.s32 %s14, 1
      %s22 = ssub.s32 %s14, %s21
      %p23 = scmp.eq.s32.totalorder %s22, 0
      %s25 = sadd.s32 %s24, 1
      %s26 = scalar_select %p23, %s24, %s25
      %p29 = pneg %p23
      %p30 = scmp.eq.s32.totalorder %s14, 1
      %p31 = por %p29, %p30
      %p32 = scmp.ne.s32.totalorder %s24, %s27
      %p33 = scmp.eq.s32.totalorder %s14, 0
      %p34 = por %p32, %p33
      %p35 = scmp.ne.s32.totalorder %s24, %s27
      %p36 = scmp.eq.s32.totalorder %s19, 1
      %p37 = por %p35, %p36
      %p38 = scmp.ne.s32.totalorder %s27, %s28
      %p39 = scmp.eq.s32.totalorder %s19, 0
      %p40 = por %p38, %p39
      %p41 = scmp.ne.s32.totalorder %s27, %s28
      %p42 = scmp.eq.s32.totalorder %s20, 1
      %p43 = por %p41, %p42
      %p45 = scmp.ne.s32.totalorder %s28, %s44
      %p46 = scmp.eq.s32.totalorder %s20, 0
      %p47 = por %p45, %p46
      %s48 = ssub.s32 %s14, %s21
      %p49 = scmp.eq.s32.totalorder %s48, 0
      %s51 = sadd.s32 %s50, 1
      %s52 = scalar_select %p49, %s50, %s51
      %p55 = pneg %p49
      %p56 = scmp.eq.s32.totalorder %s14, 1
      %p57 = por %p55, %p56
      %p58 = scmp.ne.s32.totalorder %s50, %s53
      %p59 = scmp.eq.s32.totalorder %s14, 0
      %p60 = por %p58, %p59
      %p61 = scmp.ne.s32.totalorder %s50, %s53
      %p62 = scmp.eq.s32.totalorder %s19, 1
      %p63 = por %p61, %p62
      %p64 = scmp.ne.s32.totalorder %s53, %s54
      %p65 = scmp.eq.s32.totalorder %s19, 0
      %p66 = por %p64, %p65
      %p67 = scmp.ne.s32.totalorder %s53, %s54
      %p68 = scmp.eq.s32.totalorder %s20, 1
      %p69 = por %p67, %p68
      %p71 = scmp.ne.s32.totalorder %s54, %s70
      %p72 = scmp.eq.s32.totalorder %s20, 0
      %p73 = por %p71, %p72
      %s74 = ssub.s32 %s14, %s21
      %p75 = scmp.eq.s32.totalorder %s74, 0
      %s77 = sadd.s32 %s76, 1
      %s78 = scalar_select %p75, %s76, %s77
      %p81 = pneg %p75
      %p82 = scmp.eq.s32.totalorder %s14, 1
      %p83 = por %p81, %p82
      %p84 = scmp.ne.s32.totalorder %s76, %s79
      %p85 = scmp.eq.s32.totalorder %s14, 0
      %p86 = por %p84, %p85
      %p87 = scmp.ne.s32.totalorder %s76, %s79
      %p88 = scmp.eq.s32.totalorder %s19, 1
      %p89 = por %p87, %p88
      %p90 = scmp.ne.s32.totalorder %s79, %s80
      %p91 = scmp.eq.s32.totalorder %s19, 0
      %p92 = por %p90, %p91
      %p93 = scmp.ne.s32.totalorder %s79, %s80
      %p94 = scmp.eq.s32.totalorder %s20, 1
      %p95 = por %p93, %p94
      %p97 = scmp.ne.s32.totalorder %s80, %s96
      %p98 = scmp.eq.s32.totalorder %s20, 0
      %p99 = por %p97, %p98
      %s100 = ssub.s32 %s14, %s21
      %p101 = scmp.eq.s32.totalorder %s100, 0
      %s103 = sadd.s32 %s102, 1
      %s104 = scalar_select %p101, %s102, %s103
      %p107 = pneg %p101
      %p108 = scmp.eq.s32.totalorder %s14, 1
      %p109 = por %p107, %p108
      %p110 = scmp.ne.s32.totalorder %s102, %s105
      %p111 = scmp.eq.s32.totalorder %s14, 0
      %p112 = por %p110, %p111
      %p113 = scmp.ne.s32.totalorder %s102, %s105
      %p114 = scmp.eq.s32.totalorder %s19, 1
      %p115 = por %p113, %p114
      %p116 = scmp.ne.s32.totalorder %s105, %s106
      %p117 = scmp.eq.s32.totalorder %s19, 0
      %p118 = por %p116, %p117
      %p119 = scmp.ne.s32.totalorder %s105, %s106
      %p120 = scmp.eq.s32.totalorder %s20, 1
      %p121 = por %p119, %p120
      %p123 = scmp.ne.s32.totalorder %s106, %s122
      %p124 = scmp.eq.s32.totalorder %s20, 0
      %p125 = por %p123, %p124
      %s127 = sadd.s32 %s126, 1
      %p130 = scmp.eq.s32.totalorder %s14, 1
      %p131 = scmp.ne.s32.totalorder %s126, %s128
      %p132 = scmp.eq.s32.totalorder %s14, 0
      %p133 = por %p131, %p132
      %p134 = scmp.ne.s32.totalorder %s126, %s128
      %p135 = scmp.eq.s32.totalorder %s19, 1
      %p136 = por %p134, %p135
      %p137 = scmp.ne.s32.totalorder %s128, %s129
      %p138 = scmp.eq.s32.totalorder %s19, 0
      %p139 = por %p137, %p138
      %p140 = scmp.ne.s32.totalorder %s128, %s129
      %p141 = scmp.eq.s32.totalorder %s20, 1
      %p142 = por %p140, %p141
      %p144 = scmp.ne.s32.totalorder %s129, %s143
      %p145 = scmp.eq.s32.totalorder %s20, 0
      %p146 = por %p144, %p145
      %s147 = ssub.s32 %s14, %s21
      %p148 = scmp.eq.s32.totalorder %s147, 0
      %s150 = sadd.s32 %s149, 1
      %s151 = scalar_select %p148, %s149, %s150
      %p154 = pneg %p148
      %p155 = scmp.eq.s32.totalorder %s14, 1
      %p156 = por %p154, %p155
      %p157 = scmp.ne.s32.totalorder %s149, %s152
      %p158 = scmp.eq.s32.totalorder %s14, 0
      %p159 = por %p157, %p158
      %p160 = scmp.ne.s32.totalorder %s149, %s152
      %p161 = scmp.eq.s32.totalorder %s19, 1
      %p162 = por %p160, %p161
      %p163 = scmp.ne.s32.totalorder %s152, %s153
      %p164 = scmp.eq.s32.totalorder %s19, 0
      %p165 = por %p163, %p164
      %p166 = scmp.ne.s32.totalorder %s152, %s153
      %p167 = scmp.eq.s32.totalorder %s20, 1
      %p168 = por %p166, %p167
      %p170 = scmp.ne.s32.totalorder %s153, %s169
      %p171 = scmp.eq.s32.totalorder %s20, 0
      %p172 = por %p170, %p171
      %p173 = scmp.le.s32.totalorder 1, %s14
      %p174 = scmp.lt.s32.totalorder %s14, 3
      %p175 = pnand %p173, %p174
      %p176 = pneg %p175
      // Predicated region
      $region9: #{tpu_custom_call.1} parent=5 // pred_check
        _
      $region10: #{tpu_custom_call.1} parent=5 // pred_check_branch
        %178 = sbr.rel (%p175) target = $region12
      $region11: #{tpu_custom_call.1} parent=5 // pred_region
        %s179 = ssub.s32 %s14, 1
        // Predicated region
        $region13: #{tpu_custom_call.1} parent=11 // pred_check
          %p180 = pneg %p139
        $region14: #{tpu_custom_call.1} parent=11 // pred_check_branch
          %182 = sbr.rel (%p180) target = $region16
        $region15: #{tpu_custom_call.1} parent=11 // pred_region
          _
        $region16: #{tpu_custom_call.1} parent=11 // pred_fallthru
          _
      $region12: #{tpu_custom_call.1} parent=5 // pred_fallthru
        _
      %p183 = scmp.lt.s32.totalorder %s14, 2
      // Predicated region
      $region17: #{tpu_custom_call.1} parent=5 // pred_check
        %p184 = pneg %p183
      $region18: #{tpu_custom_call.1} parent=5 // pred_check_branch
        %186 = sbr.rel (%p184) target = $region20
      $region19: #{tpu_custom_call.1} parent=5 // pred_region
        // Predicated region
        $region21: #{tpu_custom_call.1} parent=19 // pred_check
          %p187 = pneg %p34
        $region22: #{tpu_custom_call.1} parent=19 // pred_check_branch
          %189 = sbr.rel (%p187) target = $region24
        $region23: #{tpu_custom_call.1} parent=19 // pred_region
          %p190 = scmp.lt.s32.totalorder %s14, 1
          %s191 = scalar_select %p190, %s14, 1
          %s192 = smul.addr %s191, 5
          %s193 = smul.addr %s192, 8
          %s194 = scalar_lea.vmem %s0, %s193
        $region24: #{tpu_custom_call.1} parent=19 // pred_fallthru
          _
        // Predicated region
        $region25: #{tpu_custom_call.1} parent=19 // pred_check
          %p195 = pneg %p60
        $region26: #{tpu_custom_call.1} parent=19 // pred_check_branch
          %197 = sbr.rel (%p195) target = $region28
        $region27: #{tpu_custom_call.1} parent=19 // pred_region
          %p198 = scmp.lt.s32.totalorder %s14, 1
          %s199 = scalar_select %p198, %s14, 1
          %s200 = smul.addr %s199, 5
          %s201 = smul.addr %s200, 8
          %s202 = scalar_lea.vmem %s1, %s201
        $region28: #{tpu_custom_call.1} parent=19 // pred_fallthru
          _
        // Predicated region
        $region29: #{tpu_custom_call.1} parent=19 // pred_check
          %p203 = pneg %p86
        $region30: #{tpu_custom_call.1} parent=19 // pred_check_branch
          %205 = sbr.rel (%p203) target = $region32
        $region31: #{tpu_custom_call.1} parent=19 // pred_region
          %p206 = scmp.lt.s32.totalorder %s14, 1
          %s207 = scalar_select %p206, %s14, 1
          %s208 = scalar_lea.vmem %s2, %s207
        $region32: #{tpu_custom_call.1} parent=19 // pred_fallthru
          _
        // Predicated region
        $region33: #{tpu_custom_call.1} parent=19 // pred_check
          %p209 = pneg %p112
        $region34: #{tpu_custom_call.1} parent=19 // pred_check_branch
          %211 = sbr.rel (%p209) target = $region36
        $region35: #{tpu_custom_call.1} parent=19 // pred_region
          %p212 = scmp.lt.s32.totalorder %s14, 1
          %s213 = scalar_select %p212, %s14, 1
          %s214 = scalar_lea.vmem %s3, %s213
        $region36: #{tpu_custom_call.1} parent=19 // pred_fallthru
          _
      $region20: #{tpu_custom_call.1} parent=5 // pred_fallthru
        _
      %p215 = scmp.le.s32.totalorder 1, %s14
      %p216 = scmp.lt.s32.totalorder %s14, 3
      %p217 = pnand %p215, %p216
      %p218 = pneg %p217
      // Predicated region
      $region37: #{tpu_custom_call.1} parent=5 // pred_check
        _
      $region38: #{tpu_custom_call.1} parent=5 // pred_check_branch
        %220 = sbr.rel (%p217) target = $region40
      $region39: #{tpu_custom_call.1} parent=5 // pred_region
        %s221 = ssub.s32 %s14, 1
        %p222 = scmp.lt.s32.totalorder %s19, 1
        %s223 = scalar_select %p222, %s19, 1
        %s224 = smul.addr %s223, 5
        %s225 = smul.addr %s224, 8
        %s226 = scalar_lea.vmem %s0, %s225
        %p227 = pneg %p40
        %p228 = pneg %p37
        %p229 = scmp.lt.s32.totalorder %s19, 1
        %s230 = scalar_select %p229, %s19, 1
        %s231 = smul.addr %s230, 5
        %s232 = smul.addr %s231, 8
        %s233 = scalar_lea.vmem %s1, %s232
        %p234 = pneg %p66
        %p235 = pneg %p63
        %p236 = scmp.lt.s32.totalorder %s19, 1
        %s237 = scalar_select %p236, %s19, 1
        %s238 = scalar_lea.vmem %s2, %s237
        %p239 = pneg %p92
        %p240 = pneg %p89
        %p241 = scmp.lt.s32.totalorder %s19, 1
        %s242 = scalar_select %p241, %s19, 1
        %s243 = scalar_lea.vmem %s3, %s242
        %p244 = pneg %p118
        %p245 = pneg %p115
        %p246 = pneg %p139
        %p247 = pneg %p136
        %p248 = pneg %p165
        %p249 = pneg %p162
        %s250 = sand.u32 %s152, 1
        %s251 = scalar_lea.sflag [#allocation3], %s250
        %s252 = sand.u32 %s152, 1
        %s253 = smul.addr %s252, 4
        %s254 = scalar_lea.vmem [#allocation2], %s253
        %p255 = scmp.lt.s32.totalorder %s19, 1
        %s256 = scalar_select %p255, %s19, 1
        %s257 = smul.addr %s256, 5
        %s258 = smul.addr %s257, 8
        %s259 = scalar_lea.vmem %s0, %s258
        %p260 = scmp.lt.s32.totalorder %s19, 1
        %s261 = scalar_select %p260, %s19, 1
        %s262 = smul.addr %s261, 5
        %s263 = smul.addr %s262, 8
        %s264 = scalar_lea.vmem %s1, %s263
        %p265 = scmp.lt.s32.totalorder %s19, 1
        %s266 = scalar_select %p265, %s19, 1
        %s267 = scalar_lea.vmem %s2, %s266
        %p268 = scmp.lt.s32.totalorder %s19, 1
        %s269 = scalar_select %p268, %s19, 1
        %s270 = scalar_lea.vmem %s3, %s269
        %v271 = vld [vmem:[%s4] sm:$0x1]
        %v272 = vld [vmem:[%s259] sm:$0x1]
        %v273 = vld [vmem:[%s259 + $0x1] sm:$0x1]
        %v274 = vld [vmem:[%s259 + $0x2] sm:$0x1]
        %v275 = vld [vmem:[%s259 + $0x3] sm:$0x1]
        %v276 = vld [vmem:[%s264] sm:$0x1]
        %v277 = vld [vmem:[%s264 + $0x1] sm:$0x1]
        %v278 = vld [vmem:[%s264 + $0x2] sm:$0x1]
        %v279 = vld [vmem:[%s264 + $0x3] sm:$0x1]
        %v280 = vmul.f32 %v272, %v272
        %v281 = vmul.f32 %v273, %v273
        %v282 = vadd.f32 %v280, %v281
        %v283 = vmul.f32 %v274, %v274
        %v284 = vadd.f32 %v282, %v283
        %v285 = vmul.f32 %v275, %v275
        %v286 = vadd.f32 %v284, %v285
        %v287 = vrsqrt.pop %v286
        %v288 = vmul.f32 %v287, %v286
        %v289 = vmul.f32 %v288, %v287
        %v290 = vmul.f32 0.5, %v289
        %v291 = vsub.f32 1.5, %v290
        %v292 = vmul.f32 %v287, %v291
        %v293 = vmul.f32 %v286, %v292
        %vm294 = vcmp.eq.f32.partialorder %v286, inf
        %v295 = vsel %vm294, %v286, %v293
        %vm296 = vcmp.eq.f32.partialorder %v286, 0.0
        %v297 = vand.u32 %v286, 2147483648
        %v298 = vsel %vm296, %v297, %v295
        %v299 = vmax.f32 %v298, 1e-12
        %v300 = vrcp.pop %v299
        %v301 = vmul.f32 %v299, %v300
        %v302 = vsub.f32 1.0, %v301
        %v303 = vmul.f32 %v300, %v302
        %v304 = vadd.f32 %v300, %v303
        %vm305 = vweird.f32 %v299
        %vm306 = vweird.f32 %v300
        %vm307 = vmor %vm305, %vm306
        %v308 = vsel %vm307, %v300, %v304
        %v309 = vand.u32 2147483647, %v299
        %vm310 = vcmp.eq.f32.partialorder %v309, 8.507059e+37
        %v311 = vand.u32 %v299, 2147483648
        %v312 = vor.u32 1.1754944e-38, %v311
        %v313 = vsel %vm310, %v312, %v308
        %v314 = vmul.f32 1.0, %v313
        %v315 = vmul.f32 %v272, %v314
        %v316 = vmul.f32 %v273, %v314
        %v317 = vmul.f32 %v274, %v314
        %v318 = vmul.f32 %v275, %v314
        %v319 = vmul.f32 %v276, %v276
        %v320 = vmul.f32 %v277, %v277
        %v321 = vadd.f32 %v319, %v320
        %v322 = vmul.f32 %v278, %v278
        %v323 = vadd.f32 %v321, %v322
        %v324 = vmul.f32 %v279, %v279
        %v325 = vadd.f32 %v323, %v324
        %v326 = vrsqrt.pop %v325
        %v327 = vmul.f32 %v326, %v325
        %v328 = vmul.f32 %v327, %v326
        %v329 = vmul.f32 0.5, %v328
        %v330 = vsub.f32 1.5, %v329
        %v331 = vmul.f32 %v326, %v330
        %v332 = vmul.f32 %v325, %v331
        %vm333 = vcmp.eq.f32.partialorder %v325, inf
        %v334 = vsel %vm333, %v325, %v332
        %vm335 = vcmp.eq.f32.partialorder %v325, 0.0
        %v336 = vand.u32 %v325, 2147483648
        %v337 = vsel %vm335, %v336, %v334
        %v338 = vmax.f32 %v337, 1e-12
        %v339 = vrcp.pop %v338
        %v340 = vmul.f32 %v338, %v339
        %v341 = vsub.f32 1.0, %v340
        %v342 = vmul.f32 %v339, %v341
        %v343 = vadd.f32 %v339, %v342
        %vm344 = vweird.f32 %v338
        %vm345 = vweird.f32 %v339
        %vm346 = vmor %vm344, %vm345
        %v347 = vsel %vm346, %v339, %v343
        %v348 = vand.u32 2147483647, %v338
        %vm349 = vcmp.eq.f32.partialorder %v348, 8.507059e+37
        %v350 = vand.u32 %v338, 2147483648
        %v351 = vor.u32 1.1754944e-38, %v350
        %v352 = vsel %vm349, %v351, %v347
        %v353 = vmul.f32 1.0, %v352
        %v354 = vmul.f32 %v276, %v353
        %v355 = vmul.f32 %v277, %v353
        %v356 = vmul.f32 %v278, %v353
        %v357 = vmul.f32 %v279, %v353
        %v358 = vsub.f32 %v315, %v354
        %v359 = vand.u32 2147483647, %v358
        %v360 = vsub.f32 %v316, %v355
        %v361 = vand.u32 2147483647, %v360
        %v362 = vadd.f32 %v359, %v361
        %v363 = vsub.f32 %v317, %v356
        %v364 = vand.u32 2147483647, %v363
        %v365 = vadd.f32 %v362, %v364
        %v366 = vsub.f32 %v318, %v357
        %v367 = vand.u32 2147483647, %v366
        %v368 = vadd.f32 %v365, %v367
        %370 = vset.pattern.permute.xlu0 0
        %371 = vperm.xlu0 %370, %v271
        %v372 = vpop.permute.xlu0 %371
        %v374 = vperm.slane %v372, 0
        %v375 = vmul.f32 %v374, %v368
        %v376 = vadd.f32 %v375, 0.0
        %v377 = vmax.f32 %v286, 1e-12
        %v378 = vrcp.pop %v377
        %v379 = vmul.f32 %v377, %v378
        %v380 = vsub.f32 1.0, %v379
        %v381 = vmul.f32 %v378, %v380
        %v382 = vadd.f32 %v378, %v381
        %vm383 = vweird.f32 %v377
        %vm384 = vweird.f32 %v378
        %vm385 = vmor %vm383, %vm384
        %v386 = vsel %vm385, %v378, %v382
        %v387 = vand.u32 2147483647, %v377
        %vm388 = vcmp.eq.f32.partialorder %v387, 8.507059e+37
        %v389 = vand.u32 %v377, 2147483648
        %v390 = vor.u32 1.1754944e-38, %v389
        %v391 = vsel %vm388, %v390, %v386
        %v392 = vmul.f32 2.0, %v391
        %v393 = vadd.f32 %v283, %v285
        %v394 = vmul.f32 %v392, %v393
        %v395 = vsub.f32 1.0, %v394
        %v396 = vmul.f32 %v273, %v274
        %v397 = vmul.f32 %v275, %v272
        %v398 = vsub.f32 %v396, %v397
        %v399 = vmul.f32 %v392, %v398
        %v400 = vmul.f32 %v273, %v275
        %v401 = vmul.f32 %v274, %v272
        %v402 = vadd.f32 %v400, %v401
        %v403 = vmul.f32 %v392, %v402
        %v404 = vadd.f32 %v396, %v397
        %v405 = vmul.f32 %v392, %v404
        %v406 = vadd.f32 %v281, %v285
        %v407 = vmul.f32 %v392, %v406
        %v408 = vsub.f32 1.0, %v407
        %v409 = vmul.f32 %v274, %v275
        %v410 = vmul.f32 %v273, %v272
        %v411 = vsub.f32 %v409, %v410
        %v412 = vmul.f32 %v392, %v411
        %v413 = vsub.f32 %v400, %v401
        %v414 = vmul.f32 %v392, %v413
        %v415 = vadd.f32 %v409, %v410
        %v416 = vmul.f32 %v392, %v415
        %v417 = vadd.f32 %v281, %v283
        %v418 = vmul.f32 %v392, %v417
        %v419 = vsub.f32 1.0, %v418
        %v420 = vmax.f32 %v325, 1e-12
        %v421 = vrcp.pop %v420
        %v422 = vmul.f32 %v420, %v421
        %v423 = vsub.f32 1.0, %v422
        %v424 = vmul.f32 %v421, %v423
        %v425 = vadd.f32 %v421, %v424
        %vm426 = vweird.f32 %v420
        %vm427 = vweird.f32 %v421
        %vm428 = vmor %vm426, %vm427
        %v429 = vsel %vm428, %v421, %v425
        %v430 = vand.u32 2147483647, %v420
        %vm431 = vcmp.eq.f32.partialorder %v430, 8.507059e+37
        %v432 = vand.u32 %v420, 2147483648
        %v433 = vor.u32 1.1754944e-38, %v432
        %v434 = vsel %vm431, %v433, %v429
        %v435 = vmul.f32 2.0, %v434
        %v436 = vadd.f32 %v322, %v324
        %v437 = vmul.f32 %v435, %v436
        %v438 = vsub.f32 1.0, %v437
        %v439 = vmul.f32 %v277, %v278
        %v440 = vmul.f32 %v279, %v276
        %v441 = vsub.f32 %v439, %v440
        %v442 = vmul.f32 %v435, %v441
        %v443 = vmul.f32 %v277, %v279
        %v444 = vmul.f32 %v278, %v276
        %v445 = vadd.f32 %v443, %v444
        %v446 = vmul.f32 %v435, %v445
        %v447 = vadd.f32 %v439, %v440
        %v448 = vmul.f32 %v435, %v447
        %v449 = vadd.f32 %v320, %v324
        %v450 = vmul.f32 %v435, %v449
        %v451 = vsub.f32 1.0, %v450
        %v452 = vmul.f32 %v278, %v279
        %v453 = vmul.f32 %v277, %v276
        %v454 = vsub.f32 %v452, %v453
        %v455 = vmul.f32 %v435, %v454
        %v456 = vsub.f32 %v443, %v444
        %v457 = vmul.f32 %v435, %v456
        %v458 = vadd.f32 %v452, %v453
        %v459 = vmul.f32 %v435, %v458
        %v460 = vadd.f32 %v320, %v322
        %v461 = vmul.f32 %v435, %v460
        %v462 = vsub.f32 1.0, %v461
        %v463 = vld [vmem:[%s259 + $0x20] sm:$0x1]
        %v464 = vld [vmem:[%s259 + $0x21] sm:$0x1]
        %v465 = vld [vmem:[%s259 + $0x22] sm:$0x1]
        %v466 = vld [vmem:[%s264 + $0x20] sm:$0x1]
        %v467 = vld [vmem:[%s264 + $0x21] sm:$0x1]
        %v468 = vld [vmem:[%s264 + $0x22] sm:$0x1]
        %v469 = vsub.f32 %v395, %v438
        %v470 = vand.u32 2147483647, %v469
        %v471 = vsub.f32 %v399, %v442
        %v472 = vand.u32 2147483647, %v471
        %v473 = vadd.f32 %v470, %v472
        %v474 = vsub.f32 %v403, %v446
        %v475 = vand.u32 2147483647, %v474
        %v476 = vadd.f32 %v473, %v475
        %v477 = vsub.f32 %v405, %v448
        %v478 = vand.u32 2147483647, %v477
        %v479 = vadd.f32 %v476, %v478
        %v480 = vsub.f32 %v408, %v451
        %v481 = vand.u32 2147483647, %v480
        %v482 = vadd.f32 %v479, %v481
        %v483 = vsub.f32 %v412, %v455
        %v484 = vand.u32 2147483647, %v483
        %v485 = vadd.f32 %v482, %v484
        %v486 = vsub.f32 %v414, %v457
        %v487 = vand.u32 2147483647, %v486
        %v488 = vadd.f32 %v485, %v487
        %v489 = vsub.f32 %v416, %v459
        %v490 = vand.u32 2147483647, %v489
        %v491 = vadd.f32 %v488, %v490
        %v492 = vsub.f32 %v419, %v462
        %v493 = vand.u32 2147483647, %v492
        %v494 = vadd.f32 %v491, %v493
        %v495 = vadd.f32 %v494, 0.0
        %v496 = vsub.f32 %v463, %v466
        %v497 = vand.u32 2147483647, %v496
        %v498 = vsub.f32 %v464, %v467
        %v499 = vand.u32 2147483647, %v498
        %v500 = vadd.f32 %v497, %v499
        %v501 = vsub.f32 %v465, %v468
        %v502 = vand.u32 2147483647, %v501
        %v503 = vadd.f32 %v500, %v502
        %v504 = vmul.f32 %v374, %v503
        %v505 = vadd.f32 %v504, 0.0
        %v506 = vld [vmem:[%s259 + $0x4] sm:$0x1]
        %v507 = vld [vmem:[%s259 + $0x5] sm:$0x1]
        %v508 = vld [vmem:[%s259 + $0x6] sm:$0x1]
        %v509 = vld [vmem:[%s259 + $0x7] sm:$0x1]
        %v510 = vld [vmem:[%s264 + $0x4] sm:$0x1]
        %v511 = vld [vmem:[%s264 + $0x5] sm:$0x1]
        %v512 = vld [vmem:[%s264 + $0x6] sm:$0x1]
        %v513 = vld [vmem:[%s264 + $0x7] sm:$0x1]
        %v514 = vmul.f32 %v506, %v506
        %v515 = vmul.f32 %v507, %v507
        %v516 = vadd.f32 %v514, %v515
        %v517 = vmul.f32 %v508, %v508
        %v518 = vadd.f32 %v516, %v517
        %v519 = vmul.f32 %v509, %v509
        %v520 = vadd.f32 %v518, %v519
        %v521 = vrsqrt.pop %v520
        %v522 = vmul.f32 %v521, %v520
        %v523 = vmul.f32 %v522, %v521
        %v524 = vmul.f32 0.5, %v523
        %v525 = vsub.f32 1.5, %v524
        %v526 = vmul.f32 %v521, %v525
        %v527 = vmul.f32 %v520, %v526
        %vm528 = vcmp.eq.f32.partialorder %v520, inf
        %v529 = vsel %vm528, %v520, %v527
        %vm530 = vcmp.eq.f32.partialorder %v520, 0.0
        %v531 = vand.u32 %v520, 2147483648
        %v532 = vsel %vm530, %v531, %v529
        %v533 = vmax.f32 %v532, 1e-12
        %v534 = vrcp.pop %v533
        %v535 = vmul.f32 %v533, %v534
        %v536 = vsub.f32 1.0, %v535
        %v537 = vmul.f32 %v534, %v536
        %v538 = vadd.f32 %v534, %v537
        %vm539 = vweird.f32 %v533
        %vm540 = vweird.f32 %v534
        %vm541 = vmor %vm539, %vm540
        %v542 = vsel %vm541, %v534, %v538
        %v543 = vand.u32 2147483647, %v533
        %vm544 = vcmp.eq.f32.partialorder %v543, 8.507059e+37
        %v545 = vand.u32 %v533, 2147483648
        %v546 = vor.u32 1.1754944e-38, %v545
        %v547 = vsel %vm544, %v546, %v542
        %v548 = vmul.f32 1.0, %v547
        %v549 = vmul.f32 %v506, %v548
        %v550 = vmul.f32 %v507, %v548
        %v551 = vmul.f32 %v508, %v548
        %v552 = vmul.f32 %v509, %v548
        %v553 = vmul.f32 %v510, %v510
        %v554 = vmul.f32 %v511, %v511
        %v555 = vadd.f32 %v553, %v554
        %v556 = vmul.f32 %v512, %v512
        %v557 = vadd.f32 %v555, %v556
        %v558 = vmul.f32 %v513, %v513
        %v559 = vadd.f32 %v557, %v558
        %v560 = vrsqrt.pop %v559
        %v561 = vmul.f32 %v560, %v559
        %v562 = vmul.f32 %v561, %v560
        %v563 = vmul.f32 0.5, %v562
        %v564 = vsub.f32 1.5, %v563
        %v565 = vmul.f32 %v560, %v564
        %v566 = vmul.f32 %v559, %v565
        %vm567 = vcmp.eq.f32.partialorder %v559, inf
        %v568 = vsel %vm567, %v559, %v566
        %vm569 = vcmp.eq.f32.partialorder %v559, 0.0
        %v570 = vand.u32 %v559, 2147483648
        %v571 = vsel %vm569, %v570, %v568
        %v572 = vmax.f32 %v571, 1e-12
        %v573 = vrcp.pop %v572
        %v574 = vmul.f32 %v572, %v573
        %v575 = vsub.f32 1.0, %v574
        %v576 = vmul.f32 %v573, %v575
        %v577 = vadd.f32 %v573, %v576
        %vm578 = vweird.f32 %v572
        %vm579 = vweird.f32 %v573
        %vm580 = vmor %vm578, %vm579
        %v581 = vsel %vm580, %v573, %v577
        %v582 = vand.u32 2147483647, %v572
        %vm583 = vcmp.eq.f32.partialorder %v582, 8.507059e+37
        %v584 = vand.u32 %v572, 2147483648
        %v585 = vor.u32 1.1754944e-38, %v584
        %v586 = vsel %vm583, %v585, %v581
        %v587 = vmul.f32 1.0, %v586
        %v588 = vmul.f32 %v510, %v587
        %v589 = vmul.f32 %v511, %v587
        %v590 = vmul.f32 %v512, %v587
        %v591 = vmul.f32 %v513, %v587
        %v592 = vsub.f32 %v549, %v588
        %v593 = vand.u32 2147483647, %v592
        %v594 = vsub.f32 %v550, %v589
        %v595 = vand.u32 2147483647, %v594
        %v596 = vadd.f32 %v593, %v595
        %v597 = vsub.f32 %v551, %v590
        %v598 = vand.u32 2147483647, %v597
        %v599 = vadd.f32 %v596, %v598
        %v600 = vsub.f32 %v552, %v591
        %v601 = vand.u32 2147483647, %v600
        %v602 = vadd.f32 %v599, %v601
        %603 = vset.pattern.permute.xlu0 1
        %604 = vperm.xlu0 %603, %v271
        %v605 = vpop.permute.xlu0 %604
        %v607 = vperm.slane %v605, 0
        %v608 = vmul.f32 %v607, %v602
        %v609 = vadd.f32 %v376, %v608
        %v610 = vmax.f32 %v520, 1e-12
        %v611 = vrcp.pop %v610
        %v612 = vmul.f32 %v610, %v611
        %v613 = vsub.f32 1.0, %v612
        %v614 = vmul.f32 %v611, %v613
        %v615 = vadd.f32 %v611, %v614
        %vm616 = vweird.f32 %v610
        %vm617 = vweird.f32 %v611
        %vm618 = vmor %vm616, %vm617
        %v619 = vsel %vm618, %v611, %v615
        %v620 = vand.u32 2147483647, %v610
        %vm621 = vcmp.eq.f32.partialorder %v620, 8.507059e+37
        %v622 = vand.u32 %v610, 2147483648
        %v623 = vor.u32 1.1754944e-38, %v622
        %v624 = vsel %vm621, %v623, %v619
        %v625 = vmul.f32 2.0, %v624
        %v626 = vadd.f32 %v517, %v519
        %v627 = vmul.f32 %v625, %v626
        %v628 = vsub.f32 1.0, %v627
        %v629 = vmul.f32 %v507, %v508
        %v630 = vmul.f32 %v509, %v506
        %v631 = vsub.f32 %v629, %v630
        %v632 = vmul.f32 %v625, %v631
        %v633 = vmul.f32 %v507, %v509
        %v634 = vmul.f32 %v508, %v506
        %v635 = vadd.f32 %v633, %v634
        %v636 = vmul.f32 %v625, %v635
        %v637 = vadd.f32 %v629, %v630
        %v638 = vmul.f32 %v625, %v637
        %v639 = vadd.f32 %v515, %v519
        %v640 = vmul.f32 %v625, %v639
        %v641 = vsub.f32 1.0, %v640
        %v642 = vmul.f32 %v508, %v509
        %v643 = vmul.f32 %v507, %v506
        %v644 = vsub.f32 %v642, %v643
        %v645 = vmul.f32 %v625, %v644
        %v646 = vsub.f32 %v633, %v634
        %v647 = vmul.f32 %v625, %v646
        %v648 = vadd.f32 %v642, %v643
        %v649 = vmul.f32 %v625, %v648
        %v650 = vadd.f32 %v515, %v517
        %v651 = vmul.f32 %v625, %v650
        %v652 = vsub.f32 1.0, %v651
        %v653 = vmax.f32 %v559, 1e-12
        %v654 = vrcp.pop %v653
        %v655 = vmul.f32 %v653, %v654
        %v656 = vsub.f32 1.0, %v655
        %v657 = vmul.f32 %v654, %v656
        %v658 = vadd.f32 %v654, %v657
        %vm659 = vweird.f32 %v653
        %vm660 = vweird.f32 %v654
        %vm661 = vmor %vm659, %vm660
        %v662 = vsel %vm661, %v654, %v658
        %v663 = vand.u32 2147483647, %v653
        %vm664 = vcmp.eq.f32.partialorder %v663, 8.507059e+37
        %v665 = vand.u32 %v653, 2147483648
        %v666 = vor.u32 1.1754944e-38, %v665
        %v667 = vsel %vm664, %v666, %v662
        %v668 = vmul.f32 2.0, %v667
        %v669 = vadd.f32 %v556, %v558
        %v670 = vmul.f32 %v668, %v669
        %v671 = vsub.f32 1.0, %v670
        %v672 = vmul.f32 %v511, %v512
        %v673 = vmul.f32 %v513, %v510
        %v674 = vsub.f32 %v672, %v673
        %v675 = vmul.f32 %v668, %v674
        %v676 = vmul.f32 %v511, %v513
        %v677 = vmul.f32 %v512, %v510
        %v678 = vadd.f32 %v676, %v677
        %v679 = vmul.f32 %v668, %v678
        %v680 = vadd.f32 %v672, %v673
        %v681 = vmul.f32 %v668, %v680
        %v682 = vadd.f32 %v554, %v558
        %v683 = vmul.f32 %v668, %v682
        %v684 = vsub.f32 1.0, %v683
        %v685 = vmul.f32 %v512, %v513
        %v686 = vmul.f32 %v511, %v510
        %v687 = vsub.f32 %v685, %v686
        %v688 = vmul.f32 %v668, %v687
        %v689 = vsub.f32 %v676, %v677
        %v690 = vmul.f32 %v668, %v689
        %v691 = vadd.f32 %v685, %v686
        %v692 = vmul.f32 %v668, %v691
        %v693 = vadd.f32 %v554, %v556
        %v694 = vmul.f32 %v668, %v693
        %v695 = vsub.f32 1.0, %v694
        %v696 = vmul.f32 %v395, %v628
        %v697 = vmul.f32 %v399, %v638
        %v698 = vadd.f32 %v696, %v697
        %v699 = vmul.f32 %v403, %v647
        %v700 = vadd.f32 %v698, %v699
        %v701 = vmul.f32 %v395, %v632
        %v702 = vmul.f32 %v399, %v641
        %v703 = vadd.f32 %v701, %v702
        %v704 = vmul.f32 %v403, %v649
        %v705 = vadd.f32 %v703, %v704
        %v706 = vmul.f32 %v395, %v636
        %v707 = vmul.f32 %v399, %v645
        %v708 = vadd.f32 %v706, %v707
        %v709 = vmul.f32 %v403, %v652
        %v710 = vadd.f32 %v708, %v709
        %v711 = vmul.f32 %v405, %v628
        %v712 = vmul.f32 %v408, %v638
        %v713 = vadd.f32 %v711, %v712
        %v714 = vmul.f32 %v412, %v647
        %v715 = vadd.f32 %v713, %v714
        %v716 = vmul.f32 %v405, %v632
        %v717 = vmul.f32 %v408, %v641
        %v718 = vadd.f32 %v716, %v717
        %v719 = vmul.f32 %v412, %v649
        %v720 = vadd.f32 %v718, %v719
        %v721 = vmul.f32 %v405, %v636
        %v722 = vmul.f32 %v408, %v645
        %v723 = vadd.f32 %v721, %v722
        %v724 = vmul.f32 %v412, %v652
        %v725 = vadd.f32 %v723, %v724
        %v726 = vmul.f32 %v414, %v628
        %v727 = vmul.f32 %v416, %v638
        %v728 = vadd.f32 %v726, %v727
        %v729 = vmul.f32 %v419, %v647
        %v730 = vadd.f32 %v728, %v729
        %v731 = vmul.f32 %v414, %v632
        %v732 = vmul.f32 %v416, %v641
        %v733 = vadd.f32 %v731, %v732
        %v734 = vmul.f32 %v419, %v649
        %v735 = vadd.f32 %v733, %v734
        %v736 = vmul.f32 %v414, %v636
        %v737 = vmul.f32 %v416, %v645
        %v738 = vadd.f32 %v736, %v737
        %v739 = vmul.f32 %v419, %v652
        %v740 = vadd.f32 %v738, %v739
        %v741 = vmul.f32 %v438, %v671
        %v742 = vmul.f32 %v442, %v681
        %v743 = vadd.f32 %v741, %v742
        %v744 = vmul.f32 %v446, %v690
        %v745 = vadd.f32 %v743, %v744
        %v746 = vmul.f32 %v438, %v675
        %v747 = vmul.f32 %v442, %v684
        %v748 = vadd.f32 %v746, %v747
        %v749 = vmul.f32 %v446, %v692
        %v750 = vadd.f32 %v748, %v749
        %v751 = vmul.f32 %v438, %v679
        %v752 = vmul.f32 %v442, %v688
        %v753 = vadd.f32 %v751, %v752
        %v754 = vmul.f32 %v446, %v695
        %v755 = vadd.f32 %v753, %v754
        %v756 = vmul.f32 %v448, %v671
        %v757 = vmul.f32 %v451, %v681
        %v758 = vadd.f32 %v756, %v757
        %v759 = vmul.f32 %v455, %v690
        %v760 = vadd.f32 %v758, %v759
        %v761 = vmul.f32 %v448, %v675
        %v762 = vmul.f32 %v451, %v684
        %v763 = vadd.f32 %v761, %v762
        %v764 = vmul.f32 %v455, %v692
        %v765 = vadd.f32 %v763, %v764
        %v766 = vmul.f32 %v448, %v679
        %v767 = vmul.f32 %v451, %v688
        %v768 = vadd.f32 %v766, %v767
        %v769 = vmul.f32 %v455, %v695
        %v770 = vadd.f32 %v768, %v769
        %v771 = vmul.f32 %v457, %v671
        %v772 = vmul.f32 %v459, %v681
        %v773 = vadd.f32 %v771, %v772
        %v774 = vmul.f32 %v462, %v690
        %v775 = vadd.f32 %v773, %v774
        %v776 = vmul.f32 %v457, %v675
        %v777 = vmul.f32 %v459, %v684
        %v778 = vadd.f32 %v776, %v777
        %v779 = vmul.f32 %v462, %v692
        %v780 = vadd.f32 %v778, %v779
        %v781 = vmul.f32 %v457, %v679
        %v782 = vmul.f32 %v459, %v688
        %v783 = vadd.f32 %v781, %v782
        %v784 = vmul.f32 %v462, %v695
        %v785 = vadd.f32 %v783, %v784
        %v786 = vld [vmem:[%s267] sm:$0x1]
        %v787 = vld [vmem:[%s270] sm:$0x1]
        %789 = vset.pattern.permute.xlu0 3
        %790 = vperm.xlu0 %789, %v786
        %v791 = vpop.permute.xlu0 %790
        %v793 = vperm.slane %v791, 0
        %v794 = vmul.f32 %v395, %v793
        %795 = vset.pattern.permute.xlu0 4
        %796 = vperm.xlu0 %795, %v786
        %v797 = vpop.permute.xlu0 %796
        %v799 = vperm.slane %v797, 0
        %v800 = vmul.f32 %v399, %v799
        %v801 = vadd.f32 %v794, %v800
        %802 = vset.pattern.permute.xlu0 5
        %803 = vperm.xlu0 %802, %v786
        %v804 = vpop.permute.xlu0 %803
        %v806 = vperm.slane %v804, 0
        %v807 = vmul.f32 %v403, %v806
        %v808 = vadd.f32 %v801, %v807
        %v809 = vmul.f32 %v405, %v793
        %v810 = vmul.f32 %v408, %v799
        %v811 = vadd.f32 %v809, %v810
        %v812 = vmul.f32 %v412, %v806
        %v813 = vadd.f32 %v811, %v812
        %v814 = vmul.f32 %v414, %v793
        %v815 = vmul.f32 %v416, %v799
        %v816 = vadd.f32 %v814, %v815
        %v817 = vmul.f32 %v419, %v806
        %v818 = vadd.f32 %v816, %v817
        %v819 = vadd.f32 %v808, %v463
        %v820 = vadd.f32 %v813, %v464
        %v821 = vadd.f32 %v818, %v465
        %823 = vset.pattern.permute.xlu0 3
        %824 = vperm.xlu0 %823, %v787
        %v825 = vpop.permute.xlu0 %824
        %v827 = vperm.slane %v825, 0
        %v828 = vmul.f32 %v438, %v827
        %829 = vset.pattern.permute.xlu0 4
        %830 = vperm.xlu0 %829, %v787
        %v831 = vpop.permute.xlu0 %830
        %v833 = vperm.slane %v831, 0
        %v834 = vmul.f32 %v442, %v833
        %v835 = vadd.f32 %v828, %v834
        %836 = vset.pattern.permute.xlu0 5
        %837 = vperm.xlu0 %836, %v787
        %v838 = vpop.permute.xlu0 %837
        %v840 = vperm.slane %v838, 0
        %v841 = vmul.f32 %v446, %v840
        %v842 = vadd.f32 %v835, %v841
        %v843 = vmul.f32 %v448, %v827
        %v844 = vmul.f32 %v451, %v833
        %v845 = vadd.f32 %v843, %v844
        %v846 = vmul.f32 %v455, %v840
        %v847 = vadd.f32 %v845, %v846
        %v848 = vmul.f32 %v457, %v827
        %v849 = vmul.f32 %v459, %v833
        %v850 = vadd.f32 %v848, %v849
        %v851 = vmul.f32 %v462, %v840
        %v852 = vadd.f32 %v850, %v851
        %v853 = vadd.f32 %v842, %v466
        %v854 = vadd.f32 %v847, %v467
        %v855 = vadd.f32 %v852, %v468
        %v856 = vsub.f32 %v700, %v745
        %v857 = vand.u32 2147483647, %v856
        %v858 = vsub.f32 %v705, %v750
        %v859 = vand.u32 2147483647, %v858
        %v860 = vadd.f32 %v857, %v859
        %v861 = vsub.f32 %v710, %v755
        %v862 = vand.u32 2147483647, %v861
        %v863 = vadd.f32 %v860, %v862
        %v864 = vsub.f32 %v715, %v760
        %v865 = vand.u32 2147483647, %v864
        %v866 = vadd.f32 %v863, %v865
        %v867 = vsub.f32 %v720, %v765
        %v868 = vand.u32 2147483647, %v867
        %v869 = vadd.f32 %v866, %v868
        %v870 = vsub.f32 %v725, %v770
        %v871 = vand.u32 2147483647, %v870
        %v872 = vadd.f32 %v869, %v871
        %v873 = vsub.f32 %v730, %v775
        %v874 = vand.u32 2147483647, %v873
        %v875 = vadd.f32 %v872, %v874
        %v876 = vsub.f32 %v735, %v780
        %v877 = vand.u32 2147483647, %v876
        %v878 = vadd.f32 %v875, %v877
        %v879 = vsub.f32 %v740, %v785
        %v880 = vand.u32 2147483647, %v879
        %v881 = vadd.f32 %v878, %v880
        %v882 = vadd.f32 %v495, %v881
        %v883 = vsub.f32 %v819, %v853
        %v884 = vand.u32 2147483647, %v883
        %v885 = vsub.f32 %v820, %v854
        %v886 = vand.u32 2147483647, %v885
        %v887 = vadd.f32 %v884, %v886
        %v888 = vsub.f32 %v821, %v855
        %v889 = vand.u32 2147483647, %v888
        %v890 = vadd.f32 %v887, %v889
        %v891 = vmul.f32 %v607, %v890
        %v892 = vadd.f32 %v505, %v891
        %v893 = vld [vmem:[%s259 + $0x8] sm:$0x1]
        %v894 = vld [vmem:[%s259 + $0x9] sm:$0x1]
        %v895 = vld [vmem:[%s259 + $0xa] sm:$0x1]
        %v896 = vld [vmem:[%s259 + $0xb] sm:$0x1]
        %v897 = vld [vmem:[%s264 + $0x8] sm:$0x1]
        %v898 = vld [vmem:[%s264 + $0x9] sm:$0x1]
        %v899 = vld [vmem:[%s264 + $0xa] sm:$0x1]
        %v900 = vld [vmem:[%s264 + $0xb] sm:$0x1]
        %v901 = vmul.f32 %v893, %v893
        %v902 = vmul.f32 %v894, %v894
        %v903 = vadd.f32 %v901, %v902
        %v904 = vmul.f32 %v895, %v895
        %v905 = vadd.f32 %v903, %v904
        %v906 = vmul.f32 %v896, %v896
        %v907 = vadd.f32 %v905, %v906
        %v908 = vrsqrt.pop %v907
        %v909 = vmul.f32 %v908, %v907
        %v910 = vmul.f32 %v909, %v908
        %v911 = vmul.f32 0.5, %v910
        %v912 = vsub.f32 1.5, %v911
        %v913 = vmul.f32 %v908, %v912
        %v914 = vmul.f32 %v907, %v913
        %vm915 = vcmp.eq.f32.partialorder %v907, inf
        %v916 = vsel %vm915, %v907, %v914
        %vm917 = vcmp.eq.f32.partialorder %v907, 0.0
        %v918 = vand.u32 %v907, 2147483648
        %v919 = vsel %vm917, %v918, %v916
        %v920 = vmax.f32 %v919, 1e-12
        %v921 = vrcp.pop %v920
        %v922 = vmul.f32 %v920, %v921
        %v923 = vsub.f32 1.0, %v922
        %v924 = vmul.f32 %v921, %v923
        %v925 = vadd.f32 %v921, %v924
        %vm926 = vweird.f32 %v920
        %vm927 = vweird.f32 %v921
        %vm928 = vmor %vm926, %vm927
        %v929 = vsel %vm928, %v921, %v925
        %v930 = vand.u32 2147483647, %v920
        %vm931 = vcmp.eq.f32.partialorder %v930, 8.507059e+37
        %v932 = vand.u32 %v920, 2147483648
        %v933 = vor.u32 1.1754944e-38, %v932
        %v934 = vsel %vm931, %v933, %v929
        %v935 = vmul.f32 1.0, %v934
        %v936 = vmul.f32 %v893, %v935
        %v937 = vmul.f32 %v894, %v935
        %v938 = vmul.f32 %v895, %v935
        %v939 = vmul.f32 %v896, %v935
        %v940 = vmul.f32 %v897, %v897
        %v941 = vmul.f32 %v898, %v898
        %v942 = vadd.f32 %v940, %v941
        %v943 = vmul.f32 %v899, %v899
        %v944 = vadd.f32 %v942, %v943
        %v945 = vmul.f32 %v900, %v900
        %v946 = vadd.f32 %v944, %v945
        %v947 = vrsqrt.pop %v946
        %v948 = vmul.f32 %v947, %v946
        %v949 = vmul.f32 %v948, %v947
        %v950 = vmul.f32 0.5, %v949
        %v951 = vsub.f32 1.5, %v950
        %v952 = vmul.f32 %v947, %v951
        %v953 = vmul.f32 %v946, %v952
        %vm954 = vcmp.eq.f32.partialorder %v946, inf
        %v955 = vsel %vm954, %v946, %v953
        %vm956 = vcmp.eq.f32.partialorder %v946, 0.0
        %v957 = vand.u32 %v946, 2147483648
        %v958 = vsel %vm956, %v957, %v955
        %v959 = vmax.f32 %v958, 1e-12
        %v960 = vrcp.pop %v959
        %v961 = vmul.f32 %v959, %v960
        %v962 = vsub.f32 1.0, %v961
        %v963 = vmul.f32 %v960, %v962
        %v964 = vadd.f32 %v960, %v963
        %vm965 = vweird.f32 %v959
        %vm966 = vweird.f32 %v960
        %vm967 = vmor %vm965, %vm966
        %v968 = vsel %vm967, %v960, %v964
        %v969 = vand.u32 2147483647, %v959
        %vm970 = vcmp.eq.f32.partialorder %v969, 8.507059e+37
        %v971 = vand.u32 %v959, 2147483648
        %v972 = vor.u32 1.1754944e-38, %v971
        %v973 = vsel %vm970, %v972, %v968
        %v974 = vmul.f32 1.0, %v973
        %v975 = vmul.f32 %v897, %v974
        %v976 = vmul.f32 %v898, %v974
        %v977 = vmul.f32 %v899, %v974
        %v978 = vmul.f32 %v900, %v974
        %v979 = vsub.f32 %v936, %v975
        %v980 = vand.u32 2147483647, %v979
        %v981 = vsub.f32 %v937, %v976
        %v982 = vand.u32 2147483647, %v981
        %v983 = vadd.f32 %v980, %v982
        %v984 = vsub.f32 %v938, %v977
        %v985 = vand.u32 2147483647, %v984
        %v986 = vadd.f32 %v983, %v985
        %v987 = vsub.f32 %v939, %v978
        %v988 = vand.u32 2147483647, %v987
        %v989 = vadd.f32 %v986, %v988
        %990 = vset.pattern.permute.xlu0 2
        %991 = vperm.xlu0 %990, %v271
        %v992 = vpop.permute.xlu0 %991
        %v994 = vperm.slane %v992, 0
        %v995 = vmul.f32 %v994, %v989
        %v996 = vadd.f32 %v609, %v995
        %v997 = vmax.f32 %v907, 1e-12
        %v998 = vrcp.pop %v997
        %v999 = vmul.f32 %v997, %v998
        %v1000 = vsub.f32 1.0, %v999
        %v1001 = vmul.f32 %v998, %v1000
        %v1002 = vadd.f32 %v998, %v1001
        %vm1003 = vweird.f32 %v997
        %vm1004 = vweird.f32 %v998
        %vm1005 = vmor %vm1003, %vm1004
        %v1006 = vsel %vm1005, %v998, %v1002
        %v1007 = vand.u32 2147483647, %v997
        %vm1008 = vcmp.eq.f32.partialorder %v1007, 8.507059e+37
        %v1009 = vand.u32 %v997, 2147483648
        %v1010 = vor.u32 1.1754944e-38, %v1009
        %v1011 = vsel %vm1008, %v1010, %v1006
        %v1012 = vmul.f32 2.0, %v1011
        %v1013 = vadd.f32 %v904, %v906
        %v1014 = vmul.f32 %v1012, %v1013
        %v1015 = vsub.f32 1.0, %v1014
        %v1016 = vmul.f32 %v894, %v895
        %v1017 = vmul.f32 %v896, %v893
        %v1018 = vsub.f32 %v1016, %v1017
        %v1019 = vmul.f32 %v1012, %v1018
        %v1020 = vmul.f32 %v894, %v896
        %v1021 = vmul.f32 %v895, %v893
        %v1022 = vadd.f32 %v1020, %v1021
        %v1023 = vmul.f32 %v1012, %v1022
        %v1024 = vadd.f32 %v1016, %v1017
        %v1025 = vmul.f32 %v1012, %v1024
        %v1026 = vadd.f32 %v902, %v906
        %v1027 = vmul.f32 %v1012, %v1026
        %v1028 = vsub.f32 1.0, %v1027
        %v1029 = vmul.f32 %v895, %v896
        %v1030 = vmul.f32 %v894, %v893
        %v1031 = vsub.f32 %v1029, %v1030
        %v1032 = vmul.f32 %v1012, %v1031
        %v1033 = vsub.f32 %v1020, %v1021
        %v1034 = vmul.f32 %v1012, %v1033
        %v1035 = vadd.f32 %v1029, %v1030
        %v1036 = vmul.f32 %v1012, %v1035
        %v1037 = vadd.f32 %v902, %v904
        %v1038 = vmul.f32 %v1012, %v1037
        %v1039 = vsub.f32 1.0, %v1038
        %v1040 = vmax.f32 %v946, 1e-12
        %v1041 = vrcp.pop %v1040
        %v1042 = vmul.f32 %v1040, %v1041
        %v1043 = vsub.f32 1.0, %v1042
        %v1044 = vmul.f32 %v1041, %v1043
        %v1045 = vadd.f32 %v1041, %v1044
        %vm1046 = vweird.f32 %v1040
        %vm1047 = vweird.f32 %v1041
        %vm1048 = vmor %vm1046, %vm1047
        %v1049 = vsel %vm1048, %v1041, %v1045
        %v1050 = vand.u32 2147483647, %v1040
        %vm1051 = vcmp.eq.f32.partialorder %v1050, 8.507059e+37
        %v1052 = vand.u32 %v1040, 2147483648
        %v1053 = vor.u32 1.1754944e-38, %v1052
        %v1054 = vsel %vm1051, %v1053, %v1049
        %v1055 = vmul.f32 2.0, %v1054
        %v1056 = vadd.f32 %v943, %v945
        %v1057 = vmul.f32 %v1055, %v1056
        %v1058 = vsub.f32 1.0, %v1057
        %v1059 = vmul.f32 %v898, %v899
        %v1060 = vmul.f32 %v900, %v897
        %v1061 = vsub.f32 %v1059, %v1060
        %v1062 = vmul.f32 %v1055, %v1061
        %v1063 = vmul.f32 %v898, %v900
        %v1064 = vmul.f32 %v899, %v897
        %v1065 = vadd.f32 %v1063, %v1064
        %v1066 = vmul.f32 %v1055, %v1065
        %v1067 = vadd.f32 %v1059, %v1060
        %v1068 = vmul.f32 %v1055, %v1067
        %v1069 = vadd.f32 %v941, %v945
        %v1070 = vmul.f32 %v1055, %v1069
        %v1071 = vsub.f32 1.0, %v1070
        %v1072 = vmul.f32 %v899, %v900
        %v1073 = vmul.f32 %v898, %v897
        %v1074 = vsub.f32 %v1072, %v1073
        %v1075 = vmul.f32 %v1055, %v1074
        %v1076 = vsub.f32 %v1063, %v1064
        %v1077 = vmul.f32 %v1055, %v1076
        %v1078 = vadd.f32 %v1072, %v1073
        %v1079 = vmul.f32 %v1055, %v1078
        %v1080 = vadd.f32 %v941, %v943
        %v1081 = vmul.f32 %v1055, %v1080
        %v1082 = vsub.f32 1.0, %v1081
        %v1083 = vmul.f32 %v700, %v1015
        %v1084 = vmul.f32 %v705, %v1025
        %v1085 = vadd.f32 %v1083, %v1084
        %v1086 = vmul.f32 %v710, %v1034
        %v1087 = vadd.f32 %v1085, %v1086
        %v1088 = vmul.f32 %v700, %v1019
        %v1089 = vmul.f32 %v705, %v1028
        %v1090 = vadd.f32 %v1088, %v1089
        %v1091 = vmul.f32 %v710, %v1036
        %v1092 = vadd.f32 %v1090, %v1091
        %v1093 = vmul.f32 %v700, %v1023
        %v1094 = vmul.f32 %v705, %v1032
        %v1095 = vadd.f32 %v1093, %v1094
        %v1096 = vmul.f32 %v710, %v1039
        %v1097 = vadd.f32 %v1095, %v1096
        %v1098 = vmul.f32 %v715, %v1015
        %v1099 = vmul.f32 %v720, %v1025
        %v1100 = vadd.f32 %v1098, %v1099
        %v1101 = vmul.f32 %v725, %v1034
        %v1102 = vadd.f32 %v1100, %v1101
        %v1103 = vmul.f32 %v715, %v1019
        %v1104 = vmul.f32 %v720, %v1028
        %v1105 = vadd.f32 %v1103, %v1104
        %v1106 = vmul.f32 %v725, %v1036
        %v1107 = vadd.f32 %v1105, %v1106
        %v1108 = vmul.f32 %v715, %v1023
        %v1109 = vmul.f32 %v720, %v1032
        %v1110 = vadd.f32 %v1108, %v1109
        %v1111 = vmul.f32 %v725, %v1039
        %v1112 = vadd.f32 %v1110, %v1111
        %v1113 = vmul.f32 %v730, %v1015
        %v1114 = vmul.f32 %v735, %v1025
        %v1115 = vadd.f32 %v1113, %v1114
        %v1116 = vmul.f32 %v740, %v1034
        %v1117 = vadd.f32 %v1115, %v1116
        %v1118 = vmul.f32 %v730, %v1019
        %v1119 = vmul.f32 %v735, %v1028
        %v1120 = vadd.f32 %v1118, %v1119
        %v1121 = vmul.f32 %v740, %v1036
        %v1122 = vadd.f32 %v1120, %v1121
        %v1123 = vmul.f32 %v730, %v1023
        %v1124 = vmul.f32 %v735, %v1032
        %v1125 = vadd.f32 %v1123, %v1124
        %v1126 = vmul.f32 %v740, %v1039
        %v1127 = vadd.f32 %v1125, %v1126
        %v1128 = vmul.f32 %v745, %v1058
        %v1129 = vmul.f32 %v750, %v1068
        %v1130 = vadd.f32 %v1128, %v1129
        %v1131 = vmul.f32 %v755, %v1077
        %v1132 = vadd.f32 %v1130, %v1131
        %v1133 = vmul.f32 %v745, %v1062
        %v1134 = vmul.f32 %v750, %v1071
        %v1135 = vadd.f32 %v1133, %v1134
        %v1136 = vmul.f32 %v755, %v1079
        %v1137 = vadd.f32 %v1135, %v1136
        %v1138 = vmul.f32 %v745, %v1066
        %v1139 = vmul.f32 %v750, %v1075
        %v1140 = vadd.f32 %v1138, %v1139
        %v1141 = vmul.f32 %v755, %v1082
        %v1142 = vadd.f32 %v1140, %v1141
        %v1143 = vmul.f32 %v760, %v1058
        %v1144 = vmul.f32 %v765, %v1068
        %v1145 = vadd.f32 %v1143, %v1144
        %v1146 = vmul.f32 %v770, %v1077
        %v1147 = vadd.f32 %v1145, %v1146
        %v1148 = vmul.f32 %v760, %v1062
        %v1149 = vmul.f32 %v765, %v1071
        %v1150 = vadd.f32 %v1148, %v1149
        %v1151 = vmul.f32 %v770, %v1079
        %v1152 = vadd.f32 %v1150, %v1151
        %v1153 = vmul.f32 %v760, %v1066
        %v1154 = vmul.f32 %v765, %v1075
        %v1155 = vadd.f32 %v1153, %v1154
        %v1156 = vmul.f32 %v770, %v1082
        %v1157 = vadd.f32 %v1155, %v1156
        %v1158 = vmul.f32 %v775, %v1058
        %v1159 = vmul.f32 %v780, %v1068
        %v1160 = vadd.f32 %v1158, %v1159
        %v1161 = vmul.f32 %v785, %v1077
        %v1162 = vadd.f32 %v1160, %v1161
        %v1163 = vmul.f32 %v775, %v1062
        %v1164 = vmul.f32 %v780, %v1071
        %v1165 = vadd.f32 %v1163, %v1164
        %v1166 = vmul.f32 %v785, %v1079
        %v1167 = vadd.f32 %v1165, %v1166
        %v1168 = vmul.f32 %v775, %v1066
        %v1169 = vmul.f32 %v780, %v1075
        %v1170 = vadd.f32 %v1168, %v1169
        %v1171 = vmul.f32 %v785, %v1082
        %v1172 = vadd.f32 %v1170, %v1171
        %1173 = vset.pattern.permute.xlu0 6
        %1174 = vperm.xlu0 %1173, %v786
        %v1175 = vpop.permute.xlu0 %1174
        %v1177 = vperm.slane %v1175, 0
        %v1178 = vmul.f32 %v700, %v1177
        %1179 = vset.pattern.permute.xlu0 7
        %1180 = vperm.xlu0 %1179, %v786
        %v1181 = vpop.permute.xlu0 %1180
        %v1183 = vperm.slane %v1181, 0
        %v1184 = vmul.f32 %v705, %v1183
        %v1185 = vadd.f32 %v1178, %v1184
        %1186 = vset.pattern.permute.xlu0 8
        %1187 = vperm.xlu0 %1186, %v786
        %v1188 = vpop.permute.xlu0 %1187
        %v1190 = vperm.slane %v1188, 0
        %v1191 = vmul.f32 %v710, %v1190
        %v1192 = vadd.f32 %v1185, %v1191
        %v1193 = vmul.f32 %v715, %v1177
        %v1194 = vmul.f32 %v720, %v1183
        %v1195 = vadd.f32 %v1193, %v1194
        %v1196 = vmul.f32 %v725, %v1190
        %v1197 = vadd.f32 %v1195, %v1196
        %v1198 = vmul.f32 %v730, %v1177
        %v1199 = vmul.f32 %v735, %v1183
        %v1200 = vadd.f32 %v1198, %v1199
        %v1201 = vmul.f32 %v740, %v1190
        %v1202 = vadd.f32 %v1200, %v1201
        %v1203 = vadd.f32 %v1192, %v819
        %v1204 = vadd.f32 %v1197, %v820
        %v1205 = vadd.f32 %v1202, %v821
        %1206 = vset.pattern.permute.xlu0 6
        %1207 = vperm.xlu0 %1206, %v787
        %v1208 = vpop.permute.xlu0 %1207
        %v1210 = vperm.slane %v1208, 0
        %v1211 = vmul.f32 %v745, %v1210
        %1212 = vset.pattern.permute.xlu0 7
        %1213 = vperm.xlu0 %1212, %v787
        %v1214 = vpop.permute.xlu0 %1213
        %v1216 = vperm.slane %v1214, 0
        %v1217 = vmul.f32 %v750, %v1216
        %v1218 = vadd.f32 %v1211, %v1217
        %1219 = vset.pattern.permute.xlu0 8
        %1220 = vperm.xlu0 %1219, %v787
        %v1221 = vpop.permute.xlu0 %1220
        %v1223 = vperm.slane %v1221, 0
        %v1224 = vmul.f32 %v755, %v1223
        %v1225 = vadd.f32 %v1218, %v1224
        %v1226 = vmul.f32 %v760, %v1210
        %v1227 = vmul.f32 %v765, %v1216
        %v1228 = vadd.f32 %v1226, %v1227
        %v1229 = vmul.f32 %v770, %v1223
        %v1230 = vadd.f32 %v1228, %v1229
        %v1231 = vmul.f32 %v775, %v1210
        %v1232 = vmul.f32 %v780, %v1216
        %v1233 = vadd.f32 %v1231, %v1232
        %v1234 = vmul.f32 %v785, %v1223
        %v1235 = vadd.f32 %v1233, %v1234
        %v1236 = vadd.f32 %v1225, %v853
        %v1237 = vadd.f32 %v1230, %v854
        %v1238 = vadd.f32 %v1235, %v855
        %v1239 = vsub.f32 %v1087, %v1132
        %v1240 = vand.u32 2147483647, %v1239
        %v1241 = vsub.f32 %v1092, %v1137
        %v1242 = vand.u32 2147483647, %v1241
        %v1243 = vadd.f32 %v1240, %v1242
        %v1244 = vsub.f32 %v1097, %v1142
        %v1245 = vand.u32 2147483647, %v1244
        %v1246 = vadd.f32 %v1243, %v1245
        %v1247 = vsub.f32 %v1102, %v1147
        %v1248 = vand.u32 2147483647, %v1247
        %v1249 = vadd.f32 %v1246, %v1248
        %v1250 = vsub.f32 %v1107, %v1152
        %v1251 = vand.u32 2147483647, %v1250
        %v1252 = vadd.f32 %v1249, %v1251
        %v1253 = vsub.f32 %v1112, %v1157
        %v1254 = vand.u32 2147483647, %v1253
        %v1255 = vadd.f32 %v1252, %v1254
        %v1256 = vsub.f32 %v1117, %v1162
        %v1257 = vand.u32 2147483647, %v1256
        %v1258 = vadd.f32 %v1255, %v1257
        %v1259 = vsub.f32 %v1122, %v1167
        %v1260 = vand.u32 2147483647, %v1259
        %v1261 = vadd.f32 %v1258, %v1260
        %v1262 = vsub.f32 %v1127, %v1172
        %v1263 = vand.u32 2147483647, %v1262
        %v1264 = vadd.f32 %v1261, %v1263
        %v1265 = vadd.f32 %v882, %v1264
        %v1266 = vsub.f32 %v1203, %v1236
        %v1267 = vand.u32 2147483647, %v1266
        %v1268 = vsub.f32 %v1204, %v1237
        %v1269 = vand.u32 2147483647, %v1268
        %v1270 = vadd.f32 %v1267, %v1269
        %v1271 = vsub.f32 %v1205, %v1238
        %v1272 = vand.u32 2147483647, %v1271
        %v1273 = vadd.f32 %v1270, %v1272
        %v1274 = vmul.f32 %v994, %v1273
        %v1275 = vadd.f32 %v892, %v1274
        %v1276 = vld [vmem:[%s259 + $0xc] sm:$0x1]
        %v1277 = vld [vmem:[%s259 + $0xd] sm:$0x1]
        %v1278 = vld [vmem:[%s259 + $0xe] sm:$0x1]
        %v1279 = vld [vmem:[%s259 + $0xf] sm:$0x1]
        %v1280 = vld [vmem:[%s264 + $0xc] sm:$0x1]
        %v1281 = vld [vmem:[%s264 + $0xd] sm:$0x1]
        %v1282 = vld [vmem:[%s264 + $0xe] sm:$0x1]
        %v1283 = vld [vmem:[%s264 + $0xf] sm:$0x1]
        %v1284 = vmul.f32 %v1276, %v1276
        %v1285 = vmul.f32 %v1277, %v1277
        %v1286 = vadd.f32 %v1284, %v1285
        %v1287 = vmul.f32 %v1278, %v1278
        %v1288 = vadd.f32 %v1286, %v1287
        %v1289 = vmul.f32 %v1279, %v1279
        %v1290 = vadd.f32 %v1288, %v1289
        %v1291 = vrsqrt.pop %v1290
        %v1292 = vmul.f32 %v1291, %v1290
        %v1293 = vmul.f32 %v1292, %v1291
        %v1294 = vmul.f32 0.5, %v1293
        %v1295 = vsub.f32 1.5, %v1294
        %v1296 = vmul.f32 %v1291, %v1295
        %v1297 = vmul.f32 %v1290, %v1296
        %vm1298 = vcmp.eq.f32.partialorder %v1290, inf
        %v1299 = vsel %vm1298, %v1290, %v1297
        %vm1300 = vcmp.eq.f32.partialorder %v1290, 0.0
        %v1301 = vand.u32 %v1290, 2147483648
        %v1302 = vsel %vm1300, %v1301, %v1299
        %v1303 = vmax.f32 %v1302, 1e-12
        %v1304 = vrcp.pop %v1303
        %v1305 = vmul.f32 %v1303, %v1304
        %v1306 = vsub.f32 1.0, %v1305
        %v1307 = vmul.f32 %v1304, %v1306
        %v1308 = vadd.f32 %v1304, %v1307
        %vm1309 = vweird.f32 %v1303
        %vm1310 = vweird.f32 %v1304
        %vm1311 = vmor %vm1309, %vm1310
        %v1312 = vsel %vm1311, %v1304, %v1308
        %v1313 = vand.u32 2147483647, %v1303
        %vm1314 = vcmp.eq.f32.partialorder %v1313, 8.507059e+37
        %v1315 = vand.u32 %v1303, 2147483648
        %v1316 = vor.u32 1.1754944e-38, %v1315
        %v1317 = vsel %vm1314, %v1316, %v1312
        %v1318 = vmul.f32 1.0, %v1317
        %v1319 = vmul.f32 %v1276, %v1318
        %v1320 = vmul.f32 %v1277, %v1318
        %v1321 = vmul.f32 %v1278, %v1318
        %v1322 = vmul.f32 %v1279, %v1318
        %v1323 = vmul.f32 %v1280, %v1280
        %v1324 = vmul.f32 %v1281, %v1281
        %v1325 = vadd.f32 %v1323, %v1324
        %v1326 = vmul.f32 %v1282, %v1282
        %v1327 = vadd.f32 %v1325, %v1326
        %v1328 = vmul.f32 %v1283, %v1283
        %v1329 = vadd.f32 %v1327, %v1328
        %v1330 = vrsqrt.pop %v1329
        %v1331 = vmul.f32 %v1330, %v1329
        %v1332 = vmul.f32 %v1331, %v1330
        %v1333 = vmul.f32 0.5, %v1332
        %v1334 = vsub.f32 1.5, %v1333
        %v1335 = vmul.f32 %v1330, %v1334
        %v1336 = vmul.f32 %v1329, %v1335
        %vm1337 = vcmp.eq.f32.partialorder %v1329, inf
        %v1338 = vsel %vm1337, %v1329, %v1336
        %vm1339 = vcmp.eq.f32.partialorder %v1329, 0.0
        %v1340 = vand.u32 %v1329, 2147483648
        %v1341 = vsel %vm1339, %v1340, %v1338
        %v1342 = vmax.f32 %v1341, 1e-12
        %v1343 = vrcp.pop %v1342
        %v1344 = vmul.f32 %v1342, %v1343
        %v1345 = vsub.f32 1.0, %v1344
        %v1346 = vmul.f32 %v1343, %v1345
        %v1347 = vadd.f32 %v1343, %v1346
        %vm1348 = vweird.f32 %v1342
        %vm1349 = vweird.f32 %v1343
        %vm1350 = vmor %vm1348, %vm1349
        %v1351 = vsel %vm1350, %v1343, %v1347
        %v1352 = vand.u32 2147483647, %v1342
        %vm1353 = vcmp.eq.f32.partialorder %v1352, 8.507059e+37
        %v1354 = vand.u32 %v1342, 2147483648
        %v1355 = vor.u32 1.1754944e-38, %v1354
        %v1356 = vsel %vm1353, %v1355, %v1351
        %v1357 = vmul.f32 1.0, %v1356
        %v1358 = vmul.f32 %v1280, %v1357
        %v1359 = vmul.f32 %v1281, %v1357
        %v1360 = vmul.f32 %v1282, %v1357
        %v1361 = vmul.f32 %v1283, %v1357
        %v1362 = vsub.f32 %v1319, %v1358
        %v1363 = vand.u32 2147483647, %v1362
        %v1364 = vsub.f32 %v1320, %v1359
        %v1365 = vand.u32 2147483647, %v1364
        %v1366 = vadd.f32 %v1363, %v1365
        %v1367 = vsub.f32 %v1321, %v1360
        %v1368 = vand.u32 2147483647, %v1367
        %v1369 = vadd.f32 %v1366, %v1368
        %v1370 = vsub.f32 %v1322, %v1361
        %v1371 = vand.u32 2147483647, %v1370
        %v1372 = vadd.f32 %v1369, %v1371
        %1373 = vset.pattern.permute.xlu0 3
        %1374 = vperm.xlu0 %1373, %v271
        %v1375 = vpop.permute.xlu0 %1374
        %v1377 = vperm.slane %v1375, 0
        %v1378 = vmul.f32 %v1377, %v1372
        %v1379 = vadd.f32 %v996, %v1378
        %v1380 = vmax.f32 %v1290, 1e-12
        %v1381 = vrcp.pop %v1380
        %v1382 = vmul.f32 %v1380, %v1381
        %v1383 = vsub.f32 1.0, %v1382
        %v1384 = vmul.f32 %v1381, %v1383
        %v1385 = vadd.f32 %v1381, %v1384
        %vm1386 = vweird.f32 %v1380
        %vm1387 = vweird.f32 %v1381
        %vm1388 = vmor %vm1386, %vm1387
        %v1389 = vsel %vm1388, %v1381, %v1385
        %v1390 = vand.u32 2147483647, %v1380
        %vm1391 = vcmp.eq.f32.partialorder %v1390, 8.507059e+37
        %v1392 = vand.u32 %v1380, 2147483648
        %v1393 = vor.u32 1.1754944e-38, %v1392
        %v1394 = vsel %vm1391, %v1393, %v1389
        %v1395 = vmul.f32 2.0, %v1394
        %v1396 = vadd.f32 %v1287, %v1289
        %v1397 = vmul.f32 %v1395, %v1396
        %v1398 = vsub.f32 1.0, %v1397
        %v1399 = vmul.f32 %v1277, %v1278
        %v1400 = vmul.f32 %v1279, %v1276
        %v1401 = vsub.f32 %v1399, %v1400
        %v1402 = vmul.f32 %v1395, %v1401
        %v1403 = vmul.f32 %v1277, %v1279
        %v1404 = vmul.f32 %v1278, %v1276
        %v1405 = vadd.f32 %v1403, %v1404
        %v1406 = vmul.f32 %v1395, %v1405
        %v1407 = vadd.f32 %v1399, %v1400
        %v1408 = vmul.f32 %v1395, %v1407
        %v1409 = vadd.f32 %v1285, %v1289
        %v1410 = vmul.f32 %v1395, %v1409
        %v1411 = vsub.f32 1.0, %v1410
        %v1412 = vmul.f32 %v1278, %v1279
        %v1413 = vmul.f32 %v1277, %v1276
        %v1414 = vsub.f32 %v1412, %v1413
        %v1415 = vmul.f32 %v1395, %v1414
        %v1416 = vsub.f32 %v1403, %v1404
        %v1417 = vmul.f32 %v1395, %v1416
        %v1418 = vadd.f32 %v1412, %v1413
        %v1419 = vmul.f32 %v1395, %v1418
        %v1420 = vadd.f32 %v1285, %v1287
        %v1421 = vmul.f32 %v1395, %v1420
        %v1422 = vsub.f32 1.0, %v1421
        %v1423 = vmax.f32 %v1329, 1e-12
        %v1424 = vrcp.pop %v1423
        %v1425 = vmul.f32 %v1423, %v1424
        %v1426 = vsub.f32 1.0, %v1425
        %v1427 = vmul.f32 %v1424, %v1426
        %v1428 = vadd.f32 %v1424, %v1427
        %vm1429 = vweird.f32 %v1423
        %vm1430 = vweird.f32 %v1424
        %vm1431 = vmor %vm1429, %vm1430
        %v1432 = vsel %vm1431, %v1424, %v1428
        %v1433 = vand.u32 2147483647, %v1423
        %vm1434 = vcmp.eq.f32.partialorder %v1433, 8.507059e+37
        %v1435 = vand.u32 %v1423, 2147483648
        %v1436 = vor.u32 1.1754944e-38, %v1435
        %v1437 = vsel %vm1434, %v1436, %v1432
        %v1438 = vmul.f32 2.0, %v1437
        %v1439 = vadd.f32 %v1326, %v1328
        %v1440 = vmul.f32 %v1438, %v1439
        %v1441 = vsub.f32 1.0, %v1440
        %v1442 = vmul.f32 %v1281, %v1282
        %v1443 = vmul.f32 %v1283, %v1280
        %v1444 = vsub.f32 %v1442, %v1443
        %v1445 = vmul.f32 %v1438, %v1444
        %v1446 = vmul.f32 %v1281, %v1283
        %v1447 = vmul.f32 %v1282, %v1280
        %v1448 = vadd.f32 %v1446, %v1447
        %v1449 = vmul.f32 %v1438, %v1448
        %v1450 = vadd.f32 %v1442, %v1443
        %v1451 = vmul.f32 %v1438, %v1450
        %v1452 = vadd.f32 %v1324, %v1328
        %v1453 = vmul.f32 %v1438, %v1452
        %v1454 = vsub.f32 1.0, %v1453
        %v1455 = vmul.f32 %v1282, %v1283
        %v1456 = vmul.f32 %v1281, %v1280
        %v1457 = vsub.f32 %v1455, %v1456
        %v1458 = vmul.f32 %v1438, %v1457
        %v1459 = vsub.f32 %v1446, %v1447
        %v1460 = vmul.f32 %v1438, %v1459
        %v1461 = vadd.f32 %v1455, %v1456
        %v1462 = vmul.f32 %v1438, %v1461
        %v1463 = vadd.f32 %v1324, %v1326
        %v1464 = vmul.f32 %v1438, %v1463
        %v1465 = vsub.f32 1.0, %v1464
        %v1466 = vmul.f32 %v1087, %v1398
        %v1467 = vmul.f32 %v1092, %v1408
        %v1468 = vadd.f32 %v1466, %v1467
        %v1469 = vmul.f32 %v1097, %v1417
        %v1470 = vadd.f32 %v1468, %v1469
        %v1471 = vmul.f32 %v1087, %v1402
        %v1472 = vmul.f32 %v1092, %v1411
        %v1473 = vadd.f32 %v1471, %v1472
        %v1474 = vmul.f32 %v1097, %v1419
        %v1475 = vadd.f32 %v1473, %v1474
        %v1476 = vmul.f32 %v1087, %v1406
        %v1477 = vmul.f32 %v1092, %v1415
        %v1478 = vadd.f32 %v1476, %v1477
        %v1479 = vmul.f32 %v1097, %v1422
        %v1480 = vadd.f32 %v1478, %v1479
        %v1481 = vmul.f32 %v1102, %v1398
        %v1482 = vmul.f32 %v1107, %v1408
        %v1483 = vadd.f32 %v1481, %v1482
        %v1484 = vmul.f32 %v1112, %v1417
        %v1485 = vadd.f32 %v1483, %v1484
        %v1486 = vmul.f32 %v1102, %v1402
        %v1487 = vmul.f32 %v1107, %v1411
        %v1488 = vadd.f32 %v1486, %v1487
        %v1489 = vmul.f32 %v1112, %v1419
        %v1490 = vadd.f32 %v1488, %v1489
        %v1491 = vmul.f32 %v1102, %v1406
        %v1492 = vmul.f32 %v1107, %v1415
        %v1493 = vadd.f32 %v1491, %v1492
        %v1494 = vmul.f32 %v1112, %v1422
        %v1495 = vadd.f32 %v1493, %v1494
        %v1496 = vmul.f32 %v1117, %v1398
        %v1497 = vmul.f32 %v1122, %v1408
        %v1498 = vadd.f32 %v1496, %v1497
        %v1499 = vmul.f32 %v1127, %v1417
        %v1500 = vadd.f32 %v1498, %v1499
        %v1501 = vmul.f32 %v1117, %v1402
        %v1502 = vmul.f32 %v1122, %v1411
        %v1503 = vadd.f32 %v1501, %v1502
        %v1504 = vmul.f32 %v1127, %v1419
        %v1505 = vadd.f32 %v1503, %v1504
        %v1506 = vmul.f32 %v1117, %v1406
        %v1507 = vmul.f32 %v1122, %v1415
        %v1508 = vadd.f32 %v1506, %v1507
        %v1509 = vmul.f32 %v1127, %v1422
        %v1510 = vadd.f32 %v1508, %v1509
        %v1511 = vmul.f32 %v1132, %v1441
        %v1512 = vmul.f32 %v1137, %v1451
        %v1513 = vadd.f32 %v1511, %v1512
        %v1514 = vmul.f32 %v1142, %v1460
        %v1515 = vadd.f32 %v1513, %v1514
        %v1516 = vmul.f32 %v1132, %v1445
        %v1517 = vmul.f32 %v1137, %v1454
        %v1518 = vadd.f32 %v1516, %v1517
        %v1519 = vmul.f32 %v1142, %v1462
        %v1520 = vadd.f32 %v1518, %v1519
        %v1521 = vmul.f32 %v1132, %v1449
        %v1522 = vmul.f32 %v1137, %v1458
        %v1523 = vadd.f32 %v1521, %v1522
        %v1524 = vmul.f32 %v1142, %v1465
        %v1525 = vadd.f32 %v1523, %v1524
        %v1526 = vmul.f32 %v1147, %v1441
        %v1527 = vmul.f32 %v1152, %v1451
        %v1528 = vadd.f32 %v1526, %v1527
        %v1529 = vmul.f32 %v1157, %v1460
        %v1530 = vadd.f32 %v1528, %v1529
        %v1531 = vmul.f32 %v1147, %v1445
        %v1532 = vmul.f32 %v1152, %v1454
        %v1533 = vadd.f32 %v1531, %v1532
        %v1534 = vmul.f32 %v1157, %v1462
        %v1535 = vadd.f32 %v1533, %v1534
        %v1536 = vmul.f32 %v1147, %v1449
        %v1537 = vmul.f32 %v1152, %v1458
        %v1538 = vadd.f32 %v1536, %v1537
        %v1539 = vmul.f32 %v1157, %v1465
        %v1540 = vadd.f32 %v1538, %v1539
        %v1541 = vmul.f32 %v1162, %v1441
        %v1542 = vmul.f32 %v1167, %v1451
        %v1543 = vadd.f32 %v1541, %v1542
        %v1544 = vmul.f32 %v1172, %v1460
        %v1545 = vadd.f32 %v1543, %v1544
        %v1546 = vmul.f32 %v1162, %v1445
        %v1547 = vmul.f32 %v1167, %v1454
        %v1548 = vadd.f32 %v1546, %v1547
        %v1549 = vmul.f32 %v1172, %v1462
        %v1550 = vadd.f32 %v1548, %v1549
        %v1551 = vmul.f32 %v1162, %v1449
        %v1552 = vmul.f32 %v1167, %v1458
        %v1553 = vadd.f32 %v1551, %v1552
        %v1554 = vmul.f32 %v1172, %v1465
        %v1555 = vadd.f32 %v1553, %v1554
        %1556 = vset.pattern.permute.xlu0 9
        %1557 = vperm.xlu0 %1556, %v786
        %v1558 = vpop.permute.xlu0 %1557
        %v1560 = vperm.slane %v1558, 0
        %v1561 = vmul.f32 %v1087, %v1560
        %1562 = vset.pattern.permute.xlu0 10
        %1563 = vperm.xlu0 %1562, %v786
        %v1564 = vpop.permute.xlu0 %1563
        %v1566 = vperm.slane %v1564, 0
        %v1567 = vmul.f32 %v1092, %v1566
        %v1568 = vadd.f32 %v1561, %v1567
        %1569 = vset.pattern.permute.xlu0 11
        %1570 = vperm.xlu0 %1569, %v786
        %v1571 = vpop.permute.xlu0 %1570
        %v1573 = vperm.slane %v1571, 0
        %v1574 = vmul.f32 %v1097, %v1573
        %v1575 = vadd.f32 %v1568, %v1574
        %v1576 = vmul.f32 %v1102, %v1560
        %v1577 = vmul.f32 %v1107, %v1566
        %v1578 = vadd.f32 %v1576, %v1577
        %v1579 = vmul.f32 %v1112, %v1573
        %v1580 = vadd.f32 %v1578, %v1579
        %v1581 = vmul.f32 %v1117, %v1560
        %v1582 = vmul.f32 %v1122, %v1566
        %v1583 = vadd.f32 %v1581, %v1582
        %v1584 = vmul.f32 %v1127, %v1573
        %v1585 = vadd.f32 %v1583, %v1584
        %v1586 = vadd.f32 %v1575, %v1203
        %v1587 = vadd.f32 %v1580, %v1204
        %v1588 = vadd.f32 %v1585, %v1205
        %1589 = vset.pattern.permute.xlu0 9
        %1590 = vperm.xlu0 %1589, %v787
        %v1591 = vpop.permute.xlu0 %1590
        %v1593 = vperm.slane %v1591, 0
        %v1594 = vmul.f32 %v1132, %v1593
        %1595 = vset.pattern.permute.xlu0 10
        %1596 = vperm.xlu0 %1595, %v787
        %v1597 = vpop.permute.xlu0 %1596
        %v1599 = vperm.slane %v1597, 0
        %v1600 = vmul.f32 %v1137, %v1599
        %v1601 = vadd.f32 %v1594, %v1600
        %1602 = vset.pattern.permute.xlu0 11
        %1603 = vperm.xlu0 %1602, %v787
        %v1604 = vpop.permute.xlu0 %1603
        %v1606 = vperm.slane %v1604, 0
        %v1607 = vmul.f32 %v1142, %v1606
        %v1608 = vadd.f32 %v1601, %v1607
        %v1609 = vmul.f32 %v1147, %v1593
        %v1610 = vmul.f32 %v1152, %v1599
        %v1611 = vadd.f32 %v1609, %v1610
        %v1612 = vmul.f32 %v1157, %v1606
        %v1613 = vadd.f32 %v1611, %v1612
        %v1614 = vmul.f32 %v1162, %v1593
        %v1615 = vmul.f32 %v1167, %v1599
        %v1616 = vadd.f32 %v1614, %v1615
        %v1617 = vmul.f32 %v1172, %v1606
        %v1618 = vadd.f32 %v1616, %v1617
        %v1619 = vadd.f32 %v1608, %v1236
        %v1620 = vadd.f32 %v1613, %v1237
        %v1621 = vadd.f32 %v1618, %v1238
        %v1622 = vsub.f32 %v1470, %v1515
        %v1623 = vand.u32 2147483647, %v1622
        %v1624 = vsub.f32 %v1475, %v1520
        %v1625 = vand.u32 2147483647, %v1624
        %v1626 = vadd.f32 %v1623, %v1625
        %v1627 = vsub.f32 %v1480, %v1525
        %v1628 = vand.u32 2147483647, %v1627
        %v1629 = vadd.f32 %v1626, %v1628
        %v1630 = vsub.f32 %v1485, %v1530
        %v1631 = vand.u32 2147483647, %v1630
        %v1632 = vadd.f32 %v1629, %v1631
        %v1633 = vsub.f32 %v1490, %v1535
        %v1634 = vand.u32 2147483647, %v1633
        %v1635 = vadd.f32 %v1632, %v1634
        %v1636 = vsub.f32 %v1495, %v1540
        %v1637 = vand.u32 2147483647, %v1636
        %v1638 = vadd.f32 %v1635, %v1637
        %v1639 = vsub.f32 %v1500, %v1545
        %v1640 = vand.u32 2147483647, %v1639
        %v1641 = vadd.f32 %v1638, %v1640
        %v1642 = vsub.f32 %v1505, %v1550
        %v1643 = vand.u32 2147483647, %v1642
        %v1644 = vadd.f32 %v1641, %v1643
        %v1645 = vsub.f32 %v1510, %v1555
        %v1646 = vand.u32 2147483647, %v1645
        %v1647 = vadd.f32 %v1644, %v1646
        %v1648 = vadd.f32 %v1265, %v1647
        %v1649 = vsub.f32 %v1586, %v1619
        %v1650 = vand.u32 2147483647, %v1649
        %v1651 = vsub.f32 %v1587, %v1620
        %v1652 = vand.u32 2147483647, %v1651
        %v1653 = vadd.f32 %v1650, %v1652
        %v1654 = vsub.f32 %v1588, %v1621
        %v1655 = vand.u32 2147483647, %v1654
        %v1656 = vadd.f32 %v1653, %v1655
        %v1657 = vmul.f32 %v1377, %v1656
        %v1658 = vadd.f32 %v1275, %v1657
        %v1659 = vld [vmem:[%s259 + $0x10] sm:$0x1]
        %v1660 = vld [vmem:[%s259 + $0x11] sm:$0x1]
        %v1661 = vld [vmem:[%s259 + $0x12] sm:$0x1]
        %v1662 = vld [vmem:[%s259 + $0x13] sm:$0x1]
        %v1663 = vld [vmem:[%s264 + $0x10] sm:$0x1]
        %v1664 = vld [vmem:[%s264 + $0x11] sm:$0x1]
        %v1665 = vld [vmem:[%s264 + $0x12] sm:$0x1]
        %v1666 = vld [vmem:[%s264 + $0x13] sm:$0x1]
        %v1667 = vmul.f32 %v1659, %v1659
        %v1668 = vmul.f32 %v1660, %v1660
        %v1669 = vadd.f32 %v1667, %v1668
        %v1670 = vmul.f32 %v1661, %v1661
        %v1671 = vadd.f32 %v1669, %v1670
        %v1672 = vmul.f32 %v1662, %v1662
        %v1673 = vadd.f32 %v1671, %v1672
        %v1674 = vrsqrt.pop %v1673
        %v1675 = vmul.f32 %v1674, %v1673
        %v1676 = vmul.f32 %v1675, %v1674
        %v1677 = vmul.f32 0.5, %v1676
        %v1678 = vsub.f32 1.5, %v1677
        %v1679 = vmul.f32 %v1674, %v1678
        %v1680 = vmul.f32 %v1673, %v1679
        %vm1681 = vcmp.eq.f32.partialorder %v1673, inf
        %v1682 = vsel %vm1681, %v1673, %v1680
        %vm1683 = vcmp.eq.f32.partialorder %v1673, 0.0
        %v1684 = vand.u32 %v1673, 2147483648
        %v1685 = vsel %vm1683, %v1684, %v1682
        %v1686 = vmax.f32 %v1685, 1e-12
        %v1687 = vrcp.pop %v1686
        %v1688 = vmul.f32 %v1686, %v1687
        %v1689 = vsub.f32 1.0, %v1688
        %v1690 = vmul.f32 %v1687, %v1689
        %v1691 = vadd.f32 %v1687, %v1690
        %vm1692 = vweird.f32 %v1686
        %vm1693 = vweird.f32 %v1687
        %vm1694 = vmor %vm1692, %vm1693
        %v1695 = vsel %vm1694, %v1687, %v1691
        %v1696 = vand.u32 2147483647, %v1686
        %vm1697 = vcmp.eq.f32.partialorder %v1696, 8.507059e+37
        %v1698 = vand.u32 %v1686, 2147483648
        %v1699 = vor.u32 1.1754944e-38, %v1698
        %v1700 = vsel %vm1697, %v1699, %v1695
        %v1701 = vmul.f32 1.0, %v1700
        %v1702 = vmul.f32 %v1659, %v1701
        %v1703 = vmul.f32 %v1660, %v1701
        %v1704 = vmul.f32 %v1661, %v1701
        %v1705 = vmul.f32 %v1662, %v1701
        %v1706 = vmul.f32 %v1663, %v1663
        %v1707 = vmul.f32 %v1664, %v1664
        %v1708 = vadd.f32 %v1706, %v1707
        %v1709 = vmul.f32 %v1665, %v1665
        %v1710 = vadd.f32 %v1708, %v1709
        %v1711 = vmul.f32 %v1666, %v1666
        %v1712 = vadd.f32 %v1710, %v1711
        %v1713 = vrsqrt.pop %v1712
        %v1714 = vmul.f32 %v1713, %v1712
        %v1715 = vmul.f32 %v1714, %v1713
        %v1716 = vmul.f32 0.5, %v1715
        %v1717 = vsub.f32 1.5, %v1716
        %v1718 = vmul.f32 %v1713, %v1717
        %v1719 = vmul.f32 %v1712, %v1718
        %vm1720 = vcmp.eq.f32.partialorder %v1712, inf
        %v1721 = vsel %vm1720, %v1712, %v1719
        %vm1722 = vcmp.eq.f32.partialorder %v1712, 0.0
        %v1723 = vand.u32 %v1712, 2147483648
        %v1724 = vsel %vm1722, %v1723, %v1721
        %v1725 = vmax.f32 %v1724, 1e-12
        %v1726 = vrcp.pop %v1725
        %v1727 = vmul.f32 %v1725, %v1726
        %v1728 = vsub.f32 1.0, %v1727
        %v1729 = vmul.f32 %v1726, %v1728
        %v1730 = vadd.f32 %v1726, %v1729
        %vm1731 = vweird.f32 %v1725
        %vm1732 = vweird.f32 %v1726
        %vm1733 = vmor %vm1731, %vm1732
        %v1734 = vsel %vm1733, %v1726, %v1730
        %v1735 = vand.u32 2147483647, %v1725
        %vm1736 = vcmp.eq.f32.partialorder %v1735, 8.507059e+37
        %v1737 = vand.u32 %v1725, 2147483648
        %v1738 = vor.u32 1.1754944e-38, %v1737
        %v1739 = vsel %vm1736, %v1738, %v1734
        %v1740 = vmul.f32 1.0, %v1739
        %v1741 = vmul.f32 %v1663, %v1740
        %v1742 = vmul.f32 %v1664, %v1740
        %v1743 = vmul.f32 %v1665, %v1740
        %v1744 = vmul.f32 %v1666, %v1740
        %v1745 = vsub.f32 %v1702, %v1741
        %v1746 = vand.u32 2147483647, %v1745
        %v1747 = vsub.f32 %v1703, %v1742
        %v1748 = vand.u32 2147483647, %v1747
        %v1749 = vadd.f32 %v1746, %v1748
        %v1750 = vsub.f32 %v1704, %v1743
        %v1751 = vand.u32 2147483647, %v1750
        %v1752 = vadd.f32 %v1749, %v1751
        %v1753 = vsub.f32 %v1705, %v1744
        %v1754 = vand.u32 2147483647, %v1753
        %v1755 = vadd.f32 %v1752, %v1754
        %1756 = vset.pattern.permute.xlu0 4
        %1757 = vperm.xlu0 %1756, %v271
        %v1758 = vpop.permute.xlu0 %1757
        %v1760 = vperm.slane %v1758, 0
        %v1761 = vmul.f32 %v1760, %v1755
        %v1762 = vadd.f32 %v1379, %v1761
        %v1763 = vmax.f32 %v1673, 1e-12
        %v1764 = vrcp.pop %v1763
        %v1765 = vmul.f32 %v1763, %v1764
        %v1766 = vsub.f32 1.0, %v1765
        %v1767 = vmul.f32 %v1764, %v1766
        %v1768 = vadd.f32 %v1764, %v1767
        %vm1769 = vweird.f32 %v1763
        %vm1770 = vweird.f32 %v1764
        %vm1771 = vmor %vm1769, %vm1770
        %v1772 = vsel %vm1771, %v1764, %v1768
        %v1773 = vand.u32 2147483647, %v1763
        %vm1774 = vcmp.eq.f32.partialorder %v1773, 8.507059e+37
        %v1775 = vand.u32 %v1763, 2147483648
        %v1776 = vor.u32 1.1754944e-38, %v1775
        %v1777 = vsel %vm1774, %v1776, %v1772
        %v1778 = vmul.f32 2.0, %v1777
        %v1779 = vadd.f32 %v1670, %v1672
        %v1780 = vmul.f32 %v1778, %v1779
        %v1781 = vsub.f32 1.0, %v1780
        %v1782 = vmul.f32 %v1660, %v1661
        %v1783 = vmul.f32 %v1662, %v1659
        %v1784 = vsub.f32 %v1782, %v1783
        %v1785 = vmul.f32 %v1778, %v1784
        %v1786 = vmul.f32 %v1660, %v1662
        %v1787 = vmul.f32 %v1661, %v1659
        %v1788 = vadd.f32 %v1786, %v1787
        %v1789 = vmul.f32 %v1778, %v1788
        %v1790 = vadd.f32 %v1782, %v1783
        %v1791 = vmul.f32 %v1778, %v1790
        %v1792 = vadd.f32 %v1668, %v1672
        %v1793 = vmul.f32 %v1778, %v1792
        %v1794 = vsub.f32 1.0, %v1793
        %v1795 = vmul.f32 %v1661, %v1662
        %v1796 = vmul.f32 %v1660, %v1659
        %v1797 = vsub.f32 %v1795, %v1796
        %v1798 = vmul.f32 %v1778, %v1797
        %v1799 = vsub.f32 %v1786, %v1787
        %v1800 = vmul.f32 %v1778, %v1799
        %v1801 = vadd.f32 %v1795, %v1796
        %v1802 = vmul.f32 %v1778, %v1801
        %v1803 = vadd.f32 %v1668, %v1670
        %v1804 = vmul.f32 %v1778, %v1803
        %v1805 = vsub.f32 1.0, %v1804
        %v1806 = vmax.f32 %v1712, 1e-12
        %v1807 = vrcp.pop %v1806
        %v1808 = vmul.f32 %v1806, %v1807
        %v1809 = vsub.f32 1.0, %v1808
        %v1810 = vmul.f32 %v1807, %v1809
        %v1811 = vadd.f32 %v1807, %v1810
        %vm1812 = vweird.f32 %v1806
        %vm1813 = vweird.f32 %v1807
        %vm1814 = vmor %vm1812, %vm1813
        %v1815 = vsel %vm1814, %v1807, %v1811
        %v1816 = vand.u32 2147483647, %v1806
        %vm1817 = vcmp.eq.f32.partialorder %v1816, 8.507059e+37
        %v1818 = vand.u32 %v1806, 2147483648
        %v1819 = vor.u32 1.1754944e-38, %v1818
        %v1820 = vsel %vm1817, %v1819, %v1815
        %v1821 = vmul.f32 2.0, %v1820
        %v1822 = vadd.f32 %v1709, %v1711
        %v1823 = vmul.f32 %v1821, %v1822
        %v1824 = vsub.f32 1.0, %v1823
        %v1825 = vmul.f32 %v1664, %v1665
        %v1826 = vmul.f32 %v1666, %v1663
        %v1827 = vsub.f32 %v1825, %v1826
        %v1828 = vmul.f32 %v1821, %v1827
        %v1829 = vmul.f32 %v1664, %v1666
        %v1830 = vmul.f32 %v1665, %v1663
        %v1831 = vadd.f32 %v1829, %v1830
        %v1832 = vmul.f32 %v1821, %v1831
        %v1833 = vadd.f32 %v1825, %v1826
        %v1834 = vmul.f32 %v1821, %v1833
        %v1835 = vadd.f32 %v1707, %v1711
        %v1836 = vmul.f32 %v1821, %v1835
        %v1837 = vsub.f32 1.0, %v1836
        %v1838 = vmul.f32 %v1665, %v1666
        %v1839 = vmul.f32 %v1664, %v1663
        %v1840 = vsub.f32 %v1838, %v1839
        %v1841 = vmul.f32 %v1821, %v1840
        %v1842 = vsub.f32 %v1829, %v1830
        %v1843 = vmul.f32 %v1821, %v1842
        %v1844 = vadd.f32 %v1838, %v1839
        %v1845 = vmul.f32 %v1821, %v1844
        %v1846 = vadd.f32 %v1707, %v1709
        %v1847 = vmul.f32 %v1821, %v1846
        %v1848 = vsub.f32 1.0, %v1847
        %v1849 = vmul.f32 %v395, %v1781
        %v1850 = vmul.f32 %v399, %v1791
        %v1851 = vadd.f32 %v1849, %v1850
        %v1852 = vmul.f32 %v403, %v1800
        %v1853 = vadd.f32 %v1851, %v1852
        %v1854 = vmul.f32 %v395, %v1785
        %v1855 = vmul.f32 %v399, %v1794
        %v1856 = vadd.f32 %v1854, %v1855
        %v1857 = vmul.f32 %v403, %v1802
        %v1858 = vadd.f32 %v1856, %v1857
        %v1859 = vmul.f32 %v395, %v1789
        %v1860 = vmul.f32 %v399, %v1798
        %v1861 = vadd.f32 %v1859, %v1860
        %v1862 = vmul.f32 %v403, %v1805
        %v1863 = vadd.f32 %v1861, %v1862
        %v1864 = vmul.f32 %v405, %v1781
        %v1865 = vmul.f32 %v408, %v1791
        %v1866 = vadd.f32 %v1864, %v1865
        %v1867 = vmul.f32 %v412, %v1800
        %v1868 = vadd.f32 %v1866, %v1867
        %v1869 = vmul.f32 %v405, %v1785
        %v1870 = vmul.f32 %v408, %v1794
        %v1871 = vadd.f32 %v1869, %v1870
        %v1872 = vmul.f32 %v412, %v1802
        %v1873 = vadd.f32 %v1871, %v1872
        %v1874 = vmul.f32 %v405, %v1789
        %v1875 = vmul.f32 %v408, %v1798
        %v1876 = vadd.f32 %v1874, %v1875
        %v1877 = vmul.f32 %v412, %v1805
        %v1878 = vadd.f32 %v1876, %v1877
        %v1879 = vmul.f32 %v414, %v1781
        %v1880 = vmul.f32 %v416, %v1791
        %v1881 = vadd.f32 %v1879, %v1880
        %v1882 = vmul.f32 %v419, %v1800
        %v1883 = vadd.f32 %v1881, %v1882
        %v1884 = vmul.f32 %v414, %v1785
        %v1885 = vmul.f32 %v416, %v1794
        %v1886 = vadd.f32 %v1884, %v1885
        %v1887 = vmul.f32 %v419, %v1802
        %v1888 = vadd.f32 %v1886, %v1887
        %v1889 = vmul.f32 %v414, %v1789
        %v1890 = vmul.f32 %v416, %v1798
        %v1891 = vadd.f32 %v1889, %v1890
        %v1892 = vmul.f32 %v419, %v1805
        %v1893 = vadd.f32 %v1891, %v1892
        %v1894 = vmul.f32 %v438, %v1824
        %v1895 = vmul.f32 %v442, %v1834
        %v1896 = vadd.f32 %v1894, %v1895
        %v1897 = vmul.f32 %v446, %v1843
        %v1898 = vadd.f32 %v1896, %v1897
        %v1899 = vmul.f32 %v438, %v1828
        %v1900 = vmul.f32 %v442, %v1837
        %v1901 = vadd.f32 %v1899, %v1900
        %v1902 = vmul.f32 %v446, %v1845
        %v1903 = vadd.f32 %v1901, %v1902
        %v1904 = vmul.f32 %v438, %v1832
        %v1905 = vmul.f32 %v442, %v1841
        %v1906 = vadd.f32 %v1904, %v1905
        %v1907 = vmul.f32 %v446, %v1848
        %v1908 = vadd.f32 %v1906, %v1907
        %v1909 = vmul.f32 %v448, %v1824
        %v1910 = vmul.f32 %v451, %v1834
        %v1911 = vadd.f32 %v1909, %v1910
        %v1912 = vmul.f32 %v455, %v1843
        %v1913 = vadd.f32 %v1911, %v1912
        %v1914 = vmul.f32 %v448, %v1828
        %v1915 = vmul.f32 %v451, %v1837
        %v1916 = vadd.f32 %v1914, %v1915
        %v1917 = vmul.f32 %v455, %v1845
        %v1918 = vadd.f32 %v1916, %v1917
        %v1919 = vmul.f32 %v448, %v1832
        %v1920 = vmul.f32 %v451, %v1841
        %v1921 = vadd.f32 %v1919, %v1920
        %v1922 = vmul.f32 %v455, %v1848
        %v1923 = vadd.f32 %v1921, %v1922
        %v1924 = vmul.f32 %v457, %v1824
        %v1925 = vmul.f32 %v459, %v1834
        %v1926 = vadd.f32 %v1924, %v1925
        %v1927 = vmul.f32 %v462, %v1843
        %v1928 = vadd.f32 %v1926, %v1927
        %v1929 = vmul.f32 %v457, %v1828
        %v1930 = vmul.f32 %v459, %v1837
        %v1931 = vadd.f32 %v1929, %v1930
        %v1932 = vmul.f32 %v462, %v1845
        %v1933 = vadd.f32 %v1931, %v1932
        %v1934 = vmul.f32 %v457, %v1832
        %v1935 = vmul.f32 %v459, %v1841
        %v1936 = vadd.f32 %v1934, %v1935
        %v1937 = vmul.f32 %v462, %v1848
        %v1938 = vadd.f32 %v1936, %v1937
        %1939 = vset.pattern.permute.xlu0 12
        %1940 = vperm.xlu0 %1939, %v786
        %v1941 = vpop.permute.xlu0 %1940
        %v1943 = vperm.slane %v1941, 0
        %v1944 = vmul.f32 %v395, %v1943
        %1945 = vset.pattern.permute.xlu0 13
        %1946 = vperm.xlu0 %1945, %v786
        %v1947 = vpop.permute.xlu0 %1946
        %v1949 = vperm.slane %v1947, 0
        %v1950 = vmul.f32 %v399, %v1949
        %v1951 = vadd.f32 %v1944, %v1950
        %1952 = vset.pattern.permute.xlu0 14
        %1953 = vperm.xlu0 %1952, %v786
        %v1954 = vpop.permute.xlu0 %1953
        %v1956 = vperm.slane %v1954, 0
        %v1957 = vmul.f32 %v403, %v1956
        %v1958 = vadd.f32 %v1951, %v1957
        %v1959 = vmul.f32 %v405, %v1943
        %v1960 = vmul.f32 %v408, %v1949
        %v1961 = vadd.f32 %v1959, %v1960
        %v1962 = vmul.f32 %v412, %v1956
        %v1963 = vadd.f32 %v1961, %v1962
        %v1964 = vmul.f32 %v414, %v1943
        %v1965 = vmul.f32 %v416, %v1949
        %v1966 = vadd.f32 %v1964, %v1965
        %v1967 = vmul.f32 %v419, %v1956
        %v1968 = vadd.f32 %v1966, %v1967
        %v1969 = vadd.f32 %v1958, %v463
        %v1970 = vadd.f32 %v1963, %v464
        %v1971 = vadd.f32 %v1968, %v465
        %1972 = vset.pattern.permute.xlu0 12
        %1973 = vperm.xlu0 %1972, %v787
        %v1974 = vpop.permute.xlu0 %1973
        %v1976 = vperm.slane %v1974, 0
        %v1977 = vmul.f32 %v438, %v1976
        %1978 = vset.pattern.permute.xlu0 13
        %1979 = vperm.xlu0 %1978, %v787
        %v1980 = vpop.permute.xlu0 %1979
        %v1982 = vperm.slane %v1980, 0
        %v1983 = vmul.f32 %v442, %v1982
        %v1984 = vadd.f32 %v1977, %v1983
        %1985 = vset.pattern.permute.xlu0 14
        %1986 = vperm.xlu0 %1985, %v787
        %v1987 = vpop.permute.xlu0 %1986
        %v1989 = vperm.slane %v1987, 0
        %v1990 = vmul.f32 %v446, %v1989
        %v1991 = vadd.f32 %v1984, %v1990
        %v1992 = vmul.f32 %v448, %v1976
        %v1993 = vmul.f32 %v451, %v1982
        %v1994 = vadd.f32 %v1992, %v1993
        %v1995 = vmul.f32 %v455, %v1989
        %v1996 = vadd.f32 %v1994, %v1995
        %v1997 = vmul.f32 %v457, %v1976
        %v1998 = vmul.f32 %v459, %v1982
        %v1999 = vadd.f32 %v1997, %v1998
        %v2000 = vmul.f32 %v462, %v1989
        %v2001 = vadd.f32 %v1999, %v2000
        %v2002 = vadd.f32 %v1991, %v466
        %v2003 = vadd.f32 %v1996, %v467
        %v2004 = vadd.f32 %v2001, %v468
        %v2005 = vsub.f32 %v1853, %v1898
        %v2006 = vand.u32 2147483647, %v2005
        %v2007 = vsub.f32 %v1858, %v1903
        %v2008 = vand.u32 2147483647, %v2007
        %v2009 = vadd.f32 %v2006, %v2008
        %v2010 = vsub.f32 %v1863, %v1908
        %v2011 = vand.u32 2147483647, %v2010
        %v2012 = vadd.f32 %v2009, %v2011
        %v2013 = vsub.f32 %v1868, %v1913
        %v2014 = vand.u32 2147483647, %v2013
        %v2015 = vadd.f32 %v2012, %v2014
        %v2016 = vsub.f32 %v1873, %v1918
        %v2017 = vand.u32 2147483647, %v2016
        %v2018 = vadd.f32 %v2015, %v2017
        %v2019 = vsub.f32 %v1878, %v1923
        %v2020 = vand.u32 2147483647, %v2019
        %v2021 = vadd.f32 %v2018, %v2020
        %v2022 = vsub.f32 %v1883, %v1928
        %v2023 = vand.u32 2147483647, %v2022
        %v2024 = vadd.f32 %v2021, %v2023
        %v2025 = vsub.f32 %v1888, %v1933
        %v2026 = vand.u32 2147483647, %v2025
        %v2027 = vadd.f32 %v2024, %v2026
        %v2028 = vsub.f32 %v1893, %v1938
        %v2029 = vand.u32 2147483647, %v2028
        %v2030 = vadd.f32 %v2027, %v2029
        %v2031 = vadd.f32 %v1648, %v2030
        %v2032 = vsub.f32 %v1969, %v2002
        %v2033 = vand.u32 2147483647, %v2032
        %v2034 = vsub.f32 %v1970, %v2003
        %v2035 = vand.u32 2147483647, %v2034
        %v2036 = vadd.f32 %v2033, %v2035
        %v2037 = vsub.f32 %v1971, %v2004
        %v2038 = vand.u32 2147483647, %v2037
        %v2039 = vadd.f32 %v2036, %v2038
        %v2040 = vmul.f32 %v1760, %v2039
        %v2041 = vadd.f32 %v1658, %v2040
        %v2042 = vld [vmem:[%s259 + $0x14] sm:$0x1]
        %v2043 = vld [vmem:[%s259 + $0x15] sm:$0x1]
        %v2044 = vld [vmem:[%s259 + $0x16] sm:$0x1]
        %v2045 = vld [vmem:[%s259 + $0x17] sm:$0x1]
        %v2046 = vld [vmem:[%s264 + $0x14] sm:$0x1]
        %v2047 = vld [vmem:[%s264 + $0x15] sm:$0x1]
        %v2048 = vld [vmem:[%s264 + $0x16] sm:$0x1]
        %v2049 = vld [vmem:[%s264 + $0x17] sm:$0x1]
        %v2050 = vmul.f32 %v2042, %v2042
        %v2051 = vmul.f32 %v2043, %v2043
        %v2052 = vadd.f32 %v2050, %v2051
        %v2053 = vmul.f32 %v2044, %v2044
        %v2054 = vadd.f32 %v2052, %v2053
        %v2055 = vmul.f32 %v2045, %v2045
        %v2056 = vadd.f32 %v2054, %v2055
        %v2057 = vrsqrt.pop %v2056
        %v2058 = vmul.f32 %v2057, %v2056
        %v2059 = vmul.f32 %v2058, %v2057
        %v2060 = vmul.f32 0.5, %v2059
        %v2061 = vsub.f32 1.5, %v2060
        %v2062 = vmul.f32 %v2057, %v2061
        %v2063 = vmul.f32 %v2056, %v2062
        %vm2064 = vcmp.eq.f32.partialorder %v2056, inf
        %v2065 = vsel %vm2064, %v2056, %v2063
        %vm2066 = vcmp.eq.f32.partialorder %v2056, 0.0
        %v2067 = vand.u32 %v2056, 2147483648
        %v2068 = vsel %vm2066, %v2067, %v2065
        %v2069 = vmax.f32 %v2068, 1e-12
        %v2070 = vrcp.pop %v2069
        %v2071 = vmul.f32 %v2069, %v2070
        %v2072 = vsub.f32 1.0, %v2071
        %v2073 = vmul.f32 %v2070, %v2072
        %v2074 = vadd.f32 %v2070, %v2073
        %vm2075 = vweird.f32 %v2069
        %vm2076 = vweird.f32 %v2070
        %vm2077 = vmor %vm2075, %vm2076
        %v2078 = vsel %vm2077, %v2070, %v2074
        %v2079 = vand.u32 2147483647, %v2069
        %vm2080 = vcmp.eq.f32.partialorder %v2079, 8.507059e+37
        %v2081 = vand.u32 %v2069, 2147483648
        %v2082 = vor.u32 1.1754944e-38, %v2081
        %v2083 = vsel %vm2080, %v2082, %v2078
        %v2084 = vmul.f32 1.0, %v2083
        %v2085 = vmul.f32 %v2042, %v2084
        %v2086 = vmul.f32 %v2043, %v2084
        %v2087 = vmul.f32 %v2044, %v2084
        %v2088 = vmul.f32 %v2045, %v2084
        %v2089 = vmul.f32 %v2046, %v2046
        %v2090 = vmul.f32 %v2047, %v2047
        %v2091 = vadd.f32 %v2089, %v2090
        %v2092 = vmul.f32 %v2048, %v2048
        %v2093 = vadd.f32 %v2091, %v2092
        %v2094 = vmul.f32 %v2049, %v2049
        %v2095 = vadd.f32 %v2093, %v2094
        %v2096 = vrsqrt.pop %v2095
        %v2097 = vmul.f32 %v2096, %v2095
        %v2098 = vmul.f32 %v2097, %v2096
        %v2099 = vmul.f32 0.5, %v2098
        %v2100 = vsub.f32 1.5, %v2099
        %v2101 = vmul.f32 %v2096, %v2100
        %v2102 = vmul.f32 %v2095, %v2101
        %vm2103 = vcmp.eq.f32.partialorder %v2095, inf
        %v2104 = vsel %vm2103, %v2095, %v2102
        %vm2105 = vcmp.eq.f32.partialorder %v2095, 0.0
        %v2106 = vand.u32 %v2095, 2147483648
        %v2107 = vsel %vm2105, %v2106, %v2104
        %v2108 = vmax.f32 %v2107, 1e-12
        %v2109 = vrcp.pop %v2108
        %v2110 = vmul.f32 %v2108, %v2109
        %v2111 = vsub.f32 1.0, %v2110
        %v2112 = vmul.f32 %v2109, %v2111
        %v2113 = vadd.f32 %v2109, %v2112
        %vm2114 = vweird.f32 %v2108
        %vm2115 = vweird.f32 %v2109
        %vm2116 = vmor %vm2114, %vm2115
        %v2117 = vsel %vm2116, %v2109, %v2113
        %v2118 = vand.u32 2147483647, %v2108
        %vm2119 = vcmp.eq.f32.partialorder %v2118, 8.507059e+37
        %v2120 = vand.u32 %v2108, 2147483648
        %v2121 = vor.u32 1.1754944e-38, %v2120
        %v2122 = vsel %vm2119, %v2121, %v2117
        %v2123 = vmul.f32 1.0, %v2122
        %v2124 = vmul.f32 %v2046, %v2123
        %v2125 = vmul.f32 %v2047, %v2123
        %v2126 = vmul.f32 %v2048, %v2123
        %v2127 = vmul.f32 %v2049, %v2123
        %v2128 = vsub.f32 %v2085, %v2124
        %v2129 = vand.u32 2147483647, %v2128
        %v2130 = vsub.f32 %v2086, %v2125
        %v2131 = vand.u32 2147483647, %v2130
        %v2132 = vadd.f32 %v2129, %v2131
        %v2133 = vsub.f32 %v2087, %v2126
        %v2134 = vand.u32 2147483647, %v2133
        %v2135 = vadd.f32 %v2132, %v2134
        %v2136 = vsub.f32 %v2088, %v2127
        %v2137 = vand.u32 2147483647, %v2136
        %v2138 = vadd.f32 %v2135, %v2137
        %2139 = vset.pattern.permute.xlu0 5
        %2140 = vperm.xlu0 %2139, %v271
        %v2141 = vpop.permute.xlu0 %2140
        %v2143 = vperm.slane %v2141, 0
        %v2144 = vmul.f32 %v2143, %v2138
        %v2145 = vadd.f32 %v1762, %v2144
        %v2146 = vmax.f32 %v2056, 1e-12
        %v2147 = vrcp.pop %v2146
        %v2148 = vmul.f32 %v2146, %v2147
        %v2149 = vsub.f32 1.0, %v2148
        %v2150 = vmul.f32 %v2147, %v2149
        %v2151 = vadd.f32 %v2147, %v2150
        %vm2152 = vweird.f32 %v2146
        %vm2153 = vweird.f32 %v2147
        %vm2154 = vmor %vm2152, %vm2153
        %v2155 = vsel %vm2154, %v2147, %v2151
        %v2156 = vand.u32 2147483647, %v2146
        %vm2157 = vcmp.eq.f32.partialorder %v2156, 8.507059e+37
        %v2158 = vand.u32 %v2146, 2147483648
        %v2159 = vor.u32 1.1754944e-38, %v2158
        %v2160 = vsel %vm2157, %v2159, %v2155
        %v2161 = vmul.f32 2.0, %v2160
        %v2162 = vadd.f32 %v2053, %v2055
        %v2163 = vmul.f32 %v2161, %v2162
        %v2164 = vsub.f32 1.0, %v2163
        %v2165 = vmul.f32 %v2043, %v2044
        %v2166 = vmul.f32 %v2045, %v2042
        %v2167 = vsub.f32 %v2165, %v2166
        %v2168 = vmul.f32 %v2161, %v2167
        %v2169 = vmul.f32 %v2043, %v2045
        %v2170 = vmul.f32 %v2044, %v2042
        %v2171 = vadd.f32 %v2169, %v2170
        %v2172 = vmul.f32 %v2161, %v2171
        %v2173 = vadd.f32 %v2165, %v2166
        %v2174 = vmul.f32 %v2161, %v2173
        %v2175 = vadd.f32 %v2051, %v2055
        %v2176 = vmul.f32 %v2161, %v2175
        %v2177 = vsub.f32 1.0, %v2176
        %v2178 = vmul.f32 %v2044, %v2045
        %v2179 = vmul.f32 %v2043, %v2042
        %v2180 = vsub.f32 %v2178, %v2179
        %v2181 = vmul.f32 %v2161, %v2180
        %v2182 = vsub.f32 %v2169, %v2170
        %v2183 = vmul.f32 %v2161, %v2182
        %v2184 = vadd.f32 %v2178, %v2179
        %v2185 = vmul.f32 %v2161, %v2184
        %v2186 = vadd.f32 %v2051, %v2053
        %v2187 = vmul.f32 %v2161, %v2186
        %v2188 = vsub.f32 1.0, %v2187
        %v2189 = vmax.f32 %v2095, 1e-12
        %v2190 = vrcp.pop %v2189
        %v2191 = vmul.f32 %v2189, %v2190
        %v2192 = vsub.f32 1.0, %v2191
        %v2193 = vmul.f32 %v2190, %v2192
        %v2194 = vadd.f32 %v2190, %v2193
        %vm2195 = vweird.f32 %v2189
        %vm2196 = vweird.f32 %v2190
        %vm2197 = vmor %vm2195, %vm2196
        %v2198 = vsel %vm2197, %v2190, %v2194
        %v2199 = vand.u32 2147483647, %v2189
        %vm2200 = vcmp.eq.f32.partialorder %v2199, 8.507059e+37
        %v2201 = vand.u32 %v2189, 2147483648
        %v2202 = vor.u32 1.1754944e-38, %v2201
        %v2203 = vsel %vm2200, %v2202, %v2198
        %v2204 = vmul.f32 2.0, %v2203
        %v2205 = vadd.f32 %v2092, %v2094
        %v2206 = vmul.f32 %v2204, %v2205
        %v2207 = vsub.f32 1.0, %v2206
        %v2208 = vmul.f32 %v2047, %v2048
        %v2209 = vmul.f32 %v2049, %v2046
        %v2210 = vsub.f32 %v2208, %v2209
        %v2211 = vmul.f32 %v2204, %v2210
        %v2212 = vmul.f32 %v2047, %v2049
        %v2213 = vmul.f32 %v2048, %v2046
        %v2214 = vadd.f32 %v2212, %v2213
        %v2215 = vmul.f32 %v2204, %v2214
        %v2216 = vadd.f32 %v2208, %v2209
        %v2217 = vmul.f32 %v2204, %v2216
        %v2218 = vadd.f32 %v2090, %v2094
        %v2219 = vmul.f32 %v2204, %v2218
        %v2220 = vsub.f32 1.0, %v2219
        %v2221 = vmul.f32 %v2048, %v2049
        %v2222 = vmul.f32 %v2047, %v2046
        %v2223 = vsub.f32 %v2221, %v2222
        %v2224 = vmul.f32 %v2204, %v2223
        %v2225 = vsub.f32 %v2212, %v2213
        %v2226 = vmul.f32 %v2204, %v2225
        %v2227 = vadd.f32 %v2221, %v2222
        %v2228 = vmul.f32 %v2204, %v2227
        %v2229 = vadd.f32 %v2090, %v2092
        %v2230 = vmul.f32 %v2204, %v2229
        %v2231 = vsub.f32 1.0, %v2230
        %v2232 = vmul.f32 %v1853, %v2164
        %v2233 = vmul.f32 %v1858, %v2174
        %v2234 = vadd.f32 %v2232, %v2233
        %v2235 = vmul.f32 %v1863, %v2183
        %v2236 = vadd.f32 %v2234, %v2235
        %v2237 = vmul.f32 %v1853, %v2168
        %v2238 = vmul.f32 %v1858, %v2177
        %v2239 = vadd.f32 %v2237, %v2238
        %v2240 = vmul.f32 %v1863, %v2185
        %v2241 = vadd.f32 %v2239, %v2240
        %v2242 = vmul.f32 %v1853, %v2172
        %v2243 = vmul.f32 %v1858, %v2181
        %v2244 = vadd.f32 %v2242, %v2243
        %v2245 = vmul.f32 %v1863, %v2188
        %v2246 = vadd.f32 %v2244, %v2245
        %v2247 = vmul.f32 %v1868, %v2164
        %v2248 = vmul.f32 %v1873, %v2174
        %v2249 = vadd.f32 %v2247, %v2248
        %v2250 = vmul.f32 %v1878, %v2183
        %v2251 = vadd.f32 %v2249, %v2250
        %v2252 = vmul.f32 %v1868, %v2168
        %v2253 = vmul.f32 %v1873, %v2177
        %v2254 = vadd.f32 %v2252, %v2253
        %v2255 = vmul.f32 %v1878, %v2185
        %v2256 = vadd.f32 %v2254, %v2255
        %v2257 = vmul.f32 %v1868, %v2172
        %v2258 = vmul.f32 %v1873, %v2181
        %v2259 = vadd.f32 %v2257, %v2258
        %v2260 = vmul.f32 %v1878, %v2188
        %v2261 = vadd.f32 %v2259, %v2260
        %v2262 = vmul.f32 %v1883, %v2164
        %v2263 = vmul.f32 %v1888, %v2174
        %v2264 = vadd.f32 %v2262, %v2263
        %v2265 = vmul.f32 %v1893, %v2183
        %v2266 = vadd.f32 %v2264, %v2265
        %v2267 = vmul.f32 %v1883, %v2168
        %v2268 = vmul.f32 %v1888, %v2177
        %v2269 = vadd.f32 %v2267, %v2268
        %v2270 = vmul.f32 %v1893, %v2185
        %v2271 = vadd.f32 %v2269, %v2270
        %v2272 = vmul.f32 %v1883, %v2172
        %v2273 = vmul.f32 %v1888, %v2181
        %v2274 = vadd.f32 %v2272, %v2273
        %v2275 = vmul.f32 %v1893, %v2188
        %v2276 = vadd.f32 %v2274, %v2275
        %v2277 = vmul.f32 %v1898, %v2207
        %v2278 = vmul.f32 %v1903, %v2217
        %v2279 = vadd.f32 %v2277, %v2278
        %v2280 = vmul.f32 %v1908, %v2226
        %v2281 = vadd.f32 %v2279, %v2280
        %v2282 = vmul.f32 %v1898, %v2211
        %v2283 = vmul.f32 %v1903, %v2220
        %v2284 = vadd.f32 %v2282, %v2283
        %v2285 = vmul.f32 %v1908, %v2228
        %v2286 = vadd.f32 %v2284, %v2285
        %v2287 = vmul.f32 %v1898, %v2215
        %v2288 = vmul.f32 %v1903, %v2224
        %v2289 = vadd.f32 %v2287, %v2288
        %v2290 = vmul.f32 %v1908, %v2231
        %v2291 = vadd.f32 %v2289, %v2290
        %v2292 = vmul.f32 %v1913, %v2207
        %v2293 = vmul.f32 %v1918, %v2217
        %v2294 = vadd.f32 %v2292, %v2293
        %v2295 = vmul.f32 %v1923, %v2226
        %v2296 = vadd.f32 %v2294, %v2295
        %v2297 = vmul.f32 %v1913, %v2211
        %v2298 = vmul.f32 %v1918, %v2220
        %v2299 = vadd.f32 %v2297, %v2298
        %v2300 = vmul.f32 %v1923, %v2228
        %v2301 = vadd.f32 %v2299, %v2300
        %v2302 = vmul.f32 %v1913, %v2215
        %v2303 = vmul.f32 %v1918, %v2224
        %v2304 = vadd.f32 %v2302, %v2303
        %v2305 = vmul.f32 %v1923, %v2231
        %v2306 = vadd.f32 %v2304, %v2305
        %v2307 = vmul.f32 %v1928, %v2207
        %v2308 = vmul.f32 %v1933, %v2217
        %v2309 = vadd.f32 %v2307, %v2308
        %v2310 = vmul.f32 %v1938, %v2226
        %v2311 = vadd.f32 %v2309, %v2310
        %v2312 = vmul.f32 %v1928, %v2211
        %v2313 = vmul.f32 %v1933, %v2220
        %v2314 = vadd.f32 %v2312, %v2313
        %v2315 = vmul.f32 %v1938, %v2228
        %v2316 = vadd.f32 %v2314, %v2315
        %v2317 = vmul.f32 %v1928, %v2215
        %v2318 = vmul.f32 %v1933, %v2224
        %v2319 = vadd.f32 %v2317, %v2318
        %v2320 = vmul.f32 %v1938, %v2231
        %v2321 = vadd.f32 %v2319, %v2320
        %2322 = vset.pattern.permute.xlu0 15
        %2323 = vperm.xlu0 %2322, %v786
        %v2324 = vpop.permute.xlu0 %2323
        %v2326 = vperm.slane %v2324, 0
        %v2327 = vmul.f32 %v1853, %v2326
        %2328 = vset.pattern.permute.xlu0 16
        %2329 = vperm.xlu0 %2328, %v786
        %v2330 = vpop.permute.xlu0 %2329
        %v2332 = vperm.slane %v2330, 0
        %v2333 = vmul.f32 %v1858, %v2332
        %v2334 = vadd.f32 %v2327, %v2333
        %2335 = vset.pattern.permute.xlu0 17
        %2336 = vperm.xlu0 %2335, %v786
        %v2337 = vpop.permute.xlu0 %2336
        %v2339 = vperm.slane %v2337, 0
        %v2340 = vmul.f32 %v1863, %v2339
        %v2341 = vadd.f32 %v2334, %v2340
        %v2342 = vmul.f32 %v1868, %v2326
        %v2343 = vmul.f32 %v1873, %v2332
        %v2344 = vadd.f32 %v2342, %v2343
        %v2345 = vmul.f32 %v1878, %v2339
        %v2346 = vadd.f32 %v2344, %v2345
        %v2347 = vmul.f32 %v1883, %v2326
        %v2348 = vmul.f32 %v1888, %v2332
        %v2349 = vadd.f32 %v2347, %v2348
        %v2350 = vmul.f32 %v1893, %v2339
        %v2351 = vadd.f32 %v2349, %v2350
        %v2352 = vadd.f32 %v2341, %v1969
        %v2353 = vadd.f32 %v2346, %v1970
        %v2354 = vadd.f32 %v2351, %v1971
        %2355 = vset.pattern.permute.xlu0 15
        %2356 = vperm.xlu0 %2355, %v787
        %v2357 = vpop.permute.xlu0 %2356
        %v2359 = vperm.slane %v2357, 0
        %v2360 = vmul.f32 %v1898, %v2359
        %2361 = vset.pattern.permute.xlu0 16
        %2362 = vperm.xlu0 %2361, %v787
        %v2363 = vpop.permute.xlu0 %2362
        %v2365 = vperm.slane %v2363, 0
        %v2366 = vmul.f32 %v1903, %v2365
        %v2367 = vadd.f32 %v2360, %v2366
        %2368 = vset.pattern.permute.xlu0 17
        %2369 = vperm.xlu0 %2368, %v787
        %v2370 = vpop.permute.xlu0 %2369
        %v2372 = vperm.slane %v2370, 0
        %v2373 = vmul.f32 %v1908, %v2372
        %v2374 = vadd.f32 %v2367, %v2373
        %v2375 = vmul.f32 %v1913, %v2359
        %v2376 = vmul.f32 %v1918, %v2365
        %v2377 = vadd.f32 %v2375, %v2376
        %v2378 = vmul.f32 %v1923, %v2372
        %v2379 = vadd.f32 %v2377, %v2378
        %v2380 = vmul.f32 %v1928, %v2359
        %v2381 = vmul.f32 %v1933, %v2365
        %v2382 = vadd.f32 %v2380, %v2381
        %v2383 = vmul.f32 %v1938, %v2372
        %v2384 = vadd.f32 %v2382, %v2383
        %v2385 = vadd.f32 %v2374, %v2002
        %v2386 = vadd.f32 %v2379, %v2003
        %v2387 = vadd.f32 %v2384, %v2004
        %v2388 = vsub.f32 %v2236, %v2281
        %v2389 = vand.u32 2147483647, %v2388
        %v2390 = vsub.f32 %v2241, %v2286
        %v2391 = vand.u32 2147483647, %v2390
        %v2392 = vadd.f32 %v2389, %v2391
        %v2393 = vsub.f32 %v2246, %v2291
        %v2394 = vand.u32 2147483647, %v2393
        %v2395 = vadd.f32 %v2392, %v2394
        %v2396 = vsub.f32 %v2251, %v2296
        %v2397 = vand.u32 2147483647, %v2396
        %v2398 = vadd.f32 %v2395, %v2397
        %v2399 = vsub.f32 %v2256, %v2301
        %v2400 = vand.u32 2147483647, %v2399
        %v2401 = vadd.f32 %v2398, %v2400
        %v2402 = vsub.f32 %v2261, %v2306
        %v2403 = vand.u32 2147483647, %v2402
        %v2404 = vadd.f32 %v2401, %v2403
        %v2405 = vsub.f32 %v2266, %v2311
        %v2406 = vand.u32 2147483647, %v2405
        %v2407 = vadd.f32 %v2404, %v2406
        %v2408 = vsub.f32 %v2271, %v2316
        %v2409 = vand.u32 2147483647, %v2408
        %v2410 = vadd.f32 %v2407, %v2409
        %v2411 = vsub.f32 %v2276, %v2321
        %v2412 = vand.u32 2147483647, %v2411
        %v2413 = vadd.f32 %v2410, %v2412
        %v2414 = vadd.f32 %v2031, %v2413
        %v2415 = vsub.f32 %v2352, %v2385
        %v2416 = vand.u32 2147483647, %v2415
        %v2417 = vsub.f32 %v2353, %v2386
        %v2418 = vand.u32 2147483647, %v2417
        %v2419 = vadd.f32 %v2416, %v2418
        %v2420 = vsub.f32 %v2354, %v2387
        %v2421 = vand.u32 2147483647, %v2420
        %v2422 = vadd.f32 %v2419, %v2421
        %v2423 = vmul.f32 %v2143, %v2422
        %v2424 = vadd.f32 %v2041, %v2423
        %v2425 = vld [vmem:[%s259 + $0x18] sm:$0x1]
        %v2426 = vld [vmem:[%s259 + $0x19] sm:$0x1]
        %v2427 = vld [vmem:[%s259 + $0x1a] sm:$0x1]
        %v2428 = vld [vmem:[%s259 + $0x1b] sm:$0x1]
        %v2429 = vld [vmem:[%s264 + $0x18] sm:$0x1]
        %v2430 = vld [vmem:[%s264 + $0x19] sm:$0x1]
        %v2431 = vld [vmem:[%s264 + $0x1a] sm:$0x1]
        %v2432 = vld [vmem:[%s264 + $0x1b] sm:$0x1]
        %v2433 = vmul.f32 %v2425, %v2425
        %v2434 = vmul.f32 %v2426, %v2426
        %v2435 = vadd.f32 %v2433, %v2434
        %v2436 = vmul.f32 %v2427, %v2427
        %v2437 = vadd.f32 %v2435, %v2436
        %v2438 = vmul.f32 %v2428, %v2428
        %v2439 = vadd.f32 %v2437, %v2438
        %v2440 = vrsqrt.pop %v2439
        %v2441 = vmul.f32 %v2440, %v2439
        %v2442 = vmul.f32 %v2441, %v2440
        %v2443 = vmul.f32 0.5, %v2442
        %v2444 = vsub.f32 1.5, %v2443
        %v2445 = vmul.f32 %v2440, %v2444
        %v2446 = vmul.f32 %v2439, %v2445
        %vm2447 = vcmp.eq.f32.partialorder %v2439, inf
        %v2448 = vsel %vm2447, %v2439, %v2446
        %vm2449 = vcmp.eq.f32.partialorder %v2439, 0.0
        %v2450 = vand.u32 %v2439, 2147483648
        %v2451 = vsel %vm2449, %v2450, %v2448
        %v2452 = vmax.f32 %v2451, 1e-12
        %v2453 = vrcp.pop %v2452
        %v2454 = vmul.f32 %v2452, %v2453
        %v2455 = vsub.f32 1.0, %v2454
        %v2456 = vmul.f32 %v2453, %v2455
        %v2457 = vadd.f32 %v2453, %v2456
        %vm2458 = vweird.f32 %v2452
        %vm2459 = vweird.f32 %v2453
        %vm2460 = vmor %vm2458, %vm2459
        %v2461 = vsel %vm2460, %v2453, %v2457
        %v2462 = vand.u32 2147483647, %v2452
        %vm2463 = vcmp.eq.f32.partialorder %v2462, 8.507059e+37
        %v2464 = vand.u32 %v2452, 2147483648
        %v2465 = vor.u32 1.1754944e-38, %v2464
        %v2466 = vsel %vm2463, %v2465, %v2461
        %v2467 = vmul.f32 1.0, %v2466
        %v2468 = vmul.f32 %v2425, %v2467
        %v2469 = vmul.f32 %v2426, %v2467
        %v2470 = vmul.f32 %v2427, %v2467
        %v2471 = vmul.f32 %v2428, %v2467
        %v2472 = vmul.f32 %v2429, %v2429
        %v2473 = vmul.f32 %v2430, %v2430
        %v2474 = vadd.f32 %v2472, %v2473
        %v2475 = vmul.f32 %v2431, %v2431
        %v2476 = vadd.f32 %v2474, %v2475
        %v2477 = vmul.f32 %v2432, %v2432
        %v2478 = vadd.f32 %v2476, %v2477
        %v2479 = vrsqrt.pop %v2478
        %v2480 = vmul.f32 %v2479, %v2478
        %v2481 = vmul.f32 %v2480, %v2479
        %v2482 = vmul.f32 0.5, %v2481
        %v2483 = vsub.f32 1.5, %v2482
        %v2484 = vmul.f32 %v2479, %v2483
        %v2485 = vmul.f32 %v2478, %v2484
        %vm2486 = vcmp.eq.f32.partialorder %v2478, inf
        %v2487 = vsel %vm2486, %v2478, %v2485
        %vm2488 = vcmp.eq.f32.partialorder %v2478, 0.0
        %v2489 = vand.u32 %v2478, 2147483648
        %v2490 = vsel %vm2488, %v2489, %v2487
        %v2491 = vmax.f32 %v2490, 1e-12
        %v2492 = vrcp.pop %v2491
        %v2493 = vmul.f32 %v2491, %v2492
        %v2494 = vsub.f32 1.0, %v2493
        %v2495 = vmul.f32 %v2492, %v2494
        %v2496 = vadd.f32 %v2492, %v2495
        %vm2497 = vweird.f32 %v2491
        %vm2498 = vweird.f32 %v2492
        %vm2499 = vmor %vm2497, %vm2498
        %v2500 = vsel %vm2499, %v2492, %v2496
        %v2501 = vand.u32 2147483647, %v2491
        %vm2502 = vcmp.eq.f32.partialorder %v2501, 8.507059e+37
        %v2503 = vand.u32 %v2491, 2147483648
        %v2504 = vor.u32 1.1754944e-38, %v2503
        %v2505 = vsel %vm2502, %v2504, %v2500
        %v2506 = vmul.f32 1.0, %v2505
        %v2507 = vmul.f32 %v2429, %v2506
        %v2508 = vmul.f32 %v2430, %v2506
        %v2509 = vmul.f32 %v2431, %v2506
        %v2510 = vmul.f32 %v2432, %v2506
        %v2511 = vsub.f32 %v2468, %v2507
        %v2512 = vand.u32 2147483647, %v2511
        %v2513 = vsub.f32 %v2469, %v2508
        %v2514 = vand.u32 2147483647, %v2513
        %v2515 = vadd.f32 %v2512, %v2514
        %v2516 = vsub.f32 %v2470, %v2509
        %v2517 = vand.u32 2147483647, %v2516
        %v2518 = vadd.f32 %v2515, %v2517
        %v2519 = vsub.f32 %v2471, %v2510
        %v2520 = vand.u32 2147483647, %v2519
        %v2521 = vadd.f32 %v2518, %v2520
        %2522 = vset.pattern.permute.xlu0 6
        %2523 = vperm.xlu0 %2522, %v271
        %v2524 = vpop.permute.xlu0 %2523
        %v2526 = vperm.slane %v2524, 0
        %v2527 = vmul.f32 %v2526, %v2521
        %v2528 = vadd.f32 %v2145, %v2527
        %v2529 = vmax.f32 %v2439, 1e-12
        %v2530 = vrcp.pop %v2529
        %v2531 = vmul.f32 %v2529, %v2530
        %v2532 = vsub.f32 1.0, %v2531
        %v2533 = vmul.f32 %v2530, %v2532
        %v2534 = vadd.f32 %v2530, %v2533
        %vm2535 = vweird.f32 %v2529
        %vm2536 = vweird.f32 %v2530
        %vm2537 = vmor %vm2535, %vm2536
        %v2538 = vsel %vm2537, %v2530, %v2534
        %v2539 = vand.u32 2147483647, %v2529
        %vm2540 = vcmp.eq.f32.partialorder %v2539, 8.507059e+37
        %v2541 = vand.u32 %v2529, 2147483648
        %v2542 = vor.u32 1.1754944e-38, %v2541
        %v2543 = vsel %vm2540, %v2542, %v2538
        %v2544 = vmul.f32 2.0, %v2543
        %v2545 = vadd.f32 %v2436, %v2438
        %v2546 = vmul.f32 %v2544, %v2545
        %v2547 = vsub.f32 1.0, %v2546
        %v2548 = vmul.f32 %v2426, %v2427
        %v2549 = vmul.f32 %v2428, %v2425
        %v2550 = vsub.f32 %v2548, %v2549
        %v2551 = vmul.f32 %v2544, %v2550
        %v2552 = vmul.f32 %v2426, %v2428
        %v2553 = vmul.f32 %v2427, %v2425
        %v2554 = vadd.f32 %v2552, %v2553
        %v2555 = vmul.f32 %v2544, %v2554
        %v2556 = vadd.f32 %v2548, %v2549
        %v2557 = vmul.f32 %v2544, %v2556
        %v2558 = vadd.f32 %v2434, %v2438
        %v2559 = vmul.f32 %v2544, %v2558
        %v2560 = vsub.f32 1.0, %v2559
        %v2561 = vmul.f32 %v2427, %v2428
        %v2562 = vmul.f32 %v2426, %v2425
        %v2563 = vsub.f32 %v2561, %v2562
        %v2564 = vmul.f32 %v2544, %v2563
        %v2565 = vsub.f32 %v2552, %v2553
        %v2566 = vmul.f32 %v2544, %v2565
        %v2567 = vadd.f32 %v2561, %v2562
        %v2568 = vmul.f32 %v2544, %v2567
        %v2569 = vadd.f32 %v2434, %v2436
        %v2570 = vmul.f32 %v2544, %v2569
        %v2571 = vsub.f32 1.0, %v2570
        %v2572 = vmax.f32 %v2478, 1e-12
        %v2573 = vrcp.pop %v2572
        %v2574 = vmul.f32 %v2572, %v2573
        %v2575 = vsub.f32 1.0, %v2574
        %v2576 = vmul.f32 %v2573, %v2575
        %v2577 = vadd.f32 %v2573, %v2576
        %vm2578 = vweird.f32 %v2572
        %vm2579 = vweird.f32 %v2573
        %vm2580 = vmor %vm2578, %vm2579
        %v2581 = vsel %vm2580, %v2573, %v2577
        %v2582 = vand.u32 2147483647, %v2572
        %vm2583 = vcmp.eq.f32.partialorder %v2582, 8.507059e+37
        %v2584 = vand.u32 %v2572, 2147483648
        %v2585 = vor.u32 1.1754944e-38, %v2584
        %v2586 = vsel %vm2583, %v2585, %v2581
        %v2587 = vmul.f32 2.0, %v2586
        %v2588 = vadd.f32 %v2475, %v2477
        %v2589 = vmul.f32 %v2587, %v2588
        %v2590 = vsub.f32 1.0, %v2589
        %v2591 = vmul.f32 %v2430, %v2431
        %v2592 = vmul.f32 %v2432, %v2429
        %v2593 = vsub.f32 %v2591, %v2592
        %v2594 = vmul.f32 %v2587, %v2593
        %v2595 = vmul.f32 %v2430, %v2432
        %v2596 = vmul.f32 %v2431, %v2429
        %v2597 = vadd.f32 %v2595, %v2596
        %v2598 = vmul.f32 %v2587, %v2597
        %v2599 = vadd.f32 %v2591, %v2592
        %v2600 = vmul.f32 %v2587, %v2599
        %v2601 = vadd.f32 %v2473, %v2477
        %v2602 = vmul.f32 %v2587, %v2601
        %v2603 = vsub.f32 1.0, %v2602
        %v2604 = vmul.f32 %v2431, %v2432
        %v2605 = vmul.f32 %v2430, %v2429
        %v2606 = vsub.f32 %v2604, %v2605
        %v2607 = vmul.f32 %v2587, %v2606
        %v2608 = vsub.f32 %v2595, %v2596
        %v2609 = vmul.f32 %v2587, %v2608
        %v2610 = vadd.f32 %v2604, %v2605
        %v2611 = vmul.f32 %v2587, %v2610
        %v2612 = vadd.f32 %v2473, %v2475
        %v2613 = vmul.f32 %v2587, %v2612
        %v2614 = vsub.f32 1.0, %v2613
        %v2615 = vmul.f32 %v395, %v2547
        %v2616 = vmul.f32 %v399, %v2557
        %v2617 = vadd.f32 %v2615, %v2616
        %v2618 = vmul.f32 %v403, %v2566
        %v2619 = vadd.f32 %v2617, %v2618
        %v2620 = vmul.f32 %v395, %v2551
        %v2621 = vmul.f32 %v399, %v2560
        %v2622 = vadd.f32 %v2620, %v2621
        %v2623 = vmul.f32 %v403, %v2568
        %v2624 = vadd.f32 %v2622, %v2623
        %v2625 = vmul.f32 %v395, %v2555
        %v2626 = vmul.f32 %v399, %v2564
        %v2627 = vadd.f32 %v2625, %v2626
        %v2628 = vmul.f32 %v403, %v2571
        %v2629 = vadd.f32 %v2627, %v2628
        %v2630 = vmul.f32 %v405, %v2547
        %v2631 = vmul.f32 %v408, %v2557
        %v2632 = vadd.f32 %v2630, %v2631
        %v2633 = vmul.f32 %v412, %v2566
        %v2634 = vadd.f32 %v2632, %v2633
        %v2635 = vmul.f32 %v405, %v2551
        %v2636 = vmul.f32 %v408, %v2560
        %v2637 = vadd.f32 %v2635, %v2636
        %v2638 = vmul.f32 %v412, %v2568
        %v2639 = vadd.f32 %v2637, %v2638
        %v2640 = vmul.f32 %v405, %v2555
        %v2641 = vmul.f32 %v408, %v2564
        %v2642 = vadd.f32 %v2640, %v2641
        %v2643 = vmul.f32 %v412, %v2571
        %v2644 = vadd.f32 %v2642, %v2643
        %v2645 = vmul.f32 %v414, %v2547
        %v2646 = vmul.f32 %v416, %v2557
        %v2647 = vadd.f32 %v2645, %v2646
        %v2648 = vmul.f32 %v419, %v2566
        %v2649 = vadd.f32 %v2647, %v2648
        %v2650 = vmul.f32 %v414, %v2551
        %v2651 = vmul.f32 %v416, %v2560
        %v2652 = vadd.f32 %v2650, %v2651
        %v2653 = vmul.f32 %v419, %v2568
        %v2654 = vadd.f32 %v2652, %v2653
        %v2655 = vmul.f32 %v414, %v2555
        %v2656 = vmul.f32 %v416, %v2564
        %v2657 = vadd.f32 %v2655, %v2656
        %v2658 = vmul.f32 %v419, %v2571
        %v2659 = vadd.f32 %v2657, %v2658
        %v2660 = vmul.f32 %v438, %v2590
        %v2661 = vmul.f32 %v442, %v2600
        %v2662 = vadd.f32 %v2660, %v2661
        %v2663 = vmul.f32 %v446, %v2609
        %v2664 = vadd.f32 %v2662, %v2663
        %v2665 = vmul.f32 %v438, %v2594
        %v2666 = vmul.f32 %v442, %v2603
        %v2667 = vadd.f32 %v2665, %v2666
        %v2668 = vmul.f32 %v446, %v2611
        %v2669 = vadd.f32 %v2667, %v2668
        %v2670 = vmul.f32 %v438, %v2598
        %v2671 = vmul.f32 %v442, %v2607
        %v2672 = vadd.f32 %v2670, %v2671
        %v2673 = vmul.f32 %v446, %v2614
        %v2674 = vadd.f32 %v2672, %v2673
        %v2675 = vmul.f32 %v448, %v2590
        %v2676 = vmul.f32 %v451, %v2600
        %v2677 = vadd.f32 %v2675, %v2676
        %v2678 = vmul.f32 %v455, %v2609
        %v2679 = vadd.f32 %v2677, %v2678
        %v2680 = vmul.f32 %v448, %v2594
        %v2681 = vmul.f32 %v451, %v2603
        %v2682 = vadd.f32 %v2680, %v2681
        %v2683 = vmul.f32 %v455, %v2611
        %v2684 = vadd.f32 %v2682, %v2683
        %v2685 = vmul.f32 %v448, %v2598
        %v2686 = vmul.f32 %v451, %v2607
        %v2687 = vadd.f32 %v2685, %v2686
        %v2688 = vmul.f32 %v455, %v2614
        %v2689 = vadd.f32 %v2687, %v2688
        %v2690 = vmul.f32 %v457, %v2590
        %v2691 = vmul.f32 %v459, %v2600
        %v2692 = vadd.f32 %v2690, %v2691
        %v2693 = vmul.f32 %v462, %v2609
        %v2694 = vadd.f32 %v2692, %v2693
        %v2695 = vmul.f32 %v457, %v2594
        %v2696 = vmul.f32 %v459, %v2603
        %v2697 = vadd.f32 %v2695, %v2696
        %v2698 = vmul.f32 %v462, %v2611
        %v2699 = vadd.f32 %v2697, %v2698
        %v2700 = vmul.f32 %v457, %v2598
        %v2701 = vmul.f32 %v459, %v2607
        %v2702 = vadd.f32 %v2700, %v2701
        %v2703 = vmul.f32 %v462, %v2614
        %v2704 = vadd.f32 %v2702, %v2703
        %2705 = vset.pattern.permute.xlu0 18
        %2706 = vperm.xlu0 %2705, %v786
        %v2707 = vpop.permute.xlu0 %2706
        %v2709 = vperm.slane %v2707, 0
        %v2710 = vmul.f32 %v395, %v2709
        %2711 = vset.pattern.permute.xlu0 19
        %2712 = vperm.xlu0 %2711, %v786
        %v2713 = vpop.permute.xlu0 %2712
        %v2715 = vperm.slane %v2713, 0
        %v2716 = vmul.f32 %v399, %v2715
        %v2717 = vadd.f32 %v2710, %v2716
        %2718 = vset.pattern.permute.xlu0 20
        %2719 = vperm.xlu0 %2718, %v786
        %v2720 = vpop.permute.xlu0 %2719
        %v2722 = vperm.slane %v2720, 0
        %v2723 = vmul.f32 %v403, %v2722
        %v2724 = vadd.f32 %v2717, %v2723
        %v2725 = vmul.f32 %v405, %v2709
        %v2726 = vmul.f32 %v408, %v2715
        %v2727 = vadd.f32 %v2725, %v2726
        %v2728 = vmul.f32 %v412, %v2722
        %v2729 = vadd.f32 %v2727, %v2728
        %v2730 = vmul.f32 %v414, %v2709
        %v2731 = vmul.f32 %v416, %v2715
        %v2732 = vadd.f32 %v2730, %v2731
        %v2733 = vmul.f32 %v419, %v2722
        %v2734 = vadd.f32 %v2732, %v2733
        %v2735 = vadd.f32 %v2724, %v463
        %v2736 = vadd.f32 %v2729, %v464
        %v2737 = vadd.f32 %v2734, %v465
        %2738 = vset.pattern.permute.xlu0 18
        %2739 = vperm.xlu0 %2738, %v787
        %v2740 = vpop.permute.xlu0 %2739
        %v2742 = vperm.slane %v2740, 0
        %v2743 = vmul.f32 %v438, %v2742
        %2744 = vset.pattern.permute.xlu0 19
        %2745 = vperm.xlu0 %2744, %v787
        %v2746 = vpop.permute.xlu0 %2745
        %v2748 = vperm.slane %v2746, 0
        %v2749 = vmul.f32 %v442, %v2748
        %v2750 = vadd.f32 %v2743, %v2749
        %2751 = vset.pattern.permute.xlu0 20
        %2752 = vperm.xlu0 %2751, %v787
        %v2753 = vpop.permute.xlu0 %2752
        %v2755 = vperm.slane %v2753, 0
        %v2756 = vmul.f32 %v446, %v2755
        %v2757 = vadd.f32 %v2750, %v2756
        %v2758 = vmul.f32 %v448, %v2742
        %v2759 = vmul.f32 %v451, %v2748
        %v2760 = vadd.f32 %v2758, %v2759
        %v2761 = vmul.f32 %v455, %v2755
        %v2762 = vadd.f32 %v2760, %v2761
        %v2763 = vmul.f32 %v457, %v2742
        %v2764 = vmul.f32 %v459, %v2748
        %v2765 = vadd.f32 %v2763, %v2764
        %v2766 = vmul.f32 %v462, %v2755
        %v2767 = vadd.f32 %v2765, %v2766
        %v2768 = vadd.f32 %v2757, %v466
        %v2769 = vadd.f32 %v2762, %v467
        %v2770 = vadd.f32 %v2767, %v468
        %v2771 = vsub.f32 %v2619, %v2664
        %v2772 = vand.u32 2147483647, %v2771
        %v2773 = vsub.f32 %v2624, %v2669
        %v2774 = vand.u32 2147483647, %v2773
        %v2775 = vadd.f32 %v2772, %v2774
        %v2776 = vsub.f32 %v2629, %v2674
        %v2777 = vand.u32 2147483647, %v2776
        %v2778 = vadd.f32 %v2775, %v2777
        %v2779 = vsub.f32 %v2634, %v2679
        %v2780 = vand.u32 2147483647, %v2779
        %v2781 = vadd.f32 %v2778, %v2780
        %v2782 = vsub.f32 %v2639, %v2684
        %v2783 = vand.u32 2147483647, %v2782
        %v2784 = vadd.f32 %v2781, %v2783
        %v2785 = vsub.f32 %v2644, %v2689
        %v2786 = vand.u32 2147483647, %v2785
        %v2787 = vadd.f32 %v2784, %v2786
        %v2788 = vsub.f32 %v2649, %v2694
        %v2789 = vand.u32 2147483647, %v2788
        %v2790 = vadd.f32 %v2787, %v2789
        %v2791 = vsub.f32 %v2654, %v2699
        %v2792 = vand.u32 2147483647, %v2791
        %v2793 = vadd.f32 %v2790, %v2792
        %v2794 = vsub.f32 %v2659, %v2704
        %v2795 = vand.u32 2147483647, %v2794
        %v2796 = vadd.f32 %v2793, %v2795
        %v2797 = vadd.f32 %v2414, %v2796
        %v2798 = vsub.f32 %v2735, %v2768
        %v2799 = vand.u32 2147483647, %v2798
        %v2800 = vsub.f32 %v2736, %v2769
        %v2801 = vand.u32 2147483647, %v2800
        %v2802 = vadd.f32 %v2799, %v2801
        %v2803 = vsub.f32 %v2737, %v2770
        %v2804 = vand.u32 2147483647, %v2803
        %v2805 = vadd.f32 %v2802, %v2804
        %v2806 = vmul.f32 %v2526, %v2805
        %v2807 = vadd.f32 %v2424, %v2806
        %v2808 = vld [vmem:[%s259 + $0x1c] sm:$0x1]
        %v2809 = vld [vmem:[%s259 + $0x1d] sm:$0x1]
        %v2810 = vld [vmem:[%s259 + $0x1e] sm:$0x1]
        %v2811 = vld [vmem:[%s259 + $0x1f] sm:$0x1]
        %v2812 = vld [vmem:[%s264 + $0x1c] sm:$0x1]
        %v2813 = vld [vmem:[%s264 + $0x1d] sm:$0x1]
        %v2814 = vld [vmem:[%s264 + $0x1e] sm:$0x1]
        %v2815 = vld [vmem:[%s264 + $0x1f] sm:$0x1]
        %v2816 = vmul.f32 %v2808, %v2808
        %v2817 = vmul.f32 %v2809, %v2809
        %v2818 = vadd.f32 %v2816, %v2817
        %v2819 = vmul.f32 %v2810, %v2810
        %v2820 = vadd.f32 %v2818, %v2819
        %v2821 = vmul.f32 %v2811, %v2811
        %v2822 = vadd.f32 %v2820, %v2821
        %v2823 = vrsqrt.pop %v2822
        %v2824 = vmul.f32 %v2823, %v2822
        %v2825 = vmul.f32 %v2824, %v2823
        %v2826 = vmul.f32 0.5, %v2825
        %v2827 = vsub.f32 1.5, %v2826
        %v2828 = vmul.f32 %v2823, %v2827
        %v2829 = vmul.f32 %v2822, %v2828
        %vm2830 = vcmp.eq.f32.partialorder %v2822, inf
        %v2831 = vsel %vm2830, %v2822, %v2829
        %vm2832 = vcmp.eq.f32.partialorder %v2822, 0.0
        %v2833 = vand.u32 %v2822, 2147483648
        %v2834 = vsel %vm2832, %v2833, %v2831
        %v2835 = vmax.f32 %v2834, 1e-12
        %v2836 = vrcp.pop %v2835
        %v2837 = vmul.f32 %v2835, %v2836
        %v2838 = vsub.f32 1.0, %v2837
        %v2839 = vmul.f32 %v2836, %v2838
        %v2840 = vadd.f32 %v2836, %v2839
        %vm2841 = vweird.f32 %v2835
        %vm2842 = vweird.f32 %v2836
        %vm2843 = vmor %vm2841, %vm2842
        %v2844 = vsel %vm2843, %v2836, %v2840
        %v2845 = vand.u32 2147483647, %v2835
        %vm2846 = vcmp.eq.f32.partialorder %v2845, 8.507059e+37
        %v2847 = vand.u32 %v2835, 2147483648
        %v2848 = vor.u32 1.1754944e-38, %v2847
        %v2849 = vsel %vm2846, %v2848, %v2844
        %v2850 = vmul.f32 1.0, %v2849
        %v2851 = vmul.f32 %v2808, %v2850
        %v2852 = vmul.f32 %v2809, %v2850
        %v2853 = vmul.f32 %v2810, %v2850
        %v2854 = vmul.f32 %v2811, %v2850
        %v2855 = vmul.f32 %v2812, %v2812
        %v2856 = vmul.f32 %v2813, %v2813
        %v2857 = vadd.f32 %v2855, %v2856
        %v2858 = vmul.f32 %v2814, %v2814
        %v2859 = vadd.f32 %v2857, %v2858
        %v2860 = vmul.f32 %v2815, %v2815
        %v2861 = vadd.f32 %v2859, %v2860
        %v2862 = vrsqrt.pop %v2861
        %v2863 = vmul.f32 %v2862, %v2861
        %v2864 = vmul.f32 %v2863, %v2862
        %v2865 = vmul.f32 0.5, %v2864
        %v2866 = vsub.f32 1.5, %v2865
        %v2867 = vmul.f32 %v2862, %v2866
        %v2868 = vmul.f32 %v2861, %v2867
        %vm2869 = vcmp.eq.f32.partialorder %v2861, inf
        %v2870 = vsel %vm2869, %v2861, %v2868
        %vm2871 = vcmp.eq.f32.partialorder %v2861, 0.0
        %v2872 = vand.u32 %v2861, 2147483648
        %v2873 = vsel %vm2871, %v2872, %v2870
        %v2874 = vmax.f32 %v2873, 1e-12
        %v2875 = vrcp.pop %v2874
        %v2876 = vmul.f32 %v2874, %v2875
        %v2877 = vsub.f32 1.0, %v2876
        %v2878 = vmul.f32 %v2875, %v2877
        %v2879 = vadd.f32 %v2875, %v2878
        %vm2880 = vweird.f32 %v2874
        %vm2881 = vweird.f32 %v2875
        %vm2882 = vmor %vm2880, %vm2881
        %v2883 = vsel %vm2882, %v2875, %v2879
        %v2884 = vand.u32 2147483647, %v2874
        %vm2885 = vcmp.eq.f32.partialorder %v2884, 8.507059e+37
        %v2886 = vand.u32 %v2874, 2147483648
        %v2887 = vor.u32 1.1754944e-38, %v2886
        %v2888 = vsel %vm2885, %v2887, %v2883
        %v2889 = vmul.f32 1.0, %v2888
        %v2890 = vmul.f32 %v2812, %v2889
        %v2891 = vmul.f32 %v2813, %v2889
        %v2892 = vmul.f32 %v2814, %v2889
        %v2893 = vmul.f32 %v2815, %v2889
        %v2894 = vsub.f32 %v2851, %v2890
        %v2895 = vand.u32 2147483647, %v2894
        %v2896 = vsub.f32 %v2852, %v2891
        %v2897 = vand.u32 2147483647, %v2896
        %v2898 = vadd.f32 %v2895, %v2897
        %v2899 = vsub.f32 %v2853, %v2892
        %v2900 = vand.u32 2147483647, %v2899
        %v2901 = vadd.f32 %v2898, %v2900
        %v2902 = vsub.f32 %v2854, %v2893
        %v2903 = vand.u32 2147483647, %v2902
        %v2904 = vadd.f32 %v2901, %v2903
        %2905 = vset.pattern.permute.xlu0 7
        %2906 = vperm.xlu0 %2905, %v271
        %v2907 = vpop.permute.xlu0 %2906
        %v2909 = vperm.slane %v2907, 0
        %v2910 = vmul.f32 %v2909, %v2904
        %v2911 = vadd.f32 %v2528, %v2910
        %v2912 = vmax.f32 %v2822, 1e-12
        %v2913 = vrcp.pop %v2912
        %v2914 = vmul.f32 %v2912, %v2913
        %v2915 = vsub.f32 1.0, %v2914
        %v2916 = vmul.f32 %v2913, %v2915
        %v2917 = vadd.f32 %v2913, %v2916
        %vm2918 = vweird.f32 %v2912
        %vm2919 = vweird.f32 %v2913
        %vm2920 = vmor %vm2918, %vm2919
        %v2921 = vsel %vm2920, %v2913, %v2917
        %v2922 = vand.u32 2147483647, %v2912
        %vm2923 = vcmp.eq.f32.partialorder %v2922, 8.507059e+37
        %v2924 = vand.u32 %v2912, 2147483648
        %v2925 = vor.u32 1.1754944e-38, %v2924
        %v2926 = vsel %vm2923, %v2925, %v2921
        %v2927 = vmul.f32 2.0, %v2926
        %v2928 = vadd.f32 %v2819, %v2821
        %v2929 = vmul.f32 %v2927, %v2928
        %v2930 = vsub.f32 1.0, %v2929
        %v2931 = vmul.f32 %v2809, %v2810
        %v2932 = vmul.f32 %v2811, %v2808
        %v2933 = vsub.f32 %v2931, %v2932
        %v2934 = vmul.f32 %v2927, %v2933
        %v2935 = vmul.f32 %v2809, %v2811
        %v2936 = vmul.f32 %v2810, %v2808
        %v2937 = vadd.f32 %v2935, %v2936
        %v2938 = vmul.f32 %v2927, %v2937
        %v2939 = vadd.f32 %v2931, %v2932
        %v2940 = vmul.f32 %v2927, %v2939
        %v2941 = vadd.f32 %v2817, %v2821
        %v2942 = vmul.f32 %v2927, %v2941
        %v2943 = vsub.f32 1.0, %v2942
        %v2944 = vmul.f32 %v2810, %v2811
        %v2945 = vmul.f32 %v2809, %v2808
        %v2946 = vsub.f32 %v2944, %v2945
        %v2947 = vmul.f32 %v2927, %v2946
        %v2948 = vsub.f32 %v2935, %v2936
        %v2949 = vmul.f32 %v2927, %v2948
        %v2950 = vadd.f32 %v2944, %v2945
        %v2951 = vmul.f32 %v2927, %v2950
        %v2952 = vadd.f32 %v2817, %v2819
        %v2953 = vmul.f32 %v2927, %v2952
        %v2954 = vsub.f32 1.0, %v2953
        %v2955 = vmax.f32 %v2861, 1e-12
        %v2956 = vrcp.pop %v2955
        %v2957 = vmul.f32 %v2955, %v2956
        %v2958 = vsub.f32 1.0, %v2957
        %v2959 = vmul.f32 %v2956, %v2958
        %v2960 = vadd.f32 %v2956, %v2959
        %vm2961 = vweird.f32 %v2955
        %vm2962 = vweird.f32 %v2956
        %vm2963 = vmor %vm2961, %vm2962
        %v2964 = vsel %vm2963, %v2956, %v2960
        %v2965 = vand.u32 2147483647, %v2955
        %vm2966 = vcmp.eq.f32.partialorder %v2965, 8.507059e+37
        %v2967 = vand.u32 %v2955, 2147483648
        %v2968 = vor.u32 1.1754944e-38, %v2967
        %v2969 = vsel %vm2966, %v2968, %v2964
        %v2970 = vmul.f32 2.0, %v2969
        %v2971 = vadd.f32 %v2858, %v2860
        %v2972 = vmul.f32 %v2970, %v2971
        %v2973 = vsub.f32 1.0, %v2972
        %v2974 = vmul.f32 %v2813, %v2814
        %v2975 = vmul.f32 %v2815, %v2812
        %v2976 = vsub.f32 %v2974, %v2975
        %v2977 = vmul.f32 %v2970, %v2976
        %v2978 = vmul.f32 %v2813, %v2815
        %v2979 = vmul.f32 %v2814, %v2812
        %v2980 = vadd.f32 %v2978, %v2979
        %v2981 = vmul.f32 %v2970, %v2980
        %v2982 = vadd.f32 %v2974, %v2975
        %v2983 = vmul.f32 %v2970, %v2982
        %v2984 = vadd.f32 %v2856, %v2860
        %v2985 = vmul.f32 %v2970, %v2984
        %v2986 = vsub.f32 1.0, %v2985
        %v2987 = vmul.f32 %v2814, %v2815
        %v2988 = vmul.f32 %v2813, %v2812
        %v2989 = vsub.f32 %v2987, %v2988
        %v2990 = vmul.f32 %v2970, %v2989
        %v2991 = vsub.f32 %v2978, %v2979
        %v2992 = vmul.f32 %v2970, %v2991
        %v2993 = vadd.f32 %v2987, %v2988
        %v2994 = vmul.f32 %v2970, %v2993
        %v2995 = vadd.f32 %v2856, %v2858
        %v2996 = vmul.f32 %v2970, %v2995
        %v2997 = vsub.f32 1.0, %v2996
        %v2998 = vmul.f32 %v2619, %v2930
        %v2999 = vmul.f32 %v2624, %v2940
        %v3000 = vadd.f32 %v2998, %v2999
        %v3001 = vmul.f32 %v2629, %v2949
        %v3002 = vadd.f32 %v3000, %v3001
        %v3003 = vmul.f32 %v2619, %v2934
        %v3004 = vmul.f32 %v2624, %v2943
        %v3005 = vadd.f32 %v3003, %v3004
        %v3006 = vmul.f32 %v2629, %v2951
        %v3007 = vadd.f32 %v3005, %v3006
        %v3008 = vmul.f32 %v2619, %v2938
        %v3009 = vmul.f32 %v2624, %v2947
        %v3010 = vadd.f32 %v3008, %v3009
        %v3011 = vmul.f32 %v2629, %v2954
        %v3012 = vadd.f32 %v3010, %v3011
        %v3013 = vmul.f32 %v2634, %v2930
        %v3014 = vmul.f32 %v2639, %v2940
        %v3015 = vadd.f32 %v3013, %v3014
        %v3016 = vmul.f32 %v2644, %v2949
        %v3017 = vadd.f32 %v3015, %v3016
        %v3018 = vmul.f32 %v2634, %v2934
        %v3019 = vmul.f32 %v2639, %v2943
        %v3020 = vadd.f32 %v3018, %v3019
        %v3021 = vmul.f32 %v2644, %v2951
        %v3022 = vadd.f32 %v3020, %v3021
        %v3023 = vmul.f32 %v2634, %v2938
        %v3024 = vmul.f32 %v2639, %v2947
        %v3025 = vadd.f32 %v3023, %v3024
        %v3026 = vmul.f32 %v2644, %v2954
        %v3027 = vadd.f32 %v3025, %v3026
        %v3028 = vmul.f32 %v2649, %v2930
        %v3029 = vmul.f32 %v2654, %v2940
        %v3030 = vadd.f32 %v3028, %v3029
        %v3031 = vmul.f32 %v2659, %v2949
        %v3032 = vadd.f32 %v3030, %v3031
        %v3033 = vmul.f32 %v2649, %v2934
        %v3034 = vmul.f32 %v2654, %v2943
        %v3035 = vadd.f32 %v3033, %v3034
        %v3036 = vmul.f32 %v2659, %v2951
        %v3037 = vadd.f32 %v3035, %v3036
        %v3038 = vmul.f32 %v2649, %v2938
        %v3039 = vmul.f32 %v2654, %v2947
        %v3040 = vadd.f32 %v3038, %v3039
        %v3041 = vmul.f32 %v2659, %v2954
        %v3042 = vadd.f32 %v3040, %v3041
        %v3043 = vmul.f32 %v2664, %v2973
        %v3044 = vmul.f32 %v2669, %v2983
        %v3045 = vadd.f32 %v3043, %v3044
        %v3046 = vmul.f32 %v2674, %v2992
        %v3047 = vadd.f32 %v3045, %v3046
        %v3048 = vmul.f32 %v2664, %v2977
        %v3049 = vmul.f32 %v2669, %v2986
        %v3050 = vadd.f32 %v3048, %v3049
        %v3051 = vmul.f32 %v2674, %v2994
        %v3052 = vadd.f32 %v3050, %v3051
        %v3053 = vmul.f32 %v2664, %v2981
        %v3054 = vmul.f32 %v2669, %v2990
        %v3055 = vadd.f32 %v3053, %v3054
        %v3056 = vmul.f32 %v2674, %v2997
        %v3057 = vadd.f32 %v3055, %v3056
        %v3058 = vmul.f32 %v2679, %v2973
        %v3059 = vmul.f32 %v2684, %v2983
        %v3060 = vadd.f32 %v3058, %v3059
        %v3061 = vmul.f32 %v2689, %v2992
        %v3062 = vadd.f32 %v3060, %v3061
        %v3063 = vmul.f32 %v2679, %v2977
        %v3064 = vmul.f32 %v2684, %v2986
        %v3065 = vadd.f32 %v3063, %v3064
        %v3066 = vmul.f32 %v2689, %v2994
        %v3067 = vadd.f32 %v3065, %v3066
        %v3068 = vmul.f32 %v2679, %v2981
        %v3069 = vmul.f32 %v2684, %v2990
        %v3070 = vadd.f32 %v3068, %v3069
        %v3071 = vmul.f32 %v2689, %v2997
        %v3072 = vadd.f32 %v3070, %v3071
        %v3073 = vmul.f32 %v2694, %v2973
        %v3074 = vmul.f32 %v2699, %v2983
        %v3075 = vadd.f32 %v3073, %v3074
        %v3076 = vmul.f32 %v2704, %v2992
        %v3077 = vadd.f32 %v3075, %v3076
        %v3078 = vmul.f32 %v2694, %v2977
        %v3079 = vmul.f32 %v2699, %v2986
        %v3080 = vadd.f32 %v3078, %v3079
        %v3081 = vmul.f32 %v2704, %v2994
        %v3082 = vadd.f32 %v3080, %v3081
        %v3083 = vmul.f32 %v2694, %v2981
        %v3084 = vmul.f32 %v2699, %v2990
        %v3085 = vadd.f32 %v3083, %v3084
        %v3086 = vmul.f32 %v2704, %v2997
        %v3087 = vadd.f32 %v3085, %v3086
        %3088 = vset.pattern.permute.xlu0 21
        %3089 = vperm.xlu0 %3088, %v786
        %v3090 = vpop.permute.xlu0 %3089
        %v3092 = vperm.slane %v3090, 0
        %v3093 = vmul.f32 %v2619, %v3092
        %3094 = vset.pattern.permute.xlu0 22
        %3095 = vperm.xlu0 %3094, %v786
        %v3096 = vpop.permute.xlu0 %3095
        %v3098 = vperm.slane %v3096, 0
        %v3099 = vmul.f32 %v2624, %v3098
        %v3100 = vadd.f32 %v3093, %v3099
        %3101 = vset.pattern.permute.xlu0 23
        %3102 = vperm.xlu0 %3101, %v786
        %v3103 = vpop.permute.xlu0 %3102
        %v3105 = vperm.slane %v3103, 0
        %v3106 = vmul.f32 %v2629, %v3105
        %v3107 = vadd.f32 %v3100, %v3106
        %v3108 = vmul.f32 %v2634, %v3092
        %v3109 = vmul.f32 %v2639, %v3098
        %v3110 = vadd.f32 %v3108, %v3109
        %v3111 = vmul.f32 %v2644, %v3105
        %v3112 = vadd.f32 %v3110, %v3111
        %v3113 = vmul.f32 %v2649, %v3092
        %v3114 = vmul.f32 %v2654, %v3098
        %v3115 = vadd.f32 %v3113, %v3114
        %v3116 = vmul.f32 %v2659, %v3105
        %v3117 = vadd.f32 %v3115, %v3116
        %v3118 = vadd.f32 %v3107, %v2735
        %v3119 = vadd.f32 %v3112, %v2736
        %v3120 = vadd.f32 %v3117, %v2737
        %3121 = vset.pattern.permute.xlu0 21
        %3122 = vperm.xlu0 %3121, %v787
        %v3123 = vpop.permute.xlu0 %3122
        %v3125 = vperm.slane %v3123, 0
        %v3126 = vmul.f32 %v2664, %v3125
        %3127 = vset.pattern.permute.xlu0 22
        %3128 = vperm.xlu0 %3127, %v787
        %v3129 = vpop.permute.xlu0 %3128
        %v3131 = vperm.slane %v3129, 0
        %v3132 = vmul.f32 %v2669, %v3131
        %v3133 = vadd.f32 %v3126, %v3132
        %3134 = vset.pattern.permute.xlu0 23
        %3135 = vperm.xlu0 %3134, %v787
        %v3136 = vpop.permute.xlu0 %3135
        %v3138 = vperm.slane %v3136, 0
        %v3139 = vmul.f32 %v2674, %v3138
        %v3140 = vadd.f32 %v3133, %v3139
        %v3141 = vmul.f32 %v2679, %v3125
        %v3142 = vmul.f32 %v2684, %v3131
        %v3143 = vadd.f32 %v3141, %v3142
        %v3144 = vmul.f32 %v2689, %v3138
        %v3145 = vadd.f32 %v3143, %v3144
        %v3146 = vmul.f32 %v2694, %v3125
        %v3147 = vmul.f32 %v2699, %v3131
        %v3148 = vadd.f32 %v3146, %v3147
        %v3149 = vmul.f32 %v2704, %v3138
        %v3150 = vadd.f32 %v3148, %v3149
        %v3151 = vadd.f32 %v3140, %v2768
        %v3152 = vadd.f32 %v3145, %v2769
        %v3153 = vadd.f32 %v3150, %v2770
        %v3154 = vsub.f32 %v3002, %v3047
        %v3155 = vand.u32 2147483647, %v3154
        %v3156 = vsub.f32 %v3007, %v3052
        %v3157 = vand.u32 2147483647, %v3156
        %v3158 = vadd.f32 %v3155, %v3157
        %v3159 = vsub.f32 %v3012, %v3057
        %v3160 = vand.u32 2147483647, %v3159
        %v3161 = vadd.f32 %v3158, %v3160
        %v3162 = vsub.f32 %v3017, %v3062
        %v3163 = vand.u32 2147483647, %v3162
        %v3164 = vadd.f32 %v3161, %v3163
        %v3165 = vsub.f32 %v3022, %v3067
        %v3166 = vand.u32 2147483647, %v3165
        %v3167 = vadd.f32 %v3164, %v3166
        %v3168 = vsub.f32 %v3027, %v3072
        %v3169 = vand.u32 2147483647, %v3168
        %v3170 = vadd.f32 %v3167, %v3169
        %v3171 = vsub.f32 %v3032, %v3077
        %v3172 = vand.u32 2147483647, %v3171
        %v3173 = vadd.f32 %v3170, %v3172
        %v3174 = vsub.f32 %v3037, %v3082
        %v3175 = vand.u32 2147483647, %v3174
        %v3176 = vadd.f32 %v3173, %v3175
        %v3177 = vsub.f32 %v3042, %v3087
        %v3178 = vand.u32 2147483647, %v3177
        %v3179 = vadd.f32 %v3176, %v3178
        %v3180 = vadd.f32 %v2797, %v3179
        %v3181 = vsub.f32 %v3118, %v3151
        %v3182 = vand.u32 2147483647, %v3181
        %v3183 = vsub.f32 %v3119, %v3152
        %v3184 = vand.u32 2147483647, %v3183
        %v3185 = vadd.f32 %v3182, %v3184
        %v3186 = vsub.f32 %v3120, %v3153
        %v3187 = vand.u32 2147483647, %v3186
        %v3188 = vadd.f32 %v3185, %v3187
        %v3189 = vmul.f32 %v2909, %v3188
        %v3190 = vadd.f32 %v2807, %v3189
        %vm3191 = vcmask 57344
        %3192 = vst.msk [vmem:[%s254] sm:$0x1] %vm3191, %v503
        %3193 = vst.msk [vmem:[%s254 + $0x1] sm:$0x1] %vm3191, %v2911
        %3194 = vst.msk [vmem:[%s254 + $0x2] sm:$0x1] %vm3191, %v3190
        %3195 = vst.msk [vmem:[%s254 + $0x3] sm:$0x1] %vm3191, %v3180
        %s3196 = sand.u32 %s152, 1
        %s3197 = scalar_lea.sflag [#allocation3], %s3196
        %s3198 = sand.u32 %s152, 1
        %s3199 = smul.addr %s3198, 4
        %s3200 = scalar_lea.vmem [#allocation2], %s3199
        // Predicated region
        $region41: #{tpu_custom_call.1} parent=39 // pred_check
          %p3201 = pneg %p162
        $region42: #{tpu_custom_call.1} parent=39 // pred_check_branch
          %3203 = sbr.rel (%p3201) target = $region44
        $region43: #{tpu_custom_call.1} parent=39 // pred_region
          %3205 = vsyncadd %s3197, 0
          %s3206 = smul.addr %s19, 4
          %s3207 = scalar_lea.hbm %s5, %s3206
          %s3209 = sshll.u32 %s3200, 4
          %s3210 = int_to_ptr.vmem [resolvable:$true] %s3209
          %s3211 = sshll.u32 %s3207, 4
          %s3212 = int_to_ptr.hbm [resolvable:$true] %s3211
          %3214 = dma.vmem_to_hbm [thread:$0]  %s3210, 64, %s3212, %s3197
        $region44: #{tpu_custom_call.1} parent=39 // pred_fallthru
          _
      $region40: #{tpu_custom_call.1} parent=5 // pred_fallthru
        _
      %p3215 = scmp.le.s32.totalorder 2, %s14
      // Predicated region
      $region45: #{tpu_custom_call.1} parent=5 // pred_check
        %p3216 = pneg %p3215
      $region46: #{tpu_custom_call.1} parent=5 // pred_check_branch
        %3218 = sbr.rel (%p3216) target = $region48
      $region47: #{tpu_custom_call.1} parent=5 // pred_region
        %s3219 = ssub.s32 %s14, 2
        // Predicated region
        $region49: #{tpu_custom_call.1} parent=47 // pred_check
          %p3220 = pneg %p168
        $region50: #{tpu_custom_call.1} parent=47 // pred_check_branch
          %3222 = sbr.rel (%p3220) target = $region52
        $region51: #{tpu_custom_call.1} parent=47 // pred_region
          %s3223 = sand.u32 %s153, 1
          %s3224 = scalar_lea.sflag [#allocation3], %s3223
          %s3225 = sand.u32 %s153, 1
          %s3226 = smul.addr %s3225, 4
          %s3227 = scalar_lea.vmem [#allocation2], %s3226
          %3229 = dma.done %s3224, 64
        $region52: #{tpu_custom_call.1} parent=47 // pred_fallthru
          _
      $region48: #{tpu_custom_call.1} parent=5 // pred_fallthru
        _
    $region6: #{tpu_custom_call.1} parent=1 // loop_footer
      %s18 = sadd.s32 1, %s14
    $region7: #{tpu_custom_call.1} parent=1 // loop_footer_branch
      %13 = sbr.rel target = $region3
    $region8: #{tpu_custom_call.1} parent=1 // loop_exit
      _
    %3230 = vsyncpa [#allocation3], 1
    %s3231 = scalar_lea.sflag [#allocation3], 1
    %3232 = vsyncpa %s3231, 1

</llo_original>
